<compile_context>
chip_gen: v7x
topology: tpu7x:2x2x1
jax: 0.10.0
libtpu: 0.0.40
codegen_flags: <defaults>
</compile_context>

<pallas_src>
import numpy as np
import jax
import jax.numpy as jnp
from jax.experimental import pallas as pl
from jax.experimental.pallas import tpu as pltpu

HIDDEN = 256
COLOR_HID = HIDDEN // 2            # 128
POS_L, DIR_L = 10, 4
POS_DIM = 3 + 3 * 2 * POS_L        # 63
DIR_DIM = 3 + 3 * 2 * DIR_L        # 27
ENC_PAD = 128                      # packed [pos_enc | dir_enc | zeros] lanes
OUT_PAD = 128                      # merged output lanes: rgb 0..2, sigma 3
TILE_N = 256                       # sample tile (sweep 256/512 on v6e for big N)


# ----------------------------------------------------------------------------
# Positional encoding (glue, plain JAX) — matches OptimizedPositionalEncoding
# ----------------------------------------------------------------------------
def positional_encoding(x, L):
    freq = (2.0 ** jnp.arange(L, dtype=jnp.float32)) * jnp.pi
    xf = x[..., :, None] * freq                       # [..., 3, L]
    xf = xf.reshape(*x.shape[:-1], 3 * L)             # coord-major, then freq
    return jnp.concatenate([x, jnp.sin(xf), jnp.cos(xf)], axis=-1)


# ----------------------------------------------------------------------------
# Pallas kernel: full NeRF MLP for one tile of TILE_N samples
# ----------------------------------------------------------------------------
def nerf_kernel(enc_ref,
                w1, b1, w2, b2, w3, b3, w4, b4,
                w5a, w5b, b5, w6, b6, w7, b7, w8, b8,
                wd, bd, wf, bf,
                wc1a, wc1b, bc1, wc2, bc2,
                out_ref):
    f32, bf16 = jnp.float32, jnp.bfloat16
    enc = enc_ref[...]                                 # (TILE_N, ENC_PAD) bf16

    def mm(x, w):                                      # bf16 MXU, f32 accumulate
        return jnp.dot(x.astype(bf16), w[...], preferred_element_type=f32)

    def lin(x, w, b):
        return mm(x, w) + b[...]

    # pos_layers (4x Linear + ReLU); first layer consumes the packed encoding
    # (pos_enc rows of w1 are live, dir_enc / padding rows are zero).
    h = jax.nn.relu(lin(enc, w1, b1))
    h = jax.nn.relu(lin(h, w2, b2))
    h = jax.nn.relu(lin(h, w3, b3))
    h = jax.nn.relu(lin(h, w4, b4))

    # skip_layers: cat([h, pos_enc]) @ W5  ==  h @ W5a + enc @ W5b (row-padded)
    x = jax.nn.relu(mm(h, w5a) + mm(enc, w5b) + b5[...])
    x = jax.nn.relu(lin(x, w6, b6))
    x = jax.nn.relu(lin(x, w7, b7))
    x = jax.nn.relu(lin(x, w8, b8))

    # density head (eval mode -> no randn noise); wd occupies lane 3 of a
    # 128-wide projection (zeros elsewhere), so relu gives 0 in other lanes.
    # TODO(synk): training-mode sigma noise (torch.randn_like) not implemented.
    sigma = jax.nn.relu(lin(x, wd, bd))                # (TILE_N, OUT_PAD)

    # feature head + color head: cat([feat, dir_enc]) @ Wc1 == split matmuls
    # (dir_enc rows of wc1b are live, pos_enc / padding rows are zero).
    feat = lin(x, wf, bf)
    c = jax.nn.relu(mm(feat, wc1a) + mm(enc, wc1b) + bc1[...])
    rgb = jax.nn.sigmoid(lin(c, wc2, bc2))             # lanes 0..2 valid

    # merged output: lanes 0..2 <- rgb, lane 3 <- sigma, lanes 4.. <- 0
    lane = jax.lax.broadcasted_iota(jnp.int32, (rgb.shape[0], OUT_PAD), 1)
    out_ref[...] = jnp.where(lane < 3, rgb, sigma)


# ----------------------------------------------------------------------------
# Wrapper helpers: place weights into padded row/column ranges
# ----------------------------------------------------------------------------
def _rows_at(w, start, total_rows):
    out = jnp.zeros((total_rows, w.shape[1]), jnp.float32)
    return out.at[start:start + w.shape[0]].set(w)


def _cols_at(w, start, total_cols):
    out = jnp.zeros((w.shape[0], total_cols), jnp.float32)
    return out.at[:, start:start + w.shape[1]].set(w)


def _bias_at(b, start, total):
    out = jnp.zeros((total,), jnp.float32)
    return out.at[start:start + b.shape[0]].set(b).reshape(1, total)


# ----------------------------------------------------------------------------
# Wrapper
# ----------------------------------------------------------------------------
def nerf_pallas(pos, view, P):
    N = pos.shape[0]
    assert N % TILE_N == 0

    # One packed encoding input: [pos_enc(63) | dir_enc(27) | zeros] as bf16.
    pe = positional_encoding(pos, POS_L)                       # (N, 63)
    de = positional_encoding(view, DIR_L)                      # (N, 27)
    enc = jnp.concatenate(
        [pe, de, jnp.zeros((N, ENC_PAD - POS_DIM - DIR_DIM), jnp.float32)],
        axis=-1).astype(jnp.bfloat16)                          # (N, 128) bf16

    bf16 = jnp.bfloat16
    bias = lambda b: b.reshape(1, -1).astype(jnp.float32)      # biases stay f32
    weights = [
        _rows_at(P["pw0"], 0, ENC_PAD).astype(bf16), bias(P["pb0"]),
        P["pw1"].astype(bf16), bias(P["pb1"]),
        P["pw2"].astype(bf16), bias(P["pb2"]),
        P["pw3"].astype(bf16), bias(P["pb3"]),
        P["sw0"][:HIDDEN].astype(bf16),
        _rows_at(P["sw0"][HIDDEN:], 0, ENC_PAD).astype(bf16),
        bias(P["sb0"]),
        P["sw1"].astype(bf16), bias(P["sb1"]),
        P["sw2"].astype(bf16), bias(P["sb2"]),
        P["sw3"].astype(bf16), bias(P["sb3"]),
        _cols_at(P["dw"], 3, OUT_PAD).astype(bf16), _bias_at(P["db"], 3, OUT_PAD),
        P["fw"].astype(bf16), bias(P["fb"]),
        P["cw0"][:HIDDEN].astype(bf16),
        _rows_at(P["cw0"][HIDDEN:], POS_DIM, ENC_PAD).astype(bf16),
        bias(P["cb0"]),
        _cols_at(P["cw1"], 0, OUT_PAD).astype(bf16), _bias_at(P["cb1"], 0, OUT_PAD),
    ]

    enc_spec = pl.BlockSpec((TILE_N, ENC_PAD), lambda i: (i, 0))
    # Constant index_map -> each weight is DMA'd into VMEM once and reused.
    weight_specs = [pl.BlockSpec(w.shape, lambda i: (0, 0)) for w in weights]

    out = pl.pallas_call(
        nerf_kernel,
        out_shape=jax.ShapeDtypeStruct((N, OUT_PAD), jnp.float32),
        grid_spec=pltpu.PrefetchScalarGridSpec(
            num_scalar_prefetch=0,
            grid=(N // TILE_N,),
            in_specs=[enc_spec] + weight_specs,
            out_specs=pl.BlockSpec((TILE_N, OUT_PAD), lambda i: (i, 0)),
        ),
        compiler_params=pltpu.CompilerParams(
            dimension_semantics=("parallel",)),
    )(enc, *weights)

    return out[:, :3], out[:, 3:4]


# ----------------------------------------------------------------------------
# Deterministic parameter init (shapes from the PyTorch module __init__)
# ----------------------------------------------------------------------------
def init_params(key):
    P = {}
    keys = iter(jax.random.split(key, 24))

    def lin(in_d, out_d, w_std=None, b_const=None):
        kw, kb = next(keys), next(keys)
        std = (1.0 / np.sqrt(in_d)) if w_std is None else w_std
        w = jax.random.normal(kw, (in_d, out_d), jnp.float32) * std
        if b_const is not None:
            b = jnp.full((out_d,), b_const, jnp.float32)
        else:
            b = jax.random.normal(kb, (out_d,), jnp.float32) * std
        return w, b

    P["pw0"], P["pb0"] = lin(POS_DIM, HIDDEN)
    P["pw1"], P["pb1"] = lin(HIDDEN, HIDDEN)
    P["pw2"], P["pb2"] = lin(HIDDEN, HIDDEN)
    P["pw3"], P["pb3"] = lin(HIDDEN, HIDDEN)
    P["sw0"], P["sb0"] = lin(HIDDEN + POS_DIM, HIDDEN)
    P["sw1"], P["sb1"] = lin(HIDDEN, HIDDEN)
    P["sw2"], P["sb2"] = lin(HIDDEN, HIDDEN)
    P["sw3"], P["sb3"] = lin(HIDDEN, HIDDEN)
    # density layer: weight ~ N(0, 0.01), bias = 0.1 (as in the module)
    P["dw"], P["db"] = lin(HIDDEN, 1, w_std=0.01, b_const=0.1)
    P["fw"], P["fb"] = lin(HIDDEN, HIDDEN)
    P["cw0"], P["cb0"] = lin(HIDDEN + DIR_DIM, COLOR_HID)
    P["cw1"], P["cb1"] = lin(COLOR_HID, 3)
    return P


# ----------------------------------------------------------------------------
# Pure-JAX f32 reference (numerical sanity check)
# ----------------------------------------------------------------------------
def nerf_ref(pos, view, P):
    mm = lambda a, b: jnp.dot(a, b, precision="highest")
    pe = positional_encoding(pos, POS_L)
    de = positional_encoding(view, DIR_L)
    h = pe
    for i in range(4):
        h = jax.nn.relu(mm(h, P[f"pw{i}"]) + P[f"pb{i}"])
    x = jnp.concatenate([h, pe], axis=-1)
    for i in range(4):
        x = jax.nn.relu(mm(x, P[f"sw{i}"]) + P[f"sb{i}"])
    sigma = jax.nn.relu(mm(x, P["dw"]) + P["db"])
    feat = mm(x, P["fw"]) + P["fb"]
    cx = jnp.concatenate([feat, de], axis=-1)
    c = jax.nn.relu(mm(cx, P["cw0"]) + P["cb0"])
    rgb = jax.nn.sigmoid(mm(c, P["cw1"]) + P["cb1"])
    return rgb, sigma


if __name__ == "__main__":
    key = jax.random.PRNGKey(0)
    kp, kpos, kview = jax.random.split(key, 3)

    P = init_params(kp)

    N = 512                                   # small sample count (2 tiles)
    pos = jax.random.normal(kpos, (N, 3), jnp.float32)
    view = jax.random.normal(kview, (N, 3), jnp.float32)
    view = view / jnp.linalg.norm(view, axis=-1, keepdims=True)

    rgb, sigma = nerf_pallas(pos, view, P)
    rgb, sigma = jax.block_until_ready((rgb, sigma))

    rgb_r, sigma_r = nerf_ref(pos, view, P)
    # bf16 MXU inputs (f32 accumulation) vs the f32 "highest" reference:
    # a few-percent tolerance is the expected bf16 envelope.
    np.testing.assert_allclose(np.asarray(rgb), np.asarray(rgb_r),
                               rtol=3e-2, atol=3e-2)
    np.testing.assert_allclose(np.asarray(sigma), np.asarray(sigma_r),
                               rtol=3e-2, atol=3e-2)
    assert rgb.shape == (N, 3) and sigma.shape == (N, 1)

    print("KERNEL_OK")
</pallas_src>

<mosaic_0001>
module attributes {stable_mosaic.version = 11 : i64} {
  func.func @nerf_kernel(%arg0: i32, %arg1: memref<256x128xbf16, #tpu.memory_space<vmem>>, %arg2: memref<128x256xbf16, #tpu.memory_space<vmem>>, %arg3: memref<1x256xf32, #tpu.memory_space<vmem>>, %arg4: memref<256x256xbf16, #tpu.memory_space<vmem>>, %arg5: memref<1x256xf32, #tpu.memory_space<vmem>>, %arg6: memref<256x256xbf16, #tpu.memory_space<vmem>>, %arg7: memref<1x256xf32, #tpu.memory_space<vmem>>, %arg8: memref<256x256xbf16, #tpu.memory_space<vmem>>, %arg9: memref<1x256xf32, #tpu.memory_space<vmem>>, %arg10: memref<256x256xbf16, #tpu.memory_space<vmem>>, %arg11: memref<128x256xbf16, #tpu.memory_space<vmem>>, %arg12: memref<1x256xf32, #tpu.memory_space<vmem>>, %arg13: memref<256x256xbf16, #tpu.memory_space<vmem>>, %arg14: memref<1x256xf32, #tpu.memory_space<vmem>>, %arg15: memref<256x256xbf16, #tpu.memory_space<vmem>>, %arg16: memref<1x256xf32, #tpu.memory_space<vmem>>, %arg17: memref<256x256xbf16, #tpu.memory_space<vmem>>, %arg18: memref<1x256xf32, #tpu.memory_space<vmem>>, %arg19: memref<256x128xbf16, #tpu.memory_space<vmem>>, %arg20: memref<1x128xf32, #tpu.memory_space<vmem>>, %arg21: memref<256x256xbf16, #tpu.memory_space<vmem>>, %arg22: memref<1x256xf32, #tpu.memory_space<vmem>>, %arg23: memref<256x128xbf16, #tpu.memory_space<vmem>>, %arg24: memref<128x128xbf16, #tpu.memory_space<vmem>>, %arg25: memref<1x128xf32, #tpu.memory_space<vmem>>, %arg26: memref<128x128xbf16, #tpu.memory_space<vmem>>, %arg27: memref<1x128xf32, #tpu.memory_space<vmem>>, %arg28: memref<256x128xf32, #tpu.memory_space<vmem>>) attributes {dimension_semantics = [#tpu.dimension_semantics<parallel>], iteration_bounds = array<i64: 2>, scalar_prefetch = 0 : i64, scratch_operands = 0 : i64, tpu.core_type = #tpu.core_type<tc>, window_params = [{transform_indices = @transform_0, window_bounds = array<i64: 256, 128>}, {pipeline_mode = #tpu.pipeline_mode<synchronous>, transform_indices = @transform_1, window_bounds = array<i64: 128, 256>}, {pipeline_mode = #tpu.pipeline_mode<synchronous>, transform_indices = @transform_2, window_bounds = array<i64: 1, 256>}, {pipeline_mode = #tpu.pipeline_mode<synchronous>, transform_indices = @transform_3, window_bounds = array<i64: 256, 256>}, {pipeline_mode = #tpu.pipeline_mode<synchronous>, transform_indices = @transform_4, window_bounds = array<i64: 1, 256>}, {pipeline_mode = #tpu.pipeline_mode<synchronous>, transform_indices = @transform_5, window_bounds = array<i64: 256, 256>}, {pipeline_mode = #tpu.pipeline_mode<synchronous>, transform_indices = @transform_6, window_bounds = array<i64: 1, 256>}, {pipeline_mode = #tpu.pipeline_mode<synchronous>, transform_indices = @transform_7, window_bounds = array<i64: 256, 256>}, {pipeline_mode = #tpu.pipeline_mode<synchronous>, transform_indices = @transform_8, window_bounds = array<i64: 1, 256>}, {pipeline_mode = #tpu.pipeline_mode<synchronous>, transform_indices = @transform_9, window_bounds = array<i64: 256, 256>}, {pipeline_mode = #tpu.pipeline_mode<synchronous>, transform_indices = @transform_10, window_bounds = array<i64: 128, 256>}, {pipeline_mode = #tpu.pipeline_mode<synchronous>, transform_indices = @transform_11, window_bounds = array<i64: 1, 256>}, {pipeline_mode = #tpu.pipeline_mode<synchronous>, transform_indices = @transform_12, window_bounds = array<i64: 256, 256>}, {pipeline_mode = #tpu.pipeline_mode<synchronous>, transform_indices = @transform_13, window_bounds = array<i64: 1, 256>}, {pipeline_mode = #tpu.pipeline_mode<synchronous>, transform_indices = @transform_14, window_bounds = array<i64: 256, 256>}, {pipeline_mode = #tpu.pipeline_mode<synchronous>, transform_indices = @transform_15, window_bounds = array<i64: 1, 256>}, {pipeline_mode = #tpu.pipeline_mode<synchronous>, transform_indices = @transform_16, window_bounds = array<i64: 256, 256>}, {pipeline_mode = #tpu.pipeline_mode<synchronous>, transform_indices = @transform_17, window_bounds = array<i64: 1, 256>}, {pipeline_mode = #tpu.pipeline_mode<synchronous>, transform_indices = @transform_18, window_bounds = array<i64: 256, 128>}, {pipeline_mode = #tpu.pipeline_mode<synchronous>, transform_indices = @transform_19, window_bounds = array<i64: 1, 128>}, {pipeline_mode = #tpu.pipeline_mode<synchronous>, transform_indices = @transform_20, window_bounds = array<i64: 256, 256>}, {pipeline_mode = #tpu.pipeline_mode<synchronous>, transform_indices = @transform_21, window_bounds = array<i64: 1, 256>}, {pipeline_mode = #tpu.pipeline_mode<synchronous>, transform_indices = @transform_22, window_bounds = array<i64: 256, 128>}, {pipeline_mode = #tpu.pipeline_mode<synchronous>, transform_indices = @transform_23, window_bounds = array<i64: 128, 128>}, {pipeline_mode = #tpu.pipeline_mode<synchronous>, transform_indices = @transform_24, window_bounds = array<i64: 1, 128>}, {pipeline_mode = #tpu.pipeline_mode<synchronous>, transform_indices = @transform_25, window_bounds = array<i64: 128, 128>}, {pipeline_mode = #tpu.pipeline_mode<synchronous>, transform_indices = @transform_26, window_bounds = array<i64: 1, 128>}, {transform_indices = @transform_27, window_bounds = array<i64: 256, 128>}]} {
    %c0 = arith.constant 0 : index
    %c0_0 = arith.constant 0 : index
    %0 = vector.load %arg1[%c0, %c0_0] : memref<256x128xbf16, #tpu.memory_space<vmem>>, vector<256x128xbf16>
    %c0_1 = arith.constant 0 : index
    %c0_2 = arith.constant 0 : index
    %1 = vector.load %arg2[%c0_1, %c0_2] : memref<128x256xbf16, #tpu.memory_space<vmem>>, vector<128x256xbf16>
    %cst = arith.constant dense<0.000000e+00> : vector<256x256xf32>
    %2 = tpu.matmul %0, %1, %cst {dimension_numbers = #tpu.dot_dimension_numbers<[1], [0], [0], [1], [0, 0, 1, 1], [], []>} : vector<256x128xbf16>, vector<128x256xbf16>, vector<256x256xf32> -> vector<256x256xf32>
    %c0_3 = arith.constant 0 : index
    %c0_4 = arith.constant 0 : index
    %3 = vector.load %arg3[%c0_3, %c0_4] : memref<1x256xf32, #tpu.memory_space<vmem>>, vector<1x256xf32>
    %4 = vector.broadcast %3 : vector<1x256xf32> to vector<256x256xf32>
    %5 = arith.addf %2, %4 : vector<256x256xf32>
    %cst_5 = arith.constant 0.000000e+00 : f32
    %6 = vector.broadcast %cst_5 : f32 to vector<256x256xf32>
    %7 = arith.maximumf %5, %6 : vector<256x256xf32>
    %8 = arith.truncf %7 : vector<256x256xf32> to vector<256x256xbf16>
    %c0_6 = arith.constant 0 : index
    %c0_7 = arith.constant 0 : index
    %9 = vector.load %arg4[%c0_6, %c0_7] : memref<256x256xbf16, #tpu.memory_space<vmem>>, vector<256x256xbf16>
    %cst_8 = arith.constant dense<0.000000e+00> : vector<256x256xf32>
    %10 = tpu.matmul %8, %9, %cst_8 {dimension_numbers = #tpu.dot_dimension_numbers<[1], [0], [0], [1], [0, 0, 1, 1], [], []>} : vector<256x256xbf16>, vector<256x256xbf16>, vector<256x256xf32> -> vector<256x256xf32>
    %c0_9 = arith.constant 0 : index
    %c0_10 = arith.constant 0 : index
    %11 = vector.load %arg5[%c0_9, %c0_10] : memref<1x256xf32, #tpu.memory_space<vmem>>, vector<1x256xf32>
    %12 = vector.broadcast %11 : vector<1x256xf32> to vector<256x256xf32>
    %13 = arith.addf %10, %12 : vector<256x256xf32>
    %cst_11 = arith.constant 0.000000e+00 : f32
    %14 = vector.broadcast %cst_11 : f32 to vector<256x256xf32>
    %15 = arith.maximumf %13, %14 : vector<256x256xf32>
    %16 = arith.truncf %15 : vector<256x256xf32> to vector<256x256xbf16>
    %c0_12 = arith.constant 0 : index
    %c0_13 = arith.constant 0 : index
    %17 = vector.load %arg6[%c0_12, %c0_13] : memref<256x256xbf16, #tpu.memory_space<vmem>>, vector<256x256xbf16>
    %cst_14 = arith.constant dense<0.000000e+00> : vector<256x256xf32>
    %18 = tpu.matmul %16, %17, %cst_14 {dimension_numbers = #tpu.dot_dimension_numbers<[1], [0], [0], [1], [0, 0, 1, 1], [], []>} : vector<256x256xbf16>, vector<256x256xbf16>, vector<256x256xf32> -> vector<256x256xf32>
    %c0_15 = arith.constant 0 : index
    %c0_16 = arith.constant 0 : index
    %19 = vector.load %arg7[%c0_15, %c0_16] : memref<1x256xf32, #tpu.memory_space<vmem>>, vector<1x256xf32>
    %20 = vector.broadcast %19 : vector<1x256xf32> to vector<256x256xf32>
    %21 = arith.addf %18, %20 : vector<256x256xf32>
    %cst_17 = arith.constant 0.000000e+00 : f32
    %22 = vector.broadcast %cst_17 : f32 to vector<256x256xf32>
    %23 = arith.maximumf %21, %22 : vector<256x256xf32>
    %24 = arith.truncf %23 : vector<256x256xf32> to vector<256x256xbf16>
    %c0_18 = arith.constant 0 : index
    %c0_19 = arith.constant 0 : index
    %25 = vector.load %arg8[%c0_18, %c0_19] : memref<256x256xbf16, #tpu.memory_space<vmem>>, vector<256x256xbf16>
    %cst_20 = arith.constant dense<0.000000e+00> : vector<256x256xf32>
    %26 = tpu.matmul %24, %25, %cst_20 {dimension_numbers = #tpu.dot_dimension_numbers<[1], [0], [0], [1], [0, 0, 1, 1], [], []>} : vector<256x256xbf16>, vector<256x256xbf16>, vector<256x256xf32> -> vector<256x256xf32>
    %c0_21 = arith.constant 0 : index
    %c0_22 = arith.constant 0 : index
    %27 = vector.load %arg9[%c0_21, %c0_22] : memref<1x256xf32, #tpu.memory_space<vmem>>, vector<1x256xf32>
    %28 = vector.broadcast %27 : vector<1x256xf32> to vector<256x256xf32>
    %29 = arith.addf %26, %28 : vector<256x256xf32>
    %cst_23 = arith.constant 0.000000e+00 : f32
    %30 = vector.broadcast %cst_23 : f32 to vector<256x256xf32>
    %31 = arith.maximumf %29, %30 : vector<256x256xf32>
    %32 = arith.truncf %31 : vector<256x256xf32> to vector<256x256xbf16>
    %c0_24 = arith.constant 0 : index
    %c0_25 = arith.constant 0 : index
    %33 = vector.load %arg10[%c0_24, %c0_25] : memref<256x256xbf16, #tpu.memory_space<vmem>>, vector<256x256xbf16>
    %cst_26 = arith.constant dense<0.000000e+00> : vector<256x256xf32>
    %34 = tpu.matmul %32, %33, %cst_26 {dimension_numbers = #tpu.dot_dimension_numbers<[1], [0], [0], [1], [0, 0, 1, 1], [], []>} : vector<256x256xbf16>, vector<256x256xbf16>, vector<256x256xf32> -> vector<256x256xf32>
    %c0_27 = arith.constant 0 : index
    %c0_28 = arith.constant 0 : index
    %35 = vector.load %arg11[%c0_27, %c0_28] : memref<128x256xbf16, #tpu.memory_space<vmem>>, vector<128x256xbf16>
    %cst_29 = arith.constant dense<0.000000e+00> : vector<256x256xf32>
    %36 = tpu.matmul %0, %35, %cst_29 {dimension_numbers = #tpu.dot_dimension_numbers<[1], [0], [0], [1], [0, 0, 1, 1], [], []>} : vector<256x128xbf16>, vector<128x256xbf16>, vector<256x256xf32> -> vector<256x256xf32>
    %37 = arith.addf %34, %36 : vector<256x256xf32>
    %c0_30 = arith.constant 0 : index
    %c0_31 = arith.constant 0 : index
    %38 = vector.load %arg12[%c0_30, %c0_31] : memref<1x256xf32, #tpu.memory_space<vmem>>, vector<1x256xf32>
    %39 = vector.broadcast %38 : vector<1x256xf32> to vector<256x256xf32>
    %40 = arith.addf %37, %39 : vector<256x256xf32>
    %cst_32 = arith.constant 0.000000e+00 : f32
    %41 = vector.broadcast %cst_32 : f32 to vector<256x256xf32>
    %42 = arith.maximumf %40, %41 : vector<256x256xf32>
    %43 = arith.truncf %42 : vector<256x256xf32> to vector<256x256xbf16>
    %c0_33 = arith.constant 0 : index
    %c0_34 = arith.constant 0 : index
    %44 = vector.load %arg13[%c0_33, %c0_34] : memref<256x256xbf16, #tpu.memory_space<vmem>>, vector<256x256xbf16>
    %cst_35 = arith.constant dense<0.000000e+00> : vector<256x256xf32>
    %45 = tpu.matmul %43, %44, %cst_35 {dimension_numbers = #tpu.dot_dimension_numbers<[1], [0], [0], [1], [0, 0, 1, 1], [], []>} : vector<256x256xbf16>, vector<256x256xbf16>, vector<256x256xf32> -> vector<256x256xf32>
    %c0_36 = arith.constant 0 : index
    %c0_37 = arith.constant 0 : index
    %46 = vector.load %arg14[%c0_36, %c0_37] : memref<1x256xf32, #tpu.memory_space<vmem>>, vector<1x256xf32>
    %47 = vector.broadcast %46 : vector<1x256xf32> to vector<256x256xf32>
    %48 = arith.addf %45, %47 : vector<256x256xf32>
    %cst_38 = arith.constant 0.000000e+00 : f32
    %49 = vector.broadcast %cst_38 : f32 to vector<256x256xf32>
    %50 = arith.maximumf %48, %49 : vector<256x256xf32>
    %51 = arith.truncf %50 : vector<256x256xf32> to vector<256x256xbf16>
    %c0_39 = arith.constant 0 : index
    %c0_40 = arith.constant 0 : index
    %52 = vector.load %arg15[%c0_39, %c0_40] : memref<256x256xbf16, #tpu.memory_space<vmem>>, vector<256x256xbf16>
    %cst_41 = arith.constant dense<0.000000e+00> : vector<256x256xf32>
    %53 = tpu.matmul %51, %52, %cst_41 {dimension_numbers = #tpu.dot_dimension_numbers<[1], [0], [0], [1], [0, 0, 1, 1], [], []>} : vector<256x256xbf16>, vector<256x256xbf16>, vector<256x256xf32> -> vector<256x256xf32>
    %c0_42 = arith.constant 0 : index
    %c0_43 = arith.constant 0 : index
    %54 = vector.load %arg16[%c0_42, %c0_43] : memref<1x256xf32, #tpu.memory_space<vmem>>, vector<1x256xf32>
    %55 = vector.broadcast %54 : vector<1x256xf32> to vector<256x256xf32>
    %56 = arith.addf %53, %55 : vector<256x256xf32>
    %cst_44 = arith.constant 0.000000e+00 : f32
    %57 = vector.broadcast %cst_44 : f32 to vector<256x256xf32>
    %58 = arith.maximumf %56, %57 : vector<256x256xf32>
    %59 = arith.truncf %58 : vector<256x256xf32> to vector<256x256xbf16>
    %c0_45 = arith.constant 0 : index
    %c0_46 = arith.constant 0 : index
    %60 = vector.load %arg17[%c0_45, %c0_46] : memref<256x256xbf16, #tpu.memory_space<vmem>>, vector<256x256xbf16>
    %cst_47 = arith.constant dense<0.000000e+00> : vector<256x256xf32>
    %61 = tpu.matmul %59, %60, %cst_47 {dimension_numbers = #tpu.dot_dimension_numbers<[1], [0], [0], [1], [0, 0, 1, 1], [], []>} : vector<256x256xbf16>, vector<256x256xbf16>, vector<256x256xf32> -> vector<256x256xf32>
    %c0_48 = arith.constant 0 : index
    %c0_49 = arith.constant 0 : index
    %62 = vector.load %arg18[%c0_48, %c0_49] : memref<1x256xf32, #tpu.memory_space<vmem>>, vector<1x256xf32>
    %63 = vector.broadcast %62 : vector<1x256xf32> to vector<256x256xf32>
    %64 = arith.addf %61, %63 : vector<256x256xf32>
    %cst_50 = arith.constant 0.000000e+00 : f32
    %65 = vector.broadcast %cst_50 : f32 to vector<256x256xf32>
    %66 = arith.maximumf %64, %65 : vector<256x256xf32>
    %67 = arith.truncf %66 : vector<256x256xf32> to vector<256x256xbf16>
    %c0_51 = arith.constant 0 : index
    %c0_52 = arith.constant 0 : index
    %68 = vector.load %arg19[%c0_51, %c0_52] : memref<256x128xbf16, #tpu.memory_space<vmem>>, vector<256x128xbf16>
    %cst_53 = arith.constant dense<0.000000e+00> : vector<256x128xf32>
    %69 = tpu.matmul %67, %68, %cst_53 {dimension_numbers = #tpu.dot_dimension_numbers<[1], [0], [0], [1], [0, 0, 1, 1], [], []>} : vector<256x256xbf16>, vector<256x128xbf16>, vector<256x128xf32> -> vector<256x128xf32>
    %c0_54 = arith.constant 0 : index
    %c0_55 = arith.constant 0 : index
    %70 = vector.load %arg20[%c0_54, %c0_55] : memref<1x128xf32, #tpu.memory_space<vmem>>, vector<1x128xf32>
    %71 = vector.broadcast %70 : vector<1x128xf32> to vector<256x128xf32>
    %72 = arith.addf %69, %71 : vector<256x128xf32>
    %cst_56 = arith.constant 0.000000e+00 : f32
    %73 = vector.broadcast %cst_56 : f32 to vector<256x128xf32>
    %74 = arith.maximumf %72, %73 : vector<256x128xf32>
    %75 = arith.truncf %66 : vector<256x256xf32> to vector<256x256xbf16>
    %c0_57 = arith.constant 0 : index
    %c0_58 = arith.constant 0 : index
    %76 = vector.load %arg21[%c0_57, %c0_58] : memref<256x256xbf16, #tpu.memory_space<vmem>>, vector<256x256xbf16>
    %cst_59 = arith.constant dense<0.000000e+00> : vector<256x256xf32>
    %77 = tpu.matmul %75, %76, %cst_59 {dimension_numbers = #tpu.dot_dimension_numbers<[1], [0], [0], [1], [0, 0, 1, 1], [], []>} : vector<256x256xbf16>, vector<256x256xbf16>, vector<256x256xf32> -> vector<256x256xf32>
    %c0_60 = arith.constant 0 : index
    %c0_61 = arith.constant 0 : index
    %78 = vector.load %arg22[%c0_60, %c0_61] : memref<1x256xf32, #tpu.memory_space<vmem>>, vector<1x256xf32>
    %79 = vector.broadcast %78 : vector<1x256xf32> to vector<256x256xf32>
    %80 = arith.addf %77, %79 : vector<256x256xf32>
    %81 = arith.truncf %80 : vector<256x256xf32> to vector<256x256xbf16>
    %c0_62 = arith.constant 0 : index
    %c0_63 = arith.constant 0 : index
    %82 = vector.load %arg23[%c0_62, %c0_63] : memref<256x128xbf16, #tpu.memory_space<vmem>>, vector<256x128xbf16>
    %cst_64 = arith.constant dense<0.000000e+00> : vector<256x128xf32>
    %83 = tpu.matmul %81, %82, %cst_64 {dimension_numbers = #tpu.dot_dimension_numbers<[1], [0], [0], [1], [0, 0, 1, 1], [], []>} : vector<256x256xbf16>, vector<256x128xbf16>, vector<256x128xf32> -> vector<256x128xf32>
    %c0_65 = arith.constant 0 : index
    %c0_66 = arith.constant 0 : index
    %84 = vector.load %arg24[%c0_65, %c0_66] : memref<128x128xbf16, #tpu.memory_space<vmem>>, vector<128x128xbf16>
    %cst_67 = arith.constant dense<0.000000e+00> : vector<256x128xf32>
    %85 = tpu.matmul %0, %84, %cst_67 {dimension_numbers = #tpu.dot_dimension_numbers<[1], [0], [0], [1], [0, 0, 1, 1], [], []>} : vector<256x128xbf16>, vector<128x128xbf16>, vector<256x128xf32> -> vector<256x128xf32>
    %86 = arith.addf %83, %85 : vector<256x128xf32>
    %c0_68 = arith.constant 0 : index
    %c0_69 = arith.constant 0 : index
    %87 = vector.load %arg25[%c0_68, %c0_69] : memref<1x128xf32, #tpu.memory_space<vmem>>, vector<1x128xf32>
    %88 = vector.broadcast %87 : vector<1x128xf32> to vector<256x128xf32>
    %89 = arith.addf %86, %88 : vector<256x128xf32>
    %cst_70 = arith.constant 0.000000e+00 : f32
    %90 = vector.broadcast %cst_70 : f32 to vector<256x128xf32>
    %91 = arith.maximumf %89, %90 : vector<256x128xf32>
    %92 = arith.truncf %91 : vector<256x128xf32> to vector<256x128xbf16>
    %c0_71 = arith.constant 0 : index
    %c0_72 = arith.constant 0 : index
    %93 = vector.load %arg26[%c0_71, %c0_72] : memref<128x128xbf16, #tpu.memory_space<vmem>>, vector<128x128xbf16>
    %cst_73 = arith.constant dense<0.000000e+00> : vector<256x128xf32>
    %94 = tpu.matmul %92, %93, %cst_73 {dimension_numbers = #tpu.dot_dimension_numbers<[1], [0], [0], [1], [0, 0, 1, 1], [], []>} : vector<256x128xbf16>, vector<128x128xbf16>, vector<256x128xf32> -> vector<256x128xf32>
    %c0_74 = arith.constant 0 : index
    %c0_75 = arith.constant 0 : index
    %95 = vector.load %arg27[%c0_74, %c0_75] : memref<1x128xf32, #tpu.memory_space<vmem>>, vector<1x128xf32>
    %96 = vector.broadcast %95 : vector<1x128xf32> to vector<256x128xf32>
    %97 = arith.addf %94, %96 : vector<256x128xf32>
    %98 = arith.negf %97 : vector<256x128xf32>
    %99 = math.exp %98 : vector<256x128xf32>
    %cst_76 = arith.constant 1.000000e+00 : f32
    %100 = vector.broadcast %cst_76 : f32 to vector<256x128xf32>
    %101 = arith.addf %100, %99 : vector<256x128xf32>
    %102 = arith.divf %100, %101 : vector<256x128xf32>
    %103 = tpu.iota {dimensions = array<i32: 1>} : vector<256x128xi32>
    %c3_i32 = arith.constant 3 : i32
    %104 = vector.broadcast %c3_i32 : i32 to vector<256x128xi32>
    %105 = arith.cmpi slt, %103, %104 : vector<256x128xi32>
    %106 = arith.select %105, %102, %74 : vector<256x128xi1>, vector<256x128xf32>
    %c0_77 = arith.constant 0 : index
    %c0_78 = arith.constant 0 : index
    %107 = vector.load %arg28[%c0_77, %c0_78] : memref<256x128xf32, #tpu.memory_space<vmem>>, vector<256x128xf32>
    tpu.vector_store %arg28[%c0_77, %c0_78], %106 {strides = array<i32>} : memref<256x128xf32, #tpu.memory_space<vmem>>, vector<256x128xf32>,
    return
  }
  func.func @transform_0(%arg0: i32) -> (i32, i32) {
    %c0_i32 = arith.constant 0 : i32
    %c0_i32_0 = arith.constant 0 : i32
    return %arg0, %c0_i32 : i32, i32
  }
  func.func @transform_1(%arg0: i32) -> (i32, i32) {
    %c0_i32 = arith.constant 0 : i32
    %c0_i32_0 = arith.constant 0 : i32
    %c0_i32_1 = arith.constant 0 : i32
    return %c0_i32, %c0_i32_0 : i32, i32
  }
  func.func @transform_2(%arg0: i32) -> (i32, i32) {
    %c0_i32 = arith.constant 0 : i32
    %c0_i32_0 = arith.constant 0 : i32
    %c0_i32_1 = arith.constant 0 : i32
    return %c0_i32, %c0_i32_0 : i32, i32
  }
  func.func @transform_3(%arg0: i32) -> (i32, i32) {
    %c0_i32 = arith.constant 0 : i32
    %c0_i32_0 = arith.constant 0 : i32
    %c0_i32_1 = arith.constant 0 : i32
    return %c0_i32, %c0_i32_0 : i32, i32
  }
  func.func @transform_4(%arg0: i32) -> (i32, i32) {
    %c0_i32 = arith.constant 0 : i32
    %c0_i32_0 = arith.constant 0 : i32
    %c0_i32_1 = arith.constant 0 : i32
    return %c0_i32, %c0_i32_0 : i32, i32
  }
  func.func @transform_5(%arg0: i32) -> (i32, i32) {
    %c0_i32 = arith.constant 0 : i32
    %c0_i32_0 = arith.constant 0 : i32
    %c0_i32_1 = arith.constant 0 : i32
    return %c0_i32, %c0_i32_0 : i32, i32
  }
  func.func @transform_6(%arg0: i32) -> (i32, i32) {
    %c0_i32 = arith.constant 0 : i32
    %c0_i32_0 = arith.constant 0 : i32
    %c0_i32_1 = arith.constant 0 : i32
    return %c0_i32, %c0_i32_0 : i32, i32
  }
  func.func @transform_7(%arg0: i32) -> (i32, i32) {
    %c0_i32 = arith.constant 0 : i32
    %c0_i32_0 = arith.constant 0 : i32
    %c0_i32_1 = arith.constant 0 : i32
    return %c0_i32, %c0_i32_0 : i32, i32
  }
  func.func @transform_8(%arg0: i32) -> (i32, i32) {
    %c0_i32 = arith.constant 0 : i32
    %c0_i32_0 = arith.constant 0 : i32
    %c0_i32_1 = arith.constant 0 : i32
    return %c0_i32, %c0_i32_0 : i32, i32
  }
  func.func @transform_9(%arg0: i32) -> (i32, i32) {
    %c0_i32 = arith.constant 0 : i32
    %c0_i32_0 = arith.constant 0 : i32
    %c0_i32_1 = arith.constant 0 : i32
    return %c0_i32, %c0_i32_0 : i32, i32
  }
  func.func @transform_10(%arg0: i32) -> (i32, i32) {
    %c0_i32 = arith.constant 0 : i32
    %c0_i32_0 = arith.constant 0 : i32
    %c0_i32_1 = arith.constant 0 : i32
    return %c0_i32, %c0_i32_0 : i32, i32
  }
  func.func @transform_11(%arg0: i32) -> (i32, i32) {
    %c0_i32 = arith.constant 0 : i32
    %c0_i32_0 = arith.constant 0 : i32
    %c0_i32_1 = arith.constant 0 : i32
    return %c0_i32, %c0_i32_0 : i32, i32
  }
  func.func @transform_12(%arg0: i32) -> (i32, i32) {
    %c0_i32 = arith.constant 0 : i32
    %c0_i32_0 = arith.constant 0 : i32
    %c0_i32_1 = arith.constant 0 : i32
    return %c0_i32, %c0_i32_0 : i32, i32
  }
  func.func @transform_13(%arg0: i32) -> (i32, i32) {
    %c0_i32 = arith.constant 0 : i32
    %c0_i32_0 = arith.constant 0 : i32
    %c0_i32_1 = arith.constant 0 : i32
    return %c0_i32, %c0_i32_0 : i32, i32
  }
  func.func @transform_14(%arg0: i32) -> (i32, i32) {
    %c0_i32 = arith.constant 0 : i32
    %c0_i32_0 = arith.constant 0 : i32
    %c0_i32_1 = arith.constant 0 : i32
    return %c0_i32, %c0_i32_0 : i32, i32
  }
  func.func @transform_15(%arg0: i32) -> (i32, i32) {
    %c0_i32 = arith.constant 0 : i32
    %c0_i32_0 = arith.constant 0 : i32
    %c0_i32_1 = arith.constant 0 : i32
    return %c0_i32, %c0_i32_0 : i32, i32
  }
  func.func @transform_16(%arg0: i32) -> (i32, i32) {
    %c0_i32 = arith.constant 0 : i32
    %c0_i32_0 = arith.constant 0 : i32
    %c0_i32_1 = arith.constant 0 : i32
    return %c0_i32, %c0_i32_0 : i32, i32
  }
  func.func @transform_17(%arg0: i32) -> (i32, i32) {
    %c0_i32 = arith.constant 0 : i32
    %c0_i32_0 = arith.constant 0 : i32
    %c0_i32_1 = arith.constant 0 : i32
    return %c0_i32, %c0_i32_0 : i32, i32
  }
  func.func @transform_18(%arg0: i32) -> (i32, i32) {
    %c0_i32 = arith.constant 0 : i32
    %c0_i32_0 = arith.constant 0 : i32
    %c0_i32_1 = arith.constant 0 : i32
    return %c0_i32, %c0_i32_0 : i32, i32
  }
  func.func @transform_19(%arg0: i32) -> (i32, i32) {
    %c0_i32 = arith.constant 0 : i32
    %c0_i32_0 = arith.constant 0 : i32
    %c0_i32_1 = arith.constant 0 : i32
    return %c0_i32, %c0_i32_0 : i32, i32
  }
  func.func @transform_20(%arg0: i32) -> (i32, i32) {
    %c0_i32 = arith.constant 0 : i32
    %c0_i32_0 = arith.constant 0 : i32
    %c0_i32_1 = arith.constant 0 : i32
    return %c0_i32, %c0_i32_0 : i32, i32
  }
  func.func @transform_21(%arg0: i32) -> (i32, i32) {
    %c0_i32 = arith.constant 0 : i32
    %c0_i32_0 = arith.constant 0 : i32
    %c0_i32_1 = arith.constant 0 : i32
    return %c0_i32, %c0_i32_0 : i32, i32
  }
  func.func @transform_22(%arg0: i32) -> (i32, i32) {
    %c0_i32 = arith.constant 0 : i32
    %c0_i32_0 = arith.constant 0 : i32
    %c0_i32_1 = arith.constant 0 : i32
    return %c0_i32, %c0_i32_0 : i32, i32
  }
  func.func @transform_23(%arg0: i32) -> (i32, i32) {
    %c0_i32 = arith.constant 0 : i32
    %c0_i32_0 = arith.constant 0 : i32
    %c0_i32_1 = arith.constant 0 : i32
    return %c0_i32, %c0_i32_0 : i32, i32
  }
  func.func @transform_24(%arg0: i32) -> (i32, i32) {
    %c0_i32 = arith.constant 0 : i32
    %c0_i32_0 = arith.constant 0 : i32
    %c0_i32_1 = arith.constant 0 : i32
    return %c0_i32, %c0_i32_0 : i32, i32
  }
  func.func @transform_25(%arg0: i32) -> (i32, i32) {
    %c0_i32 = arith.constant 0 : i32
    %c0_i32_0 = arith.constant 0 : i32
    %c0_i32_1 = arith.constant 0 : i32
    return %c0_i32, %c0_i32_0 : i32, i32
  }
  func.func @transform_26(%arg0: i32) -> (i32, i32) {
    %c0_i32 = arith.constant 0 : i32
    %c0_i32_0 = arith.constant 0 : i32
    %c0_i32_1 = arith.constant 0 : i32
    return %c0_i32, %c0_i32_0 : i32, i32
  }
  func.func @transform_27(%arg0: i32) -> (i32, i32) {
    %c0_i32 = arith.constant 0 : i32
    %c0_i32_0 = arith.constant 0 : i32
    return %arg0, %c0_i32 : i32, i32
  }
}

</mosaic_0001>

<llo_original>
// kernel: tpu_custom_call.1
$region0: #{tpu_custom_call.1}
  #allocation0 [shape = 'u32[]', space=smem, size = 0x4, offset = 0x4, fixed_abs, tag = 'smem constant byte address 0x4 - core index']
  #allocation1 [shape = 'u32[144,128]{1,0:T(1,128)}', space=vmem, size = 0x12000, scoped, tag = 'internal scratch']
  %s0 = inlined_call_operand.hbm [shape: bf16[512,128], index: 0, kind: input, shape index: {}]
  %s1 = inlined_call_operand.hbm [shape: bf16[128,256], index: 1, kind: input, shape index: {}]
  %s2 = inlined_call_operand.vmem [shape: f32[1,256], index: 2, kind: input, shape index: {}]
  %s3 = inlined_call_operand.hbm [shape: bf16[256,256], index: 3, kind: input, shape index: {}]
  %s4 = inlined_call_operand.vmem [shape: f32[1,256], index: 4, kind: input, shape index: {}]
  %s5 = inlined_call_operand.hbm [shape: bf16[256,256], index: 5, kind: input, shape index: {}]
  %s6 = inlined_call_operand.vmem [shape: f32[1,256], index: 6, kind: input, shape index: {}]
  %s7 = inlined_call_operand.hbm [shape: bf16[256,256], index: 7, kind: input, shape index: {}]
  %s8 = inlined_call_operand.vmem [shape: f32[1,256], index: 8, kind: input, shape index: {}]
  %s9 = inlined_call_operand.hbm [shape: bf16[256,256], index: 9, kind: input, shape index: {}]
  %s10 = inlined_call_operand.hbm [shape: bf16[128,256], index: 10, kind: input, shape index: {}]
  %s11 = inlined_call_operand.vmem [shape: f32[1,256], index: 11, kind: input, shape index: {}]
  %s12 = inlined_call_operand.hbm [shape: bf16[256,256], index: 12, kind: input, shape index: {}]
  %s13 = inlined_call_operand.vmem [shape: f32[1,256], index: 13, kind: input, shape index: {}]
  %s14 = inlined_call_operand.hbm [shape: bf16[256,256], index: 14, kind: input, shape index: {}]
  %s15 = inlined_call_operand.vmem [shape: f32[1,256], index: 15, kind: input, shape index: {}]
  %s16 = inlined_call_operand.hbm [shape: bf16[256,256], index: 16, kind: input, shape index: {}]
  %s17 = inlined_call_operand.vmem [shape: f32[1,256], index: 17, kind: input, shape index: {}]
  %s18 = inlined_call_operand.hbm [shape: bf16[256,128], index: 18, kind: input, shape index: {}]
  %s19 = inlined_call_operand.vmem [shape: f32[1,128], index: 19, kind: input, shape index: {}]
  %s20 = inlined_call_operand.hbm [shape: bf16[256,256], index: 20, kind: input, shape index: {}]
  %s21 = inlined_call_operand.vmem [shape: f32[1,256], index: 21, kind: input, shape index: {}]
  %s22 = inlined_call_operand.hbm [shape: bf16[256,128], index: 22, kind: input, shape index: {}]
  %s23 = inlined_call_operand.vmem [shape: bf16[128,128], index: 23, kind: input, shape index: {}]
  %s24 = inlined_call_operand.vmem [shape: f32[1,128], index: 24, kind: input, shape index: {}]
  %s25 = inlined_call_operand.hbm [shape: bf16[128,128], index: 25, kind: input, shape index: {}]
  %s26 = inlined_call_operand.vmem [shape: f32[1,128], index: 26, kind: input, shape index: {}]
  %s27 = inlined_call_operand.hbm [shape: f32[512,128], index: 27, kind: output, shape index: {}]
  %s28 = sld [smem:[#allocation0]]
  $region197: #{tpu_custom_call.1} parent=0
    _
  %s30 = ssub.s32 1, %s28
  %s31 = scalar_select 0, %s30, %s28
  $region1: #{tpu_custom_call.1} parent=0
    #allocation2 [shape = 'u8[131072]{0}', space=vmem, size = 0x20000, scoped, tag = 'input window, operand 0']
    #allocation3 [shape = 's32[2]{0}', space=sflag, size = 0x8, scoped, tag = 'scoped memory for tpu_custom_call.1']
    #allocation4 [shape = 's32[2]{0}', space=sflag, size = 0x8, scoped, tag = 'scoped memory for tpu_custom_call.1']
    #allocation5 [shape = 'u8[65536]{0}', space=vmem, size = 0x10000, scoped, tag = 'input window, operand 1, single buffered']
    #allocation6 [shape = 's32[1]{0}', space=sflag, size = 0x4, scoped, tag = 'scoped memory for tpu_custom_call.1']
    #allocation7 [shape = 'u8[131072]{0}', space=vmem, size = 0x20000, scoped, tag = 'input window, operand 3, single buffered']
    #allocation8 [shape = 'u8[131072]{0}', space=vmem, size = 0x20000, scoped, tag = 'input window, operand 5, single buffered']
    #allocation9 [shape = 's32[1]{0}', space=sflag, size = 0x4, scoped, tag = 'scoped memory for tpu_custom_call.1']
    #allocation10 [shape = 'u8[131072]{0}', space=vmem, size = 0x20000, scoped, tag = 'input window, operand 7, single buffered']
    #allocation11 [shape = 'u8[131072]{0}', space=vmem, size = 0x20000, scoped, tag = 'input window, operand 9, single buffered']
    #allocation12 [shape = 's32[1]{0}', space=sflag, size = 0x4, scoped, tag = 'scoped memory for tpu_custom_call.1']
    #allocation13 [shape = 'u8[65536]{0}', space=vmem, size = 0x10000, scoped, tag = 'input window, operand 10, single buffered']
    #allocation14 [shape = 'u8[131072]{0}', space=vmem, size = 0x20000, scoped, tag = 'input window, operand 12, single buffered']
    #allocation15 [shape = 's32[1]{0}', space=sflag, size = 0x4, scoped, tag = 'scoped memory for tpu_custom_call.1']
    #allocation16 [shape = 'u8[131072]{0}', space=vmem, size = 0x20000, scoped, tag = 'input window, operand 14, single buffered']
    #allocation17 [shape = 'u8[131072]{0}', space=vmem, size = 0x20000, scoped, tag = 'input window, operand 16, single buffered']
    #allocation18 [shape = 's32[1]{0}', space=sflag, size = 0x4, scoped, tag = 'scoped memory for tpu_custom_call.1']
    #allocation19 [shape = 'u8[65536]{0}', space=vmem, size = 0x10000, scoped, tag = 'input window, operand 18, single buffered']
    #allocation20 [shape = 'u8[131072]{0}', space=vmem, size = 0x20000, scoped, tag = 'input window, operand 20, single buffered']
    #allocation21 [shape = 's32[1]{0}', space=sflag, size = 0x4, scoped, tag = 'scoped memory for tpu_custom_call.1']
    #allocation22 [shape = 'u8[65536]{0}', space=vmem, size = 0x10000, scoped, tag = 'input window, operand 22, single buffered']
    #allocation23 [shape = 'u8[32768]{0}', space=vmem, size = 0x8000, scoped, tag = 'input window, operand 25, single buffered']
    #allocation24 [shape = 's32[1]{0}', space=sflag, size = 0x4, scoped, tag = 'scoped memory for tpu_custom_call.1']
    #allocation25 [shape = 'u8[262144]{0}', space=vmem, size = 0x40000, scoped, tag = 'output window, operand 0']
    %32 = vsyncpa [#allocation3], 0
    %s33 = scalar_lea.sflag [#allocation3], 1
    %34 = vsyncpa %s33, 0
    %35 = vsyncpa [#allocation6], 0
    %36 = vsyncpa [#allocation9], 0
    %37 = vsyncpa [#allocation12], 0
    %38 = vsyncpa [#allocation15], 0
    %39 = vsyncpa [#allocation18], 0
    %40 = vsyncpa [#allocation21], 0
    %41 = vsyncpa [#allocation24], 0
    %42 = vsyncpa [#allocation4], 0
    %s43 = scalar_lea.sflag [#allocation4], 1
    %44 = vsyncpa %s43, 0
    loop: start=0, step=1, limit=4
    $region2: #{tpu_custom_call.1} parent=1 // loop_pre_header
      _
    $region3: #{tpu_custom_call.1} parent=1 // loop_header
      %s46 = sphi 0, %s50
      %p47 = scmp.ge.s32.totalorder %s46, 4
      %s56 = sphi 0, %s58
      %s59 = sphi 0, %s56
      %s60 = sphi 0, %s59
      %s76 = sphi 0, %s60
      %s80 = sphi 0, %s80
      %s82 = sphi 0, %s80
      %s83 = sphi 0, %s82
      %s97 = sphi 0, %s83
      %s101 = sphi 0, %s101
      %s103 = sphi 0, %s101
      %s104 = sphi 0, %s103
      %s118 = sphi 0, %s104
      %s122 = sphi 0, %s122
      %s124 = sphi 0, %s122
      %s125 = sphi 0, %s124
      %s139 = sphi 0, %s125
      %s143 = sphi 0, %s143
      %s145 = sphi 0, %s143
      %s146 = sphi 0, %s145
      %s160 = sphi 0, %s146
      %s164 = sphi 0, %s164
      %s166 = sphi 0, %s164
      %s167 = sphi 0, %s166
      %s181 = sphi 0, %s167
      %s185 = sphi 0, %s185
      %s187 = sphi 0, %s185
      %s188 = sphi 0, %s187
      %s202 = sphi 0, %s188
      %s206 = sphi 0, %s206
      %s208 = sphi 0, %s206
      %s209 = sphi 0, %s208
      %s223 = sphi 0, %s209
      %s227 = sphi 0, %s227
      %s229 = sphi 0, %s227
      %s230 = sphi 0, %s229
      %s244 = sphi 0, %s230
      %s248 = sphi 0, %s248
      %s250 = sphi 0, %s248
      %s251 = sphi 0, %s250
      %s265 = sphi 0, %s251
      %s269 = sphi 0, %s269
      %s271 = sphi 0, %s269
      %s272 = sphi 0, %s271
      %s286 = sphi 0, %s272
      %s290 = sphi 0, %s290
      %s292 = sphi 0, %s290
      %s293 = sphi 0, %s292
      %s307 = sphi 0, %s293
      %s311 = sphi 0, %s311
      %s313 = sphi 0, %s311
      %s314 = sphi 0, %s313
      %s328 = sphi 0, %s314
      %s332 = sphi 0, %s332
      %s334 = sphi 0, %s332
      %s335 = sphi 0, %s334
      %s349 = sphi 0, %s335
      %s353 = sphi 0, %s353
      %s355 = sphi 0, %s353
      %s356 = sphi 0, %s355
      %s370 = sphi 0, %s356
      %s374 = sphi 0, %s374
      %s376 = sphi 0, %s374
      %s377 = sphi 0, %s376
      %s391 = sphi 0, %s377
      %s395 = sphi 0, %s395
      %s397 = sphi 0, %s395
      %s398 = sphi 0, %s397
      %s412 = sphi 0, %s398
      %s416 = sphi 0, %s416
      %s418 = sphi 0, %s416
      %s419 = sphi 0, %s418
      %s433 = sphi 0, %s419
      %s437 = sphi 0, %s437
      %s439 = sphi 0, %s437
      %s440 = sphi 0, %s439
      %s454 = sphi 0, %s440
      %s458 = sphi 0, %s458
      %s460 = sphi 0, %s458
      %s461 = sphi 0, %s460
      %s475 = sphi 0, %s461
      %s479 = sphi 0, %s479
      %s481 = sphi 0, %s479
      %s482 = sphi 0, %s481
      %s496 = sphi 0, %s482
      %s500 = sphi 0, %s500
      %s502 = sphi 0, %s500
      %s503 = sphi 0, %s502
      %s517 = sphi 0, %s503
      %s521 = sphi 0, %s521
      %s523 = sphi 0, %s521
      %s524 = sphi 0, %s523
      %s538 = sphi 0, %s524
      %s542 = sphi 0, %s542
      %s544 = sphi 0, %s542
      %s545 = sphi 0, %s544
      %s559 = sphi 0, %s545
      %s563 = sphi 0, %s563
      %s565 = sphi 0, %s563
      %s566 = sphi 0, %s565
      %s580 = sphi 0, %s566
      %s584 = sphi 0, %s584
      %s586 = sphi 0, %s584
      %s587 = sphi 0, %s586
      %s601 = sphi 0, %s587
      %s605 = sphi 0, %s605
      %s607 = sphi 0, %s605
      %s608 = sphi 0, %s607
      %s622 = sphi 0, %s608
      %s628 = sphi 0, %s630
      %s631 = sphi 0, %s628
      %s632 = sphi 0, %s631
      %s648 = sphi 0, %s632
    $region4: #{tpu_custom_call.1} parent=1 // loop_header_branch
      %49 = sbr.rel (%p47) target = $region8
    $region5: #{tpu_custom_call.1} parent=1 // loop_body
      %s51 = ssub.s32 %s46, 1
      %s52 = ssub.s32 %s46, 2
      %s53 = sadd.s32 %s46, 1
      %s54 = ssub.s32 %s46, %s53
      %p55 = scmp.eq.s32.totalorder %s54, 0
      %s57 = sadd.s32 %s56, 1
      %s58 = scalar_select %p55, %s56, %s57
      %p61 = pneg %p55
      %p62 = scmp.eq.s32.totalorder %s46, 1
      %p63 = por %p61, %p62
      %p64 = scmp.ne.s32.totalorder %s56, %s59
      %p65 = scmp.eq.s32.totalorder %s46, 0
      %p66 = por %p64, %p65
      %p67 = scmp.ne.s32.totalorder %s56, %s59
      %p68 = scmp.eq.s32.totalorder %s51, 1
      %p69 = por %p67, %p68
      %p70 = scmp.ne.s32.totalorder %s59, %s60
      %p71 = scmp.eq.s32.totalorder %s51, 0
      %p72 = por %p70, %p71
      %p73 = scmp.ne.s32.totalorder %s59, %s60
      %p74 = scmp.eq.s32.totalorder %s52, 1
      %p75 = por %p73, %p74
      %p77 = scmp.ne.s32.totalorder %s60, %s76
      %p78 = scmp.eq.s32.totalorder %s52, 0
      %p79 = por %p77, %p78
      %s81 = sadd.s32 %s80, 1
      %p84 = scmp.eq.s32.totalorder %s46, 1
      %p85 = scmp.ne.s32.totalorder %s80, %s82
      %p86 = scmp.eq.s32.totalorder %s46, 0
      %p87 = por %p85, %p86
      %p88 = scmp.ne.s32.totalorder %s80, %s82
      %p89 = scmp.eq.s32.totalorder %s51, 1
      %p90 = por %p88, %p89
      %p91 = scmp.ne.s32.totalorder %s82, %s83
      %p92 = scmp.eq.s32.totalorder %s51, 0
      %p93 = por %p91, %p92
      %p94 = scmp.ne.s32.totalorder %s82, %s83
      %p95 = scmp.eq.s32.totalorder %s52, 1
      %p96 = por %p94, %p95
      %p98 = scmp.ne.s32.totalorder %s83, %s97
      %p99 = scmp.eq.s32.totalorder %s52, 0
      %p100 = por %p98, %p99
      %s102 = sadd.s32 %s101, 1
      %p105 = scmp.eq.s32.totalorder %s46, 1
      %p106 = scmp.ne.s32.totalorder %s101, %s103
      %p107 = scmp.eq.s32.totalorder %s46, 0
      %p108 = por %p106, %p107
      %p109 = scmp.ne.s32.totalorder %s101, %s103
      %p110 = scmp.eq.s32.totalorder %s51, 1
      %p111 = por %p109, %p110
      %p112 = scmp.ne.s32.totalorder %s103, %s104
      %p113 = scmp.eq.s32.totalorder %s51, 0
      %p114 = por %p112, %p113
      %p115 = scmp.ne.s32.totalorder %s103, %s104
      %p116 = scmp.eq.s32.totalorder %s52, 1
      %p117 = por %p115, %p116
      %p119 = scmp.ne.s32.totalorder %s104, %s118
      %p120 = scmp.eq.s32.totalorder %s52, 0
      %p121 = por %p119, %p120
      %s123 = sadd.s32 %s122, 1
      %p126 = scmp.eq.s32.totalorder %s46, 1
      %p127 = scmp.ne.s32.totalorder %s122, %s124
      %p128 = scmp.eq.s32.totalorder %s46, 0
      %p129 = por %p127, %p128
      %p130 = scmp.ne.s32.totalorder %s122, %s124
      %p131 = scmp.eq.s32.totalorder %s51, 1
      %p132 = por %p130, %p131
      %p133 = scmp.ne.s32.totalorder %s124, %s125
      %p134 = scmp.eq.s32.totalorder %s51, 0
      %p135 = por %p133, %p134
      %p136 = scmp.ne.s32.totalorder %s124, %s125
      %p137 = scmp.eq.s32.totalorder %s52, 1
      %p138 = por %p136, %p137
      %p140 = scmp.ne.s32.totalorder %s125, %s139
      %p141 = scmp.eq.s32.totalorder %s52, 0
      %p142 = por %p140, %p141
      %s144 = sadd.s32 %s143, 1
      %p147 = scmp.eq.s32.totalorder %s46, 1
      %p148 = scmp.ne.s32.totalorder %s143, %s145
      %p149 = scmp.eq.s32.totalorder %s46, 0
      %p150 = por %p148, %p149
      %p151 = scmp.ne.s32.totalorder %s143, %s145
      %p152 = scmp.eq.s32.totalorder %s51, 1
      %p153 = por %p151, %p152
      %p154 = scmp.ne.s32.totalorder %s145, %s146
      %p155 = scmp.eq.s32.totalorder %s51, 0
      %p156 = por %p154, %p155
      %p157 = scmp.ne.s32.totalorder %s145, %s146
      %p158 = scmp.eq.s32.totalorder %s52, 1
      %p159 = por %p157, %p158
      %p161 = scmp.ne.s32.totalorder %s146, %s160
      %p162 = scmp.eq.s32.totalorder %s52, 0
      %p163 = por %p161, %p162
      %s165 = sadd.s32 %s164, 1
      %p168 = scmp.eq.s32.totalorder %s46, 1
      %p169 = scmp.ne.s32.totalorder %s164, %s166
      %p170 = scmp.eq.s32.totalorder %s46, 0
      %p171 = por %p169, %p170
      %p172 = scmp.ne.s32.totalorder %s164, %s166
      %p173 = scmp.eq.s32.totalorder %s51, 1
      %p174 = por %p172, %p173
      %p175 = scmp.ne.s32.totalorder %s166, %s167
      %p176 = scmp.eq.s32.totalorder %s51, 0
      %p177 = por %p175, %p176
      %p178 = scmp.ne.s32.totalorder %s166, %s167
      %p179 = scmp.eq.s32.totalorder %s52, 1
      %p180 = por %p178, %p179
      %p182 = scmp.ne.s32.totalorder %s167, %s181
      %p183 = scmp.eq.s32.totalorder %s52, 0
      %p184 = por %p182, %p183
      %s186 = sadd.s32 %s185, 1
      %p189 = scmp.eq.s32.totalorder %s46, 1
      %p190 = scmp.ne.s32.totalorder %s185, %s187
      %p191 = scmp.eq.s32.totalorder %s46, 0
      %p192 = por %p190, %p191
      %p193 = scmp.ne.s32.totalorder %s185, %s187
      %p194 = scmp.eq.s32.totalorder %s51, 1
      %p195 = por %p193, %p194
      %p196 = scmp.ne.s32.totalorder %s187, %s188
      %p197 = scmp.eq.s32.totalorder %s51, 0
      %p198 = por %p196, %p197
      %p199 = scmp.ne.s32.totalorder %s187, %s188
      %p200 = scmp.eq.s32.totalorder %s52, 1
      %p201 = por %p199, %p200
      %p203 = scmp.ne.s32.totalorder %s188, %s202
      %p204 = scmp.eq.s32.totalorder %s52, 0
      %p205 = por %p203, %p204
      %s207 = sadd.s32 %s206, 1
      %p210 = scmp.eq.s32.totalorder %s46, 1
      %p211 = scmp.ne.s32.totalorder %s206, %s208
      %p212 = scmp.eq.s32.totalorder %s46, 0
      %p213 = por %p211, %p212
      %p214 = scmp.ne.s32.totalorder %s206, %s208
      %p215 = scmp.eq.s32.totalorder %s51, 1
      %p216 = por %p214, %p215
      %p217 = scmp.ne.s32.totalorder %s208, %s209
      %p218 = scmp.eq.s32.totalorder %s51, 0
      %p219 = por %p217, %p218
      %p220 = scmp.ne.s32.totalorder %s208, %s209
      %p221 = scmp.eq.s32.totalorder %s52, 1
      %p222 = por %p220, %p221
      %p224 = scmp.ne.s32.totalorder %s209, %s223
      %p225 = scmp.eq.s32.totalorder %s52, 0
      %p226 = por %p224, %p225
      %s228 = sadd.s32 %s227, 1
      %p231 = scmp.eq.s32.totalorder %s46, 1
      %p232 = scmp.ne.s32.totalorder %s227, %s229
      %p233 = scmp.eq.s32.totalorder %s46, 0
      %p234 = por %p232, %p233
      %p235 = scmp.ne.s32.totalorder %s227, %s229
      %p236 = scmp.eq.s32.totalorder %s51, 1
      %p237 = por %p235, %p236
      %p238 = scmp.ne.s32.totalorder %s229, %s230
      %p239 = scmp.eq.s32.totalorder %s51, 0
      %p240 = por %p238, %p239
      %p241 = scmp.ne.s32.totalorder %s229, %s230
      %p242 = scmp.eq.s32.totalorder %s52, 1
      %p243 = por %p241, %p242
      %p245 = scmp.ne.s32.totalorder %s230, %s244
      %p246 = scmp.eq.s32.totalorder %s52, 0
      %p247 = por %p245, %p246
      %s249 = sadd.s32 %s248, 1
      %p252 = scmp.eq.s32.totalorder %s46, 1
      %p253 = scmp.ne.s32.totalorder %s248, %s250
      %p254 = scmp.eq.s32.totalorder %s46, 0
      %p255 = por %p253, %p254
      %p256 = scmp.ne.s32.totalorder %s248, %s250
      %p257 = scmp.eq.s32.totalorder %s51, 1
      %p258 = por %p256, %p257
      %p259 = scmp.ne.s32.totalorder %s250, %s251
      %p260 = scmp.eq.s32.totalorder %s51, 0
      %p261 = por %p259, %p260
      %p262 = scmp.ne.s32.totalorder %s250, %s251
      %p263 = scmp.eq.s32.totalorder %s52, 1
      %p264 = por %p262, %p263
      %p266 = scmp.ne.s32.totalorder %s251, %s265
      %p267 = scmp.eq.s32.totalorder %s52, 0
      %p268 = por %p266, %p267
      %s270 = sadd.s32 %s269, 1
      %p273 = scmp.eq.s32.totalorder %s46, 1
      %p274 = scmp.ne.s32.totalorder %s269, %s271
      %p275 = scmp.eq.s32.totalorder %s46, 0
      %p276 = por %p274, %p275
      %p277 = scmp.ne.s32.totalorder %s269, %s271
      %p278 = scmp.eq.s32.totalorder %s51, 1
      %p279 = por %p277, %p278
      %p280 = scmp.ne.s32.totalorder %s271, %s272
      %p281 = scmp.eq.s32.totalorder %s51, 0
      %p282 = por %p280, %p281
      %p283 = scmp.ne.s32.totalorder %s271, %s272
      %p284 = scmp.eq.s32.totalorder %s52, 1
      %p285 = por %p283, %p284
      %p287 = scmp.ne.s32.totalorder %s272, %s286
      %p288 = scmp.eq.s32.totalorder %s52, 0
      %p289 = por %p287, %p288
      %s291 = sadd.s32 %s290, 1
      %p294 = scmp.eq.s32.totalorder %s46, 1
      %p295 = scmp.ne.s32.totalorder %s290, %s292
      %p296 = scmp.eq.s32.totalorder %s46, 0
      %p297 = por %p295, %p296
      %p298 = scmp.ne.s32.totalorder %s290, %s292
      %p299 = scmp.eq.s32.totalorder %s51, 1
      %p300 = por %p298, %p299
      %p301 = scmp.ne.s32.totalorder %s292, %s293
      %p302 = scmp.eq.s32.totalorder %s51, 0
      %p303 = por %p301, %p302
      %p304 = scmp.ne.s32.totalorder %s292, %s293
      %p305 = scmp.eq.s32.totalorder %s52, 1
      %p306 = por %p304, %p305
      %p308 = scmp.ne.s32.totalorder %s293, %s307
      %p309 = scmp.eq.s32.totalorder %s52, 0
      %p310 = por %p308, %p309
      %s312 = sadd.s32 %s311, 1
      %p315 = scmp.eq.s32.totalorder %s46, 1
      %p316 = scmp.ne.s32.totalorder %s311, %s313
      %p317 = scmp.eq.s32.totalorder %s46, 0
      %p318 = por %p316, %p317
      %p319 = scmp.ne.s32.totalorder %s311, %s313
      %p320 = scmp.eq.s32.totalorder %s51, 1
      %p321 = por %p319, %p320
      %p322 = scmp.ne.s32.totalorder %s313, %s314
      %p323 = scmp.eq.s32.totalorder %s51, 0
      %p324 = por %p322, %p323
      %p325 = scmp.ne.s32.totalorder %s313, %s314
      %p326 = scmp.eq.s32.totalorder %s52, 1
      %p327 = por %p325, %p326
      %p329 = scmp.ne.s32.totalorder %s314, %s328
      %p330 = scmp.eq.s32.totalorder %s52, 0
      %p331 = por %p329, %p330
      %s333 = sadd.s32 %s332, 1
      %p336 = scmp.eq.s32.totalorder %s46, 1
      %p337 = scmp.ne.s32.totalorder %s332, %s334
      %p338 = scmp.eq.s32.totalorder %s46, 0
      %p339 = por %p337, %p338
      %p340 = scmp.ne.s32.totalorder %s332, %s334
      %p341 = scmp.eq.s32.totalorder %s51, 1
      %p342 = por %p340, %p341
      %p343 = scmp.ne.s32.totalorder %s334, %s335
      %p344 = scmp.eq.s32.totalorder %s51, 0
      %p345 = por %p343, %p344
      %p346 = scmp.ne.s32.totalorder %s334, %s335
      %p347 = scmp.eq.s32.totalorder %s52, 1
      %p348 = por %p346, %p347
      %p350 = scmp.ne.s32.totalorder %s335, %s349
      %p351 = scmp.eq.s32.totalorder %s52, 0
      %p352 = por %p350, %p351
      %s354 = sadd.s32 %s353, 1
      %p357 = scmp.eq.s32.totalorder %s46, 1
      %p358 = scmp.ne.s32.totalorder %s353, %s355
      %p359 = scmp.eq.s32.totalorder %s46, 0
      %p360 = por %p358, %p359
      %p361 = scmp.ne.s32.totalorder %s353, %s355
      %p362 = scmp.eq.s32.totalorder %s51, 1
      %p363 = por %p361, %p362
      %p364 = scmp.ne.s32.totalorder %s355, %s356
      %p365 = scmp.eq.s32.totalorder %s51, 0
      %p366 = por %p364, %p365
      %p367 = scmp.ne.s32.totalorder %s355, %s356
      %p368 = scmp.eq.s32.totalorder %s52, 1
      %p369 = por %p367, %p368
      %p371 = scmp.ne.s32.totalorder %s356, %s370
      %p372 = scmp.eq.s32.totalorder %s52, 0
      %p373 = por %p371, %p372
      %s375 = sadd.s32 %s374, 1
      %p378 = scmp.eq.s32.totalorder %s46, 1
      %p379 = scmp.ne.s32.totalorder %s374, %s376
      %p380 = scmp.eq.s32.totalorder %s46, 0
      %p381 = por %p379, %p380
      %p382 = scmp.ne.s32.totalorder %s374, %s376
      %p383 = scmp.eq.s32.totalorder %s51, 1
      %p384 = por %p382, %p383
      %p385 = scmp.ne.s32.totalorder %s376, %s377
      %p386 = scmp.eq.s32.totalorder %s51, 0
      %p387 = por %p385, %p386
      %p388 = scmp.ne.s32.totalorder %s376, %s377
      %p389 = scmp.eq.s32.totalorder %s52, 1
      %p390 = por %p388, %p389
      %p392 = scmp.ne.s32.totalorder %s377, %s391
      %p393 = scmp.eq.s32.totalorder %s52, 0
      %p394 = por %p392, %p393
      %s396 = sadd.s32 %s395, 1
      %p399 = scmp.eq.s32.totalorder %s46, 1
      %p400 = scmp.ne.s32.totalorder %s395, %s397
      %p401 = scmp.eq.s32.totalorder %s46, 0
      %p402 = por %p400, %p401
      %p403 = scmp.ne.s32.totalorder %s395, %s397
      %p404 = scmp.eq.s32.totalorder %s51, 1
      %p405 = por %p403, %p404
      %p406 = scmp.ne.s32.totalorder %s397, %s398
      %p407 = scmp.eq.s32.totalorder %s51, 0
      %p408 = por %p406, %p407
      %p409 = scmp.ne.s32.totalorder %s397, %s398
      %p410 = scmp.eq.s32.totalorder %s52, 1
      %p411 = por %p409, %p410
      %p413 = scmp.ne.s32.totalorder %s398, %s412
      %p414 = scmp.eq.s32.totalorder %s52, 0
      %p415 = por %p413, %p414
      %s417 = sadd.s32 %s416, 1
      %p420 = scmp.eq.s32.totalorder %s46, 1
      %p421 = scmp.ne.s32.totalorder %s416, %s418
      %p422 = scmp.eq.s32.totalorder %s46, 0
      %p423 = por %p421, %p422
      %p424 = scmp.ne.s32.totalorder %s416, %s418
      %p425 = scmp.eq.s32.totalorder %s51, 1
      %p426 = por %p424, %p425
      %p427 = scmp.ne.s32.totalorder %s418, %s419
      %p428 = scmp.eq.s32.totalorder %s51, 0
      %p429 = por %p427, %p428
      %p430 = scmp.ne.s32.totalorder %s418, %s419
      %p431 = scmp.eq.s32.totalorder %s52, 1
      %p432 = por %p430, %p431
      %p434 = scmp.ne.s32.totalorder %s419, %s433
      %p435 = scmp.eq.s32.totalorder %s52, 0
      %p436 = por %p434, %p435
      %s438 = sadd.s32 %s437, 1
      %p441 = scmp.eq.s32.totalorder %s46, 1
      %p442 = scmp.ne.s32.totalorder %s437, %s439
      %p443 = scmp.eq.s32.totalorder %s46, 0
      %p444 = por %p442, %p443
      %p445 = scmp.ne.s32.totalorder %s437, %s439
      %p446 = scmp.eq.s32.totalorder %s51, 1
      %p447 = por %p445, %p446
      %p448 = scmp.ne.s32.totalorder %s439, %s440
      %p449 = scmp.eq.s32.totalorder %s51, 0
      %p450 = por %p448, %p449
      %p451 = scmp.ne.s32.totalorder %s439, %s440
      %p452 = scmp.eq.s32.totalorder %s52, 1
      %p453 = por %p451, %p452
      %p455 = scmp.ne.s32.totalorder %s440, %s454
      %p456 = scmp.eq.s32.totalorder %s52, 0
      %p457 = por %p455, %p456
      %s459 = sadd.s32 %s458, 1
      %p462 = scmp.eq.s32.totalorder %s46, 1
      %p463 = scmp.ne.s32.totalorder %s458, %s460
      %p464 = scmp.eq.s32.totalorder %s46, 0
      %p465 = por %p463, %p464
      %p466 = scmp.ne.s32.totalorder %s458, %s460
      %p467 = scmp.eq.s32.totalorder %s51, 1
      %p468 = por %p466, %p467
      %p469 = scmp.ne.s32.totalorder %s460, %s461
      %p470 = scmp.eq.s32.totalorder %s51, 0
      %p471 = por %p469, %p470
      %p472 = scmp.ne.s32.totalorder %s460, %s461
      %p473 = scmp.eq.s32.totalorder %s52, 1
      %p474 = por %p472, %p473
      %p476 = scmp.ne.s32.totalorder %s461, %s475
      %p477 = scmp.eq.s32.totalorder %s52, 0
      %p478 = por %p476, %p477
      %s480 = sadd.s32 %s479, 1
      %p483 = scmp.eq.s32.totalorder %s46, 1
      %p484 = scmp.ne.s32.totalorder %s479, %s481
      %p485 = scmp.eq.s32.totalorder %s46, 0
      %p486 = por %p484, %p485
      %p487 = scmp.ne.s32.totalorder %s479, %s481
      %p488 = scmp.eq.s32.totalorder %s51, 1
      %p489 = por %p487, %p488
      %p490 = scmp.ne.s32.totalorder %s481, %s482
      %p491 = scmp.eq.s32.totalorder %s51, 0
      %p492 = por %p490, %p491
      %p493 = scmp.ne.s32.totalorder %s481, %s482
      %p494 = scmp.eq.s32.totalorder %s52, 1
      %p495 = por %p493, %p494
      %p497 = scmp.ne.s32.totalorder %s482, %s496
      %p498 = scmp.eq.s32.totalorder %s52, 0
      %p499 = por %p497, %p498
      %s501 = sadd.s32 %s500, 1
      %p504 = scmp.eq.s32.totalorder %s46, 1
      %p505 = scmp.ne.s32.totalorder %s500, %s502
      %p506 = scmp.eq.s32.totalorder %s46, 0
      %p507 = por %p505, %p506
      %p508 = scmp.ne.s32.totalorder %s500, %s502
      %p509 = scmp.eq.s32.totalorder %s51, 1
      %p510 = por %p508, %p509
      %p511 = scmp.ne.s32.totalorder %s502, %s503
      %p512 = scmp.eq.s32.totalorder %s51, 0
      %p513 = por %p511, %p512
      %p514 = scmp.ne.s32.totalorder %s502, %s503
      %p515 = scmp.eq.s32.totalorder %s52, 1
      %p516 = por %p514, %p515
      %p518 = scmp.ne.s32.totalorder %s503, %s517
      %p519 = scmp.eq.s32.totalorder %s52, 0
      %p520 = por %p518, %p519
      %s522 = sadd.s32 %s521, 1
      %p525 = scmp.eq.s32.totalorder %s46, 1
      %p526 = scmp.ne.s32.totalorder %s521, %s523
      %p527 = scmp.eq.s32.totalorder %s46, 0
      %p528 = por %p526, %p527
      %p529 = scmp.ne.s32.totalorder %s521, %s523
      %p530 = scmp.eq.s32.totalorder %s51, 1
      %p531 = por %p529, %p530
      %p532 = scmp.ne.s32.totalorder %s523, %s524
      %p533 = scmp.eq.s32.totalorder %s51, 0
      %p534 = por %p532, %p533
      %p535 = scmp.ne.s32.totalorder %s523, %s524
      %p536 = scmp.eq.s32.totalorder %s52, 1
      %p537 = por %p535, %p536
      %p539 = scmp.ne.s32.totalorder %s524, %s538
      %p540 = scmp.eq.s32.totalorder %s52, 0
      %p541 = por %p539, %p540
      %s543 = sadd.s32 %s542, 1
      %p546 = scmp.eq.s32.totalorder %s46, 1
      %p547 = scmp.ne.s32.totalorder %s542, %s544
      %p548 = scmp.eq.s32.totalorder %s46, 0
      %p549 = por %p547, %p548
      %p550 = scmp.ne.s32.totalorder %s542, %s544
      %p551 = scmp.eq.s32.totalorder %s51, 1
      %p552 = por %p550, %p551
      %p553 = scmp.ne.s32.totalorder %s544, %s545
      %p554 = scmp.eq.s32.totalorder %s51, 0
      %p555 = por %p553, %p554
      %p556 = scmp.ne.s32.totalorder %s544, %s545
      %p557 = scmp.eq.s32.totalorder %s52, 1
      %p558 = por %p556, %p557
      %p560 = scmp.ne.s32.totalorder %s545, %s559
      %p561 = scmp.eq.s32.totalorder %s52, 0
      %p562 = por %p560, %p561
      %s564 = sadd.s32 %s563, 1
      %p567 = scmp.eq.s32.totalorder %s46, 1
      %p568 = scmp.ne.s32.totalorder %s563, %s565
      %p569 = scmp.eq.s32.totalorder %s46, 0
      %p570 = por %p568, %p569
      %p571 = scmp.ne.s32.totalorder %s563, %s565
      %p572 = scmp.eq.s32.totalorder %s51, 1
      %p573 = por %p571, %p572
      %p574 = scmp.ne.s32.totalorder %s565, %s566
      %p575 = scmp.eq.s32.totalorder %s51, 0
      %p576 = por %p574, %p575
      %p577 = scmp.ne.s32.totalorder %s565, %s566
      %p578 = scmp.eq.s32.totalorder %s52, 1
      %p579 = por %p577, %p578
      %p581 = scmp.ne.s32.totalorder %s566, %s580
      %p582 = scmp.eq.s32.totalorder %s52, 0
      %p583 = por %p581, %p582
      %s585 = sadd.s32 %s584, 1
      %p588 = scmp.eq.s32.totalorder %s46, 1
      %p589 = scmp.ne.s32.totalorder %s584, %s586
      %p590 = scmp.eq.s32.totalorder %s46, 0
      %p591 = por %p589, %p590
      %p592 = scmp.ne.s32.totalorder %s584, %s586
      %p593 = scmp.eq.s32.totalorder %s51, 1
      %p594 = por %p592, %p593
      %p595 = scmp.ne.s32.totalorder %s586, %s587
      %p596 = scmp.eq.s32.totalorder %s51, 0
      %p597 = por %p595, %p596
      %p598 = scmp.ne.s32.totalorder %s586, %s587
      %p599 = scmp.eq.s32.totalorder %s52, 1
      %p600 = por %p598, %p599
      %p602 = scmp.ne.s32.totalorder %s587, %s601
      %p603 = scmp.eq.s32.totalorder %s52, 0
      %p604 = por %p602, %p603
      %s606 = sadd.s32 %s605, 1
      %p609 = scmp.eq.s32.totalorder %s46, 1
      %p610 = scmp.ne.s32.totalorder %s605, %s607
      %p611 = scmp.eq.s32.totalorder %s46, 0
      %p612 = por %p610, %p611
      %p613 = scmp.ne.s32.totalorder %s605, %s607
      %p614 = scmp.eq.s32.totalorder %s51, 1
      %p615 = por %p613, %p614
      %p616 = scmp.ne.s32.totalorder %s607, %s608
      %p617 = scmp.eq.s32.totalorder %s51, 0
      %p618 = por %p616, %p617
      %p619 = scmp.ne.s32.totalorder %s607, %s608
      %p620 = scmp.eq.s32.totalorder %s52, 1
      %p621 = por %p619, %p620
      %p623 = scmp.ne.s32.totalorder %s608, %s622
      %p624 = scmp.eq.s32.totalorder %s52, 0
      %p625 = por %p623, %p624
      %s626 = ssub.s32 %s46, %s53
      %p627 = scmp.eq.s32.totalorder %s626, 0
      %s629 = sadd.s32 %s628, 1
      %s630 = scalar_select %p627, %s628, %s629
      %p633 = pneg %p627
      %p634 = scmp.eq.s32.totalorder %s46, 1
      %p635 = por %p633, %p634
      %p636 = scmp.ne.s32.totalorder %s628, %s631
      %p637 = scmp.eq.s32.totalorder %s46, 0
      %p638 = por %p636, %p637
      %p639 = scmp.ne.s32.totalorder %s628, %s631
      %p640 = scmp.eq.s32.totalorder %s51, 1
      %p641 = por %p639, %p640
      %p642 = scmp.ne.s32.totalorder %s631, %s632
      %p643 = scmp.eq.s32.totalorder %s51, 0
      %p644 = por %p642, %p643
      %p645 = scmp.ne.s32.totalorder %s631, %s632
      %p646 = scmp.eq.s32.totalorder %s52, 1
      %p647 = por %p645, %p646
      %p649 = scmp.ne.s32.totalorder %s632, %s648
      %p650 = scmp.eq.s32.totalorder %s52, 0
      %p651 = por %p649, %p650
      %p652 = scmp.le.s32.totalorder 1, %s46
      %p653 = scmp.lt.s32.totalorder %s46, 3
      %p654 = pnand %p652, %p653
      %p655 = pneg %p654
      // Predicated region
      $region9: #{tpu_custom_call.1} parent=5 // pred_check
        _
      $region10: #{tpu_custom_call.1} parent=5 // pred_check_branch
        %657 = sbr.rel (%p654) target = $region12
      $region11: #{tpu_custom_call.1} parent=5 // pred_region
        %s658 = ssub.s32 %s46, 1
        // Predicated region
        $region13: #{tpu_custom_call.1} parent=11 // pred_check
          %p659 = pneg %p93
        $region14: #{tpu_custom_call.1} parent=11 // pred_check_branch
          %661 = sbr.rel (%p659) target = $region16
        $region15: #{tpu_custom_call.1} parent=11 // pred_region
          %s663 = ssub.s32 2048, 2048
          %664 = vsyncadd [#allocation6], %s663
          %s665 = sshll.u32 [#allocation5], 4
          %s666 = int_to_ptr.vmem [resolvable:$true] %s665
          %671 = dma.hbm_to_vmem [thread:$0]  %s1, 2048, %s666, [#allocation6], 128, 128, 8
        $region16: #{tpu_custom_call.1} parent=11 // pred_fallthru
          _
        // Predicated region
        $region17: #{tpu_custom_call.1} parent=11 // pred_check
          %p672 = pneg %p114
        $region18: #{tpu_custom_call.1} parent=11 // pred_check_branch
          %674 = sbr.rel (%p672) target = $region20
        $region19: #{tpu_custom_call.1} parent=11 // pred_region
          _
        $region20: #{tpu_custom_call.1} parent=11 // pred_fallthru
          _
        // Predicated region
        $region21: #{tpu_custom_call.1} parent=11 // pred_check
          %p675 = pneg %p135
        $region22: #{tpu_custom_call.1} parent=11 // pred_check_branch
          %677 = sbr.rel (%p675) target = $region24
        $region23: #{tpu_custom_call.1} parent=11 // pred_region
          %s679 = ssub.s32 4096, 4096
          %680 = vsyncadd [#allocation6], %s679
          %s681 = sshll.u32 [#allocation7], 4
          %s682 = int_to_ptr.vmem [resolvable:$true] %s681
          %687 = dma.hbm_to_vmem [thread:$0]  %s3, 4096, %s682, [#allocation6], 128, 128, 8
        $region24: #{tpu_custom_call.1} parent=11 // pred_fallthru
          _
        // Predicated region
        $region25: #{tpu_custom_call.1} parent=11 // pred_check
          %p688 = pneg %p156
        $region26: #{tpu_custom_call.1} parent=11 // pred_check_branch
          %690 = sbr.rel (%p688) target = $region28
        $region27: #{tpu_custom_call.1} parent=11 // pred_region
          _
        $region28: #{tpu_custom_call.1} parent=11 // pred_fallthru
          _
        // Predicated region
        $region29: #{tpu_custom_call.1} parent=11 // pred_check
          %p691 = pneg %p177
        $region30: #{tpu_custom_call.1} parent=11 // pred_check_branch
          %693 = sbr.rel (%p691) target = $region32
        $region31: #{tpu_custom_call.1} parent=11 // pred_region
          %s695 = ssub.s32 4096, 4096
          %696 = vsyncadd [#allocation9], %s695
          %s697 = sshll.u32 [#allocation8], 4
          %s698 = int_to_ptr.vmem [resolvable:$true] %s697
          %703 = dma.hbm_to_vmem [thread:$0]  %s5, 4096, %s698, [#allocation9], 128, 128, 8
        $region32: #{tpu_custom_call.1} parent=11 // pred_fallthru
          _
        // Predicated region
        $region33: #{tpu_custom_call.1} parent=11 // pred_check
          %p704 = pneg %p198
        $region34: #{tpu_custom_call.1} parent=11 // pred_check_branch
          %706 = sbr.rel (%p704) target = $region36
        $region35: #{tpu_custom_call.1} parent=11 // pred_region
          _
        $region36: #{tpu_custom_call.1} parent=11 // pred_fallthru
          _
        // Predicated region
        $region37: #{tpu_custom_call.1} parent=11 // pred_check
          %p707 = pneg %p219
        $region38: #{tpu_custom_call.1} parent=11 // pred_check_branch
          %709 = sbr.rel (%p707) target = $region40
        $region39: #{tpu_custom_call.1} parent=11 // pred_region
          %s711 = ssub.s32 4096, 4096
          %712 = vsyncadd [#allocation9], %s711
          %s713 = sshll.u32 [#allocation10], 4
          %s714 = int_to_ptr.vmem [resolvable:$true] %s713
          %719 = dma.hbm_to_vmem [thread:$0]  %s7, 4096, %s714, [#allocation9], 128, 128, 8
        $region40: #{tpu_custom_call.1} parent=11 // pred_fallthru
          _
        // Predicated region
        $region41: #{tpu_custom_call.1} parent=11 // pred_check
          %p720 = pneg %p240
        $region42: #{tpu_custom_call.1} parent=11 // pred_check_branch
          %722 = sbr.rel (%p720) target = $region44
        $region43: #{tpu_custom_call.1} parent=11 // pred_region
          _
        $region44: #{tpu_custom_call.1} parent=11 // pred_fallthru
          _
        // Predicated region
        $region45: #{tpu_custom_call.1} parent=11 // pred_check
          %p723 = pneg %p261
        $region46: #{tpu_custom_call.1} parent=11 // pred_check_branch
          %725 = sbr.rel (%p723) target = $region48
        $region47: #{tpu_custom_call.1} parent=11 // pred_region
          %s727 = ssub.s32 4096, 4096
          %728 = vsyncadd [#allocation12], %s727
          %s729 = sshll.u32 [#allocation11], 4
          %s730 = int_to_ptr.vmem [resolvable:$true] %s729
          %735 = dma.hbm_to_vmem [thread:$0]  %s9, 4096, %s730, [#allocation12], 128, 128, 8
        $region48: #{tpu_custom_call.1} parent=11 // pred_fallthru
          _
        // Predicated region
        $region49: #{tpu_custom_call.1} parent=11 // pred_check
          %p736 = pneg %p282
        $region50: #{tpu_custom_call.1} parent=11 // pred_check_branch
          %738 = sbr.rel (%p736) target = $region52
        $region51: #{tpu_custom_call.1} parent=11 // pred_region
          %s740 = ssub.s32 2048, 2048
          %741 = vsyncadd [#allocation12], %s740
          %s742 = sshll.u32 [#allocation13], 4
          %s743 = int_to_ptr.vmem [resolvable:$true] %s742
          %748 = dma.hbm_to_vmem [thread:$0]  %s10, 2048, %s743, [#allocation12], 128, 128, 8
        $region52: #{tpu_custom_call.1} parent=11 // pred_fallthru
          _
        // Predicated region
        $region53: #{tpu_custom_call.1} parent=11 // pred_check
          %p749 = pneg %p303
        $region54: #{tpu_custom_call.1} parent=11 // pred_check_branch
          %751 = sbr.rel (%p749) target = $region56
        $region55: #{tpu_custom_call.1} parent=11 // pred_region
          _
        $region56: #{tpu_custom_call.1} parent=11 // pred_fallthru
          _
        // Predicated region
        $region57: #{tpu_custom_call.1} parent=11 // pred_check
          %p752 = pneg %p324
        $region58: #{tpu_custom_call.1} parent=11 // pred_check_branch
          %754 = sbr.rel (%p752) target = $region60
        $region59: #{tpu_custom_call.1} parent=11 // pred_region
          %s756 = ssub.s32 4096, 4096
          %757 = vsyncadd [#allocation15], %s756
          %s758 = sshll.u32 [#allocation14], 4
          %s759 = int_to_ptr.vmem [resolvable:$true] %s758
          %764 = dma.hbm_to_vmem [thread:$0]  %s12, 4096, %s759, [#allocation15], 128, 128, 8
        $region60: #{tpu_custom_call.1} parent=11 // pred_fallthru
          _
        // Predicated region
        $region61: #{tpu_custom_call.1} parent=11 // pred_check
          %p765 = pneg %p345
        $region62: #{tpu_custom_call.1} parent=11 // pred_check_branch
          %767 = sbr.rel (%p765) target = $region64
        $region63: #{tpu_custom_call.1} parent=11 // pred_region
          _
        $region64: #{tpu_custom_call.1} parent=11 // pred_fallthru
          _
        // Predicated region
        $region65: #{tpu_custom_call.1} parent=11 // pred_check
          %p768 = pneg %p366
        $region66: #{tpu_custom_call.1} parent=11 // pred_check_branch
          %770 = sbr.rel (%p768) target = $region68
        $region67: #{tpu_custom_call.1} parent=11 // pred_region
          %s772 = ssub.s32 4096, 4096
          %773 = vsyncadd [#allocation15], %s772
          %s774 = sshll.u32 [#allocation16], 4
          %s775 = int_to_ptr.vmem [resolvable:$true] %s774
          %780 = dma.hbm_to_vmem [thread:$0]  %s14, 4096, %s775, [#allocation15], 128, 128, 8
        $region68: #{tpu_custom_call.1} parent=11 // pred_fallthru
          _
        // Predicated region
        $region69: #{tpu_custom_call.1} parent=11 // pred_check
          %p781 = pneg %p387
        $region70: #{tpu_custom_call.1} parent=11 // pred_check_branch
          %783 = sbr.rel (%p781) target = $region72
        $region71: #{tpu_custom_call.1} parent=11 // pred_region
          _
        $region72: #{tpu_custom_call.1} parent=11 // pred_fallthru
          _
        // Predicated region
        $region73: #{tpu_custom_call.1} parent=11 // pred_check
          %p784 = pneg %p408
        $region74: #{tpu_custom_call.1} parent=11 // pred_check_branch
          %786 = sbr.rel (%p784) target = $region76
        $region75: #{tpu_custom_call.1} parent=11 // pred_region
          %s788 = ssub.s32 4096, 4096
          %789 = vsyncadd [#allocation18], %s788
          %s790 = sshll.u32 [#allocation17], 4
          %s791 = int_to_ptr.vmem [resolvable:$true] %s790
          %796 = dma.hbm_to_vmem [thread:$0]  %s16, 4096, %s791, [#allocation18], 128, 128, 8
        $region76: #{tpu_custom_call.1} parent=11 // pred_fallthru
          _
        // Predicated region
        $region77: #{tpu_custom_call.1} parent=11 // pred_check
          %p797 = pneg %p429
        $region78: #{tpu_custom_call.1} parent=11 // pred_check_branch
          %799 = sbr.rel (%p797) target = $region80
        $region79: #{tpu_custom_call.1} parent=11 // pred_region
          _
        $region80: #{tpu_custom_call.1} parent=11 // pred_fallthru
          _
        // Predicated region
        $region81: #{tpu_custom_call.1} parent=11 // pred_check
          %p800 = pneg %p450
        $region82: #{tpu_custom_call.1} parent=11 // pred_check_branch
          %802 = sbr.rel (%p800) target = $region84
        $region83: #{tpu_custom_call.1} parent=11 // pred_region
          %s804 = ssub.s32 2048, 2048
          %805 = vsyncadd [#allocation18], %s804
          %s806 = sshll.u32 [#allocation19], 4
          %s807 = int_to_ptr.vmem [resolvable:$true] %s806
          %812 = dma.hbm_to_vmem [thread:$0]  %s18, 2048, %s807, [#allocation18], 64, 64, 4
        $region84: #{tpu_custom_call.1} parent=11 // pred_fallthru
          _
        // Predicated region
        $region85: #{tpu_custom_call.1} parent=11 // pred_check
          %p813 = pneg %p471
        $region86: #{tpu_custom_call.1} parent=11 // pred_check_branch
          %815 = sbr.rel (%p813) target = $region88
        $region87: #{tpu_custom_call.1} parent=11 // pred_region
          _
        $region88: #{tpu_custom_call.1} parent=11 // pred_fallthru
          _
        // Predicated region
        $region89: #{tpu_custom_call.1} parent=11 // pred_check
          %p816 = pneg %p492
        $region90: #{tpu_custom_call.1} parent=11 // pred_check_branch
          %818 = sbr.rel (%p816) target = $region92
        $region91: #{tpu_custom_call.1} parent=11 // pred_region
          %s820 = ssub.s32 4096, 4096
          %821 = vsyncadd [#allocation21], %s820
          %s822 = sshll.u32 [#allocation20], 4
          %s823 = int_to_ptr.vmem [resolvable:$true] %s822
          %828 = dma.hbm_to_vmem [thread:$0]  %s20, 4096, %s823, [#allocation21], 128, 128, 8
        $region92: #{tpu_custom_call.1} parent=11 // pred_fallthru
          _
        // Predicated region
        $region93: #{tpu_custom_call.1} parent=11 // pred_check
          %p829 = pneg %p513
        $region94: #{tpu_custom_call.1} parent=11 // pred_check_branch
          %831 = sbr.rel (%p829) target = $region96
        $region95: #{tpu_custom_call.1} parent=11 // pred_region
          _
        $region96: #{tpu_custom_call.1} parent=11 // pred_fallthru
          _
        // Predicated region
        $region97: #{tpu_custom_call.1} parent=11 // pred_check
          %p832 = pneg %p534
        $region98: #{tpu_custom_call.1} parent=11 // pred_check_branch
          %834 = sbr.rel (%p832) target = $region100
        $region99: #{tpu_custom_call.1} parent=11 // pred_region
          %s836 = ssub.s32 2048, 2048
          %837 = vsyncadd [#allocation21], %s836
          %s838 = sshll.u32 [#allocation22], 4
          %s839 = int_to_ptr.vmem [resolvable:$true] %s838
          %844 = dma.hbm_to_vmem [thread:$0]  %s22, 2048, %s839, [#allocation21], 64, 64, 4
        $region100: #{tpu_custom_call.1} parent=11 // pred_fallthru
          _
        // Predicated region
        $region101: #{tpu_custom_call.1} parent=11 // pred_check
          %p845 = pneg %p555
        $region102: #{tpu_custom_call.1} parent=11 // pred_check_branch
          %847 = sbr.rel (%p845) target = $region104
        $region103: #{tpu_custom_call.1} parent=11 // pred_region
          _
        $region104: #{tpu_custom_call.1} parent=11 // pred_fallthru
          _
        // Predicated region
        $region105: #{tpu_custom_call.1} parent=11 // pred_check
          %p848 = pneg %p576
        $region106: #{tpu_custom_call.1} parent=11 // pred_check_branch
          %850 = sbr.rel (%p848) target = $region108
        $region107: #{tpu_custom_call.1} parent=11 // pred_region
          _
        $region108: #{tpu_custom_call.1} parent=11 // pred_fallthru
          _
        // Predicated region
        $region109: #{tpu_custom_call.1} parent=11 // pred_check
          %p851 = pneg %p597
        $region110: #{tpu_custom_call.1} parent=11 // pred_check_branch
          %853 = sbr.rel (%p851) target = $region112
        $region111: #{tpu_custom_call.1} parent=11 // pred_region
          %s855 = ssub.s32 1024, 1024
          %856 = vsyncadd [#allocation24], %s855
          %s857 = sshll.u32 [#allocation23], 4
          %s858 = int_to_ptr.vmem [resolvable:$true] %s857
          %863 = dma.hbm_to_vmem [thread:$0]  %s25, 1024, %s858, [#allocation24], 64, 64, 4
        $region112: #{tpu_custom_call.1} parent=11 // pred_fallthru
          _
        // Predicated region
        $region113: #{tpu_custom_call.1} parent=11 // pred_check
          %p864 = pneg %p618
        $region114: #{tpu_custom_call.1} parent=11 // pred_check_branch
          %866 = sbr.rel (%p864) target = $region116
        $region115: #{tpu_custom_call.1} parent=11 // pred_region
          _
        $region116: #{tpu_custom_call.1} parent=11 // pred_fallthru
          _
      $region12: #{tpu_custom_call.1} parent=5 // pred_fallthru
        _
      %p867 = scmp.lt.s32.totalorder %s46, 2
      // Predicated region
      $region117: #{tpu_custom_call.1} parent=5 // pred_check
        %p868 = pneg %p867
      $region118: #{tpu_custom_call.1} parent=5 // pred_check_branch
        %870 = sbr.rel (%p868) target = $region120
      $region119: #{tpu_custom_call.1} parent=5 // pred_region
        // Predicated region
        $region121: #{tpu_custom_call.1} parent=119 // pred_check
          %p871 = pneg %p66
        $region122: #{tpu_custom_call.1} parent=119 // pred_check_branch
          %873 = sbr.rel (%p871) target = $region124
        $region123: #{tpu_custom_call.1} parent=119 // pred_region
          %s874 = sand.u32 %s56, 1
          %s875 = scalar_lea.sflag [#allocation3], %s874
          %s876 = sand.u32 %s56, 1
          %s877 = smul.addr %s876, 128
          %s878 = scalar_lea.vmem [#allocation2], %s877
          %s879 = smul.u32 32, %s46
          %s881 = ssub.s32 2048, 2048
          %882 = vsyncadd %s875, %s881
          %s883 = smul.addr %s879, 64
          %s884 = scalar_lea.hbm %s0, %s883
          %s885 = sshll.u32 %s878, 4
          %s886 = int_to_ptr.vmem [resolvable:$true] %s885
          %891 = dma.hbm_to_vmem [thread:$0]  %s884, 2048, %s886, %s875, 64, 64, 4
        $region124: #{tpu_custom_call.1} parent=119 // pred_fallthru
          _
      $region120: #{tpu_custom_call.1} parent=5 // pred_fallthru
        _
      %p892 = scmp.le.s32.totalorder 1, %s46
      %p893 = scmp.lt.s32.totalorder %s46, 3
      %p894 = pnand %p892, %p893
      %p895 = pneg %p894
      // Predicated region
      $region125: #{tpu_custom_call.1} parent=5 // pred_check
        _
      $region126: #{tpu_custom_call.1} parent=5 // pred_check_branch
        %897 = sbr.rel (%p894) target = $region128
      $region127: #{tpu_custom_call.1} parent=5 // pred_region
        %s898 = ssub.s32 %s46, 1
        %s899 = sand.u32 %s59, 1
        %s900 = scalar_lea.sflag [#allocation3], %s899
        %s901 = sand.u32 %s59, 1
        %s902 = smul.addr %s901, 128
        %s903 = scalar_lea.vmem [#allocation2], %s902
        // Predicated region
        $region129: #{tpu_custom_call.1} parent=127 // pred_check
          %p904 = pneg %p72
        $region130: #{tpu_custom_call.1} parent=127 // pred_check_branch
          %906 = sbr.rel (%p904) target = $region132
        $region131: #{tpu_custom_call.1} parent=127 // pred_region
          %907 = dma.done %s900, 2048
        $region132: #{tpu_custom_call.1} parent=127 // pred_fallthru
          _
        // Predicated region
        $region133: #{tpu_custom_call.1} parent=127 // pred_check
          %p908 = pneg %p93
        $region134: #{tpu_custom_call.1} parent=127 // pred_check_branch
          %910 = sbr.rel (%p908) target = $region136
        $region135: #{tpu_custom_call.1} parent=127 // pred_region
          %911 = dma.done [#allocation6], 2048
        $region136: #{tpu_custom_call.1} parent=127 // pred_fallthru
          _
        // Predicated region
        $region137: #{tpu_custom_call.1} parent=127 // pred_check
          %p912 = pneg %p135
        $region138: #{tpu_custom_call.1} parent=127 // pred_check_branch
          %914 = sbr.rel (%p912) target = $region140
        $region139: #{tpu_custom_call.1} parent=127 // pred_region
          %915 = dma.done [#allocation6], 4096
        $region140: #{tpu_custom_call.1} parent=127 // pred_fallthru
          _
        // Predicated region
        $region141: #{tpu_custom_call.1} parent=127 // pred_check
          %p916 = pneg %p177
        $region142: #{tpu_custom_call.1} parent=127 // pred_check_branch
          %918 = sbr.rel (%p916) target = $region144
        $region143: #{tpu_custom_call.1} parent=127 // pred_region
          %919 = dma.done [#allocation9], 4096
        $region144: #{tpu_custom_call.1} parent=127 // pred_fallthru
          _
        // Predicated region
        $region145: #{tpu_custom_call.1} parent=127 // pred_check
          %p920 = pneg %p219
        $region146: #{tpu_custom_call.1} parent=127 // pred_check_branch
          %922 = sbr.rel (%p920) target = $region148
        $region147: #{tpu_custom_call.1} parent=127 // pred_region
          %923 = dma.done [#allocation9], 4096
        $region148: #{tpu_custom_call.1} parent=127 // pred_fallthru
          _
        // Predicated region
        $region149: #{tpu_custom_call.1} parent=127 // pred_check
          %p924 = pneg %p261
        $region150: #{tpu_custom_call.1} parent=127 // pred_check_branch
          %926 = sbr.rel (%p924) target = $region152
        $region151: #{tpu_custom_call.1} parent=127 // pred_region
          %927 = dma.done [#allocation12], 4096
        $region152: #{tpu_custom_call.1} parent=127 // pred_fallthru
          _
        // Predicated region
        $region153: #{tpu_custom_call.1} parent=127 // pred_check
          %p928 = pneg %p282
        $region154: #{tpu_custom_call.1} parent=127 // pred_check_branch
          %930 = sbr.rel (%p928) target = $region156
        $region155: #{tpu_custom_call.1} parent=127 // pred_region
          %931 = dma.done [#allocation12], 2048
        $region156: #{tpu_custom_call.1} parent=127 // pred_fallthru
          _
        // Predicated region
        $region157: #{tpu_custom_call.1} parent=127 // pred_check
          %p932 = pneg %p324
        $region158: #{tpu_custom_call.1} parent=127 // pred_check_branch
          %934 = sbr.rel (%p932) target = $region160
        $region159: #{tpu_custom_call.1} parent=127 // pred_region
          %935 = dma.done [#allocation15], 4096
        $region160: #{tpu_custom_call.1} parent=127 // pred_fallthru
          _
        // Predicated region
        $region161: #{tpu_custom_call.1} parent=127 // pred_check
          %p936 = pneg %p366
        $region162: #{tpu_custom_call.1} parent=127 // pred_check_branch
          %938 = sbr.rel (%p936) target = $region164
        $region163: #{tpu_custom_call.1} parent=127 // pred_region
          %939 = dma.done [#allocation15], 4096
        $region164: #{tpu_custom_call.1} parent=127 // pred_fallthru
          _
        // Predicated region
        $region165: #{tpu_custom_call.1} parent=127 // pred_check
          %p940 = pneg %p408
        $region166: #{tpu_custom_call.1} parent=127 // pred_check_branch
          %942 = sbr.rel (%p940) target = $region168
        $region167: #{tpu_custom_call.1} parent=127 // pred_region
          %943 = dma.done [#allocation18], 4096
        $region168: #{tpu_custom_call.1} parent=127 // pred_fallthru
          _
        // Predicated region
        $region169: #{tpu_custom_call.1} parent=127 // pred_check
          %p944 = pneg %p450
        $region170: #{tpu_custom_call.1} parent=127 // pred_check_branch
          %946 = sbr.rel (%p944) target = $region172
        $region171: #{tpu_custom_call.1} parent=127 // pred_region
          %947 = dma.done [#allocation18], 2048
        $region172: #{tpu_custom_call.1} parent=127 // pred_fallthru
          _
        // Predicated region
        $region173: #{tpu_custom_call.1} parent=127 // pred_check
          %p948 = pneg %p492
        $region174: #{tpu_custom_call.1} parent=127 // pred_check_branch
          %950 = sbr.rel (%p948) target = $region176
        $region175: #{tpu_custom_call.1} parent=127 // pred_region
          %951 = dma.done [#allocation21], 4096
        $region176: #{tpu_custom_call.1} parent=127 // pred_fallthru
          _
        // Predicated region
        $region177: #{tpu_custom_call.1} parent=127 // pred_check
          %p952 = pneg %p534
        $region178: #{tpu_custom_call.1} parent=127 // pred_check_branch
          %954 = sbr.rel (%p952) target = $region180
        $region179: #{tpu_custom_call.1} parent=127 // pred_region
          %955 = dma.done [#allocation21], 2048
        $region180: #{tpu_custom_call.1} parent=127 // pred_fallthru
          _
        // Predicated region
        $region181: #{tpu_custom_call.1} parent=127 // pred_check
          %p956 = pneg %p597
        $region182: #{tpu_custom_call.1} parent=127 // pred_check_branch
          %958 = sbr.rel (%p956) target = $region184
        $region183: #{tpu_custom_call.1} parent=127 // pred_region
          %959 = dma.done [#allocation24], 1024
        $region184: #{tpu_custom_call.1} parent=127 // pred_fallthru
          _
        %s960 = sand.u32 %s59, 1
        %s961 = scalar_lea.sflag [#allocation3], %s960
        %s962 = sand.u32 %s59, 1
        %s963 = smul.addr %s962, 128
        %s964 = scalar_lea.vmem [#allocation2], %s963
        %p965 = pneg %p72
        %p966 = pneg %p69
        %p967 = pneg %p93
        %p968 = pneg %p90
        %p969 = pneg %p114
        %p970 = pneg %p111
        %p971 = pneg %p135
        %p972 = pneg %p132
        %p973 = pneg %p156
        %p974 = pneg %p153
        %p975 = pneg %p177
        %p976 = pneg %p174
        %p977 = pneg %p198
        %p978 = pneg %p195
        %p979 = pneg %p219
        %p980 = pneg %p216
        %p981 = pneg %p240
        %p982 = pneg %p237
        %p983 = pneg %p261
        %p984 = pneg %p258
        %p985 = pneg %p282
        %p986 = pneg %p279
        %p987 = pneg %p303
        %p988 = pneg %p300
        %p989 = pneg %p324
        %p990 = pneg %p321
        %p991 = pneg %p345
        %p992 = pneg %p342
        %p993 = pneg %p366
        %p994 = pneg %p363
        %p995 = pneg %p387
        %p996 = pneg %p384
        %p997 = pneg %p408
        %p998 = pneg %p405
        %p999 = pneg %p429
        %p1000 = pneg %p426
        %p1001 = pneg %p450
        %p1002 = pneg %p447
        %p1003 = pneg %p471
        %p1004 = pneg %p468
        %p1005 = pneg %p492
        %p1006 = pneg %p489
        %p1007 = pneg %p513
        %p1008 = pneg %p510
        %p1009 = pneg %p534
        %p1010 = pneg %p531
        %p1011 = pneg %p555
        %p1012 = pneg %p552
        %p1013 = pneg %p576
        %p1014 = pneg %p573
        %p1015 = pneg %p597
        %p1016 = pneg %p594
        %p1017 = pneg %p618
        %p1018 = pneg %p615
        %p1019 = pneg %p644
        %p1020 = pneg %p641
        %s1021 = sand.u32 %s631, 1
        %s1022 = scalar_lea.sflag [#allocation4], %s1021
        %s1023 = sand.u32 %s631, 1
        %s1024 = smul.addr %s1023, 256
        %s1025 = scalar_lea.vmem [#allocation25], %s1024
        %s1026 = smul.u32 32, %s51
        %s1027 = smul.u32 32, %s51
        %v1029 = vld [vmem:[%s903] sm:$0xf]
        %v1030 = vld [vmem:[%s903 + $0x4] sm:$0xf]
        %v1031 = vld [vmem:[%s903 + $0x8] sm:$0xf]
        %v1032 = vld [vmem:[%s903 + $0xc] sm:$0xf]
        %v1033 = vld [vmem:[%s903 + $0x10] sm:$0xf]
        %v1034 = vld [vmem:[%s903 + $0x14] sm:$0xf]
        %v1035 = vld [vmem:[%s903 + $0x18] sm:$0xf]
        %v1036 = vld [vmem:[%s903 + $0x1c] sm:$0xf]
        %v1037 = vld [vmem:[%s903 + $0x20] sm:$0xf]
        %v1038 = vld [vmem:[%s903 + $0x24] sm:$0xf]
        %v1039 = vld [vmem:[%s903 + $0x28] sm:$0xf]
        %v1040 = vld [vmem:[%s903 + $0x2c] sm:$0xf]
        %v1041 = vld [vmem:[%s903 + $0x30] sm:$0xf]
        %v1042 = vld [vmem:[%s903 + $0x34] sm:$0xf]
        %v1043 = vld [vmem:[%s903 + $0x38] sm:$0xf]
        %v1044 = vld [vmem:[%s903 + $0x3c] sm:$0xf]
        %v1045 = vld [vmem:[%s903 + $0x40] sm:$0xf]
        %v1046 = vld [vmem:[%s903 + $0x44] sm:$0xf]
        %v1047 = vld [vmem:[%s903 + $0x48] sm:$0xf]
        %v1048 = vld [vmem:[%s903 + $0x4c] sm:$0xf]
        %v1049 = vld [vmem:[%s903 + $0x50] sm:$0xf]
        %v1050 = vld [vmem:[%s903 + $0x54] sm:$0xf]
        %v1051 = vld [vmem:[%s903 + $0x58] sm:$0xf]
        %v1052 = vld [vmem:[%s903 + $0x5c] sm:$0xf]
        %v1053 = vld [vmem:[%s903 + $0x60] sm:$0xf]
        %v1054 = vld [vmem:[%s903 + $0x64] sm:$0xf]
        %v1055 = vld [vmem:[%s903 + $0x68] sm:$0xf]
        %v1056 = vld [vmem:[%s903 + $0x6c] sm:$0xf]
        %v1057 = vld [vmem:[%s903 + $0x70] sm:$0xf]
        %v1058 = vld [vmem:[%s903 + $0x74] sm:$0xf]
        %v1059 = vld [vmem:[%s903 + $0x78] sm:$0xf]
        %v1060 = vld [vmem:[%s903 + $0x7c] sm:$0xf]
        %v1061 = vld [vmem:[#allocation5] sm:$0xff]
        %v1062 = vld [vmem:[#allocation5 + $0x8] sm:$0xff]
        %v1063 = vld [vmem:[#allocation5 + $0x10] sm:$0xff]
        %v1064 = vld [vmem:[#allocation5 + $0x18] sm:$0xff]
        %v1065 = vld [vmem:[#allocation5 + $0x20] sm:$0xff]
        %v1066 = vld [vmem:[#allocation5 + $0x28] sm:$0xff]
        %v1067 = vld [vmem:[#allocation5 + $0x30] sm:$0xff]
        %v1068 = vld [vmem:[#allocation5 + $0x38] sm:$0xff]
        %v1069 = vld [vmem:[#allocation5 + $0x40] sm:$0xff]
        %v1070 = vld [vmem:[#allocation5 + $0x48] sm:$0xff]
        %v1071 = vld [vmem:[#allocation5 + $0x50] sm:$0xff]
        %v1072 = vld [vmem:[#allocation5 + $0x58] sm:$0xff]
        %v1073 = vld [vmem:[#allocation5 + $0x60] sm:$0xff]
        %v1074 = vld [vmem:[#allocation5 + $0x68] sm:$0xff]
        %v1075 = vld [vmem:[#allocation5 + $0x70] sm:$0xff]
        %v1076 = vld [vmem:[#allocation5 + $0x78] sm:$0xff]
        %v1077 = vld [vmem:[%s2] sm:$0x3]
        %v1079 = vlaneseq
        %v1080 = vshrl.u32 %v1079, 7
        %v1081 = vsub.s32 0, %v1080
        %v1082 = vrot.slane %v1077, %v1081
        %v1083 = vlaneseq
        %v1084 = vshrl.u32 %v1083, 7
        %v1085 = vsub.s32 1, %v1084
        %v1086 = vrot.slane %v1077, %v1085
        %v1121 = vunpack.c.l.b16 %v1029
        %v1122 = vunpack.c.l.b16 %v1030
        %v1123 = vunpack.c.l.b16 %v1031
        %v1124 = vunpack.c.l.b16 %v1032
        %v1125 = vunpack.c.l.b16 %v1033
        %v1126 = vunpack.c.l.b16 %v1034
        %v1127 = vunpack.c.l.b16 %v1035
        %v1128 = vunpack.c.l.b16 %v1036
        %v1129 = vunpack.c.l.b16 %v1037
        %v1130 = vunpack.c.l.b16 %v1038
        %v1131 = vunpack.c.l.b16 %v1039
        %v1132 = vunpack.c.l.b16 %v1040
        %v1133 = vunpack.c.l.b16 %v1041
        %v1134 = vunpack.c.l.b16 %v1042
        %v1135 = vunpack.c.l.b16 %v1043
        %v1136 = vunpack.c.l.b16 %v1044
        %v1137 = vunpack.c.l.b16 %v1045
        %v1138 = vunpack.c.l.b16 %v1046
        %v1139 = vunpack.c.l.b16 %v1047
        %v1140 = vunpack.c.l.b16 %v1048
        %v1141 = vunpack.c.l.b16 %v1049
        %v1142 = vunpack.c.l.b16 %v1050
        %v1143 = vunpack.c.l.b16 %v1051
        %v1144 = vunpack.c.l.b16 %v1052
        %v1145 = vunpack.c.l.b16 %v1053
        %v1146 = vunpack.c.l.b16 %v1054
        %v1147 = vunpack.c.l.b16 %v1055
        %v1148 = vunpack.c.l.b16 %v1056
        %v1149 = vunpack.c.l.b16 %v1057
        %v1150 = vunpack.c.l.b16 %v1058
        %v1151 = vunpack.c.l.b16 %v1059
        %v1152 = vunpack.c.l.b16 %v1060
        %v1153 = vpack.c.b16 %v1122, %v1121
        %v1154 = vpack.c.b16 %v1124, %v1123
        %v1155 = vpack.c.b16 %v1126, %v1125
        %v1156 = vpack.c.b16 %v1128, %v1127
        %v1157 = vpack.c.b16 %v1130, %v1129
        %v1158 = vpack.c.b16 %v1132, %v1131
        %v1159 = vpack.c.b16 %v1134, %v1133
        %v1160 = vpack.c.b16 %v1136, %v1135
        %v1161 = vpack.c.b16 %v1138, %v1137
        %v1162 = vpack.c.b16 %v1140, %v1139
        %v1163 = vpack.c.b16 %v1142, %v1141
        %v1164 = vpack.c.b16 %v1144, %v1143
        %v1165 = vpack.c.b16 %v1146, %v1145
        %v1166 = vpack.c.b16 %v1148, %v1147
        %v1167 = vpack.c.b16 %v1150, %v1149
        %v1168 = vpack.c.b16 %v1152, %v1151
        %v1201 = vunpack.c.l.b16 %v1061
        %v1202 = vunpack.c.h.b16 %v1061
        %v1203 = vunpack.c.l.b16 %v1062
        %v1204 = vunpack.c.h.b16 %v1062
        %v1205 = vunpack.c.l.b16 %v1063
        %v1206 = vunpack.c.h.b16 %v1063
        %v1207 = vunpack.c.l.b16 %v1064
        %v1208 = vunpack.c.h.b16 %v1064
        %v1209 = vunpack.c.l.b16 %v1065
        %v1210 = vunpack.c.h.b16 %v1065
        %v1211 = vunpack.c.l.b16 %v1066
        %v1212 = vunpack.c.h.b16 %v1066
        %v1213 = vunpack.c.l.b16 %v1067
        %v1214 = vunpack.c.h.b16 %v1067
        %v1215 = vunpack.c.l.b16 %v1068
        %v1216 = vunpack.c.h.b16 %v1068
        %v1217 = vunpack.c.l.b16 %v1069
        %v1218 = vunpack.c.h.b16 %v1069
        %v1219 = vunpack.c.l.b16 %v1070
        %v1220 = vunpack.c.h.b16 %v1070
        %v1221 = vunpack.c.l.b16 %v1071
        %v1222 = vunpack.c.h.b16 %v1071
        %v1223 = vunpack.c.l.b16 %v1072
        %v1224 = vunpack.c.h.b16 %v1072
        %v1225 = vunpack.c.l.b16 %v1073
        %v1226 = vunpack.c.h.b16 %v1073
        %v1227 = vunpack.c.l.b16 %v1074
        %v1228 = vunpack.c.h.b16 %v1074
        %v1229 = vunpack.c.l.b16 %v1075
        %v1230 = vunpack.c.h.b16 %v1075
        %v1231 = vunpack.c.l.b16 %v1076
        %v1232 = vunpack.c.h.b16 %v1076
        %v1233 = vpack.c.b16 %v1203, %v1201
        %v1234 = vpack.c.b16 %v1204, %v1202
        %v1235 = vpack.c.b16 %v1207, %v1205
        %v1236 = vpack.c.b16 %v1208, %v1206
        %v1237 = vpack.c.b16 %v1211, %v1209
        %v1238 = vpack.c.b16 %v1212, %v1210
        %v1239 = vpack.c.b16 %v1215, %v1213
        %v1240 = vpack.c.b16 %v1216, %v1214
        %v1241 = vpack.c.b16 %v1219, %v1217
        %v1242 = vpack.c.b16 %v1220, %v1218
        %v1243 = vpack.c.b16 %v1223, %v1221
        %v1244 = vpack.c.b16 %v1224, %v1222
        %v1245 = vpack.c.b16 %v1227, %v1225
        %v1246 = vpack.c.b16 %v1228, %v1226
        %v1247 = vpack.c.b16 %v1231, %v1229
        %v1248 = vpack.c.b16 %v1232, %v1230
        %1265 = vmatprep.subr.bf16.mxu0 %v1234
        %1266 = vmatpush1.bf16.msra.mxu0 %v1233
        %1267 = vmatprep.subr.bf16.mxu0 %v1236
        %1268 = vmatpush1.bf16.msra.mxu0 %v1235
        %1269 = vmatprep.subr.bf16.mxu0 %v1238
        %1270 = vmatpush1.bf16.msra.mxu0 %v1237
        %1271 = vmatprep.subr.bf16.mxu0 %v1240
        %1272 = vmatpush1.bf16.msra.mxu0 %v1239
        %1273 = vmatprep.subr.bf16.mxu0 %v1242
        %1274 = vmatpush1.bf16.msra.mxu0 %v1241
        %1275 = vmatprep.subr.bf16.mxu0 %v1244
        %1276 = vmatpush1.bf16.msra.mxu0 %v1243
        %1277 = vmatprep.subr.bf16.mxu0 %v1246
        %1278 = vmatpush1.bf16.msra.mxu0 %v1245
        %1279 = vmatprep.subr.bf16.mxu0 %v1248
        %1280 = vmatpush1.bf16.msra.mxu0 %v1247
        %1281 = vmatprep.subr.bf16.mxu0 0
        %1282 = vmatpush1.bf16.msra.mxu0 0
        %1283 = vmatprep.subr.bf16.mxu0 0
        %1284 = vmatpush1.bf16.msra.mxu0 0
        %1285 = vmatprep.subr.bf16.mxu0 0
        %1286 = vmatpush1.bf16.msra.mxu0 0
        %1287 = vmatprep.subr.bf16.mxu0 0
        %1288 = vmatpush1.bf16.msra.mxu0 0
        %1289 = vmatprep.subr.bf16.mxu0 0
        %1290 = vmatpush1.bf16.msra.mxu0 0
        %1291 = vmatprep.subr.bf16.mxu0 0
        %1292 = vmatpush1.bf16.msra.mxu0 0
        %1293 = vmatprep.subr.bf16.mxu0 0
        %1294 = vmatpush1.bf16.msra.mxu0 0
        %1295 = vmatprep.subr.bf16.mxu0 0
        %1296 = vmatpush1.bf16.msra.mxu0 0
        %1297 = vmatprep.mubr.bf16.mxu0 0
        %1298 = vmatmul.mubr.bf16.gmra.mrb[0].mxu0 %v1153
        %v1299 = vpop.f32.mrb[0].mxu0
        %v1300 = vadd.f32 %v1082, %v1299
        %v1301 = vpop.f32.mrb[0].mxu0
        %v1302 = vadd.f32 %v1086, %v1301
        %v1303 = vpop.f32.mrb[0].mxu0
        %v1304 = vadd.f32 %v1082, %v1303
        %v1305 = vpop.f32.mrb[0].mxu0
        %v1306 = vadd.f32 %v1086, %v1305
        %1307 = vmatprep.mubr.bf16.mxu0 0
        %1308 = vmatmul.mubr.bf16.gmra.mrb[0].mxu0 %v1154
        %v1309 = vpop.f32.mrb[0].mxu0
        %v1310 = vadd.f32 %v1082, %v1309
        %v1311 = vpop.f32.mrb[0].mxu0
        %v1312 = vadd.f32 %v1086, %v1311
        %v1313 = vpop.f32.mrb[0].mxu0
        %v1314 = vadd.f32 %v1082, %v1313
        %v1315 = vpop.f32.mrb[0].mxu0
        %v1316 = vadd.f32 %v1086, %v1315
        %1317 = vmatprep.mubr.bf16.mxu0 0
        %1318 = vmatmul.mubr.bf16.gmra.mrb[0].mxu0 %v1155
        %v1319 = vpop.f32.mrb[0].mxu0
        %v1320 = vadd.f32 %v1082, %v1319
        %v1321 = vpop.f32.mrb[0].mxu0
        %v1322 = vadd.f32 %v1086, %v1321
        %v1323 = vpop.f32.mrb[0].mxu0
        %v1324 = vadd.f32 %v1082, %v1323
        %v1325 = vpop.f32.mrb[0].mxu0
        %v1326 = vadd.f32 %v1086, %v1325
        %1327 = vmatprep.mubr.bf16.mxu0 0
        %1328 = vmatmul.mubr.bf16.gmra.mrb[0].mxu0 %v1156
        %v1329 = vpop.f32.mrb[0].mxu0
        %v1330 = vadd.f32 %v1082, %v1329
        %v1331 = vpop.f32.mrb[0].mxu0
        %v1332 = vadd.f32 %v1086, %v1331
        %v1333 = vpop.f32.mrb[0].mxu0
        %v1334 = vadd.f32 %v1082, %v1333
        %v1335 = vpop.f32.mrb[0].mxu0
        %v1336 = vadd.f32 %v1086, %v1335
        %1337 = vmatprep.mubr.bf16.mxu0 0
        %1338 = vmatmul.mubr.bf16.gmra.mrb[0].mxu0 %v1157
        %v1339 = vpop.f32.mrb[0].mxu0
        %v1340 = vadd.f32 %v1082, %v1339
        %v1341 = vpop.f32.mrb[0].mxu0
        %v1342 = vadd.f32 %v1086, %v1341
        %v1343 = vpop.f32.mrb[0].mxu0
        %v1344 = vadd.f32 %v1082, %v1343
        %v1345 = vpop.f32.mrb[0].mxu0
        %v1346 = vadd.f32 %v1086, %v1345
        %1347 = vmatprep.mubr.bf16.mxu0 0
        %1348 = vmatmul.mubr.bf16.gmra.mrb[0].mxu0 %v1158
        %v1349 = vpop.f32.mrb[0].mxu0
        %v1350 = vadd.f32 %v1082, %v1349
        %v1351 = vpop.f32.mrb[0].mxu0
        %v1352 = vadd.f32 %v1086, %v1351
        %v1353 = vpop.f32.mrb[0].mxu0
        %v1354 = vadd.f32 %v1082, %v1353
        %v1355 = vpop.f32.mrb[0].mxu0
        %v1356 = vadd.f32 %v1086, %v1355
        %1357 = vmatprep.mubr.bf16.mxu0 0
        %1358 = vmatmul.mubr.bf16.gmra.mrb[0].mxu0 %v1159
        %v1359 = vpop.f32.mrb[0].mxu0
        %v1360 = vadd.f32 %v1082, %v1359
        %v1361 = vpop.f32.mrb[0].mxu0
        %v1362 = vadd.f32 %v1086, %v1361
        %v1363 = vpop.f32.mrb[0].mxu0
        %v1364 = vadd.f32 %v1082, %v1363
        %v1365 = vpop.f32.mrb[0].mxu0
        %v1366 = vadd.f32 %v1086, %v1365
        %1367 = vmatprep.mubr.bf16.mxu0 0
        %1368 = vmatmul.mubr.bf16.gmra.mrb[0].mxu0 %v1160
        %v1369 = vpop.f32.mrb[0].mxu0
        %v1370 = vadd.f32 %v1082, %v1369
        %v1371 = vpop.f32.mrb[0].mxu0
        %v1372 = vadd.f32 %v1086, %v1371
        %v1373 = vpop.f32.mrb[0].mxu0
        %v1374 = vadd.f32 %v1082, %v1373
        %v1375 = vpop.f32.mrb[0].mxu0
        %v1376 = vadd.f32 %v1086, %v1375
        %1377 = vmatprep.mubr.bf16.mxu0 0
        %1378 = vmatmul.mubr.bf16.gmra.mrb[0].mxu0 %v1161
        %v1379 = vpop.f32.mrb[0].mxu0
        %v1380 = vadd.f32 %v1082, %v1379
        %v1381 = vpop.f32.mrb[0].mxu0
        %v1382 = vadd.f32 %v1086, %v1381
        %v1383 = vpop.f32.mrb[0].mxu0
        %v1384 = vadd.f32 %v1082, %v1383
        %v1385 = vpop.f32.mrb[0].mxu0
        %v1386 = vadd.f32 %v1086, %v1385
        %1387 = vmatprep.mubr.bf16.mxu0 0
        %1388 = vmatmul.mubr.bf16.gmra.mrb[0].mxu0 %v1162
        %v1389 = vpop.f32.mrb[0].mxu0
        %v1390 = vadd.f32 %v1082, %v1389
        %v1391 = vpop.f32.mrb[0].mxu0
        %v1392 = vadd.f32 %v1086, %v1391
        %v1393 = vpop.f32.mrb[0].mxu0
        %v1394 = vadd.f32 %v1082, %v1393
        %v1395 = vpop.f32.mrb[0].mxu0
        %v1396 = vadd.f32 %v1086, %v1395
        %1397 = vmatprep.mubr.bf16.mxu0 0
        %1398 = vmatmul.mubr.bf16.gmra.mrb[0].mxu0 %v1163
        %v1399 = vpop.f32.mrb[0].mxu0
        %v1400 = vadd.f32 %v1082, %v1399
        %v1401 = vpop.f32.mrb[0].mxu0
        %v1402 = vadd.f32 %v1086, %v1401
        %v1403 = vpop.f32.mrb[0].mxu0
        %v1404 = vadd.f32 %v1082, %v1403
        %v1405 = vpop.f32.mrb[0].mxu0
        %v1406 = vadd.f32 %v1086, %v1405
        %1407 = vmatprep.mubr.bf16.mxu0 0
        %1408 = vmatmul.mubr.bf16.gmra.mrb[0].mxu0 %v1164
        %v1409 = vpop.f32.mrb[0].mxu0
        %v1410 = vadd.f32 %v1082, %v1409
        %v1411 = vpop.f32.mrb[0].mxu0
        %v1412 = vadd.f32 %v1086, %v1411
        %v1413 = vpop.f32.mrb[0].mxu0
        %v1414 = vadd.f32 %v1082, %v1413
        %v1415 = vpop.f32.mrb[0].mxu0
        %v1416 = vadd.f32 %v1086, %v1415
        %1417 = vmatprep.mubr.bf16.mxu0 0
        %1418 = vmatmul.mubr.bf16.gmra.mrb[0].mxu0 %v1165
        %v1419 = vpop.f32.mrb[0].mxu0
        %v1420 = vadd.f32 %v1082, %v1419
        %v1421 = vpop.f32.mrb[0].mxu0
        %v1422 = vadd.f32 %v1086, %v1421
        %v1423 = vpop.f32.mrb[0].mxu0
        %v1424 = vadd.f32 %v1082, %v1423
        %v1425 = vpop.f32.mrb[0].mxu0
        %v1426 = vadd.f32 %v1086, %v1425
        %1427 = vmatprep.mubr.bf16.mxu0 0
        %1428 = vmatmul.mubr.bf16.gmra.mrb[0].mxu0 %v1166
        %v1429 = vpop.f32.mrb[0].mxu0
        %v1430 = vadd.f32 %v1082, %v1429
        %v1431 = vpop.f32.mrb[0].mxu0
        %v1432 = vadd.f32 %v1086, %v1431
        %v1433 = vpop.f32.mrb[0].mxu0
        %v1434 = vadd.f32 %v1082, %v1433
        %v1435 = vpop.f32.mrb[0].mxu0
        %v1436 = vadd.f32 %v1086, %v1435
        %1437 = vmatprep.mubr.bf16.mxu0 0
        %1438 = vmatmul.mubr.bf16.gmra.mrb[0].mxu0 %v1167
        %v1439 = vpop.f32.mrb[0].mxu0
        %v1440 = vadd.f32 %v1082, %v1439
        %v1441 = vpop.f32.mrb[0].mxu0
        %v1442 = vadd.f32 %v1086, %v1441
        %v1443 = vpop.f32.mrb[0].mxu0
        %v1444 = vadd.f32 %v1082, %v1443
        %v1445 = vpop.f32.mrb[0].mxu0
        %v1446 = vadd.f32 %v1086, %v1445
        %1447 = vmatprep.mubr.bf16.mxu0 0
        %1448 = vmatmul.mubr.bf16.gmra.mrb[0].mxu0 %v1168
        %v1449 = vpop.f32.mrb[0].mxu0
        %v1450 = vadd.f32 %v1082, %v1449
        %v1451 = vpop.f32.mrb[0].mxu0
        %v1452 = vadd.f32 %v1086, %v1451
        %v1453 = vpop.f32.mrb[0].mxu0
        %v1454 = vadd.f32 %v1082, %v1453
        %v1455 = vpop.f32.mrb[0].mxu0
        %v1456 = vadd.f32 %v1086, %v1455
        %1457 = vdwg.mxu0
        %v1458 = vmax.f32 %v1300, 0.0
        %v1459 = vmax.f32 %v1302, 0.0
        %v1460 = vmax.f32 %v1304, 0.0
        %v1461 = vmax.f32 %v1306, 0.0
        %v1462 = vmax.f32 %v1310, 0.0
        %v1463 = vmax.f32 %v1312, 0.0
        %v1464 = vmax.f32 %v1314, 0.0
        %v1465 = vmax.f32 %v1316, 0.0
        %v1466 = vmax.f32 %v1320, 0.0
        %v1467 = vmax.f32 %v1322, 0.0
        %v1468 = vmax.f32 %v1324, 0.0
        %v1469 = vmax.f32 %v1326, 0.0
        %v1470 = vmax.f32 %v1330, 0.0
        %v1471 = vmax.f32 %v1332, 0.0
        %v1472 = vmax.f32 %v1334, 0.0
        %v1473 = vmax.f32 %v1336, 0.0
        %v1474 = vmax.f32 %v1340, 0.0
        %v1475 = vmax.f32 %v1342, 0.0
        %v1476 = vmax.f32 %v1344, 0.0
        %v1477 = vmax.f32 %v1346, 0.0
        %v1478 = vmax.f32 %v1350, 0.0
        %v1479 = vmax.f32 %v1352, 0.0
        %v1480 = vmax.f32 %v1354, 0.0
        %v1481 = vmax.f32 %v1356, 0.0
        %v1482 = vmax.f32 %v1360, 0.0
        %v1483 = vmax.f32 %v1362, 0.0
        %v1484 = vmax.f32 %v1364, 0.0
        %v1485 = vmax.f32 %v1366, 0.0
        %v1486 = vmax.f32 %v1370, 0.0
        %v1487 = vmax.f32 %v1372, 0.0
        %v1488 = vmax.f32 %v1374, 0.0
        %v1489 = vmax.f32 %v1376, 0.0
        %v1490 = vmax.f32 %v1380, 0.0
        %v1491 = vmax.f32 %v1382, 0.0
        %v1492 = vmax.f32 %v1384, 0.0
        %v1493 = vmax.f32 %v1386, 0.0
        %v1494 = vmax.f32 %v1390, 0.0
        %v1495 = vmax.f32 %v1392, 0.0
        %v1496 = vmax.f32 %v1394, 0.0
        %v1497 = vmax.f32 %v1396, 0.0
        %v1498 = vmax.f32 %v1400, 0.0
        %v1499 = vmax.f32 %v1402, 0.0
        %v1500 = vmax.f32 %v1404, 0.0
        %v1501 = vmax.f32 %v1406, 0.0
        %v1502 = vmax.f32 %v1410, 0.0
        %v1503 = vmax.f32 %v1412, 0.0
        %v1504 = vmax.f32 %v1414, 0.0
        %v1505 = vmax.f32 %v1416, 0.0
        %v1506 = vmax.f32 %v1420, 0.0
        %v1507 = vmax.f32 %v1422, 0.0
        %v1508 = vmax.f32 %v1424, 0.0
        %v1509 = vmax.f32 %v1426, 0.0
        %v1510 = vmax.f32 %v1430, 0.0
        %v1511 = vmax.f32 %v1432, 0.0
        %v1512 = vmax.f32 %v1434, 0.0
        %v1513 = vmax.f32 %v1436, 0.0
        %v1514 = vmax.f32 %v1440, 0.0
        %v1515 = vmax.f32 %v1442, 0.0
        %v1516 = vmax.f32 %v1444, 0.0
        %v1517 = vmax.f32 %v1446, 0.0
        %v1518 = vmax.f32 %v1450, 0.0
        %v1519 = vmax.f32 %v1452, 0.0
        %v1520 = vmax.f32 %v1454, 0.0
        %v1521 = vmax.f32 %v1456, 0.0
        %v1522 = vpack.c.bf16 %v1460, %v1458
        %v1523 = vpack.c.bf16 %v1461, %v1459
        %v1524 = vpack.c.bf16 %v1464, %v1462
        %v1525 = vpack.c.bf16 %v1465, %v1463
        %v1526 = vpack.c.bf16 %v1468, %v1466
        %v1527 = vpack.c.bf16 %v1469, %v1467
        %v1528 = vpack.c.bf16 %v1472, %v1470
        %v1529 = vpack.c.bf16 %v1473, %v1471
        %v1530 = vpack.c.bf16 %v1476, %v1474
        %v1531 = vpack.c.bf16 %v1477, %v1475
        %v1532 = vpack.c.bf16 %v1480, %v1478
        %v1533 = vpack.c.bf16 %v1481, %v1479
        %v1534 = vpack.c.bf16 %v1484, %v1482
        %v1535 = vpack.c.bf16 %v1485, %v1483
        %v1536 = vpack.c.bf16 %v1488, %v1486
        %v1537 = vpack.c.bf16 %v1489, %v1487
        %v1538 = vpack.c.bf16 %v1492, %v1490
        %v1539 = vpack.c.bf16 %v1493, %v1491
        %v1540 = vpack.c.bf16 %v1496, %v1494
        %v1541 = vpack.c.bf16 %v1497, %v1495
        %v1542 = vpack.c.bf16 %v1500, %v1498
        %v1543 = vpack.c.bf16 %v1501, %v1499
        %v1544 = vpack.c.bf16 %v1504, %v1502
        %v1545 = vpack.c.bf16 %v1505, %v1503
        %v1546 = vpack.c.bf16 %v1508, %v1506
        %v1547 = vpack.c.bf16 %v1509, %v1507
        %v1548 = vpack.c.bf16 %v1512, %v1510
        %v1549 = vpack.c.bf16 %v1513, %v1511
        %v1550 = vpack.c.bf16 %v1516, %v1514
        %v1551 = vpack.c.bf16 %v1517, %v1515
        %v1552 = vpack.c.bf16 %v1520, %v1518
        %v1553 = vpack.c.bf16 %v1521, %v1519
        %v1554 = vld [vmem:[#allocation7] sm:$0xff]
        %v1555 = vld [vmem:[#allocation7 + $0x8] sm:$0xff]
        %v1556 = vld [vmem:[#allocation7 + $0x10] sm:$0xff]
        %v1557 = vld [vmem:[#allocation7 + $0x18] sm:$0xff]
        %v1558 = vld [vmem:[#allocation7 + $0x20] sm:$0xff]
        %v1559 = vld [vmem:[#allocation7 + $0x28] sm:$0xff]
        %v1560 = vld [vmem:[#allocation7 + $0x30] sm:$0xff]
        %v1561 = vld [vmem:[#allocation7 + $0x38] sm:$0xff]
        %v1562 = vld [vmem:[#allocation7 + $0x40] sm:$0xff]
        %v1563 = vld [vmem:[#allocation7 + $0x48] sm:$0xff]
        %v1564 = vld [vmem:[#allocation7 + $0x50] sm:$0xff]
        %v1565 = vld [vmem:[#allocation7 + $0x58] sm:$0xff]
        %v1566 = vld [vmem:[#allocation7 + $0x60] sm:$0xff]
        %v1567 = vld [vmem:[#allocation7 + $0x68] sm:$0xff]
        %v1568 = vld [vmem:[#allocation7 + $0x70] sm:$0xff]
        %v1569 = vld [vmem:[#allocation7 + $0x78] sm:$0xff]
        %v1570 = vld [vmem:[#allocation7 + $0x80] sm:$0xff]
        %v1571 = vld [vmem:[#allocation7 + $0x88] sm:$0xff]
        %v1572 = vld [vmem:[#allocation7 + $0x90] sm:$0xff]
        %v1573 = vld [vmem:[#allocation7 + $0x98] sm:$0xff]
        %v1574 = vld [vmem:[#allocation7 + $0xa0] sm:$0xff]
        %v1575 = vld [vmem:[#allocation7 + $0xa8] sm:$0xff]
        %v1576 = vld [vmem:[#allocation7 + $0xb0] sm:$0xff]
        %v1577 = vld [vmem:[#allocation7 + $0xb8] sm:$0xff]
        %v1578 = vld [vmem:[#allocation7 + $0xc0] sm:$0xff]
        %v1579 = vld [vmem:[#allocation7 + $0xc8] sm:$0xff]
        %v1580 = vld [vmem:[#allocation7 + $0xd0] sm:$0xff]
        %v1581 = vld [vmem:[#allocation7 + $0xd8] sm:$0xff]
        %v1582 = vld [vmem:[#allocation7 + $0xe0] sm:$0xff]
        %v1583 = vld [vmem:[#allocation7 + $0xe8] sm:$0xff]
        %v1584 = vld [vmem:[#allocation7 + $0xf0] sm:$0xff]
        %v1585 = vld [vmem:[#allocation7 + $0xf8] sm:$0xff]
        %v1586 = vld [vmem:[%s4] sm:$0x3]
        %v1588 = vlaneseq
        %v1589 = vshrl.u32 %v1588, 7
        %v1590 = vsub.s32 0, %v1589
        %v1591 = vrot.slane %v1586, %v1590
        %v1592 = vlaneseq
        %v1593 = vshrl.u32 %v1592, 7
        %v1594 = vsub.s32 1, %v1593
        %v1595 = vrot.slane %v1586, %v1594
        %v1630 = vunpack.c.l.b16 %v1554
        %v1631 = vunpack.c.h.b16 %v1554
        %v1632 = vunpack.c.l.b16 %v1555
        %v1633 = vunpack.c.h.b16 %v1555
        %v1634 = vunpack.c.l.b16 %v1556
        %v1635 = vunpack.c.h.b16 %v1556
        %v1636 = vunpack.c.l.b16 %v1557
        %v1637 = vunpack.c.h.b16 %v1557
        %v1638 = vunpack.c.l.b16 %v1558
        %v1639 = vunpack.c.h.b16 %v1558
        %v1640 = vunpack.c.l.b16 %v1559
        %v1641 = vunpack.c.h.b16 %v1559
        %v1642 = vunpack.c.l.b16 %v1560
        %v1643 = vunpack.c.h.b16 %v1560
        %v1644 = vunpack.c.l.b16 %v1561
        %v1645 = vunpack.c.h.b16 %v1561
        %v1646 = vunpack.c.l.b16 %v1562
        %v1647 = vunpack.c.h.b16 %v1562
        %v1648 = vunpack.c.l.b16 %v1563
        %v1649 = vunpack.c.h.b16 %v1563
        %v1650 = vunpack.c.l.b16 %v1564
        %v1651 = vunpack.c.h.b16 %v1564
        %v1652 = vunpack.c.l.b16 %v1565
        %v1653 = vunpack.c.h.b16 %v1565
        %v1654 = vunpack.c.l.b16 %v1566
        %v1655 = vunpack.c.h.b16 %v1566
        %v1656 = vunpack.c.l.b16 %v1567
        %v1657 = vunpack.c.h.b16 %v1567
        %v1658 = vunpack.c.l.b16 %v1568
        %v1659 = vunpack.c.h.b16 %v1568
        %v1660 = vunpack.c.l.b16 %v1569
        %v1661 = vunpack.c.h.b16 %v1569
        %v1662 = vunpack.c.l.b16 %v1570
        %v1663 = vunpack.c.h.b16 %v1570
        %v1664 = vunpack.c.l.b16 %v1571
        %v1665 = vunpack.c.h.b16 %v1571
        %v1666 = vunpack.c.l.b16 %v1572
        %v1667 = vunpack.c.h.b16 %v1572
        %v1668 = vunpack.c.l.b16 %v1573
        %v1669 = vunpack.c.h.b16 %v1573
        %v1670 = vunpack.c.l.b16 %v1574
        %v1671 = vunpack.c.h.b16 %v1574
        %v1672 = vunpack.c.l.b16 %v1575
        %v1673 = vunpack.c.h.b16 %v1575
        %v1674 = vunpack.c.l.b16 %v1576
        %v1675 = vunpack.c.h.b16 %v1576
        %v1676 = vunpack.c.l.b16 %v1577
        %v1677 = vunpack.c.h.b16 %v1577
        %v1678 = vunpack.c.l.b16 %v1578
        %v1679 = vunpack.c.h.b16 %v1578
        %v1680 = vunpack.c.l.b16 %v1579
        %v1681 = vunpack.c.h.b16 %v1579
        %v1682 = vunpack.c.l.b16 %v1580
        %v1683 = vunpack.c.h.b16 %v1580
        %v1684 = vunpack.c.l.b16 %v1581
        %v1685 = vunpack.c.h.b16 %v1581
        %v1686 = vunpack.c.l.b16 %v1582
        %v1687 = vunpack.c.h.b16 %v1582
        %v1688 = vunpack.c.l.b16 %v1583
        %v1689 = vunpack.c.h.b16 %v1583
        %v1690 = vunpack.c.l.b16 %v1584
        %v1691 = vunpack.c.h.b16 %v1584
        %v1692 = vunpack.c.l.b16 %v1585
        %v1693 = vunpack.c.h.b16 %v1585
        %v1694 = vpack.c.b16 %v1632, %v1630
        %v1695 = vpack.c.b16 %v1633, %v1631
        %v1696 = vpack.c.b16 %v1636, %v1634
        %v1697 = vpack.c.b16 %v1637, %v1635
        %v1698 = vpack.c.b16 %v1640, %v1638
        %v1699 = vpack.c.b16 %v1641, %v1639
        %v1700 = vpack.c.b16 %v1644, %v1642
        %v1701 = vpack.c.b16 %v1645, %v1643
        %v1702 = vpack.c.b16 %v1648, %v1646
        %v1703 = vpack.c.b16 %v1649, %v1647
        %v1704 = vpack.c.b16 %v1652, %v1650
        %v1705 = vpack.c.b16 %v1653, %v1651
        %v1706 = vpack.c.b16 %v1656, %v1654
        %v1707 = vpack.c.b16 %v1657, %v1655
        %v1708 = vpack.c.b16 %v1660, %v1658
        %v1709 = vpack.c.b16 %v1661, %v1659
        %v1710 = vpack.c.b16 %v1664, %v1662
        %v1711 = vpack.c.b16 %v1665, %v1663
        %v1712 = vpack.c.b16 %v1668, %v1666
        %v1713 = vpack.c.b16 %v1669, %v1667
        %v1714 = vpack.c.b16 %v1672, %v1670
        %v1715 = vpack.c.b16 %v1673, %v1671
        %v1716 = vpack.c.b16 %v1676, %v1674
        %v1717 = vpack.c.b16 %v1677, %v1675
        %v1718 = vpack.c.b16 %v1680, %v1678
        %v1719 = vpack.c.b16 %v1681, %v1679
        %v1720 = vpack.c.b16 %v1684, %v1682
        %v1721 = vpack.c.b16 %v1685, %v1683
        %v1722 = vpack.c.b16 %v1688, %v1686
        %v1723 = vpack.c.b16 %v1689, %v1687
        %v1724 = vpack.c.b16 %v1692, %v1690
        %v1725 = vpack.c.b16 %v1693, %v1691
        %1758 = vmatprep.subr.bf16.mxu0 %v1695
        %1759 = vmatpush1.bf16.msra.mxu0 %v1694
        %1760 = vmatprep.subr.bf16.mxu0 %v1697
        %1761 = vmatpush1.bf16.msra.mxu0 %v1696
        %1762 = vmatprep.subr.bf16.mxu0 %v1699
        %1763 = vmatpush1.bf16.msra.mxu0 %v1698
        %1764 = vmatprep.subr.bf16.mxu0 %v1701
        %1765 = vmatpush1.bf16.msra.mxu0 %v1700
        %1766 = vmatprep.subr.bf16.mxu0 %v1703
        %1767 = vmatpush1.bf16.msra.mxu0 %v1702
        %1768 = vmatprep.subr.bf16.mxu0 %v1705
        %1769 = vmatpush1.bf16.msra.mxu0 %v1704
        %1770 = vmatprep.subr.bf16.mxu0 %v1707
        %1771 = vmatpush1.bf16.msra.mxu0 %v1706
        %1772 = vmatprep.subr.bf16.mxu0 %v1709
        %1773 = vmatpush1.bf16.msra.mxu0 %v1708
        %1774 = vmatprep.subr.bf16.mxu0 %v1711
        %1775 = vmatpush1.bf16.msra.mxu0 %v1710
        %1776 = vmatprep.subr.bf16.mxu0 %v1713
        %1777 = vmatpush1.bf16.msra.mxu0 %v1712
        %1778 = vmatprep.subr.bf16.mxu0 %v1715
        %1779 = vmatpush1.bf16.msra.mxu0 %v1714
        %1780 = vmatprep.subr.bf16.mxu0 %v1717
        %1781 = vmatpush1.bf16.msra.mxu0 %v1716
        %1782 = vmatprep.subr.bf16.mxu0 %v1719
        %1783 = vmatpush1.bf16.msra.mxu0 %v1718
        %1784 = vmatprep.subr.bf16.mxu0 %v1721
        %1785 = vmatpush1.bf16.msra.mxu0 %v1720
        %1786 = vmatprep.subr.bf16.mxu0 %v1723
        %1787 = vmatpush1.bf16.msra.mxu0 %v1722
        %1788 = vmatprep.subr.bf16.mxu0 %v1725
        %1789 = vmatpush1.bf16.msra.mxu0 %v1724
        %1790 = vmatprep.mubr.bf16.mxu0 %v1523
        %1791 = vmatmul.mubr.bf16.gmra.mrb[0].mxu0 %v1522
        %v1792 = vpop.f32.mrb[0].mxu0
        %v1793 = vadd.f32 %v1591, %v1792
        %v1794 = vpop.f32.mrb[0].mxu0
        %v1795 = vadd.f32 %v1595, %v1794
        %v1796 = vpop.f32.mrb[0].mxu0
        %v1797 = vadd.f32 %v1591, %v1796
        %v1798 = vpop.f32.mrb[0].mxu0
        %v1799 = vadd.f32 %v1595, %v1798
        %1800 = vmatprep.mubr.bf16.mxu0 %v1525
        %1801 = vmatmul.mubr.bf16.gmra.mrb[0].mxu0 %v1524
        %v1802 = vpop.f32.mrb[0].mxu0
        %v1803 = vadd.f32 %v1591, %v1802
        %v1804 = vpop.f32.mrb[0].mxu0
        %v1805 = vadd.f32 %v1595, %v1804
        %v1806 = vpop.f32.mrb[0].mxu0
        %v1807 = vadd.f32 %v1591, %v1806
        %v1808 = vpop.f32.mrb[0].mxu0
        %v1809 = vadd.f32 %v1595, %v1808
        %1810 = vmatprep.mubr.bf16.mxu0 %v1527
        %1811 = vmatmul.mubr.bf16.gmra.mrb[0].mxu0 %v1526
        %v1812 = vpop.f32.mrb[0].mxu0
        %v1813 = vadd.f32 %v1591, %v1812
        %v1814 = vpop.f32.mrb[0].mxu0
        %v1815 = vadd.f32 %v1595, %v1814
        %v1816 = vpop.f32.mrb[0].mxu0
        %v1817 = vadd.f32 %v1591, %v1816
        %v1818 = vpop.f32.mrb[0].mxu0
        %v1819 = vadd.f32 %v1595, %v1818
        %1820 = vmatprep.mubr.bf16.mxu0 %v1529
        %1821 = vmatmul.mubr.bf16.gmra.mrb[0].mxu0 %v1528
        %v1822 = vpop.f32.mrb[0].mxu0
        %v1823 = vadd.f32 %v1591, %v1822
        %v1824 = vpop.f32.mrb[0].mxu0
        %v1825 = vadd.f32 %v1595, %v1824
        %v1826 = vpop.f32.mrb[0].mxu0
        %v1827 = vadd.f32 %v1591, %v1826
        %v1828 = vpop.f32.mrb[0].mxu0
        %v1829 = vadd.f32 %v1595, %v1828
        %1830 = vmatprep.mubr.bf16.mxu0 %v1531
        %1831 = vmatmul.mubr.bf16.gmra.mrb[0].mxu0 %v1530
        %v1832 = vpop.f32.mrb[0].mxu0
        %v1833 = vadd.f32 %v1591, %v1832
        %v1834 = vpop.f32.mrb[0].mxu0
        %v1835 = vadd.f32 %v1595, %v1834
        %v1836 = vpop.f32.mrb[0].mxu0
        %v1837 = vadd.f32 %v1591, %v1836
        %v1838 = vpop.f32.mrb[0].mxu0
        %v1839 = vadd.f32 %v1595, %v1838
        %1840 = vmatprep.mubr.bf16.mxu0 %v1533
        %1841 = vmatmul.mubr.bf16.gmra.mrb[0].mxu0 %v1532
        %v1842 = vpop.f32.mrb[0].mxu0
        %v1843 = vadd.f32 %v1591, %v1842
        %v1844 = vpop.f32.mrb[0].mxu0
        %v1845 = vadd.f32 %v1595, %v1844
        %v1846 = vpop.f32.mrb[0].mxu0
        %v1847 = vadd.f32 %v1591, %v1846
        %v1848 = vpop.f32.mrb[0].mxu0
        %v1849 = vadd.f32 %v1595, %v1848
        %1850 = vmatprep.mubr.bf16.mxu0 %v1535
        %1851 = vmatmul.mubr.bf16.gmra.mrb[0].mxu0 %v1534
        %v1852 = vpop.f32.mrb[0].mxu0
        %v1853 = vadd.f32 %v1591, %v1852
        %v1854 = vpop.f32.mrb[0].mxu0
        %v1855 = vadd.f32 %v1595, %v1854
        %v1856 = vpop.f32.mrb[0].mxu0
        %v1857 = vadd.f32 %v1591, %v1856
        %v1858 = vpop.f32.mrb[0].mxu0
        %v1859 = vadd.f32 %v1595, %v1858
        %1860 = vmatprep.mubr.bf16.mxu0 %v1537
        %1861 = vmatmul.mubr.bf16.gmra.mrb[0].mxu0 %v1536
        %v1862 = vpop.f32.mrb[0].mxu0
        %v1863 = vadd.f32 %v1591, %v1862
        %v1864 = vpop.f32.mrb[0].mxu0
        %v1865 = vadd.f32 %v1595, %v1864
        %v1866 = vpop.f32.mrb[0].mxu0
        %v1867 = vadd.f32 %v1591, %v1866
        %v1868 = vpop.f32.mrb[0].mxu0
        %v1869 = vadd.f32 %v1595, %v1868
        %1870 = vmatprep.mubr.bf16.mxu0 %v1539
        %1871 = vmatmul.mubr.bf16.gmra.mrb[0].mxu0 %v1538
        %v1872 = vpop.f32.mrb[0].mxu0
        %v1873 = vadd.f32 %v1591, %v1872
        %v1874 = vpop.f32.mrb[0].mxu0
        %v1875 = vadd.f32 %v1595, %v1874
        %v1876 = vpop.f32.mrb[0].mxu0
        %v1877 = vadd.f32 %v1591, %v1876
        %v1878 = vpop.f32.mrb[0].mxu0
        %v1879 = vadd.f32 %v1595, %v1878
        %1880 = vmatprep.mubr.bf16.mxu0 %v1541
        %1881 = vmatmul.mubr.bf16.gmra.mrb[0].mxu0 %v1540
        %v1882 = vpop.f32.mrb[0].mxu0
        %v1883 = vadd.f32 %v1591, %v1882
        %v1884 = vpop.f32.mrb[0].mxu0
        %v1885 = vadd.f32 %v1595, %v1884
        %v1886 = vpop.f32.mrb[0].mxu0
        %v1887 = vadd.f32 %v1591, %v1886
        %v1888 = vpop.f32.mrb[0].mxu0
        %v1889 = vadd.f32 %v1595, %v1888
        %1890 = vmatprep.mubr.bf16.mxu0 %v1543
        %1891 = vmatmul.mubr.bf16.gmra.mrb[0].mxu0 %v1542
        %v1892 = vpop.f32.mrb[0].mxu0
        %v1893 = vadd.f32 %v1591, %v1892
        %v1894 = vpop.f32.mrb[0].mxu0
        %v1895 = vadd.f32 %v1595, %v1894
        %v1896 = vpop.f32.mrb[0].mxu0
        %v1897 = vadd.f32 %v1591, %v1896
        %v1898 = vpop.f32.mrb[0].mxu0
        %v1899 = vadd.f32 %v1595, %v1898
        %1900 = vmatprep.mubr.bf16.mxu0 %v1545
        %1901 = vmatmul.mubr.bf16.gmra.mrb[0].mxu0 %v1544
        %v1902 = vpop.f32.mrb[0].mxu0
        %v1903 = vadd.f32 %v1591, %v1902
        %v1904 = vpop.f32.mrb[0].mxu0
        %v1905 = vadd.f32 %v1595, %v1904
        %v1906 = vpop.f32.mrb[0].mxu0
        %v1907 = vadd.f32 %v1591, %v1906
        %v1908 = vpop.f32.mrb[0].mxu0
        %v1909 = vadd.f32 %v1595, %v1908
        %1910 = vmatprep.mubr.bf16.mxu0 %v1547
        %1911 = vmatmul.mubr.bf16.gmra.mrb[0].mxu0 %v1546
        %v1912 = vpop.f32.mrb[0].mxu0
        %v1913 = vadd.f32 %v1591, %v1912
        %v1914 = vpop.f32.mrb[0].mxu0
        %v1915 = vadd.f32 %v1595, %v1914
        %v1916 = vpop.f32.mrb[0].mxu0
        %v1917 = vadd.f32 %v1591, %v1916
        %v1918 = vpop.f32.mrb[0].mxu0
        %v1919 = vadd.f32 %v1595, %v1918
        %1920 = vmatprep.mubr.bf16.mxu0 %v1549
        %1921 = vmatmul.mubr.bf16.gmra.mrb[0].mxu0 %v1548
        %v1922 = vpop.f32.mrb[0].mxu0
        %v1923 = vadd.f32 %v1591, %v1922
        %v1924 = vpop.f32.mrb[0].mxu0
        %v1925 = vadd.f32 %v1595, %v1924
        %v1926 = vpop.f32.mrb[0].mxu0
        %v1927 = vadd.f32 %v1591, %v1926
        %v1928 = vpop.f32.mrb[0].mxu0
        %v1929 = vadd.f32 %v1595, %v1928
        %1930 = vmatprep.mubr.bf16.mxu0 %v1551
        %1931 = vmatmul.mubr.bf16.gmra.mrb[0].mxu0 %v1550
        %v1932 = vpop.f32.mrb[0].mxu0
        %v1933 = vadd.f32 %v1591, %v1932
        %v1934 = vpop.f32.mrb[0].mxu0
        %v1935 = vadd.f32 %v1595, %v1934
        %v1936 = vpop.f32.mrb[0].mxu0
        %v1937 = vadd.f32 %v1591, %v1936
        %v1938 = vpop.f32.mrb[0].mxu0
        %v1939 = vadd.f32 %v1595, %v1938
        %1940 = vmatprep.mubr.bf16.mxu0 %v1553
        %1941 = vmatmul.mubr.bf16.gmra.mrb[0].mxu0 %v1552
        %v1942 = vpop.f32.mrb[0].mxu0
        %v1943 = vadd.f32 %v1591, %v1942
        %v1944 = vpop.f32.mrb[0].mxu0
        %v1945 = vadd.f32 %v1595, %v1944
        %v1946 = vpop.f32.mrb[0].mxu0
        %v1947 = vadd.f32 %v1591, %v1946
        %v1948 = vpop.f32.mrb[0].mxu0
        %v1949 = vadd.f32 %v1595, %v1948
        %1950 = vdwg.mxu0
        %v1951 = vmax.f32 %v1793, 0.0
        %v1952 = vmax.f32 %v1795, 0.0
        %v1953 = vmax.f32 %v1797, 0.0
        %v1954 = vmax.f32 %v1799, 0.0
        %v1955 = vmax.f32 %v1803, 0.0
        %v1956 = vmax.f32 %v1805, 0.0
        %v1957 = vmax.f32 %v1807, 0.0
        %v1958 = vmax.f32 %v1809, 0.0
        %v1959 = vmax.f32 %v1813, 0.0
        %v1960 = vmax.f32 %v1815, 0.0
        %v1961 = vmax.f32 %v1817, 0.0
        %v1962 = vmax.f32 %v1819, 0.0
        %v1963 = vmax.f32 %v1823, 0.0
        %v1964 = vmax.f32 %v1825, 0.0
        %v1965 = vmax.f32 %v1827, 0.0
        %v1966 = vmax.f32 %v1829, 0.0
        %v1967 = vmax.f32 %v1833, 0.0
        %v1968 = vmax.f32 %v1835, 0.0
        %v1969 = vmax.f32 %v1837, 0.0
        %v1970 = vmax.f32 %v1839, 0.0
        %v1971 = vmax.f32 %v1843, 0.0
        %v1972 = vmax.f32 %v1845, 0.0
        %v1973 = vmax.f32 %v1847, 0.0
        %v1974 = vmax.f32 %v1849, 0.0
        %v1975 = vmax.f32 %v1853, 0.0
        %v1976 = vmax.f32 %v1855, 0.0
        %v1977 = vmax.f32 %v1857, 0.0
        %v1978 = vmax.f32 %v1859, 0.0
        %v1979 = vmax.f32 %v1863, 0.0
        %v1980 = vmax.f32 %v1865, 0.0
        %v1981 = vmax.f32 %v1867, 0.0
        %v1982 = vmax.f32 %v1869, 0.0
        %v1983 = vmax.f32 %v1873, 0.0
        %v1984 = vmax.f32 %v1875, 0.0
        %v1985 = vmax.f32 %v1877, 0.0
        %v1986 = vmax.f32 %v1879, 0.0
        %v1987 = vmax.f32 %v1883, 0.0
        %v1988 = vmax.f32 %v1885, 0.0
        %v1989 = vmax.f32 %v1887, 0.0
        %v1990 = vmax.f32 %v1889, 0.0
        %v1991 = vmax.f32 %v1893, 0.0
        %v1992 = vmax.f32 %v1895, 0.0
        %v1993 = vmax.f32 %v1897, 0.0
        %v1994 = vmax.f32 %v1899, 0.0
        %v1995 = vmax.f32 %v1903, 0.0
        %v1996 = vmax.f32 %v1905, 0.0
        %v1997 = vmax.f32 %v1907, 0.0
        %v1998 = vmax.f32 %v1909, 0.0
        %v1999 = vmax.f32 %v1913, 0.0
        %v2000 = vmax.f32 %v1915, 0.0
        %v2001 = vmax.f32 %v1917, 0.0
        %v2002 = vmax.f32 %v1919, 0.0
        %v2003 = vmax.f32 %v1923, 0.0
        %v2004 = vmax.f32 %v1925, 0.0
        %v2005 = vmax.f32 %v1927, 0.0
        %v2006 = vmax.f32 %v1929, 0.0
        %v2007 = vmax.f32 %v1933, 0.0
        %v2008 = vmax.f32 %v1935, 0.0
        %v2009 = vmax.f32 %v1937, 0.0
        %v2010 = vmax.f32 %v1939, 0.0
        %v2011 = vmax.f32 %v1943, 0.0
        %v2012 = vmax.f32 %v1945, 0.0
        %v2013 = vmax.f32 %v1947, 0.0
        %v2014 = vmax.f32 %v1949, 0.0
        %v2015 = vpack.c.bf16 %v1953, %v1951
        %v2016 = vpack.c.bf16 %v1954, %v1952
        %v2017 = vpack.c.bf16 %v1957, %v1955
        %v2018 = vpack.c.bf16 %v1958, %v1956
        %v2019 = vpack.c.bf16 %v1961, %v1959
        %v2020 = vpack.c.bf16 %v1962, %v1960
        %v2021 = vpack.c.bf16 %v1965, %v1963
        %v2022 = vpack.c.bf16 %v1966, %v1964
        %v2023 = vpack.c.bf16 %v1969, %v1967
        %v2024 = vpack.c.bf16 %v1970, %v1968
        %v2025 = vpack.c.bf16 %v1973, %v1971
        %v2026 = vpack.c.bf16 %v1974, %v1972
        %v2027 = vpack.c.bf16 %v1977, %v1975
        %v2028 = vpack.c.bf16 %v1978, %v1976
        %v2029 = vpack.c.bf16 %v1981, %v1979
        %v2030 = vpack.c.bf16 %v1982, %v1980
        %v2031 = vpack.c.bf16 %v1985, %v1983
        %v2032 = vpack.c.bf16 %v1986, %v1984
        %v2033 = vpack.c.bf16 %v1989, %v1987
        %v2034 = vpack.c.bf16 %v1990, %v1988
        %v2035 = vpack.c.bf16 %v1993, %v1991
        %v2036 = vpack.c.bf16 %v1994, %v1992
        %v2037 = vpack.c.bf16 %v1997, %v1995
        %v2038 = vpack.c.bf16 %v1998, %v1996
        %v2039 = vpack.c.bf16 %v2001, %v1999
        %v2040 = vpack.c.bf16 %v2002, %v2000
        %v2041 = vpack.c.bf16 %v2005, %v2003
        %v2042 = vpack.c.bf16 %v2006, %v2004
        %v2043 = vpack.c.bf16 %v2009, %v2007
        %v2044 = vpack.c.bf16 %v2010, %v2008
        %v2045 = vpack.c.bf16 %v2013, %v2011
        %v2046 = vpack.c.bf16 %v2014, %v2012
        %v2047 = vld [vmem:[#allocation8] sm:$0xff]
        %v2048 = vld [vmem:[#allocation8 + $0x8] sm:$0xff]
        %v2049 = vld [vmem:[#allocation8 + $0x10] sm:$0xff]
        %v2050 = vld [vmem:[#allocation8 + $0x18] sm:$0xff]
        %v2051 = vld [vmem:[#allocation8 + $0x20] sm:$0xff]
        %v2052 = vld [vmem:[#allocation8 + $0x28] sm:$0xff]
        %v2053 = vld [vmem:[#allocation8 + $0x30] sm:$0xff]
        %v2054 = vld [vmem:[#allocation8 + $0x38] sm:$0xff]
        %v2055 = vld [vmem:[#allocation8 + $0x40] sm:$0xff]
        %v2056 = vld [vmem:[#allocation8 + $0x48] sm:$0xff]
        %v2057 = vld [vmem:[#allocation8 + $0x50] sm:$0xff]
        %v2058 = vld [vmem:[#allocation8 + $0x58] sm:$0xff]
        %v2059 = vld [vmem:[#allocation8 + $0x60] sm:$0xff]
        %v2060 = vld [vmem:[#allocation8 + $0x68] sm:$0xff]
        %v2061 = vld [vmem:[#allocation8 + $0x70] sm:$0xff]
        %v2062 = vld [vmem:[#allocation8 + $0x78] sm:$0xff]
        %v2063 = vld [vmem:[#allocation8 + $0x80] sm:$0xff]
        %v2064 = vld [vmem:[#allocation8 + $0x88] sm:$0xff]
        %v2065 = vld [vmem:[#allocation8 + $0x90] sm:$0xff]
        %v2066 = vld [vmem:[#allocation8 + $0x98] sm:$0xff]
        %v2067 = vld [vmem:[#allocation8 + $0xa0] sm:$0xff]
        %v2068 = vld [vmem:[#allocation8 + $0xa8] sm:$0xff]
        %v2069 = vld [vmem:[#allocation8 + $0xb0] sm:$0xff]
        %v2070 = vld [vmem:[#allocation8 + $0xb8] sm:$0xff]
        %v2071 = vld [vmem:[#allocation8 + $0xc0] sm:$0xff]
        %v2072 = vld [vmem:[#allocation8 + $0xc8] sm:$0xff]
        %v2073 = vld [vmem:[#allocation8 + $0xd0] sm:$0xff]
        %v2074 = vld [vmem:[#allocation8 + $0xd8] sm:$0xff]
        %v2075 = vld [vmem:[#allocation8 + $0xe0] sm:$0xff]
        %v2076 = vld [vmem:[#allocation8 + $0xe8] sm:$0xff]
        %v2077 = vld [vmem:[#allocation8 + $0xf0] sm:$0xff]
        %v2078 = vld [vmem:[#allocation8 + $0xf8] sm:$0xff]
        %v2079 = vld [vmem:[%s6] sm:$0x3]
        %v2081 = vlaneseq
        %v2082 = vshrl.u32 %v2081, 7
        %v2083 = vsub.s32 0, %v2082
        %v2084 = vrot.slane %v2079, %v2083
        %v2085 = vlaneseq
        %v2086 = vshrl.u32 %v2085, 7
        %v2087 = vsub.s32 1, %v2086
        %v2088 = vrot.slane %v2079, %v2087
        %v2123 = vunpack.c.l.b16 %v2047
        %v2124 = vunpack.c.h.b16 %v2047
        %v2125 = vunpack.c.l.b16 %v2048
        %v2126 = vunpack.c.h.b16 %v2048
        %v2127 = vunpack.c.l.b16 %v2049
        %v2128 = vunpack.c.h.b16 %v2049
        %v2129 = vunpack.c.l.b16 %v2050
        %v2130 = vunpack.c.h.b16 %v2050
        %v2131 = vunpack.c.l.b16 %v2051
        %v2132 = vunpack.c.h.b16 %v2051
        %v2133 = vunpack.c.l.b16 %v2052
        %v2134 = vunpack.c.h.b16 %v2052
        %v2135 = vunpack.c.l.b16 %v2053
        %v2136 = vunpack.c.h.b16 %v2053
        %v2137 = vunpack.c.l.b16 %v2054
        %v2138 = vunpack.c.h.b16 %v2054
        %v2139 = vunpack.c.l.b16 %v2055
        %v2140 = vunpack.c.h.b16 %v2055
        %v2141 = vunpack.c.l.b16 %v2056
        %v2142 = vunpack.c.h.b16 %v2056
        %v2143 = vunpack.c.l.b16 %v2057
        %v2144 = vunpack.c.h.b16 %v2057
        %v2145 = vunpack.c.l.b16 %v2058
        %v2146 = vunpack.c.h.b16 %v2058
        %v2147 = vunpack.c.l.b16 %v2059
        %v2148 = vunpack.c.h.b16 %v2059
        %v2149 = vunpack.c.l.b16 %v2060
        %v2150 = vunpack.c.h.b16 %v2060
        %v2151 = vunpack.c.l.b16 %v2061
        %v2152 = vunpack.c.h.b16 %v2061
        %v2153 = vunpack.c.l.b16 %v2062
        %v2154 = vunpack.c.h.b16 %v2062
        %v2155 = vunpack.c.l.b16 %v2063
        %v2156 = vunpack.c.h.b16 %v2063
        %v2157 = vunpack.c.l.b16 %v2064
        %v2158 = vunpack.c.h.b16 %v2064
        %v2159 = vunpack.c.l.b16 %v2065
        %v2160 = vunpack.c.h.b16 %v2065
        %v2161 = vunpack.c.l.b16 %v2066
        %v2162 = vunpack.c.h.b16 %v2066
        %v2163 = vunpack.c.l.b16 %v2067
        %v2164 = vunpack.c.h.b16 %v2067
        %v2165 = vunpack.c.l.b16 %v2068
        %v2166 = vunpack.c.h.b16 %v2068
        %v2167 = vunpack.c.l.b16 %v2069
        %v2168 = vunpack.c.h.b16 %v2069
        %v2169 = vunpack.c.l.b16 %v2070
        %v2170 = vunpack.c.h.b16 %v2070
        %v2171 = vunpack.c.l.b16 %v2071
        %v2172 = vunpack.c.h.b16 %v2071
        %v2173 = vunpack.c.l.b16 %v2072
        %v2174 = vunpack.c.h.b16 %v2072
        %v2175 = vunpack.c.l.b16 %v2073
        %v2176 = vunpack.c.h.b16 %v2073
        %v2177 = vunpack.c.l.b16 %v2074
        %v2178 = vunpack.c.h.b16 %v2074
        %v2179 = vunpack.c.l.b16 %v2075
        %v2180 = vunpack.c.h.b16 %v2075
        %v2181 = vunpack.c.l.b16 %v2076
        %v2182 = vunpack.c.h.b16 %v2076
        %v2183 = vunpack.c.l.b16 %v2077
        %v2184 = vunpack.c.h.b16 %v2077
        %v2185 = vunpack.c.l.b16 %v2078
        %v2186 = vunpack.c.h.b16 %v2078
        %v2187 = vpack.c.b16 %v2125, %v2123
        %v2188 = vpack.c.b16 %v2126, %v2124
        %v2189 = vpack.c.b16 %v2129, %v2127
        %v2190 = vpack.c.b16 %v2130, %v2128
        %v2191 = vpack.c.b16 %v2133, %v2131
        %v2192 = vpack.c.b16 %v2134, %v2132
        %v2193 = vpack.c.b16 %v2137, %v2135
        %v2194 = vpack.c.b16 %v2138, %v2136
        %v2195 = vpack.c.b16 %v2141, %v2139
        %v2196 = vpack.c.b16 %v2142, %v2140
        %v2197 = vpack.c.b16 %v2145, %v2143
        %v2198 = vpack.c.b16 %v2146, %v2144
        %v2199 = vpack.c.b16 %v2149, %v2147
        %v2200 = vpack.c.b16 %v2150, %v2148
        %v2201 = vpack.c.b16 %v2153, %v2151
        %v2202 = vpack.c.b16 %v2154, %v2152
        %v2203 = vpack.c.b16 %v2157, %v2155
        %v2204 = vpack.c.b16 %v2158, %v2156
        %v2205 = vpack.c.b16 %v2161, %v2159
        %v2206 = vpack.c.b16 %v2162, %v2160
        %v2207 = vpack.c.b16 %v2165, %v2163
        %v2208 = vpack.c.b16 %v2166, %v2164
        %v2209 = vpack.c.b16 %v2169, %v2167
        %v2210 = vpack.c.b16 %v2170, %v2168
        %v2211 = vpack.c.b16 %v2173, %v2171
        %v2212 = vpack.c.b16 %v2174, %v2172
        %v2213 = vpack.c.b16 %v2177, %v2175
        %v2214 = vpack.c.b16 %v2178, %v2176
        %v2215 = vpack.c.b16 %v2181, %v2179
        %v2216 = vpack.c.b16 %v2182, %v2180
        %v2217 = vpack.c.b16 %v2185, %v2183
        %v2218 = vpack.c.b16 %v2186, %v2184
        %2251 = vmatprep.subr.bf16.mxu0 %v2188
        %2252 = vmatpush1.bf16.msra.mxu0 %v2187
        %2253 = vmatprep.subr.bf16.mxu0 %v2190
        %2254 = vmatpush1.bf16.msra.mxu0 %v2189
        %2255 = vmatprep.subr.bf16.mxu0 %v2192
        %2256 = vmatpush1.bf16.msra.mxu0 %v2191
        %2257 = vmatprep.subr.bf16.mxu0 %v2194
        %2258 = vmatpush1.bf16.msra.mxu0 %v2193
        %2259 = vmatprep.subr.bf16.mxu0 %v2196
        %2260 = vmatpush1.bf16.msra.mxu0 %v2195
        %2261 = vmatprep.subr.bf16.mxu0 %v2198
        %2262 = vmatpush1.bf16.msra.mxu0 %v2197
        %2263 = vmatprep.subr.bf16.mxu0 %v2200
        %2264 = vmatpush1.bf16.msra.mxu0 %v2199
        %2265 = vmatprep.subr.bf16.mxu0 %v2202
        %2266 = vmatpush1.bf16.msra.mxu0 %v2201
        %2267 = vmatprep.subr.bf16.mxu0 %v2204
        %2268 = vmatpush1.bf16.msra.mxu0 %v2203
        %2269 = vmatprep.subr.bf16.mxu0 %v2206
        %2270 = vmatpush1.bf16.msra.mxu0 %v2205
        %2271 = vmatprep.subr.bf16.mxu0 %v2208
        %2272 = vmatpush1.bf16.msra.mxu0 %v2207
        %2273 = vmatprep.subr.bf16.mxu0 %v2210
        %2274 = vmatpush1.bf16.msra.mxu0 %v2209
        %2275 = vmatprep.subr.bf16.mxu0 %v2212
        %2276 = vmatpush1.bf16.msra.mxu0 %v2211
        %2277 = vmatprep.subr.bf16.mxu0 %v2214
        %2278 = vmatpush1.bf16.msra.mxu0 %v2213
        %2279 = vmatprep.subr.bf16.mxu0 %v2216
        %2280 = vmatpush1.bf16.msra.mxu0 %v2215
        %2281 = vmatprep.subr.bf16.mxu0 %v2218
        %2282 = vmatpush1.bf16.msra.mxu0 %v2217
        %2283 = vmatprep.mubr.bf16.mxu0 %v2016
        %2284 = vmatmul.mubr.bf16.gmra.mrb[0].mxu0 %v2015
        %v2285 = vpop.f32.mrb[0].mxu0
        %v2286 = vadd.f32 %v2084, %v2285
        %v2287 = vpop.f32.mrb[0].mxu0
        %v2288 = vadd.f32 %v2088, %v2287
        %v2289 = vpop.f32.mrb[0].mxu0
        %v2290 = vadd.f32 %v2084, %v2289
        %v2291 = vpop.f32.mrb[0].mxu0
        %v2292 = vadd.f32 %v2088, %v2291
        %2293 = vmatprep.mubr.bf16.mxu0 %v2018
        %2294 = vmatmul.mubr.bf16.gmra.mrb[0].mxu0 %v2017
        %v2295 = vpop.f32.mrb[0].mxu0
        %v2296 = vadd.f32 %v2084, %v2295
        %v2297 = vpop.f32.mrb[0].mxu0
        %v2298 = vadd.f32 %v2088, %v2297
        %v2299 = vpop.f32.mrb[0].mxu0
        %v2300 = vadd.f32 %v2084, %v2299
        %v2301 = vpop.f32.mrb[0].mxu0
        %v2302 = vadd.f32 %v2088, %v2301
        %2303 = vmatprep.mubr.bf16.mxu0 %v2020
        %2304 = vmatmul.mubr.bf16.gmra.mrb[0].mxu0 %v2019
        %v2305 = vpop.f32.mrb[0].mxu0
        %v2306 = vadd.f32 %v2084, %v2305
        %v2307 = vpop.f32.mrb[0].mxu0
        %v2308 = vadd.f32 %v2088, %v2307
        %v2309 = vpop.f32.mrb[0].mxu0
        %v2310 = vadd.f32 %v2084, %v2309
        %v2311 = vpop.f32.mrb[0].mxu0
        %v2312 = vadd.f32 %v2088, %v2311
        %2313 = vmatprep.mubr.bf16.mxu0 %v2022
        %2314 = vmatmul.mubr.bf16.gmra.mrb[0].mxu0 %v2021
        %v2315 = vpop.f32.mrb[0].mxu0
        %v2316 = vadd.f32 %v2084, %v2315
        %v2317 = vpop.f32.mrb[0].mxu0
        %v2318 = vadd.f32 %v2088, %v2317
        %v2319 = vpop.f32.mrb[0].mxu0
        %v2320 = vadd.f32 %v2084, %v2319
        %v2321 = vpop.f32.mrb[0].mxu0
        %v2322 = vadd.f32 %v2088, %v2321
        %2323 = vmatprep.mubr.bf16.mxu0 %v2024
        %2324 = vmatmul.mubr.bf16.gmra.mrb[0].mxu0 %v2023
        %v2325 = vpop.f32.mrb[0].mxu0
        %v2326 = vadd.f32 %v2084, %v2325
        %v2327 = vpop.f32.mrb[0].mxu0
        %v2328 = vadd.f32 %v2088, %v2327
        %v2329 = vpop.f32.mrb[0].mxu0
        %v2330 = vadd.f32 %v2084, %v2329
        %v2331 = vpop.f32.mrb[0].mxu0
        %v2332 = vadd.f32 %v2088, %v2331
        %2333 = vmatprep.mubr.bf16.mxu0 %v2026
        %2334 = vmatmul.mubr.bf16.gmra.mrb[0].mxu0 %v2025
        %v2335 = vpop.f32.mrb[0].mxu0
        %v2336 = vadd.f32 %v2084, %v2335
        %v2337 = vpop.f32.mrb[0].mxu0
        %v2338 = vadd.f32 %v2088, %v2337
        %v2339 = vpop.f32.mrb[0].mxu0
        %v2340 = vadd.f32 %v2084, %v2339
        %v2341 = vpop.f32.mrb[0].mxu0
        %v2342 = vadd.f32 %v2088, %v2341
        %2343 = vmatprep.mubr.bf16.mxu0 %v2028
        %2344 = vmatmul.mubr.bf16.gmra.mrb[0].mxu0 %v2027
        %v2345 = vpop.f32.mrb[0].mxu0
        %v2346 = vadd.f32 %v2084, %v2345
        %v2347 = vpop.f32.mrb[0].mxu0
        %v2348 = vadd.f32 %v2088, %v2347
        %v2349 = vpop.f32.mrb[0].mxu0
        %v2350 = vadd.f32 %v2084, %v2349
        %v2351 = vpop.f32.mrb[0].mxu0
        %v2352 = vadd.f32 %v2088, %v2351
        %2353 = vmatprep.mubr.bf16.mxu0 %v2030
        %2354 = vmatmul.mubr.bf16.gmra.mrb[0].mxu0 %v2029
        %v2355 = vpop.f32.mrb[0].mxu0
        %v2356 = vadd.f32 %v2084, %v2355
        %v2357 = vpop.f32.mrb[0].mxu0
        %v2358 = vadd.f32 %v2088, %v2357
        %v2359 = vpop.f32.mrb[0].mxu0
        %v2360 = vadd.f32 %v2084, %v2359
        %v2361 = vpop.f32.mrb[0].mxu0
        %v2362 = vadd.f32 %v2088, %v2361
        %2363 = vmatprep.mubr.bf16.mxu0 %v2032
        %2364 = vmatmul.mubr.bf16.gmra.mrb[0].mxu0 %v2031
        %v2365 = vpop.f32.mrb[0].mxu0
        %v2366 = vadd.f32 %v2084, %v2365
        %v2367 = vpop.f32.mrb[0].mxu0
        %v2368 = vadd.f32 %v2088, %v2367
        %v2369 = vpop.f32.mrb[0].mxu0
        %v2370 = vadd.f32 %v2084, %v2369
        %v2371 = vpop.f32.mrb[0].mxu0
        %v2372 = vadd.f32 %v2088, %v2371
        %2373 = vmatprep.mubr.bf16.mxu0 %v2034
        %2374 = vmatmul.mubr.bf16.gmra.mrb[0].mxu0 %v2033
        %v2375 = vpop.f32.mrb[0].mxu0
        %v2376 = vadd.f32 %v2084, %v2375
        %v2377 = vpop.f32.mrb[0].mxu0
        %v2378 = vadd.f32 %v2088, %v2377
        %v2379 = vpop.f32.mrb[0].mxu0
        %v2380 = vadd.f32 %v2084, %v2379
        %v2381 = vpop.f32.mrb[0].mxu0
        %v2382 = vadd.f32 %v2088, %v2381
        %2383 = vmatprep.mubr.bf16.mxu0 %v2036
        %2384 = vmatmul.mubr.bf16.gmra.mrb[0].mxu0 %v2035
        %v2385 = vpop.f32.mrb[0].mxu0
        %v2386 = vadd.f32 %v2084, %v2385
        %v2387 = vpop.f32.mrb[0].mxu0
        %v2388 = vadd.f32 %v2088, %v2387
        %v2389 = vpop.f32.mrb[0].mxu0
        %v2390 = vadd.f32 %v2084, %v2389
        %v2391 = vpop.f32.mrb[0].mxu0
        %v2392 = vadd.f32 %v2088, %v2391
        %2393 = vmatprep.mubr.bf16.mxu0 %v2038
        %2394 = vmatmul.mubr.bf16.gmra.mrb[0].mxu0 %v2037
        %v2395 = vpop.f32.mrb[0].mxu0
        %v2396 = vadd.f32 %v2084, %v2395
        %v2397 = vpop.f32.mrb[0].mxu0
        %v2398 = vadd.f32 %v2088, %v2397
        %v2399 = vpop.f32.mrb[0].mxu0
        %v2400 = vadd.f32 %v2084, %v2399
        %v2401 = vpop.f32.mrb[0].mxu0
        %v2402 = vadd.f32 %v2088, %v2401
        %2403 = vmatprep.mubr.bf16.mxu0 %v2040
        %2404 = vmatmul.mubr.bf16.gmra.mrb[0].mxu0 %v2039
        %v2405 = vpop.f32.mrb[0].mxu0
        %v2406 = vadd.f32 %v2084, %v2405
        %v2407 = vpop.f32.mrb[0].mxu0
        %v2408 = vadd.f32 %v2088, %v2407
        %v2409 = vpop.f32.mrb[0].mxu0
        %v2410 = vadd.f32 %v2084, %v2409
        %v2411 = vpop.f32.mrb[0].mxu0
        %v2412 = vadd.f32 %v2088, %v2411
        %2413 = vmatprep.mubr.bf16.mxu0 %v2042
        %2414 = vmatmul.mubr.bf16.gmra.mrb[0].mxu0 %v2041
        %v2415 = vpop.f32.mrb[0].mxu0
        %v2416 = vadd.f32 %v2084, %v2415
        %v2417 = vpop.f32.mrb[0].mxu0
        %v2418 = vadd.f32 %v2088, %v2417
        %v2419 = vpop.f32.mrb[0].mxu0
        %v2420 = vadd.f32 %v2084, %v2419
        %v2421 = vpop.f32.mrb[0].mxu0
        %v2422 = vadd.f32 %v2088, %v2421
        %2423 = vmatprep.mubr.bf16.mxu0 %v2044
        %2424 = vmatmul.mubr.bf16.gmra.mrb[0].mxu0 %v2043
        %v2425 = vpop.f32.mrb[0].mxu0
        %v2426 = vadd.f32 %v2084, %v2425
        %v2427 = vpop.f32.mrb[0].mxu0
        %v2428 = vadd.f32 %v2088, %v2427
        %v2429 = vpop.f32.mrb[0].mxu0
        %v2430 = vadd.f32 %v2084, %v2429
        %v2431 = vpop.f32.mrb[0].mxu0
        %v2432 = vadd.f32 %v2088, %v2431
        %2433 = vmatprep.mubr.bf16.mxu0 %v2046
        %2434 = vmatmul.mubr.bf16.gmra.mrb[0].mxu0 %v2045
        %v2435 = vpop.f32.mrb[0].mxu0
        %v2436 = vadd.f32 %v2084, %v2435
        %v2437 = vpop.f32.mrb[0].mxu0
        %v2438 = vadd.f32 %v2088, %v2437
        %v2439 = vpop.f32.mrb[0].mxu0
        %v2440 = vadd.f32 %v2084, %v2439
        %v2441 = vpop.f32.mrb[0].mxu0
        %v2442 = vadd.f32 %v2088, %v2441
        %2443 = vdwg.mxu0
        %v2444 = vmax.f32 %v2286, 0.0
        %v2445 = vmax.f32 %v2288, 0.0
        %v2446 = vmax.f32 %v2290, 0.0
        %v2447 = vmax.f32 %v2292, 0.0
        %v2448 = vmax.f32 %v2296, 0.0
        %v2449 = vmax.f32 %v2298, 0.0
        %v2450 = vmax.f32 %v2300, 0.0
        %v2451 = vmax.f32 %v2302, 0.0
        %v2452 = vmax.f32 %v2306, 0.0
        %v2453 = vmax.f32 %v2308, 0.0
        %v2454 = vmax.f32 %v2310, 0.0
        %v2455 = vmax.f32 %v2312, 0.0
        %v2456 = vmax.f32 %v2316, 0.0
        %v2457 = vmax.f32 %v2318, 0.0
        %v2458 = vmax.f32 %v2320, 0.0
        %v2459 = vmax.f32 %v2322, 0.0
        %v2460 = vmax.f32 %v2326, 0.0
        %v2461 = vmax.f32 %v2328, 0.0
        %v2462 = vmax.f32 %v2330, 0.0
        %v2463 = vmax.f32 %v2332, 0.0
        %v2464 = vmax.f32 %v2336, 0.0
        %v2465 = vmax.f32 %v2338, 0.0
        %v2466 = vmax.f32 %v2340, 0.0
        %v2467 = vmax.f32 %v2342, 0.0
        %v2468 = vmax.f32 %v2346, 0.0
        %v2469 = vmax.f32 %v2348, 0.0
        %v2470 = vmax.f32 %v2350, 0.0
        %v2471 = vmax.f32 %v2352, 0.0
        %v2472 = vmax.f32 %v2356, 0.0
        %v2473 = vmax.f32 %v2358, 0.0
        %v2474 = vmax.f32 %v2360, 0.0
        %v2475 = vmax.f32 %v2362, 0.0
        %v2476 = vmax.f32 %v2366, 0.0
        %v2477 = vmax.f32 %v2368, 0.0
        %v2478 = vmax.f32 %v2370, 0.0
        %v2479 = vmax.f32 %v2372, 0.0
        %v2480 = vmax.f32 %v2376, 0.0
        %v2481 = vmax.f32 %v2378, 0.0
        %v2482 = vmax.f32 %v2380, 0.0
        %v2483 = vmax.f32 %v2382, 0.0
        %v2484 = vmax.f32 %v2386, 0.0
        %v2485 = vmax.f32 %v2388, 0.0
        %v2486 = vmax.f32 %v2390, 0.0
        %v2487 = vmax.f32 %v2392, 0.0
        %v2488 = vmax.f32 %v2396, 0.0
        %v2489 = vmax.f32 %v2398, 0.0
        %v2490 = vmax.f32 %v2400, 0.0
        %v2491 = vmax.f32 %v2402, 0.0
        %v2492 = vmax.f32 %v2406, 0.0
        %v2493 = vmax.f32 %v2408, 0.0
        %v2494 = vmax.f32 %v2410, 0.0
        %v2495 = vmax.f32 %v2412, 0.0
        %v2496 = vmax.f32 %v2416, 0.0
        %v2497 = vmax.f32 %v2418, 0.0
        %v2498 = vmax.f32 %v2420, 0.0
        %v2499 = vmax.f32 %v2422, 0.0
        %v2500 = vmax.f32 %v2426, 0.0
        %v2501 = vmax.f32 %v2428, 0.0
        %v2502 = vmax.f32 %v2430, 0.0
        %v2503 = vmax.f32 %v2432, 0.0
        %v2504 = vmax.f32 %v2436, 0.0
        %v2505 = vmax.f32 %v2438, 0.0
        %v2506 = vmax.f32 %v2440, 0.0
        %v2507 = vmax.f32 %v2442, 0.0
        %v2508 = vpack.c.bf16 %v2446, %v2444
        %v2509 = vpack.c.bf16 %v2447, %v2445
        %v2510 = vpack.c.bf16 %v2450, %v2448
        %v2511 = vpack.c.bf16 %v2451, %v2449
        %v2512 = vpack.c.bf16 %v2454, %v2452
        %v2513 = vpack.c.bf16 %v2455, %v2453
        %v2514 = vpack.c.bf16 %v2458, %v2456
        %v2515 = vpack.c.bf16 %v2459, %v2457
        %v2516 = vpack.c.bf16 %v2462, %v2460
        %v2517 = vpack.c.bf16 %v2463, %v2461
        %v2518 = vpack.c.bf16 %v2466, %v2464
        %v2519 = vpack.c.bf16 %v2467, %v2465
        %v2520 = vpack.c.bf16 %v2470, %v2468
        %v2521 = vpack.c.bf16 %v2471, %v2469
        %v2522 = vpack.c.bf16 %v2474, %v2472
        %v2523 = vpack.c.bf16 %v2475, %v2473
        %v2524 = vpack.c.bf16 %v2478, %v2476
        %v2525 = vpack.c.bf16 %v2479, %v2477
        %v2526 = vpack.c.bf16 %v2482, %v2480
        %v2527 = vpack.c.bf16 %v2483, %v2481
        %v2528 = vpack.c.bf16 %v2486, %v2484
        %v2529 = vpack.c.bf16 %v2487, %v2485
        %v2530 = vpack.c.bf16 %v2490, %v2488
        %v2531 = vpack.c.bf16 %v2491, %v2489
        %v2532 = vpack.c.bf16 %v2494, %v2492
        %v2533 = vpack.c.bf16 %v2495, %v2493
        %v2534 = vpack.c.bf16 %v2498, %v2496
        %v2535 = vpack.c.bf16 %v2499, %v2497
        %v2536 = vpack.c.bf16 %v2502, %v2500
        %v2537 = vpack.c.bf16 %v2503, %v2501
        %v2538 = vpack.c.bf16 %v2506, %v2504
        %v2539 = vpack.c.bf16 %v2507, %v2505
        %v2540 = vld [vmem:[#allocation10] sm:$0xff]
        %v2541 = vld [vmem:[#allocation10 + $0x8] sm:$0xff]
        %v2542 = vld [vmem:[#allocation10 + $0x10] sm:$0xff]
        %v2543 = vld [vmem:[#allocation10 + $0x18] sm:$0xff]
        %v2544 = vld [vmem:[#allocation10 + $0x20] sm:$0xff]
        %v2545 = vld [vmem:[#allocation10 + $0x28] sm:$0xff]
        %v2546 = vld [vmem:[#allocation10 + $0x30] sm:$0xff]
        %v2547 = vld [vmem:[#allocation10 + $0x38] sm:$0xff]
        %v2548 = vld [vmem:[#allocation10 + $0x40] sm:$0xff]
        %v2549 = vld [vmem:[#allocation10 + $0x48] sm:$0xff]
        %v2550 = vld [vmem:[#allocation10 + $0x50] sm:$0xff]
        %v2551 = vld [vmem:[#allocation10 + $0x58] sm:$0xff]
        %v2552 = vld [vmem:[#allocation10 + $0x60] sm:$0xff]
        %v2553 = vld [vmem:[#allocation10 + $0x68] sm:$0xff]
        %v2554 = vld [vmem:[#allocation10 + $0x70] sm:$0xff]
        %v2555 = vld [vmem:[#allocation10 + $0x78] sm:$0xff]
        %v2556 = vld [vmem:[#allocation10 + $0x80] sm:$0xff]
        %v2557 = vld [vmem:[#allocation10 + $0x88] sm:$0xff]
        %v2558 = vld [vmem:[#allocation10 + $0x90] sm:$0xff]
        %v2559 = vld [vmem:[#allocation10 + $0x98] sm:$0xff]
        %v2560 = vld [vmem:[#allocation10 + $0xa0] sm:$0xff]
        %v2561 = vld [vmem:[#allocation10 + $0xa8] sm:$0xff]
        %v2562 = vld [vmem:[#allocation10 + $0xb0] sm:$0xff]
        %v2563 = vld [vmem:[#allocation10 + $0xb8] sm:$0xff]
        %v2564 = vld [vmem:[#allocation10 + $0xc0] sm:$0xff]
        %v2565 = vld [vmem:[#allocation10 + $0xc8] sm:$0xff]
        %v2566 = vld [vmem:[#allocation10 + $0xd0] sm:$0xff]
        %v2567 = vld [vmem:[#allocation10 + $0xd8] sm:$0xff]
        %v2568 = vld [vmem:[#allocation10 + $0xe0] sm:$0xff]
        %v2569 = vld [vmem:[#allocation10 + $0xe8] sm:$0xff]
        %v2570 = vld [vmem:[#allocation10 + $0xf0] sm:$0xff]
        %v2571 = vld [vmem:[#allocation10 + $0xf8] sm:$0xff]
        %v2572 = vld [vmem:[%s8] sm:$0x3]
        %v2574 = vlaneseq
        %v2575 = vshrl.u32 %v2574, 7
        %v2576 = vsub.s32 0, %v2575
        %v2577 = vrot.slane %v2572, %v2576
        %v2578 = vlaneseq
        %v2579 = vshrl.u32 %v2578, 7
        %v2580 = vsub.s32 1, %v2579
        %v2581 = vrot.slane %v2572, %v2580
        %v2616 = vunpack.c.l.b16 %v2540
        %v2617 = vunpack.c.h.b16 %v2540
        %v2618 = vunpack.c.l.b16 %v2541
        %v2619 = vunpack.c.h.b16 %v2541
        %v2620 = vunpack.c.l.b16 %v2542
        %v2621 = vunpack.c.h.b16 %v2542
        %v2622 = vunpack.c.l.b16 %v2543
        %v2623 = vunpack.c.h.b16 %v2543
        %v2624 = vunpack.c.l.b16 %v2544
        %v2625 = vunpack.c.h.b16 %v2544
        %v2626 = vunpack.c.l.b16 %v2545
        %v2627 = vunpack.c.h.b16 %v2545
        %v2628 = vunpack.c.l.b16 %v2546
        %v2629 = vunpack.c.h.b16 %v2546
        %v2630 = vunpack.c.l.b16 %v2547
        %v2631 = vunpack.c.h.b16 %v2547
        %v2632 = vunpack.c.l.b16 %v2548
        %v2633 = vunpack.c.h.b16 %v2548
        %v2634 = vunpack.c.l.b16 %v2549
        %v2635 = vunpack.c.h.b16 %v2549
        %v2636 = vunpack.c.l.b16 %v2550
        %v2637 = vunpack.c.h.b16 %v2550
        %v2638 = vunpack.c.l.b16 %v2551
        %v2639 = vunpack.c.h.b16 %v2551
        %v2640 = vunpack.c.l.b16 %v2552
        %v2641 = vunpack.c.h.b16 %v2552
        %v2642 = vunpack.c.l.b16 %v2553
        %v2643 = vunpack.c.h.b16 %v2553
        %v2644 = vunpack.c.l.b16 %v2554
        %v2645 = vunpack.c.h.b16 %v2554
        %v2646 = vunpack.c.l.b16 %v2555
        %v2647 = vunpack.c.h.b16 %v2555
        %v2648 = vunpack.c.l.b16 %v2556
        %v2649 = vunpack.c.h.b16 %v2556
        %v2650 = vunpack.c.l.b16 %v2557
        %v2651 = vunpack.c.h.b16 %v2557
        %v2652 = vunpack.c.l.b16 %v2558
        %v2653 = vunpack.c.h.b16 %v2558
        %v2654 = vunpack.c.l.b16 %v2559
        %v2655 = vunpack.c.h.b16 %v2559
        %v2656 = vunpack.c.l.b16 %v2560
        %v2657 = vunpack.c.h.b16 %v2560
        %v2658 = vunpack.c.l.b16 %v2561
        %v2659 = vunpack.c.h.b16 %v2561
        %v2660 = vunpack.c.l.b16 %v2562
        %v2661 = vunpack.c.h.b16 %v2562
        %v2662 = vunpack.c.l.b16 %v2563
        %v2663 = vunpack.c.h.b16 %v2563
        %v2664 = vunpack.c.l.b16 %v2564
        %v2665 = vunpack.c.h.b16 %v2564
        %v2666 = vunpack.c.l.b16 %v2565
        %v2667 = vunpack.c.h.b16 %v2565
        %v2668 = vunpack.c.l.b16 %v2566
        %v2669 = vunpack.c.h.b16 %v2566
        %v2670 = vunpack.c.l.b16 %v2567
        %v2671 = vunpack.c.h.b16 %v2567
        %v2672 = vunpack.c.l.b16 %v2568
        %v2673 = vunpack.c.h.b16 %v2568
        %v2674 = vunpack.c.l.b16 %v2569
        %v2675 = vunpack.c.h.b16 %v2569
        %v2676 = vunpack.c.l.b16 %v2570
        %v2677 = vunpack.c.h.b16 %v2570
        %v2678 = vunpack.c.l.b16 %v2571
        %v2679 = vunpack.c.h.b16 %v2571
        %v2680 = vpack.c.b16 %v2618, %v2616
        %v2681 = vpack.c.b16 %v2619, %v2617
        %v2682 = vpack.c.b16 %v2622, %v2620
        %v2683 = vpack.c.b16 %v2623, %v2621
        %v2684 = vpack.c.b16 %v2626, %v2624
        %v2685 = vpack.c.b16 %v2627, %v2625
        %v2686 = vpack.c.b16 %v2630, %v2628
        %v2687 = vpack.c.b16 %v2631, %v2629
        %v2688 = vpack.c.b16 %v2634, %v2632
        %v2689 = vpack.c.b16 %v2635, %v2633
        %v2690 = vpack.c.b16 %v2638, %v2636
        %v2691 = vpack.c.b16 %v2639, %v2637
        %v2692 = vpack.c.b16 %v2642, %v2640
        %v2693 = vpack.c.b16 %v2643, %v2641
        %v2694 = vpack.c.b16 %v2646, %v2644
        %v2695 = vpack.c.b16 %v2647, %v2645
        %v2696 = vpack.c.b16 %v2650, %v2648
        %v2697 = vpack.c.b16 %v2651, %v2649
        %v2698 = vpack.c.b16 %v2654, %v2652
        %v2699 = vpack.c.b16 %v2655, %v2653
        %v2700 = vpack.c.b16 %v2658, %v2656
        %v2701 = vpack.c.b16 %v2659, %v2657
        %v2702 = vpack.c.b16 %v2662, %v2660
        %v2703 = vpack.c.b16 %v2663, %v2661
        %v2704 = vpack.c.b16 %v2666, %v2664
        %v2705 = vpack.c.b16 %v2667, %v2665
        %v2706 = vpack.c.b16 %v2670, %v2668
        %v2707 = vpack.c.b16 %v2671, %v2669
        %v2708 = vpack.c.b16 %v2674, %v2672
        %v2709 = vpack.c.b16 %v2675, %v2673
        %v2710 = vpack.c.b16 %v2678, %v2676
        %v2711 = vpack.c.b16 %v2679, %v2677
        %2744 = vmatprep.subr.bf16.mxu0 %v2681
        %2745 = vmatpush1.bf16.msra.mxu0 %v2680
        %2746 = vmatprep.subr.bf16.mxu0 %v2683
        %2747 = vmatpush1.bf16.msra.mxu0 %v2682
        %2748 = vmatprep.subr.bf16.mxu0 %v2685
        %2749 = vmatpush1.bf16.msra.mxu0 %v2684
        %2750 = vmatprep.subr.bf16.mxu0 %v2687
        %2751 = vmatpush1.bf16.msra.mxu0 %v2686
        %2752 = vmatprep.subr.bf16.mxu0 %v2689
        %2753 = vmatpush1.bf16.msra.mxu0 %v2688
        %2754 = vmatprep.subr.bf16.mxu0 %v2691
        %2755 = vmatpush1.bf16.msra.mxu0 %v2690
        %2756 = vmatprep.subr.bf16.mxu0 %v2693
        %2757 = vmatpush1.bf16.msra.mxu0 %v2692
        %2758 = vmatprep.subr.bf16.mxu0 %v2695
        %2759 = vmatpush1.bf16.msra.mxu0 %v2694
        %2760 = vmatprep.subr.bf16.mxu0 %v2697
        %2761 = vmatpush1.bf16.msra.mxu0 %v2696
        %2762 = vmatprep.subr.bf16.mxu0 %v2699
        %2763 = vmatpush1.bf16.msra.mxu0 %v2698
        %2764 = vmatprep.subr.bf16.mxu0 %v2701
        %2765 = vmatpush1.bf16.msra.mxu0 %v2700
        %2766 = vmatprep.subr.bf16.mxu0 %v2703
        %2767 = vmatpush1.bf16.msra.mxu0 %v2702
        %2768 = vmatprep.subr.bf16.mxu0 %v2705
        %2769 = vmatpush1.bf16.msra.mxu0 %v2704
        %2770 = vmatprep.subr.bf16.mxu0 %v2707
        %2771 = vmatpush1.bf16.msra.mxu0 %v2706
        %2772 = vmatprep.subr.bf16.mxu0 %v2709
        %2773 = vmatpush1.bf16.msra.mxu0 %v2708
        %2774 = vmatprep.subr.bf16.mxu0 %v2711
        %2775 = vmatpush1.bf16.msra.mxu0 %v2710
        %2776 = vmatprep.mubr.bf16.mxu0 %v2509
        %2777 = vmatmul.mubr.bf16.gmra.mrb[0].mxu0 %v2508
        %v2778 = vpop.f32.mrb[0].mxu0
        %v2779 = vadd.f32 %v2577, %v2778
        %v2780 = vpop.f32.mrb[0].mxu0
        %v2781 = vadd.f32 %v2581, %v2780
        %v2782 = vpop.f32.mrb[0].mxu0
        %v2783 = vadd.f32 %v2577, %v2782
        %v2784 = vpop.f32.mrb[0].mxu0
        %v2785 = vadd.f32 %v2581, %v2784
        %2786 = vmatprep.mubr.bf16.mxu0 %v2511
        %2787 = vmatmul.mubr.bf16.gmra.mrb[0].mxu0 %v2510
        %v2788 = vpop.f32.mrb[0].mxu0
        %v2789 = vadd.f32 %v2577, %v2788
        %v2790 = vpop.f32.mrb[0].mxu0
        %v2791 = vadd.f32 %v2581, %v2790
        %v2792 = vpop.f32.mrb[0].mxu0
        %v2793 = vadd.f32 %v2577, %v2792
        %v2794 = vpop.f32.mrb[0].mxu0
        %v2795 = vadd.f32 %v2581, %v2794
        %2796 = vmatprep.mubr.bf16.mxu0 %v2513
        %2797 = vmatmul.mubr.bf16.gmra.mrb[0].mxu0 %v2512
        %v2798 = vpop.f32.mrb[0].mxu0
        %v2799 = vadd.f32 %v2577, %v2798
        %v2800 = vpop.f32.mrb[0].mxu0
        %v2801 = vadd.f32 %v2581, %v2800
        %v2802 = vpop.f32.mrb[0].mxu0
        %v2803 = vadd.f32 %v2577, %v2802
        %v2804 = vpop.f32.mrb[0].mxu0
        %v2805 = vadd.f32 %v2581, %v2804
        %2806 = vmatprep.mubr.bf16.mxu0 %v2515
        %2807 = vmatmul.mubr.bf16.gmra.mrb[0].mxu0 %v2514
        %v2808 = vpop.f32.mrb[0].mxu0
        %v2809 = vadd.f32 %v2577, %v2808
        %v2810 = vpop.f32.mrb[0].mxu0
        %v2811 = vadd.f32 %v2581, %v2810
        %v2812 = vpop.f32.mrb[0].mxu0
        %v2813 = vadd.f32 %v2577, %v2812
        %v2814 = vpop.f32.mrb[0].mxu0
        %v2815 = vadd.f32 %v2581, %v2814
        %2816 = vmatprep.mubr.bf16.mxu0 %v2517
        %2817 = vmatmul.mubr.bf16.gmra.mrb[0].mxu0 %v2516
        %v2818 = vpop.f32.mrb[0].mxu0
        %v2819 = vadd.f32 %v2577, %v2818
        %v2820 = vpop.f32.mrb[0].mxu0
        %v2821 = vadd.f32 %v2581, %v2820
        %v2822 = vpop.f32.mrb[0].mxu0
        %v2823 = vadd.f32 %v2577, %v2822
        %v2824 = vpop.f32.mrb[0].mxu0
        %v2825 = vadd.f32 %v2581, %v2824
        %2826 = vmatprep.mubr.bf16.mxu0 %v2519
        %2827 = vmatmul.mubr.bf16.gmra.mrb[0].mxu0 %v2518
        %v2828 = vpop.f32.mrb[0].mxu0
        %v2829 = vadd.f32 %v2577, %v2828
        %v2830 = vpop.f32.mrb[0].mxu0
        %v2831 = vadd.f32 %v2581, %v2830
        %v2832 = vpop.f32.mrb[0].mxu0
        %v2833 = vadd.f32 %v2577, %v2832
        %v2834 = vpop.f32.mrb[0].mxu0
        %v2835 = vadd.f32 %v2581, %v2834
        %2836 = vmatprep.mubr.bf16.mxu0 %v2521
        %2837 = vmatmul.mubr.bf16.gmra.mrb[0].mxu0 %v2520
        %v2838 = vpop.f32.mrb[0].mxu0
        %v2839 = vadd.f32 %v2577, %v2838
        %v2840 = vpop.f32.mrb[0].mxu0
        %v2841 = vadd.f32 %v2581, %v2840
        %v2842 = vpop.f32.mrb[0].mxu0
        %v2843 = vadd.f32 %v2577, %v2842
        %v2844 = vpop.f32.mrb[0].mxu0
        %v2845 = vadd.f32 %v2581, %v2844
        %2846 = vmatprep.mubr.bf16.mxu0 %v2523
        %2847 = vmatmul.mubr.bf16.gmra.mrb[0].mxu0 %v2522
        %v2848 = vpop.f32.mrb[0].mxu0
        %v2849 = vadd.f32 %v2577, %v2848
        %v2850 = vpop.f32.mrb[0].mxu0
        %v2851 = vadd.f32 %v2581, %v2850
        %v2852 = vpop.f32.mrb[0].mxu0
        %v2853 = vadd.f32 %v2577, %v2852
        %v2854 = vpop.f32.mrb[0].mxu0
        %v2855 = vadd.f32 %v2581, %v2854
        %2856 = vmatprep.mubr.bf16.mxu0 %v2525
        %2857 = vmatmul.mubr.bf16.gmra.mrb[0].mxu0 %v2524
        %v2858 = vpop.f32.mrb[0].mxu0
        %v2859 = vadd.f32 %v2577, %v2858
        %v2860 = vpop.f32.mrb[0].mxu0
        %v2861 = vadd.f32 %v2581, %v2860
        %v2862 = vpop.f32.mrb[0].mxu0
        %v2863 = vadd.f32 %v2577, %v2862
        %v2864 = vpop.f32.mrb[0].mxu0
        %v2865 = vadd.f32 %v2581, %v2864
        %2866 = vmatprep.mubr.bf16.mxu0 %v2527
        %2867 = vmatmul.mubr.bf16.gmra.mrb[0].mxu0 %v2526
        %v2868 = vpop.f32.mrb[0].mxu0
        %v2869 = vadd.f32 %v2577, %v2868
        %v2870 = vpop.f32.mrb[0].mxu0
        %v2871 = vadd.f32 %v2581, %v2870
        %v2872 = vpop.f32.mrb[0].mxu0
        %v2873 = vadd.f32 %v2577, %v2872
        %v2874 = vpop.f32.mrb[0].mxu0
        %v2875 = vadd.f32 %v2581, %v2874
        %2876 = vmatprep.mubr.bf16.mxu0 %v2529
        %2877 = vmatmul.mubr.bf16.gmra.mrb[0].mxu0 %v2528
        %v2878 = vpop.f32.mrb[0].mxu0
        %v2879 = vadd.f32 %v2577, %v2878
        %v2880 = vpop.f32.mrb[0].mxu0
        %v2881 = vadd.f32 %v2581, %v2880
        %v2882 = vpop.f32.mrb[0].mxu0
        %v2883 = vadd.f32 %v2577, %v2882
        %v2884 = vpop.f32.mrb[0].mxu0
        %v2885 = vadd.f32 %v2581, %v2884
        %2886 = vmatprep.mubr.bf16.mxu0 %v2531
        %2887 = vmatmul.mubr.bf16.gmra.mrb[0].mxu0 %v2530
        %v2888 = vpop.f32.mrb[0].mxu0
        %v2889 = vadd.f32 %v2577, %v2888
        %v2890 = vpop.f32.mrb[0].mxu0
        %v2891 = vadd.f32 %v2581, %v2890
        %v2892 = vpop.f32.mrb[0].mxu0
        %v2893 = vadd.f32 %v2577, %v2892
        %v2894 = vpop.f32.mrb[0].mxu0
        %v2895 = vadd.f32 %v2581, %v2894
        %2896 = vmatprep.mubr.bf16.mxu0 %v2533
        %2897 = vmatmul.mubr.bf16.gmra.mrb[0].mxu0 %v2532
        %v2898 = vpop.f32.mrb[0].mxu0
        %v2899 = vadd.f32 %v2577, %v2898
        %v2900 = vpop.f32.mrb[0].mxu0
        %v2901 = vadd.f32 %v2581, %v2900
        %v2902 = vpop.f32.mrb[0].mxu0
        %v2903 = vadd.f32 %v2577, %v2902
        %v2904 = vpop.f32.mrb[0].mxu0
        %v2905 = vadd.f32 %v2581, %v2904
        %2906 = vmatprep.mubr.bf16.mxu0 %v2535
        %2907 = vmatmul.mubr.bf16.gmra.mrb[0].mxu0 %v2534
        %v2908 = vpop.f32.mrb[0].mxu0
        %v2909 = vadd.f32 %v2577, %v2908
        %v2910 = vpop.f32.mrb[0].mxu0
        %v2911 = vadd.f32 %v2581, %v2910
        %v2912 = vpop.f32.mrb[0].mxu0
        %v2913 = vadd.f32 %v2577, %v2912
        %v2914 = vpop.f32.mrb[0].mxu0
        %v2915 = vadd.f32 %v2581, %v2914
        %2916 = vmatprep.mubr.bf16.mxu0 %v2537
        %2917 = vmatmul.mubr.bf16.gmra.mrb[0].mxu0 %v2536
        %v2918 = vpop.f32.mrb[0].mxu0
        %v2919 = vadd.f32 %v2577, %v2918
        %v2920 = vpop.f32.mrb[0].mxu0
        %v2921 = vadd.f32 %v2581, %v2920
        %v2922 = vpop.f32.mrb[0].mxu0
        %v2923 = vadd.f32 %v2577, %v2922
        %v2924 = vpop.f32.mrb[0].mxu0
        %v2925 = vadd.f32 %v2581, %v2924
        %2926 = vmatprep.mubr.bf16.mxu0 %v2539
        %2927 = vmatmul.mubr.bf16.gmra.mrb[0].mxu0 %v2538
        %v2928 = vpop.f32.mrb[0].mxu0
        %v2929 = vadd.f32 %v2577, %v2928
        %v2930 = vpop.f32.mrb[0].mxu0
        %v2931 = vadd.f32 %v2581, %v2930
        %v2932 = vpop.f32.mrb[0].mxu0
        %v2933 = vadd.f32 %v2577, %v2932
        %v2934 = vpop.f32.mrb[0].mxu0
        %v2935 = vadd.f32 %v2581, %v2934
        %2936 = vdwg.mxu0
        %v2937 = vmax.f32 %v2779, 0.0
        %v2938 = vmax.f32 %v2781, 0.0
        %v2939 = vmax.f32 %v2783, 0.0
        %v2940 = vmax.f32 %v2785, 0.0
        %v2941 = vmax.f32 %v2789, 0.0
        %v2942 = vmax.f32 %v2791, 0.0
        %v2943 = vmax.f32 %v2793, 0.0
        %v2944 = vmax.f32 %v2795, 0.0
        %v2945 = vmax.f32 %v2799, 0.0
        %v2946 = vmax.f32 %v2801, 0.0
        %v2947 = vmax.f32 %v2803, 0.0
        %v2948 = vmax.f32 %v2805, 0.0
        %v2949 = vmax.f32 %v2809, 0.0
        %v2950 = vmax.f32 %v2811, 0.0
        %v2951 = vmax.f32 %v2813, 0.0
        %v2952 = vmax.f32 %v2815, 0.0
        %v2953 = vmax.f32 %v2819, 0.0
        %v2954 = vmax.f32 %v2821, 0.0
        %v2955 = vmax.f32 %v2823, 0.0
        %v2956 = vmax.f32 %v2825, 0.0
        %v2957 = vmax.f32 %v2829, 0.0
        %v2958 = vmax.f32 %v2831, 0.0
        %v2959 = vmax.f32 %v2833, 0.0
        %v2960 = vmax.f32 %v2835, 0.0
        %v2961 = vmax.f32 %v2839, 0.0
        %v2962 = vmax.f32 %v2841, 0.0
        %v2963 = vmax.f32 %v2843, 0.0
        %v2964 = vmax.f32 %v2845, 0.0
        %v2965 = vmax.f32 %v2849, 0.0
        %v2966 = vmax.f32 %v2851, 0.0
        %v2967 = vmax.f32 %v2853, 0.0
        %v2968 = vmax.f32 %v2855, 0.0
        %v2969 = vmax.f32 %v2859, 0.0
        %v2970 = vmax.f32 %v2861, 0.0
        %v2971 = vmax.f32 %v2863, 0.0
        %v2972 = vmax.f32 %v2865, 0.0
        %v2973 = vmax.f32 %v2869, 0.0
        %v2974 = vmax.f32 %v2871, 0.0
        %v2975 = vmax.f32 %v2873, 0.0
        %v2976 = vmax.f32 %v2875, 0.0
        %v2977 = vmax.f32 %v2879, 0.0
        %v2978 = vmax.f32 %v2881, 0.0
        %v2979 = vmax.f32 %v2883, 0.0
        %v2980 = vmax.f32 %v2885, 0.0
        %v2981 = vmax.f32 %v2889, 0.0
        %v2982 = vmax.f32 %v2891, 0.0
        %v2983 = vmax.f32 %v2893, 0.0
        %v2984 = vmax.f32 %v2895, 0.0
        %v2985 = vmax.f32 %v2899, 0.0
        %v2986 = vmax.f32 %v2901, 0.0
        %v2987 = vmax.f32 %v2903, 0.0
        %v2988 = vmax.f32 %v2905, 0.0
        %v2989 = vmax.f32 %v2909, 0.0
        %v2990 = vmax.f32 %v2911, 0.0
        %v2991 = vmax.f32 %v2913, 0.0
        %v2992 = vmax.f32 %v2915, 0.0
        %v2993 = vmax.f32 %v2919, 0.0
        %v2994 = vmax.f32 %v2921, 0.0
        %v2995 = vmax.f32 %v2923, 0.0
        %v2996 = vmax.f32 %v2925, 0.0
        %v2997 = vmax.f32 %v2929, 0.0
        %v2998 = vmax.f32 %v2931, 0.0
        %v2999 = vmax.f32 %v2933, 0.0
        %v3000 = vmax.f32 %v2935, 0.0
        %v3001 = vpack.c.bf16 %v2939, %v2937
        %v3002 = vpack.c.bf16 %v2940, %v2938
        %v3003 = vpack.c.bf16 %v2943, %v2941
        %v3004 = vpack.c.bf16 %v2944, %v2942
        %v3005 = vpack.c.bf16 %v2947, %v2945
        %v3006 = vpack.c.bf16 %v2948, %v2946
        %v3007 = vpack.c.bf16 %v2951, %v2949
        %v3008 = vpack.c.bf16 %v2952, %v2950
        %v3009 = vpack.c.bf16 %v2955, %v2953
        %v3010 = vpack.c.bf16 %v2956, %v2954
        %v3011 = vpack.c.bf16 %v2959, %v2957
        %v3012 = vpack.c.bf16 %v2960, %v2958
        %v3013 = vpack.c.bf16 %v2963, %v2961
        %v3014 = vpack.c.bf16 %v2964, %v2962
        %v3015 = vpack.c.bf16 %v2967, %v2965
        %v3016 = vpack.c.bf16 %v2968, %v2966
        %v3017 = vpack.c.bf16 %v2971, %v2969
        %v3018 = vpack.c.bf16 %v2972, %v2970
        %v3019 = vpack.c.bf16 %v2975, %v2973
        %v3020 = vpack.c.bf16 %v2976, %v2974
        %v3021 = vpack.c.bf16 %v2979, %v2977
        %v3022 = vpack.c.bf16 %v2980, %v2978
        %v3023 = vpack.c.bf16 %v2983, %v2981
        %v3024 = vpack.c.bf16 %v2984, %v2982
        %v3025 = vpack.c.bf16 %v2987, %v2985
        %v3026 = vpack.c.bf16 %v2988, %v2986
        %v3027 = vpack.c.bf16 %v2991, %v2989
        %v3028 = vpack.c.bf16 %v2992, %v2990
        %v3029 = vpack.c.bf16 %v2995, %v2993
        %v3030 = vpack.c.bf16 %v2996, %v2994
        %v3031 = vpack.c.bf16 %v2999, %v2997
        %v3032 = vpack.c.bf16 %v3000, %v2998
        %v3033 = vld [vmem:[#allocation11] sm:$0xff]
        %v3034 = vld [vmem:[#allocation11 + $0x8] sm:$0xff]
        %v3035 = vld [vmem:[#allocation11 + $0x10] sm:$0xff]
        %v3036 = vld [vmem:[#allocation11 + $0x18] sm:$0xff]
        %v3037 = vld [vmem:[#allocation11 + $0x20] sm:$0xff]
        %v3038 = vld [vmem:[#allocation11 + $0x28] sm:$0xff]
        %v3039 = vld [vmem:[#allocation11 + $0x30] sm:$0xff]
        %v3040 = vld [vmem:[#allocation11 + $0x38] sm:$0xff]
        %v3041 = vld [vmem:[#allocation11 + $0x40] sm:$0xff]
        %v3042 = vld [vmem:[#allocation11 + $0x48] sm:$0xff]
        %v3043 = vld [vmem:[#allocation11 + $0x50] sm:$0xff]
        %v3044 = vld [vmem:[#allocation11 + $0x58] sm:$0xff]
        %v3045 = vld [vmem:[#allocation11 + $0x60] sm:$0xff]
        %v3046 = vld [vmem:[#allocation11 + $0x68] sm:$0xff]
        %v3047 = vld [vmem:[#allocation11 + $0x70] sm:$0xff]
        %v3048 = vld [vmem:[#allocation11 + $0x78] sm:$0xff]
        %v3049 = vld [vmem:[#allocation11 + $0x80] sm:$0xff]
        %v3050 = vld [vmem:[#allocation11 + $0x88] sm:$0xff]
        %v3051 = vld [vmem:[#allocation11 + $0x90] sm:$0xff]
        %v3052 = vld [vmem:[#allocation11 + $0x98] sm:$0xff]
        %v3053 = vld [vmem:[#allocation11 + $0xa0] sm:$0xff]
        %v3054 = vld [vmem:[#allocation11 + $0xa8] sm:$0xff]
        %v3055 = vld [vmem:[#allocation11 + $0xb0] sm:$0xff]
        %v3056 = vld [vmem:[#allocation11 + $0xb8] sm:$0xff]
        %v3057 = vld [vmem:[#allocation11 + $0xc0] sm:$0xff]
        %v3058 = vld [vmem:[#allocation11 + $0xc8] sm:$0xff]
        %v3059 = vld [vmem:[#allocation11 + $0xd0] sm:$0xff]
        %v3060 = vld [vmem:[#allocation11 + $0xd8] sm:$0xff]
        %v3061 = vld [vmem:[#allocation11 + $0xe0] sm:$0xff]
        %v3062 = vld [vmem:[#allocation11 + $0xe8] sm:$0xff]
        %v3063 = vld [vmem:[#allocation11 + $0xf0] sm:$0xff]
        %v3064 = vld [vmem:[#allocation11 + $0xf8] sm:$0xff]
        %v3065 = vld [vmem:[#allocation13] sm:$0xff]
        %v3066 = vld [vmem:[#allocation13 + $0x8] sm:$0xff]
        %v3067 = vld [vmem:[#allocation13 + $0x10] sm:$0xff]
        %v3068 = vld [vmem:[#allocation13 + $0x18] sm:$0xff]
        %v3069 = vld [vmem:[#allocation13 + $0x20] sm:$0xff]
        %v3070 = vld [vmem:[#allocation13 + $0x28] sm:$0xff]
        %v3071 = vld [vmem:[#allocation13 + $0x30] sm:$0xff]
        %v3072 = vld [vmem:[#allocation13 + $0x38] sm:$0xff]
        %v3073 = vld [vmem:[#allocation13 + $0x40] sm:$0xff]
        %v3074 = vld [vmem:[#allocation13 + $0x48] sm:$0xff]
        %v3075 = vld [vmem:[#allocation13 + $0x50] sm:$0xff]
        %v3076 = vld [vmem:[#allocation13 + $0x58] sm:$0xff]
        %v3077 = vld [vmem:[#allocation13 + $0x60] sm:$0xff]
        %v3078 = vld [vmem:[#allocation13 + $0x68] sm:$0xff]
        %v3079 = vld [vmem:[#allocation13 + $0x70] sm:$0xff]
        %v3080 = vld [vmem:[#allocation13 + $0x78] sm:$0xff]
        %v3097 = vunpack.c.l.b16 %v3065
        %v3098 = vunpack.c.h.b16 %v3065
        %v3099 = vunpack.c.l.b16 %v3066
        %v3100 = vunpack.c.h.b16 %v3066
        %v3101 = vunpack.c.l.b16 %v3067
        %v3102 = vunpack.c.h.b16 %v3067
        %v3103 = vunpack.c.l.b16 %v3068
        %v3104 = vunpack.c.h.b16 %v3068
        %v3105 = vunpack.c.l.b16 %v3069
        %v3106 = vunpack.c.h.b16 %v3069
        %v3107 = vunpack.c.l.b16 %v3070
        %v3108 = vunpack.c.h.b16 %v3070
        %v3109 = vunpack.c.l.b16 %v3071
        %v3110 = vunpack.c.h.b16 %v3071
        %v3111 = vunpack.c.l.b16 %v3072
        %v3112 = vunpack.c.h.b16 %v3072
        %v3113 = vunpack.c.l.b16 %v3073
        %v3114 = vunpack.c.h.b16 %v3073
        %v3115 = vunpack.c.l.b16 %v3074
        %v3116 = vunpack.c.h.b16 %v3074
        %v3117 = vunpack.c.l.b16 %v3075
        %v3118 = vunpack.c.h.b16 %v3075
        %v3119 = vunpack.c.l.b16 %v3076
        %v3120 = vunpack.c.h.b16 %v3076
        %v3121 = vunpack.c.l.b16 %v3077
        %v3122 = vunpack.c.h.b16 %v3077
        %v3123 = vunpack.c.l.b16 %v3078
        %v3124 = vunpack.c.h.b16 %v3078
        %v3125 = vunpack.c.l.b16 %v3079
        %v3126 = vunpack.c.h.b16 %v3079
        %v3127 = vunpack.c.l.b16 %v3080
        %v3128 = vunpack.c.h.b16 %v3080
        %v3129 = vpack.c.b16 %v3099, %v3097
        %v3130 = vpack.c.b16 %v3100, %v3098
        %v3131 = vpack.c.b16 %v3103, %v3101
        %v3132 = vpack.c.b16 %v3104, %v3102
        %v3133 = vpack.c.b16 %v3107, %v3105
        %v3134 = vpack.c.b16 %v3108, %v3106
        %v3135 = vpack.c.b16 %v3111, %v3109
        %v3136 = vpack.c.b16 %v3112, %v3110
        %v3137 = vpack.c.b16 %v3115, %v3113
        %v3138 = vpack.c.b16 %v3116, %v3114
        %v3139 = vpack.c.b16 %v3119, %v3117
        %v3140 = vpack.c.b16 %v3120, %v3118
        %v3141 = vpack.c.b16 %v3123, %v3121
        %v3142 = vpack.c.b16 %v3124, %v3122
        %v3143 = vpack.c.b16 %v3127, %v3125
        %v3144 = vpack.c.b16 %v3128, %v3126
        %3161 = vmatprep.subr.bf16.mxu0 %v3130
        %3162 = vmatpush1.bf16.msra.mxu0 %v3129
        %3163 = vmatprep.subr.bf16.mxu0 %v3132
        %3164 = vmatpush1.bf16.msra.mxu0 %v3131
        %3165 = vmatprep.subr.bf16.mxu0 %v3134
        %3166 = vmatpush1.bf16.msra.mxu0 %v3133
        %3167 = vmatprep.subr.bf16.mxu0 %v3136
        %3168 = vmatpush1.bf16.msra.mxu0 %v3135
        %3169 = vmatprep.subr.bf16.mxu0 %v3138
        %3170 = vmatpush1.bf16.msra.mxu0 %v3137
        %3171 = vmatprep.subr.bf16.mxu0 %v3140
        %3172 = vmatpush1.bf16.msra.mxu0 %v3139
        %3173 = vmatprep.subr.bf16.mxu0 %v3142
        %3174 = vmatpush1.bf16.msra.mxu0 %v3141
        %3175 = vmatprep.subr.bf16.mxu0 %v3144
        %3176 = vmatpush1.bf16.msra.mxu0 %v3143
        %3177 = vmatprep.subr.bf16.mxu0 0
        %3178 = vmatpush1.bf16.msra.mxu0 0
        %3179 = vmatprep.subr.bf16.mxu0 0
        %3180 = vmatpush1.bf16.msra.mxu0 0
        %3181 = vmatprep.subr.bf16.mxu0 0
        %3182 = vmatpush1.bf16.msra.mxu0 0
        %3183 = vmatprep.subr.bf16.mxu0 0
        %3184 = vmatpush1.bf16.msra.mxu0 0
        %3185 = vmatprep.subr.bf16.mxu0 0
        %3186 = vmatpush1.bf16.msra.mxu0 0
        %3187 = vmatprep.subr.bf16.mxu0 0
        %3188 = vmatpush1.bf16.msra.mxu0 0
        %3189 = vmatprep.subr.bf16.mxu0 0
        %3190 = vmatpush1.bf16.msra.mxu0 0
        %3191 = vmatprep.subr.bf16.mxu0 0
        %3192 = vmatpush1.bf16.msra.mxu0 0
        %3193 = vmatprep.mubr.bf16.mxu0 0
        %3194 = vmatmul.mubr.bf16.gmra.mrb[0].mxu0 %v1153
        %v3195 = vpop.f32.mrb[0].mxu0
        %v3196 = vadd.f32 0.0, %v3195
        %v3197 = vpop.f32.mrb[0].mxu0
        %v3198 = vadd.f32 0.0, %v3197
        %v3199 = vpop.f32.mrb[0].mxu0
        %v3200 = vadd.f32 0.0, %v3199
        %v3201 = vpop.f32.mrb[0].mxu0
        %v3202 = vadd.f32 0.0, %v3201
        %3203 = vmatprep.mubr.bf16.mxu0 0
        %3204 = vmatmul.mubr.bf16.gmra.mrb[0].mxu0 %v1154
        %v3205 = vpop.f32.mrb[0].mxu0
        %v3206 = vadd.f32 0.0, %v3205
        %v3207 = vpop.f32.mrb[0].mxu0
        %v3208 = vadd.f32 0.0, %v3207
        %v3209 = vpop.f32.mrb[0].mxu0
        %v3210 = vadd.f32 0.0, %v3209
        %v3211 = vpop.f32.mrb[0].mxu0
        %v3212 = vadd.f32 0.0, %v3211
        %3213 = vmatprep.mubr.bf16.mxu0 0
        %3214 = vmatmul.mubr.bf16.gmra.mrb[0].mxu0 %v1155
        %v3215 = vpop.f32.mrb[0].mxu0
        %v3216 = vadd.f32 0.0, %v3215
        %v3217 = vpop.f32.mrb[0].mxu0
        %v3218 = vadd.f32 0.0, %v3217
        %v3219 = vpop.f32.mrb[0].mxu0
        %v3220 = vadd.f32 0.0, %v3219
        %v3221 = vpop.f32.mrb[0].mxu0
        %v3222 = vadd.f32 0.0, %v3221
        %3223 = vmatprep.mubr.bf16.mxu0 0
        %3224 = vmatmul.mubr.bf16.gmra.mrb[0].mxu0 %v1156
        %v3225 = vpop.f32.mrb[0].mxu0
        %v3226 = vadd.f32 0.0, %v3225
        %v3227 = vpop.f32.mrb[0].mxu0
        %v3228 = vadd.f32 0.0, %v3227
        %v3229 = vpop.f32.mrb[0].mxu0
        %v3230 = vadd.f32 0.0, %v3229
        %v3231 = vpop.f32.mrb[0].mxu0
        %v3232 = vadd.f32 0.0, %v3231
        %3233 = vmatprep.mubr.bf16.mxu0 0
        %3234 = vmatmul.mubr.bf16.gmra.mrb[0].mxu0 %v1157
        %v3235 = vpop.f32.mrb[0].mxu0
        %v3236 = vadd.f32 0.0, %v3235
        %v3237 = vpop.f32.mrb[0].mxu0
        %v3238 = vadd.f32 0.0, %v3237
        %v3239 = vpop.f32.mrb[0].mxu0
        %v3240 = vadd.f32 0.0, %v3239
        %v3241 = vpop.f32.mrb[0].mxu0
        %v3242 = vadd.f32 0.0, %v3241
        %3243 = vmatprep.mubr.bf16.mxu0 0
        %3244 = vmatmul.mubr.bf16.gmra.mrb[0].mxu0 %v1158
        %v3245 = vpop.f32.mrb[0].mxu0
        %v3246 = vadd.f32 0.0, %v3245
        %v3247 = vpop.f32.mrb[0].mxu0
        %v3248 = vadd.f32 0.0, %v3247
        %v3249 = vpop.f32.mrb[0].mxu0
        %v3250 = vadd.f32 0.0, %v3249
        %v3251 = vpop.f32.mrb[0].mxu0
        %v3252 = vadd.f32 0.0, %v3251
        %3253 = vmatprep.mubr.bf16.mxu0 0
        %3254 = vmatmul.mubr.bf16.gmra.mrb[0].mxu0 %v1159
        %v3255 = vpop.f32.mrb[0].mxu0
        %v3256 = vadd.f32 0.0, %v3255
        %v3257 = vpop.f32.mrb[0].mxu0
        %v3258 = vadd.f32 0.0, %v3257
        %v3259 = vpop.f32.mrb[0].mxu0
        %v3260 = vadd.f32 0.0, %v3259
        %v3261 = vpop.f32.mrb[0].mxu0
        %v3262 = vadd.f32 0.0, %v3261
        %3263 = vmatprep.mubr.bf16.mxu0 0
        %3264 = vmatmul.mubr.bf16.gmra.mrb[0].mxu0 %v1160
        %v3265 = vpop.f32.mrb[0].mxu0
        %v3266 = vadd.f32 0.0, %v3265
        %v3267 = vpop.f32.mrb[0].mxu0
        %v3268 = vadd.f32 0.0, %v3267
        %v3269 = vpop.f32.mrb[0].mxu0
        %v3270 = vadd.f32 0.0, %v3269
        %v3271 = vpop.f32.mrb[0].mxu0
        %v3272 = vadd.f32 0.0, %v3271
        %3273 = vmatprep.mubr.bf16.mxu0 0
        %3274 = vmatmul.mubr.bf16.gmra.mrb[0].mxu0 %v1161
        %v3275 = vpop.f32.mrb[0].mxu0
        %v3276 = vadd.f32 0.0, %v3275
        %v3277 = vpop.f32.mrb[0].mxu0
        %v3278 = vadd.f32 0.0, %v3277
        %v3279 = vpop.f32.mrb[0].mxu0
        %v3280 = vadd.f32 0.0, %v3279
        %v3281 = vpop.f32.mrb[0].mxu0
        %v3282 = vadd.f32 0.0, %v3281
        %3283 = vmatprep.mubr.bf16.mxu0 0
        %3284 = vmatmul.mubr.bf16.gmra.mrb[0].mxu0 %v1162
        %v3285 = vpop.f32.mrb[0].mxu0
        %v3286 = vadd.f32 0.0, %v3285
        %v3287 = vpop.f32.mrb[0].mxu0
        %v3288 = vadd.f32 0.0, %v3287
        %v3289 = vpop.f32.mrb[0].mxu0
        %v3290 = vadd.f32 0.0, %v3289
        %v3291 = vpop.f32.mrb[0].mxu0
        %v3292 = vadd.f32 0.0, %v3291
        %3293 = vmatprep.mubr.bf16.mxu0 0
        %3294 = vmatmul.mubr.bf16.gmra.mrb[0].mxu0 %v1163
        %v3295 = vpop.f32.mrb[0].mxu0
        %v3296 = vadd.f32 0.0, %v3295
        %v3297 = vpop.f32.mrb[0].mxu0
        %v3298 = vadd.f32 0.0, %v3297
        %v3299 = vpop.f32.mrb[0].mxu0
        %v3300 = vadd.f32 0.0, %v3299
        %v3301 = vpop.f32.mrb[0].mxu0
        %v3302 = vadd.f32 0.0, %v3301
        %3303 = vmatprep.mubr.bf16.mxu0 0
        %3304 = vmatmul.mubr.bf16.gmra.mrb[0].mxu0 %v1164
        %v3305 = vpop.f32.mrb[0].mxu0
        %v3306 = vadd.f32 0.0, %v3305
        %v3307 = vpop.f32.mrb[0].mxu0
        %v3308 = vadd.f32 0.0, %v3307
        %v3309 = vpop.f32.mrb[0].mxu0
        %v3310 = vadd.f32 0.0, %v3309
        %v3311 = vpop.f32.mrb[0].mxu0
        %v3312 = vadd.f32 0.0, %v3311
        %3313 = vmatprep.mubr.bf16.mxu0 0
        %3314 = vmatmul.mubr.bf16.gmra.mrb[0].mxu0 %v1165
        %v3315 = vpop.f32.mrb[0].mxu0
        %v3316 = vadd.f32 0.0, %v3315
        %v3317 = vpop.f32.mrb[0].mxu0
        %v3318 = vadd.f32 0.0, %v3317
        %v3319 = vpop.f32.mrb[0].mxu0
        %v3320 = vadd.f32 0.0, %v3319
        %v3321 = vpop.f32.mrb[0].mxu0
        %v3322 = vadd.f32 0.0, %v3321
        %3323 = vmatprep.mubr.bf16.mxu0 0
        %3324 = vmatmul.mubr.bf16.gmra.mrb[0].mxu0 %v1166
        %v3325 = vpop.f32.mrb[0].mxu0
        %v3326 = vadd.f32 0.0, %v3325
        %v3327 = vpop.f32.mrb[0].mxu0
        %v3328 = vadd.f32 0.0, %v3327
        %v3329 = vpop.f32.mrb[0].mxu0
        %v3330 = vadd.f32 0.0, %v3329
        %v3331 = vpop.f32.mrb[0].mxu0
        %v3332 = vadd.f32 0.0, %v3331
        %3333 = vmatprep.mubr.bf16.mxu0 0
        %3334 = vmatmul.mubr.bf16.gmra.mrb[0].mxu0 %v1167
        %v3335 = vpop.f32.mrb[0].mxu0
        %v3336 = vadd.f32 0.0, %v3335
        %v3337 = vpop.f32.mrb[0].mxu0
        %v3338 = vadd.f32 0.0, %v3337
        %v3339 = vpop.f32.mrb[0].mxu0
        %v3340 = vadd.f32 0.0, %v3339
        %v3341 = vpop.f32.mrb[0].mxu0
        %v3342 = vadd.f32 0.0, %v3341
        %3343 = vmatprep.mubr.bf16.mxu0 0
        %3344 = vmatmul.mubr.bf16.gmra.mrb[0].mxu0 %v1168
        %v3345 = vpop.f32.mrb[0].mxu0
        %v3346 = vadd.f32 0.0, %v3345
        %v3347 = vpop.f32.mrb[0].mxu0
        %v3348 = vadd.f32 0.0, %v3347
        %v3349 = vpop.f32.mrb[0].mxu0
        %v3350 = vadd.f32 0.0, %v3349
        %v3351 = vpop.f32.mrb[0].mxu0
        %v3352 = vadd.f32 0.0, %v3351
        %3353 = vdwg.mxu0
        %v3386 = vunpack.c.l.b16 %v3033
        %v3387 = vunpack.c.h.b16 %v3033
        %v3388 = vunpack.c.l.b16 %v3034
        %v3389 = vunpack.c.h.b16 %v3034
        %v3390 = vunpack.c.l.b16 %v3035
        %v3391 = vunpack.c.h.b16 %v3035
        %v3392 = vunpack.c.l.b16 %v3036
        %v3393 = vunpack.c.h.b16 %v3036
        %v3394 = vunpack.c.l.b16 %v3037
        %v3395 = vunpack.c.h.b16 %v3037
        %v3396 = vunpack.c.l.b16 %v3038
        %v3397 = vunpack.c.h.b16 %v3038
        %v3398 = vunpack.c.l.b16 %v3039
        %v3399 = vunpack.c.h.b16 %v3039
        %v3400 = vunpack.c.l.b16 %v3040
        %v3401 = vunpack.c.h.b16 %v3040
        %v3402 = vunpack.c.l.b16 %v3041
        %v3403 = vunpack.c.h.b16 %v3041
        %v3404 = vunpack.c.l.b16 %v3042
        %v3405 = vunpack.c.h.b16 %v3042
        %v3406 = vunpack.c.l.b16 %v3043
        %v3407 = vunpack.c.h.b16 %v3043
        %v3408 = vunpack.c.l.b16 %v3044
        %v3409 = vunpack.c.h.b16 %v3044
        %v3410 = vunpack.c.l.b16 %v3045
        %v3411 = vunpack.c.h.b16 %v3045
        %v3412 = vunpack.c.l.b16 %v3046
        %v3413 = vunpack.c.h.b16 %v3046
        %v3414 = vunpack.c.l.b16 %v3047
        %v3415 = vunpack.c.h.b16 %v3047
        %v3416 = vunpack.c.l.b16 %v3048
        %v3417 = vunpack.c.h.b16 %v3048
        %v3418 = vunpack.c.l.b16 %v3049
        %v3419 = vunpack.c.h.b16 %v3049
        %v3420 = vunpack.c.l.b16 %v3050
        %v3421 = vunpack.c.h.b16 %v3050
        %v3422 = vunpack.c.l.b16 %v3051
        %v3423 = vunpack.c.h.b16 %v3051
        %v3424 = vunpack.c.l.b16 %v3052
        %v3425 = vunpack.c.h.b16 %v3052
        %v3426 = vunpack.c.l.b16 %v3053
        %v3427 = vunpack.c.h.b16 %v3053
        %v3428 = vunpack.c.l.b16 %v3054
        %v3429 = vunpack.c.h.b16 %v3054
        %v3430 = vunpack.c.l.b16 %v3055
        %v3431 = vunpack.c.h.b16 %v3055
        %v3432 = vunpack.c.l.b16 %v3056
        %v3433 = vunpack.c.h.b16 %v3056
        %v3434 = vunpack.c.l.b16 %v3057
        %v3435 = vunpack.c.h.b16 %v3057
        %v3436 = vunpack.c.l.b16 %v3058
        %v3437 = vunpack.c.h.b16 %v3058
        %v3438 = vunpack.c.l.b16 %v3059
        %v3439 = vunpack.c.h.b16 %v3059
        %v3440 = vunpack.c.l.b16 %v3060
        %v3441 = vunpack.c.h.b16 %v3060
        %v3442 = vunpack.c.l.b16 %v3061
        %v3443 = vunpack.c.h.b16 %v3061
        %v3444 = vunpack.c.l.b16 %v3062
        %v3445 = vunpack.c.h.b16 %v3062
        %v3446 = vunpack.c.l.b16 %v3063
        %v3447 = vunpack.c.h.b16 %v3063
        %v3448 = vunpack.c.l.b16 %v3064
        %v3449 = vunpack.c.h.b16 %v3064
        %v3450 = vpack.c.b16 %v3388, %v3386
        %v3451 = vpack.c.b16 %v3389, %v3387
        %v3452 = vpack.c.b16 %v3392, %v3390
        %v3453 = vpack.c.b16 %v3393, %v3391
        %v3454 = vpack.c.b16 %v3396, %v3394
        %v3455 = vpack.c.b16 %v3397, %v3395
        %v3456 = vpack.c.b16 %v3400, %v3398
        %v3457 = vpack.c.b16 %v3401, %v3399
        %v3458 = vpack.c.b16 %v3404, %v3402
        %v3459 = vpack.c.b16 %v3405, %v3403
        %v3460 = vpack.c.b16 %v3408, %v3406
        %v3461 = vpack.c.b16 %v3409, %v3407
        %v3462 = vpack.c.b16 %v3412, %v3410
        %v3463 = vpack.c.b16 %v3413, %v3411
        %v3464 = vpack.c.b16 %v3416, %v3414
        %v3465 = vpack.c.b16 %v3417, %v3415
        %v3466 = vpack.c.b16 %v3420, %v3418
        %v3467 = vpack.c.b16 %v3421, %v3419
        %v3468 = vpack.c.b16 %v3424, %v3422
        %v3469 = vpack.c.b16 %v3425, %v3423
        %v3470 = vpack.c.b16 %v3428, %v3426
        %v3471 = vpack.c.b16 %v3429, %v3427
        %v3472 = vpack.c.b16 %v3432, %v3430
        %v3473 = vpack.c.b16 %v3433, %v3431
        %v3474 = vpack.c.b16 %v3436, %v3434
        %v3475 = vpack.c.b16 %v3437, %v3435
        %v3476 = vpack.c.b16 %v3440, %v3438
        %v3477 = vpack.c.b16 %v3441, %v3439
        %v3478 = vpack.c.b16 %v3444, %v3442
        %v3479 = vpack.c.b16 %v3445, %v3443
        %v3480 = vpack.c.b16 %v3448, %v3446
        %v3481 = vpack.c.b16 %v3449, %v3447
        %3514 = vmatprep.subr.bf16.mxu0 %v3451
        %3515 = vmatpush1.bf16.msra.mxu0 %v3450
        %3516 = vmatprep.subr.bf16.mxu0 %v3453
        %3517 = vmatpush1.bf16.msra.mxu0 %v3452
        %3518 = vmatprep.subr.bf16.mxu0 %v3455
        %3519 = vmatpush1.bf16.msra.mxu0 %v3454
        %3520 = vmatprep.subr.bf16.mxu0 %v3457
        %3521 = vmatpush1.bf16.msra.mxu0 %v3456
        %3522 = vmatprep.subr.bf16.mxu0 %v3459
        %3523 = vmatpush1.bf16.msra.mxu0 %v3458
        %3524 = vmatprep.subr.bf16.mxu0 %v3461
        %3525 = vmatpush1.bf16.msra.mxu0 %v3460
        %3526 = vmatprep.subr.bf16.mxu0 %v3463
        %3527 = vmatpush1.bf16.msra.mxu0 %v3462
        %3528 = vmatprep.subr.bf16.mxu0 %v3465
        %3529 = vmatpush1.bf16.msra.mxu0 %v3464
        %3530 = vmatprep.subr.bf16.mxu0 %v3467
        %3531 = vmatpush1.bf16.msra.mxu0 %v3466
        %3532 = vmatprep.subr.bf16.mxu0 %v3469
        %3533 = vmatpush1.bf16.msra.mxu0 %v3468
        %3534 = vmatprep.subr.bf16.mxu0 %v3471
        %3535 = vmatpush1.bf16.msra.mxu0 %v3470
        %3536 = vmatprep.subr.bf16.mxu0 %v3473
        %3537 = vmatpush1.bf16.msra.mxu0 %v3472
        %3538 = vmatprep.subr.bf16.mxu0 %v3475
        %3539 = vmatpush1.bf16.msra.mxu0 %v3474
        %3540 = vmatprep.subr.bf16.mxu0 %v3477
        %3541 = vmatpush1.bf16.msra.mxu0 %v3476
        %3542 = vmatprep.subr.bf16.mxu0 %v3479
        %3543 = vmatpush1.bf16.msra.mxu0 %v3478
        %3544 = vmatprep.subr.bf16.mxu0 %v3481
        %3545 = vmatpush1.bf16.msra.mxu0 %v3480
        %3546 = vmatprep.mubr.bf16.mxu0 %v3002
        %3547 = vmatmul.mubr.bf16.gmra.mrb[0].mxu0 %v3001
        %v3548 = vpop.f32.mrb[0].mxu0
        %v3549 = vadd.f32 %v3196, %v3548
        %v3550 = vpop.f32.mrb[0].mxu0
        %v3551 = vadd.f32 %v3198, %v3550
        %v3552 = vpop.f32.mrb[0].mxu0
        %v3553 = vadd.f32 %v3200, %v3552
        %v3554 = vpop.f32.mrb[0].mxu0
        %v3555 = vadd.f32 %v3202, %v3554
        %3556 = vmatprep.mubr.bf16.mxu0 %v3004
        %3557 = vmatmul.mubr.bf16.gmra.mrb[0].mxu0 %v3003
        %v3558 = vpop.f32.mrb[0].mxu0
        %v3559 = vadd.f32 %v3206, %v3558
        %v3560 = vpop.f32.mrb[0].mxu0
        %v3561 = vadd.f32 %v3208, %v3560
        %v3562 = vpop.f32.mrb[0].mxu0
        %v3563 = vadd.f32 %v3210, %v3562
        %v3564 = vpop.f32.mrb[0].mxu0
        %v3565 = vadd.f32 %v3212, %v3564
        %3566 = vmatprep.mubr.bf16.mxu0 %v3006
        %3567 = vmatmul.mubr.bf16.gmra.mrb[0].mxu0 %v3005
        %v3568 = vpop.f32.mrb[0].mxu0
        %v3569 = vadd.f32 %v3216, %v3568
        %v3570 = vpop.f32.mrb[0].mxu0
        %v3571 = vadd.f32 %v3218, %v3570
        %v3572 = vpop.f32.mrb[0].mxu0
        %v3573 = vadd.f32 %v3220, %v3572
        %v3574 = vpop.f32.mrb[0].mxu0
        %v3575 = vadd.f32 %v3222, %v3574
        %3576 = vmatprep.mubr.bf16.mxu0 %v3008
        %3577 = vmatmul.mubr.bf16.gmra.mrb[0].mxu0 %v3007
        %v3578 = vpop.f32.mrb[0].mxu0
        %v3579 = vadd.f32 %v3226, %v3578
        %v3580 = vpop.f32.mrb[0].mxu0
        %v3581 = vadd.f32 %v3228, %v3580
        %v3582 = vpop.f32.mrb[0].mxu0
        %v3583 = vadd.f32 %v3230, %v3582
        %v3584 = vpop.f32.mrb[0].mxu0
        %v3585 = vadd.f32 %v3232, %v3584
        %3586 = vmatprep.mubr.bf16.mxu0 %v3010
        %3587 = vmatmul.mubr.bf16.gmra.mrb[0].mxu0 %v3009
        %v3588 = vpop.f32.mrb[0].mxu0
        %v3589 = vadd.f32 %v3236, %v3588
        %v3590 = vpop.f32.mrb[0].mxu0
        %v3591 = vadd.f32 %v3238, %v3590
        %v3592 = vpop.f32.mrb[0].mxu0
        %v3593 = vadd.f32 %v3240, %v3592
        %v3594 = vpop.f32.mrb[0].mxu0
        %v3595 = vadd.f32 %v3242, %v3594
        %3596 = vmatprep.mubr.bf16.mxu0 %v3012
        %3597 = vmatmul.mubr.bf16.gmra.mrb[0].mxu0 %v3011
        %v3598 = vpop.f32.mrb[0].mxu0
        %v3599 = vadd.f32 %v3246, %v3598
        %v3600 = vpop.f32.mrb[0].mxu0
        %v3601 = vadd.f32 %v3248, %v3600
        %v3602 = vpop.f32.mrb[0].mxu0
        %v3603 = vadd.f32 %v3250, %v3602
        %v3604 = vpop.f32.mrb[0].mxu0
        %v3605 = vadd.f32 %v3252, %v3604
        %3606 = vmatprep.mubr.bf16.mxu0 %v3014
        %3607 = vmatmul.mubr.bf16.gmra.mrb[0].mxu0 %v3013
        %v3608 = vpop.f32.mrb[0].mxu0
        %v3609 = vadd.f32 %v3256, %v3608
        %v3610 = vpop.f32.mrb[0].mxu0
        %v3611 = vadd.f32 %v3258, %v3610
        %v3612 = vpop.f32.mrb[0].mxu0
        %v3613 = vadd.f32 %v3260, %v3612
        %v3614 = vpop.f32.mrb[0].mxu0
        %v3615 = vadd.f32 %v3262, %v3614
        %3616 = vmatprep.mubr.bf16.mxu0 %v3016
        %3617 = vmatmul.mubr.bf16.gmra.mrb[0].mxu0 %v3015
        %v3618 = vpop.f32.mrb[0].mxu0
        %v3619 = vadd.f32 %v3266, %v3618
        %v3620 = vpop.f32.mrb[0].mxu0
        %v3621 = vadd.f32 %v3268, %v3620
        %v3622 = vpop.f32.mrb[0].mxu0
        %v3623 = vadd.f32 %v3270, %v3622
        %v3624 = vpop.f32.mrb[0].mxu0
        %v3625 = vadd.f32 %v3272, %v3624
        %3626 = vmatprep.mubr.bf16.mxu0 %v3018
        %3627 = vmatmul.mubr.bf16.gmra.mrb[0].mxu0 %v3017
        %v3628 = vpop.f32.mrb[0].mxu0
        %v3629 = vadd.f32 %v3276, %v3628
        %v3630 = vpop.f32.mrb[0].mxu0
        %v3631 = vadd.f32 %v3278, %v3630
        %v3632 = vpop.f32.mrb[0].mxu0
        %v3633 = vadd.f32 %v3280, %v3632
        %v3634 = vpop.f32.mrb[0].mxu0
        %v3635 = vadd.f32 %v3282, %v3634
        %3636 = vmatprep.mubr.bf16.mxu0 %v3020
        %3637 = vmatmul.mubr.bf16.gmra.mrb[0].mxu0 %v3019
        %v3638 = vpop.f32.mrb[0].mxu0
        %v3639 = vadd.f32 %v3286, %v3638
        %v3640 = vpop.f32.mrb[0].mxu0
        %v3641 = vadd.f32 %v3288, %v3640
        %v3642 = vpop.f32.mrb[0].mxu0
        %v3643 = vadd.f32 %v3290, %v3642
        %v3644 = vpop.f32.mrb[0].mxu0
        %v3645 = vadd.f32 %v3292, %v3644
        %3646 = vmatprep.mubr.bf16.mxu0 %v3022
        %3647 = vmatmul.mubr.bf16.gmra.mrb[0].mxu0 %v3021
        %v3648 = vpop.f32.mrb[0].mxu0
        %v3649 = vadd.f32 %v3296, %v3648
        %v3650 = vpop.f32.mrb[0].mxu0
        %v3651 = vadd.f32 %v3298, %v3650
        %v3652 = vpop.f32.mrb[0].mxu0
        %v3653 = vadd.f32 %v3300, %v3652
        %v3654 = vpop.f32.mrb[0].mxu0
        %v3655 = vadd.f32 %v3302, %v3654
        %3656 = vmatprep.mubr.bf16.mxu0 %v3024
        %3657 = vmatmul.mubr.bf16.gmra.mrb[0].mxu0 %v3023
        %v3658 = vpop.f32.mrb[0].mxu0
        %v3659 = vadd.f32 %v3306, %v3658
        %v3660 = vpop.f32.mrb[0].mxu0
        %v3661 = vadd.f32 %v3308, %v3660
        %v3662 = vpop.f32.mrb[0].mxu0
        %v3663 = vadd.f32 %v3310, %v3662
        %v3664 = vpop.f32.mrb[0].mxu0
        %v3665 = vadd.f32 %v3312, %v3664
        %3666 = vmatprep.mubr.bf16.mxu0 %v3026
        %3667 = vmatmul.mubr.bf16.gmra.mrb[0].mxu0 %v3025
        %v3668 = vpop.f32.mrb[0].mxu0
        %v3669 = vadd.f32 %v3316, %v3668
        %v3670 = vpop.f32.mrb[0].mxu0
        %v3671 = vadd.f32 %v3318, %v3670
        %v3672 = vpop.f32.mrb[0].mxu0
        %v3673 = vadd.f32 %v3320, %v3672
        %v3674 = vpop.f32.mrb[0].mxu0
        %v3675 = vadd.f32 %v3322, %v3674
        %3676 = vmatprep.mubr.bf16.mxu0 %v3028
        %3677 = vmatmul.mubr.bf16.gmra.mrb[0].mxu0 %v3027
        %v3678 = vpop.f32.mrb[0].mxu0
        %v3679 = vadd.f32 %v3326, %v3678
        %v3680 = vpop.f32.mrb[0].mxu0
        %v3681 = vadd.f32 %v3328, %v3680
        %v3682 = vpop.f32.mrb[0].mxu0
        %v3683 = vadd.f32 %v3330, %v3682
        %v3684 = vpop.f32.mrb[0].mxu0
        %v3685 = vadd.f32 %v3332, %v3684
        %3686 = vmatprep.mubr.bf16.mxu0 %v3030
        %3687 = vmatmul.mubr.bf16.gmra.mrb[0].mxu0 %v3029
        %v3688 = vpop.f32.mrb[0].mxu0
        %v3689 = vadd.f32 %v3336, %v3688
        %v3690 = vpop.f32.mrb[0].mxu0
        %v3691 = vadd.f32 %v3338, %v3690
        %v3692 = vpop.f32.mrb[0].mxu0
        %v3693 = vadd.f32 %v3340, %v3692
        %v3694 = vpop.f32.mrb[0].mxu0
        %v3695 = vadd.f32 %v3342, %v3694
        %3696 = vmatprep.mubr.bf16.mxu0 %v3032
        %3697 = vmatmul.mubr.bf16.gmra.mrb[0].mxu0 %v3031
        %v3698 = vpop.f32.mrb[0].mxu0
        %v3699 = vadd.f32 %v3346, %v3698
        %v3700 = vpop.f32.mrb[0].mxu0
        %v3701 = vadd.f32 %v3348, %v3700
        %v3702 = vpop.f32.mrb[0].mxu0
        %v3703 = vadd.f32 %v3350, %v3702
        %v3704 = vpop.f32.mrb[0].mxu0
        %v3705 = vadd.f32 %v3352, %v3704
        %3706 = vdwg.mxu0
        %v3707 = vld [vmem:[%s11] sm:$0x3]
        %v3709 = vlaneseq
        %v3710 = vshrl.u32 %v3709, 7
        %v3711 = vsub.s32 0, %v3710
        %v3712 = vrot.slane %v3707, %v3711
        %v3713 = vlaneseq
        %v3714 = vshrl.u32 %v3713, 7
        %v3715 = vsub.s32 1, %v3714
        %v3716 = vrot.slane %v3707, %v3715
        %v3719 = vadd.f32 %v3549, %v3712
        %v3720 = vadd.f32 %v3551, %v3716
        %v3721 = vadd.f32 %v3553, %v3712
        %v3722 = vadd.f32 %v3555, %v3716
        %v3723 = vadd.f32 %v3559, %v3712
        %v3724 = vadd.f32 %v3561, %v3716
        %v3725 = vadd.f32 %v3563, %v3712
        %v3726 = vadd.f32 %v3565, %v3716
        %v3727 = vadd.f32 %v3569, %v3712
        %v3728 = vadd.f32 %v3571, %v3716
        %v3729 = vadd.f32 %v3573, %v3712
        %v3730 = vadd.f32 %v3575, %v3716
        %v3731 = vadd.f32 %v3579, %v3712
        %v3732 = vadd.f32 %v3581, %v3716
        %v3733 = vadd.f32 %v3583, %v3712
        %v3734 = vadd.f32 %v3585, %v3716
        %v3735 = vadd.f32 %v3589, %v3712
        %v3736 = vadd.f32 %v3591, %v3716
        %v3737 = vadd.f32 %v3593, %v3712
        %v3738 = vadd.f32 %v3595, %v3716
        %v3739 = vadd.f32 %v3599, %v3712
        %v3740 = vadd.f32 %v3601, %v3716
        %v3741 = vadd.f32 %v3603, %v3712
        %v3742 = vadd.f32 %v3605, %v3716
        %v3743 = vadd.f32 %v3609, %v3712
        %v3744 = vadd.f32 %v3611, %v3716
        %v3745 = vadd.f32 %v3613, %v3712
        %v3746 = vadd.f32 %v3615, %v3716
        %v3747 = vadd.f32 %v3619, %v3712
        %v3748 = vadd.f32 %v3621, %v3716
        %v3749 = vadd.f32 %v3623, %v3712
        %v3750 = vadd.f32 %v3625, %v3716
        %v3751 = vadd.f32 %v3629, %v3712
        %v3752 = vadd.f32 %v3631, %v3716
        %v3753 = vadd.f32 %v3633, %v3712
        %v3754 = vadd.f32 %v3635, %v3716
        %v3755 = vadd.f32 %v3639, %v3712
        %v3756 = vadd.f32 %v3641, %v3716
        %v3757 = vadd.f32 %v3643, %v3712
        %v3758 = vadd.f32 %v3645, %v3716
        %v3759 = vadd.f32 %v3649, %v3712
        %v3760 = vadd.f32 %v3651, %v3716
        %v3761 = vadd.f32 %v3653, %v3712
        %v3762 = vadd.f32 %v3655, %v3716
        %v3763 = vadd.f32 %v3659, %v3712
        %v3764 = vadd.f32 %v3661, %v3716
        %v3765 = vadd.f32 %v3663, %v3712
        %v3766 = vadd.f32 %v3665, %v3716
        %v3767 = vadd.f32 %v3669, %v3712
        %v3768 = vadd.f32 %v3671, %v3716
        %v3769 = vadd.f32 %v3673, %v3712
        %v3770 = vadd.f32 %v3675, %v3716
        %v3771 = vadd.f32 %v3679, %v3712
        %v3772 = vadd.f32 %v3681, %v3716
        %v3773 = vadd.f32 %v3683, %v3712
        %v3774 = vadd.f32 %v3685, %v3716
        %v3775 = vadd.f32 %v3689, %v3712
        %v3776 = vadd.f32 %v3691, %v3716
        %v3777 = vadd.f32 %v3693, %v3712
        %v3778 = vadd.f32 %v3695, %v3716
        %v3779 = vadd.f32 %v3699, %v3712
        %v3780 = vadd.f32 %v3701, %v3716
        %v3781 = vadd.f32 %v3703, %v3712
        %v3782 = vadd.f32 %v3705, %v3716
        %v3783 = vmax.f32 %v3719, 0.0
        %v3784 = vmax.f32 %v3720, 0.0
        %v3785 = vmax.f32 %v3721, 0.0
        %v3786 = vmax.f32 %v3722, 0.0
        %v3787 = vmax.f32 %v3723, 0.0
        %v3788 = vmax.f32 %v3724, 0.0
        %v3789 = vmax.f32 %v3725, 0.0
        %v3790 = vmax.f32 %v3726, 0.0
        %v3791 = vmax.f32 %v3727, 0.0
        %v3792 = vmax.f32 %v3728, 0.0
        %v3793 = vmax.f32 %v3729, 0.0
        %v3794 = vmax.f32 %v3730, 0.0
        %v3795 = vmax.f32 %v3731, 0.0
        %v3796 = vmax.f32 %v3732, 0.0
        %v3797 = vmax.f32 %v3733, 0.0
        %v3798 = vmax.f32 %v3734, 0.0
        %v3799 = vmax.f32 %v3735, 0.0
        %v3800 = vmax.f32 %v3736, 0.0
        %v3801 = vmax.f32 %v3737, 0.0
        %v3802 = vmax.f32 %v3738, 0.0
        %v3803 = vmax.f32 %v3739, 0.0
        %v3804 = vmax.f32 %v3740, 0.0
        %v3805 = vmax.f32 %v3741, 0.0
        %v3806 = vmax.f32 %v3742, 0.0
        %v3807 = vmax.f32 %v3743, 0.0
        %v3808 = vmax.f32 %v3744, 0.0
        %v3809 = vmax.f32 %v3745, 0.0
        %v3810 = vmax.f32 %v3746, 0.0
        %v3811 = vmax.f32 %v3747, 0.0
        %v3812 = vmax.f32 %v3748, 0.0
        %v3813 = vmax.f32 %v3749, 0.0
        %v3814 = vmax.f32 %v3750, 0.0
        %v3815 = vmax.f32 %v3751, 0.0
        %v3816 = vmax.f32 %v3752, 0.0
        %v3817 = vmax.f32 %v3753, 0.0
        %v3818 = vmax.f32 %v3754, 0.0
        %v3819 = vmax.f32 %v3755, 0.0
        %v3820 = vmax.f32 %v3756, 0.0
        %v3821 = vmax.f32 %v3757, 0.0
        %v3822 = vmax.f32 %v3758, 0.0
        %v3823 = vmax.f32 %v3759, 0.0
        %v3824 = vmax.f32 %v3760, 0.0
        %v3825 = vmax.f32 %v3761, 0.0
        %v3826 = vmax.f32 %v3762, 0.0
        %v3827 = vmax.f32 %v3763, 0.0
        %v3828 = vmax.f32 %v3764, 0.0
        %v3829 = vmax.f32 %v3765, 0.0
        %v3830 = vmax.f32 %v3766, 0.0
        %v3831 = vmax.f32 %v3767, 0.0
        %v3832 = vmax.f32 %v3768, 0.0
        %v3833 = vmax.f32 %v3769, 0.0
        %v3834 = vmax.f32 %v3770, 0.0
        %v3835 = vmax.f32 %v3771, 0.0
        %v3836 = vmax.f32 %v3772, 0.0
        %v3837 = vmax.f32 %v3773, 0.0
        %v3838 = vmax.f32 %v3774, 0.0
        %v3839 = vmax.f32 %v3775, 0.0
        %v3840 = vmax.f32 %v3776, 0.0
        %v3841 = vmax.f32 %v3777, 0.0
        %v3842 = vmax.f32 %v3778, 0.0
        %v3843 = vmax.f32 %v3779, 0.0
        %v3844 = vmax.f32 %v3780, 0.0
        %v3845 = vmax.f32 %v3781, 0.0
        %v3846 = vmax.f32 %v3782, 0.0
        %v3847 = vpack.c.bf16 %v3785, %v3783
        %v3848 = vpack.c.bf16 %v3786, %v3784
        %v3849 = vpack.c.bf16 %v3789, %v3787
        %v3850 = vpack.c.bf16 %v3790, %v3788
        %v3851 = vpack.c.bf16 %v3793, %v3791
        %v3852 = vpack.c.bf16 %v3794, %v3792
        %v3853 = vpack.c.bf16 %v3797, %v3795
        %v3854 = vpack.c.bf16 %v3798, %v3796
        %v3855 = vpack.c.bf16 %v3801, %v3799
        %v3856 = vpack.c.bf16 %v3802, %v3800
        %v3857 = vpack.c.bf16 %v3805, %v3803
        %v3858 = vpack.c.bf16 %v3806, %v3804
        %v3859 = vpack.c.bf16 %v3809, %v3807
        %v3860 = vpack.c.bf16 %v3810, %v3808
        %v3861 = vpack.c.bf16 %v3813, %v3811
        %v3862 = vpack.c.bf16 %v3814, %v3812
        %v3863 = vpack.c.bf16 %v3817, %v3815
        %v3864 = vpack.c.bf16 %v3818, %v3816
        %v3865 = vpack.c.bf16 %v3821, %v3819
        %v3866 = vpack.c.bf16 %v3822, %v3820
        %v3867 = vpack.c.bf16 %v3825, %v3823
        %v3868 = vpack.c.bf16 %v3826, %v3824
        %v3869 = vpack.c.bf16 %v3829, %v3827
        %v3870 = vpack.c.bf16 %v3830, %v3828
        %v3871 = vpack.c.bf16 %v3833, %v3831
        %v3872 = vpack.c.bf16 %v3834, %v3832
        %v3873 = vpack.c.bf16 %v3837, %v3835
        %v3874 = vpack.c.bf16 %v3838, %v3836
        %v3875 = vpack.c.bf16 %v3841, %v3839
        %v3876 = vpack.c.bf16 %v3842, %v3840
        %v3877 = vpack.c.bf16 %v3845, %v3843
        %v3878 = vpack.c.bf16 %v3846, %v3844
        %v3879 = vld [vmem:[#allocation14] sm:$0xff]
        %v3880 = vld [vmem:[#allocation14 + $0x8] sm:$0xff]
        %v3881 = vld [vmem:[#allocation14 + $0x10] sm:$0xff]
        %v3882 = vld [vmem:[#allocation14 + $0x18] sm:$0xff]
        %v3883 = vld [vmem:[#allocation14 + $0x20] sm:$0xff]
        %v3884 = vld [vmem:[#allocation14 + $0x28] sm:$0xff]
        %v3885 = vld [vmem:[#allocation14 + $0x30] sm:$0xff]
        %v3886 = vld [vmem:[#allocation14 + $0x38] sm:$0xff]
        %v3887 = vld [vmem:[#allocation14 + $0x40] sm:$0xff]
        %v3888 = vld [vmem:[#allocation14 + $0x48] sm:$0xff]
        %v3889 = vld [vmem:[#allocation14 + $0x50] sm:$0xff]
        %v3890 = vld [vmem:[#allocation14 + $0x58] sm:$0xff]
        %v3891 = vld [vmem:[#allocation14 + $0x60] sm:$0xff]
        %v3892 = vld [vmem:[#allocation14 + $0x68] sm:$0xff]
        %v3893 = vld [vmem:[#allocation14 + $0x70] sm:$0xff]
        %v3894 = vld [vmem:[#allocation14 + $0x78] sm:$0xff]
        %v3895 = vld [vmem:[#allocation14 + $0x80] sm:$0xff]
        %v3896 = vld [vmem:[#allocation14 + $0x88] sm:$0xff]
        %v3897 = vld [vmem:[#allocation14 + $0x90] sm:$0xff]
        %v3898 = vld [vmem:[#allocation14 + $0x98] sm:$0xff]
        %v3899 = vld [vmem:[#allocation14 + $0xa0] sm:$0xff]
        %v3900 = vld [vmem:[#allocation14 + $0xa8] sm:$0xff]
        %v3901 = vld [vmem:[#allocation14 + $0xb0] sm:$0xff]
        %v3902 = vld [vmem:[#allocation14 + $0xb8] sm:$0xff]
        %v3903 = vld [vmem:[#allocation14 + $0xc0] sm:$0xff]
        %v3904 = vld [vmem:[#allocation14 + $0xc8] sm:$0xff]
        %v3905 = vld [vmem:[#allocation14 + $0xd0] sm:$0xff]
        %v3906 = vld [vmem:[#allocation14 + $0xd8] sm:$0xff]
        %v3907 = vld [vmem:[#allocation14 + $0xe0] sm:$0xff]
        %v3908 = vld [vmem:[#allocation14 + $0xe8] sm:$0xff]
        %v3909 = vld [vmem:[#allocation14 + $0xf0] sm:$0xff]
        %v3910 = vld [vmem:[#allocation14 + $0xf8] sm:$0xff]
        %v3911 = vld [vmem:[%s13] sm:$0x3]
        %v3913 = vlaneseq
        %v3914 = vshrl.u32 %v3913, 7
        %v3915 = vsub.s32 0, %v3914
        %v3916 = vrot.slane %v3911, %v3915
        %v3917 = vlaneseq
        %v3918 = vshrl.u32 %v3917, 7
        %v3919 = vsub.s32 1, %v3918
        %v3920 = vrot.slane %v3911, %v3919
        %v3955 = vunpack.c.l.b16 %v3879
        %v3956 = vunpack.c.h.b16 %v3879
        %v3957 = vunpack.c.l.b16 %v3880
        %v3958 = vunpack.c.h.b16 %v3880
        %v3959 = vunpack.c.l.b16 %v3881
        %v3960 = vunpack.c.h.b16 %v3881
        %v3961 = vunpack.c.l.b16 %v3882
        %v3962 = vunpack.c.h.b16 %v3882
        %v3963 = vunpack.c.l.b16 %v3883
        %v3964 = vunpack.c.h.b16 %v3883
        %v3965 = vunpack.c.l.b16 %v3884
        %v3966 = vunpack.c.h.b16 %v3884
        %v3967 = vunpack.c.l.b16 %v3885
        %v3968 = vunpack.c.h.b16 %v3885
        %v3969 = vunpack.c.l.b16 %v3886
        %v3970 = vunpack.c.h.b16 %v3886
        %v3971 = vunpack.c.l.b16 %v3887
        %v3972 = vunpack.c.h.b16 %v3887
        %v3973 = vunpack.c.l.b16 %v3888
        %v3974 = vunpack.c.h.b16 %v3888
        %v3975 = vunpack.c.l.b16 %v3889
        %v3976 = vunpack.c.h.b16 %v3889
        %v3977 = vunpack.c.l.b16 %v3890
        %v3978 = vunpack.c.h.b16 %v3890
        %v3979 = vunpack.c.l.b16 %v3891
        %v3980 = vunpack.c.h.b16 %v3891
        %v3981 = vunpack.c.l.b16 %v3892
        %v3982 = vunpack.c.h.b16 %v3892
        %v3983 = vunpack.c.l.b16 %v3893
        %v3984 = vunpack.c.h.b16 %v3893
        %v3985 = vunpack.c.l.b16 %v3894
        %v3986 = vunpack.c.h.b16 %v3894
        %v3987 = vunpack.c.l.b16 %v3895
        %v3988 = vunpack.c.h.b16 %v3895
        %v3989 = vunpack.c.l.b16 %v3896
        %v3990 = vunpack.c.h.b16 %v3896
        %v3991 = vunpack.c.l.b16 %v3897
        %v3992 = vunpack.c.h.b16 %v3897
        %v3993 = vunpack.c.l.b16 %v3898
        %v3994 = vunpack.c.h.b16 %v3898
        %v3995 = vunpack.c.l.b16 %v3899
        %v3996 = vunpack.c.h.b16 %v3899
        %v3997 = vunpack.c.l.b16 %v3900
        %v3998 = vunpack.c.h.b16 %v3900
        %v3999 = vunpack.c.l.b16 %v3901
        %v4000 = vunpack.c.h.b16 %v3901
        %v4001 = vunpack.c.l.b16 %v3902
        %v4002 = vunpack.c.h.b16 %v3902
        %v4003 = vunpack.c.l.b16 %v3903
        %v4004 = vunpack.c.h.b16 %v3903
        %v4005 = vunpack.c.l.b16 %v3904
        %v4006 = vunpack.c.h.b16 %v3904
        %v4007 = vunpack.c.l.b16 %v3905
        %v4008 = vunpack.c.h.b16 %v3905
        %v4009 = vunpack.c.l.b16 %v3906
        %v4010 = vunpack.c.h.b16 %v3906
        %v4011 = vunpack.c.l.b16 %v3907
        %v4012 = vunpack.c.h.b16 %v3907
        %v4013 = vunpack.c.l.b16 %v3908
        %v4014 = vunpack.c.h.b16 %v3908
        %v4015 = vunpack.c.l.b16 %v3909
        %v4016 = vunpack.c.h.b16 %v3909
        %v4017 = vunpack.c.l.b16 %v3910
        %v4018 = vunpack.c.h.b16 %v3910
        %v4019 = vpack.c.b16 %v3957, %v3955
        %v4020 = vpack.c.b16 %v3958, %v3956
        %v4021 = vpack.c.b16 %v3961, %v3959
        %v4022 = vpack.c.b16 %v3962, %v3960
        %v4023 = vpack.c.b16 %v3965, %v3963
        %v4024 = vpack.c.b16 %v3966, %v3964
        %v4025 = vpack.c.b16 %v3969, %v3967
        %v4026 = vpack.c.b16 %v3970, %v3968
        %v4027 = vpack.c.b16 %v3973, %v3971
        %v4028 = vpack.c.b16 %v3974, %v3972
        %v4029 = vpack.c.b16 %v3977, %v3975
        %v4030 = vpack.c.b16 %v3978, %v3976
        %v4031 = vpack.c.b16 %v3981, %v3979
        %v4032 = vpack.c.b16 %v3982, %v3980
        %v4033 = vpack.c.b16 %v3985, %v3983
        %v4034 = vpack.c.b16 %v3986, %v3984
        %v4035 = vpack.c.b16 %v3989, %v3987
        %v4036 = vpack.c.b16 %v3990, %v3988
        %v4037 = vpack.c.b16 %v3993, %v3991
        %v4038 = vpack.c.b16 %v3994, %v3992
        %v4039 = vpack.c.b16 %v3997, %v3995
        %v4040 = vpack.c.b16 %v3998, %v3996
        %v4041 = vpack.c.b16 %v4001, %v3999
        %v4042 = vpack.c.b16 %v4002, %v4000
        %v4043 = vpack.c.b16 %v4005, %v4003
        %v4044 = vpack.c.b16 %v4006, %v4004
        %v4045 = vpack.c.b16 %v4009, %v4007
        %v4046 = vpack.c.b16 %v4010, %v4008
        %v4047 = vpack.c.b16 %v4013, %v4011
        %v4048 = vpack.c.b16 %v4014, %v4012
        %v4049 = vpack.c.b16 %v4017, %v4015
        %v4050 = vpack.c.b16 %v4018, %v4016
        %4083 = vmatprep.subr.bf16.mxu0 %v4020
        %4084 = vmatpush1.bf16.msra.mxu0 %v4019
        %4085 = vmatprep.subr.bf16.mxu0 %v4022
        %4086 = vmatpush1.bf16.msra.mxu0 %v4021
        %4087 = vmatprep.subr.bf16.mxu0 %v4024
        %4088 = vmatpush1.bf16.msra.mxu0 %v4023
        %4089 = vmatprep.subr.bf16.mxu0 %v4026
        %4090 = vmatpush1.bf16.msra.mxu0 %v4025
        %4091 = vmatprep.subr.bf16.mxu0 %v4028
        %4092 = vmatpush1.bf16.msra.mxu0 %v4027
        %4093 = vmatprep.subr.bf16.mxu0 %v4030
        %4094 = vmatpush1.bf16.msra.mxu0 %v4029
        %4095 = vmatprep.subr.bf16.mxu0 %v4032
        %4096 = vmatpush1.bf16.msra.mxu0 %v4031
        %4097 = vmatprep.subr.bf16.mxu0 %v4034
        %4098 = vmatpush1.bf16.msra.mxu0 %v4033
        %4099 = vmatprep.subr.bf16.mxu0 %v4036
        %4100 = vmatpush1.bf16.msra.mxu0 %v4035
        %4101 = vmatprep.subr.bf16.mxu0 %v4038
        %4102 = vmatpush1.bf16.msra.mxu0 %v4037
        %4103 = vmatprep.subr.bf16.mxu0 %v4040
        %4104 = vmatpush1.bf16.msra.mxu0 %v4039
        %4105 = vmatprep.subr.bf16.mxu0 %v4042
        %4106 = vmatpush1.bf16.msra.mxu0 %v4041
        %4107 = vmatprep.subr.bf16.mxu0 %v4044
        %4108 = vmatpush1.bf16.msra.mxu0 %v4043
        %4109 = vmatprep.subr.bf16.mxu0 %v4046
        %4110 = vmatpush1.bf16.msra.mxu0 %v4045
        %4111 = vmatprep.subr.bf16.mxu0 %v4048
        %4112 = vmatpush1.bf16.msra.mxu0 %v4047
        %4113 = vmatprep.subr.bf16.mxu0 %v4050
        %4114 = vmatpush1.bf16.msra.mxu0 %v4049
        %4115 = vmatprep.mubr.bf16.mxu0 %v3848
        %4116 = vmatmul.mubr.bf16.gmra.mrb[0].mxu0 %v3847
        %v4117 = vpop.f32.mrb[0].mxu0
        %v4118 = vadd.f32 %v3916, %v4117
        %v4119 = vpop.f32.mrb[0].mxu0
        %v4120 = vadd.f32 %v3920, %v4119
        %v4121 = vpop.f32.mrb[0].mxu0
        %v4122 = vadd.f32 %v3916, %v4121
        %v4123 = vpop.f32.mrb[0].mxu0
        %v4124 = vadd.f32 %v3920, %v4123
        %4125 = vmatprep.mubr.bf16.mxu0 %v3850
        %4126 = vmatmul.mubr.bf16.gmra.mrb[0].mxu0 %v3849
        %v4127 = vpop.f32.mrb[0].mxu0
        %v4128 = vadd.f32 %v3916, %v4127
        %v4129 = vpop.f32.mrb[0].mxu0
        %v4130 = vadd.f32 %v3920, %v4129
        %v4131 = vpop.f32.mrb[0].mxu0
        %v4132 = vadd.f32 %v3916, %v4131
        %v4133 = vpop.f32.mrb[0].mxu0
        %v4134 = vadd.f32 %v3920, %v4133
        %4135 = vmatprep.mubr.bf16.mxu0 %v3852
        %4136 = vmatmul.mubr.bf16.gmra.mrb[0].mxu0 %v3851
        %v4137 = vpop.f32.mrb[0].mxu0
        %v4138 = vadd.f32 %v3916, %v4137
        %v4139 = vpop.f32.mrb[0].mxu0
        %v4140 = vadd.f32 %v3920, %v4139
        %v4141 = vpop.f32.mrb[0].mxu0
        %v4142 = vadd.f32 %v3916, %v4141
        %v4143 = vpop.f32.mrb[0].mxu0
        %v4144 = vadd.f32 %v3920, %v4143
        %4145 = vmatprep.mubr.bf16.mxu0 %v3854
        %4146 = vmatmul.mubr.bf16.gmra.mrb[0].mxu0 %v3853
        %v4147 = vpop.f32.mrb[0].mxu0
        %v4148 = vadd.f32 %v3916, %v4147
        %v4149 = vpop.f32.mrb[0].mxu0
        %v4150 = vadd.f32 %v3920, %v4149
        %v4151 = vpop.f32.mrb[0].mxu0
        %v4152 = vadd.f32 %v3916, %v4151
        %v4153 = vpop.f32.mrb[0].mxu0
        %v4154 = vadd.f32 %v3920, %v4153
        %4155 = vmatprep.mubr.bf16.mxu0 %v3856
        %4156 = vmatmul.mubr.bf16.gmra.mrb[0].mxu0 %v3855
        %v4157 = vpop.f32.mrb[0].mxu0
        %v4158 = vadd.f32 %v3916, %v4157
        %v4159 = vpop.f32.mrb[0].mxu0
        %v4160 = vadd.f32 %v3920, %v4159
        %v4161 = vpop.f32.mrb[0].mxu0
        %v4162 = vadd.f32 %v3916, %v4161
        %v4163 = vpop.f32.mrb[0].mxu0
        %v4164 = vadd.f32 %v3920, %v4163
        %4165 = vmatprep.mubr.bf16.mxu0 %v3858
        %4166 = vmatmul.mubr.bf16.gmra.mrb[0].mxu0 %v3857
        %v4167 = vpop.f32.mrb[0].mxu0
        %v4168 = vadd.f32 %v3916, %v4167
        %v4169 = vpop.f32.mrb[0].mxu0
        %v4170 = vadd.f32 %v3920, %v4169
        %v4171 = vpop.f32.mrb[0].mxu0
        %v4172 = vadd.f32 %v3916, %v4171
        %v4173 = vpop.f32.mrb[0].mxu0
        %v4174 = vadd.f32 %v3920, %v4173
        %4175 = vmatprep.mubr.bf16.mxu0 %v3860
        %4176 = vmatmul.mubr.bf16.gmra.mrb[0].mxu0 %v3859
        %v4177 = vpop.f32.mrb[0].mxu0
        %v4178 = vadd.f32 %v3916, %v4177
        %v4179 = vpop.f32.mrb[0].mxu0
        %v4180 = vadd.f32 %v3920, %v4179
        %v4181 = vpop.f32.mrb[0].mxu0
        %v4182 = vadd.f32 %v3916, %v4181
        %v4183 = vpop.f32.mrb[0].mxu0
        %v4184 = vadd.f32 %v3920, %v4183
        %4185 = vmatprep.mubr.bf16.mxu0 %v3862
        %4186 = vmatmul.mubr.bf16.gmra.mrb[0].mxu0 %v3861
        %v4187 = vpop.f32.mrb[0].mxu0
        %v4188 = vadd.f32 %v3916, %v4187
        %v4189 = vpop.f32.mrb[0].mxu0
        %v4190 = vadd.f32 %v3920, %v4189
        %v4191 = vpop.f32.mrb[0].mxu0
        %v4192 = vadd.f32 %v3916, %v4191
        %v4193 = vpop.f32.mrb[0].mxu0
        %v4194 = vadd.f32 %v3920, %v4193
        %4195 = vmatprep.mubr.bf16.mxu0 %v3864
        %4196 = vmatmul.mubr.bf16.gmra.mrb[0].mxu0 %v3863
        %v4197 = vpop.f32.mrb[0].mxu0
        %v4198 = vadd.f32 %v3916, %v4197
        %v4199 = vpop.f32.mrb[0].mxu0
        %v4200 = vadd.f32 %v3920, %v4199
        %v4201 = vpop.f32.mrb[0].mxu0
        %v4202 = vadd.f32 %v3916, %v4201
        %v4203 = vpop.f32.mrb[0].mxu0
        %v4204 = vadd.f32 %v3920, %v4203
        %4205 = vmatprep.mubr.bf16.mxu0 %v3866
        %4206 = vmatmul.mubr.bf16.gmra.mrb[0].mxu0 %v3865
        %v4207 = vpop.f32.mrb[0].mxu0
        %v4208 = vadd.f32 %v3916, %v4207
        %v4209 = vpop.f32.mrb[0].mxu0
        %v4210 = vadd.f32 %v3920, %v4209
        %v4211 = vpop.f32.mrb[0].mxu0
        %v4212 = vadd.f32 %v3916, %v4211
        %v4213 = vpop.f32.mrb[0].mxu0
        %v4214 = vadd.f32 %v3920, %v4213
        %4215 = vmatprep.mubr.bf16.mxu0 %v3868
        %4216 = vmatmul.mubr.bf16.gmra.mrb[0].mxu0 %v3867
        %v4217 = vpop.f32.mrb[0].mxu0
        %v4218 = vadd.f32 %v3916, %v4217
        %v4219 = vpop.f32.mrb[0].mxu0
        %v4220 = vadd.f32 %v3920, %v4219
        %v4221 = vpop.f32.mrb[0].mxu0
        %v4222 = vadd.f32 %v3916, %v4221
        %v4223 = vpop.f32.mrb[0].mxu0
        %v4224 = vadd.f32 %v3920, %v4223
        %4225 = vmatprep.mubr.bf16.mxu0 %v3870
        %4226 = vmatmul.mubr.bf16.gmra.mrb[0].mxu0 %v3869
        %v4227 = vpop.f32.mrb[0].mxu0
        %v4228 = vadd.f32 %v3916, %v4227
        %v4229 = vpop.f32.mrb[0].mxu0
        %v4230 = vadd.f32 %v3920, %v4229
        %v4231 = vpop.f32.mrb[0].mxu0
        %v4232 = vadd.f32 %v3916, %v4231
        %v4233 = vpop.f32.mrb[0].mxu0
        %v4234 = vadd.f32 %v3920, %v4233
        %4235 = vmatprep.mubr.bf16.mxu0 %v3872
        %4236 = vmatmul.mubr.bf16.gmra.mrb[0].mxu0 %v3871
        %v4237 = vpop.f32.mrb[0].mxu0
        %v4238 = vadd.f32 %v3916, %v4237
        %v4239 = vpop.f32.mrb[0].mxu0
        %v4240 = vadd.f32 %v3920, %v4239
        %v4241 = vpop.f32.mrb[0].mxu0
        %v4242 = vadd.f32 %v3916, %v4241
        %v4243 = vpop.f32.mrb[0].mxu0
        %v4244 = vadd.f32 %v3920, %v4243
        %4245 = vmatprep.mubr.bf16.mxu0 %v3874
        %4246 = vmatmul.mubr.bf16.gmra.mrb[0].mxu0 %v3873
        %v4247 = vpop.f32.mrb[0].mxu0
        %v4248 = vadd.f32 %v3916, %v4247
        %v4249 = vpop.f32.mrb[0].mxu0
        %v4250 = vadd.f32 %v3920, %v4249
        %v4251 = vpop.f32.mrb[0].mxu0
        %v4252 = vadd.f32 %v3916, %v4251
        %v4253 = vpop.f32.mrb[0].mxu0
        %v4254 = vadd.f32 %v3920, %v4253
        %4255 = vmatprep.mubr.bf16.mxu0 %v3876
        %4256 = vmatmul.mubr.bf16.gmra.mrb[0].mxu0 %v3875
        %v4257 = vpop.f32.mrb[0].mxu0
        %v4258 = vadd.f32 %v3916, %v4257
        %v4259 = vpop.f32.mrb[0].mxu0
        %v4260 = vadd.f32 %v3920, %v4259
        %v4261 = vpop.f32.mrb[0].mxu0
        %v4262 = vadd.f32 %v3916, %v4261
        %v4263 = vpop.f32.mrb[0].mxu0
        %v4264 = vadd.f32 %v3920, %v4263
        %4265 = vmatprep.mubr.bf16.mxu0 %v3878
        %4266 = vmatmul.mubr.bf16.gmra.mrb[0].mxu0 %v3877
        %v4267 = vpop.f32.mrb[0].mxu0
        %v4268 = vadd.f32 %v3916, %v4267
        %v4269 = vpop.f32.mrb[0].mxu0
        %v4270 = vadd.f32 %v3920, %v4269
        %v4271 = vpop.f32.mrb[0].mxu0
        %v4272 = vadd.f32 %v3916, %v4271
        %v4273 = vpop.f32.mrb[0].mxu0
        %v4274 = vadd.f32 %v3920, %v4273
        %4275 = vdwg.mxu0
        %v4276 = vmax.f32 %v4118, 0.0
        %v4277 = vmax.f32 %v4120, 0.0
        %v4278 = vmax.f32 %v4122, 0.0
        %v4279 = vmax.f32 %v4124, 0.0
        %v4280 = vmax.f32 %v4128, 0.0
        %v4281 = vmax.f32 %v4130, 0.0
        %v4282 = vmax.f32 %v4132, 0.0
        %v4283 = vmax.f32 %v4134, 0.0
        %v4284 = vmax.f32 %v4138, 0.0
        %v4285 = vmax.f32 %v4140, 0.0
        %v4286 = vmax.f32 %v4142, 0.0
        %v4287 = vmax.f32 %v4144, 0.0
        %v4288 = vmax.f32 %v4148, 0.0
        %v4289 = vmax.f32 %v4150, 0.0
        %v4290 = vmax.f32 %v4152, 0.0
        %v4291 = vmax.f32 %v4154, 0.0
        %v4292 = vmax.f32 %v4158, 0.0
        %v4293 = vmax.f32 %v4160, 0.0
        %v4294 = vmax.f32 %v4162, 0.0
        %v4295 = vmax.f32 %v4164, 0.0
        %v4296 = vmax.f32 %v4168, 0.0
        %v4297 = vmax.f32 %v4170, 0.0
        %v4298 = vmax.f32 %v4172, 0.0
        %v4299 = vmax.f32 %v4174, 0.0
        %v4300 = vmax.f32 %v4178, 0.0
        %v4301 = vmax.f32 %v4180, 0.0
        %v4302 = vmax.f32 %v4182, 0.0
        %v4303 = vmax.f32 %v4184, 0.0
        %v4304 = vmax.f32 %v4188, 0.0
        %v4305 = vmax.f32 %v4190, 0.0
        %v4306 = vmax.f32 %v4192, 0.0
        %v4307 = vmax.f32 %v4194, 0.0
        %v4308 = vmax.f32 %v4198, 0.0
        %v4309 = vmax.f32 %v4200, 0.0
        %v4310 = vmax.f32 %v4202, 0.0
        %v4311 = vmax.f32 %v4204, 0.0
        %v4312 = vmax.f32 %v4208, 0.0
        %v4313 = vmax.f32 %v4210, 0.0
        %v4314 = vmax.f32 %v4212, 0.0
        %v4315 = vmax.f32 %v4214, 0.0
        %v4316 = vmax.f32 %v4218, 0.0
        %v4317 = vmax.f32 %v4220, 0.0
        %v4318 = vmax.f32 %v4222, 0.0
        %v4319 = vmax.f32 %v4224, 0.0
        %v4320 = vmax.f32 %v4228, 0.0
        %v4321 = vmax.f32 %v4230, 0.0
        %v4322 = vmax.f32 %v4232, 0.0
        %v4323 = vmax.f32 %v4234, 0.0
        %v4324 = vmax.f32 %v4238, 0.0
        %v4325 = vmax.f32 %v4240, 0.0
        %v4326 = vmax.f32 %v4242, 0.0
        %v4327 = vmax.f32 %v4244, 0.0
        %v4328 = vmax.f32 %v4248, 0.0
        %v4329 = vmax.f32 %v4250, 0.0
        %v4330 = vmax.f32 %v4252, 0.0
        %v4331 = vmax.f32 %v4254, 0.0
        %v4332 = vmax.f32 %v4258, 0.0
        %v4333 = vmax.f32 %v4260, 0.0
        %v4334 = vmax.f32 %v4262, 0.0
        %v4335 = vmax.f32 %v4264, 0.0
        %v4336 = vmax.f32 %v4268, 0.0
        %v4337 = vmax.f32 %v4270, 0.0
        %v4338 = vmax.f32 %v4272, 0.0
        %v4339 = vmax.f32 %v4274, 0.0
        %v4340 = vpack.c.bf16 %v4278, %v4276
        %v4341 = vpack.c.bf16 %v4279, %v4277
        %v4342 = vpack.c.bf16 %v4282, %v4280
        %v4343 = vpack.c.bf16 %v4283, %v4281
        %v4344 = vpack.c.bf16 %v4286, %v4284
        %v4345 = vpack.c.bf16 %v4287, %v4285
        %v4346 = vpack.c.bf16 %v4290, %v4288
        %v4347 = vpack.c.bf16 %v4291, %v4289
        %v4348 = vpack.c.bf16 %v4294, %v4292
        %v4349 = vpack.c.bf16 %v4295, %v4293
        %v4350 = vpack.c.bf16 %v4298, %v4296
        %v4351 = vpack.c.bf16 %v4299, %v4297
        %v4352 = vpack.c.bf16 %v4302, %v4300
        %v4353 = vpack.c.bf16 %v4303, %v4301
        %v4354 = vpack.c.bf16 %v4306, %v4304
        %v4355 = vpack.c.bf16 %v4307, %v4305
        %v4356 = vpack.c.bf16 %v4310, %v4308
        %v4357 = vpack.c.bf16 %v4311, %v4309
        %v4358 = vpack.c.bf16 %v4314, %v4312
        %v4359 = vpack.c.bf16 %v4315, %v4313
        %v4360 = vpack.c.bf16 %v4318, %v4316
        %v4361 = vpack.c.bf16 %v4319, %v4317
        %v4362 = vpack.c.bf16 %v4322, %v4320
        %v4363 = vpack.c.bf16 %v4323, %v4321
        %v4364 = vpack.c.bf16 %v4326, %v4324
        %v4365 = vpack.c.bf16 %v4327, %v4325
        %v4366 = vpack.c.bf16 %v4330, %v4328
        %v4367 = vpack.c.bf16 %v4331, %v4329
        %v4368 = vpack.c.bf16 %v4334, %v4332
        %v4369 = vpack.c.bf16 %v4335, %v4333
        %v4370 = vpack.c.bf16 %v4338, %v4336
        %v4371 = vpack.c.bf16 %v4339, %v4337
        %v4372 = vld [vmem:[#allocation16] sm:$0xff]
        %v4373 = vld [vmem:[#allocation16 + $0x8] sm:$0xff]
        %v4374 = vld [vmem:[#allocation16 + $0x10] sm:$0xff]
        %v4375 = vld [vmem:[#allocation16 + $0x18] sm:$0xff]
        %v4376 = vld [vmem:[#allocation16 + $0x20] sm:$0xff]
        %v4377 = vld [vmem:[#allocation16 + $0x28] sm:$0xff]
        %v4378 = vld [vmem:[#allocation16 + $0x30] sm:$0xff]
        %v4379 = vld [vmem:[#allocation16 + $0x38] sm:$0xff]
        %v4380 = vld [vmem:[#allocation16 + $0x40] sm:$0xff]
        %v4381 = vld [vmem:[#allocation16 + $0x48] sm:$0xff]
        %v4382 = vld [vmem:[#allocation16 + $0x50] sm:$0xff]
        %v4383 = vld [vmem:[#allocation16 + $0x58] sm:$0xff]
        %v4384 = vld [vmem:[#allocation16 + $0x60] sm:$0xff]
        %v4385 = vld [vmem:[#allocation16 + $0x68] sm:$0xff]
        %v4386 = vld [vmem:[#allocation16 + $0x70] sm:$0xff]
        %v4387 = vld [vmem:[#allocation16 + $0x78] sm:$0xff]
        %v4388 = vld [vmem:[#allocation16 + $0x80] sm:$0xff]
        %v4389 = vld [vmem:[#allocation16 + $0x88] sm:$0xff]
        %v4390 = vld [vmem:[#allocation16 + $0x90] sm:$0xff]
        %v4391 = vld [vmem:[#allocation16 + $0x98] sm:$0xff]
        %v4392 = vld [vmem:[#allocation16 + $0xa0] sm:$0xff]
        %v4393 = vld [vmem:[#allocation16 + $0xa8] sm:$0xff]
        %v4394 = vld [vmem:[#allocation16 + $0xb0] sm:$0xff]
        %v4395 = vld [vmem:[#allocation16 + $0xb8] sm:$0xff]
        %v4396 = vld [vmem:[#allocation16 + $0xc0] sm:$0xff]
        %v4397 = vld [vmem:[#allocation16 + $0xc8] sm:$0xff]
        %v4398 = vld [vmem:[#allocation16 + $0xd0] sm:$0xff]
        %v4399 = vld [vmem:[#allocation16 + $0xd8] sm:$0xff]
        %v4400 = vld [vmem:[#allocation16 + $0xe0] sm:$0xff]
        %v4401 = vld [vmem:[#allocation16 + $0xe8] sm:$0xff]
        %v4402 = vld [vmem:[#allocation16 + $0xf0] sm:$0xff]
        %v4403 = vld [vmem:[#allocation16 + $0xf8] sm:$0xff]
        %v4404 = vld [vmem:[%s15] sm:$0x3]
        %v4406 = vlaneseq
        %v4407 = vshrl.u32 %v4406, 7
        %v4408 = vsub.s32 0, %v4407
        %v4409 = vrot.slane %v4404, %v4408
        %v4410 = vlaneseq
        %v4411 = vshrl.u32 %v4410, 7
        %v4412 = vsub.s32 1, %v4411
        %v4413 = vrot.slane %v4404, %v4412
        %v4448 = vunpack.c.l.b16 %v4372
        %v4449 = vunpack.c.h.b16 %v4372
        %v4450 = vunpack.c.l.b16 %v4373
        %v4451 = vunpack.c.h.b16 %v4373
        %v4452 = vunpack.c.l.b16 %v4374
        %v4453 = vunpack.c.h.b16 %v4374
        %v4454 = vunpack.c.l.b16 %v4375
        %v4455 = vunpack.c.h.b16 %v4375
        %v4456 = vunpack.c.l.b16 %v4376
        %v4457 = vunpack.c.h.b16 %v4376
        %v4458 = vunpack.c.l.b16 %v4377
        %v4459 = vunpack.c.h.b16 %v4377
        %v4460 = vunpack.c.l.b16 %v4378
        %v4461 = vunpack.c.h.b16 %v4378
        %v4462 = vunpack.c.l.b16 %v4379
        %v4463 = vunpack.c.h.b16 %v4379
        %v4464 = vunpack.c.l.b16 %v4380
        %v4465 = vunpack.c.h.b16 %v4380
        %v4466 = vunpack.c.l.b16 %v4381
        %v4467 = vunpack.c.h.b16 %v4381
        %v4468 = vunpack.c.l.b16 %v4382
        %v4469 = vunpack.c.h.b16 %v4382
        %v4470 = vunpack.c.l.b16 %v4383
        %v4471 = vunpack.c.h.b16 %v4383
        %v4472 = vunpack.c.l.b16 %v4384
        %v4473 = vunpack.c.h.b16 %v4384
        %v4474 = vunpack.c.l.b16 %v4385
        %v4475 = vunpack.c.h.b16 %v4385
        %v4476 = vunpack.c.l.b16 %v4386
        %v4477 = vunpack.c.h.b16 %v4386
        %v4478 = vunpack.c.l.b16 %v4387
        %v4479 = vunpack.c.h.b16 %v4387
        %v4480 = vunpack.c.l.b16 %v4388
        %v4481 = vunpack.c.h.b16 %v4388
        %v4482 = vunpack.c.l.b16 %v4389
        %v4483 = vunpack.c.h.b16 %v4389
        %v4484 = vunpack.c.l.b16 %v4390
        %v4485 = vunpack.c.h.b16 %v4390
        %v4486 = vunpack.c.l.b16 %v4391
        %v4487 = vunpack.c.h.b16 %v4391
        %v4488 = vunpack.c.l.b16 %v4392
        %v4489 = vunpack.c.h.b16 %v4392
        %v4490 = vunpack.c.l.b16 %v4393
        %v4491 = vunpack.c.h.b16 %v4393
        %v4492 = vunpack.c.l.b16 %v4394
        %v4493 = vunpack.c.h.b16 %v4394
        %v4494 = vunpack.c.l.b16 %v4395
        %v4495 = vunpack.c.h.b16 %v4395
        %v4496 = vunpack.c.l.b16 %v4396
        %v4497 = vunpack.c.h.b16 %v4396
        %v4498 = vunpack.c.l.b16 %v4397
        %v4499 = vunpack.c.h.b16 %v4397
        %v4500 = vunpack.c.l.b16 %v4398
        %v4501 = vunpack.c.h.b16 %v4398
        %v4502 = vunpack.c.l.b16 %v4399
        %v4503 = vunpack.c.h.b16 %v4399
        %v4504 = vunpack.c.l.b16 %v4400
        %v4505 = vunpack.c.h.b16 %v4400
        %v4506 = vunpack.c.l.b16 %v4401
        %v4507 = vunpack.c.h.b16 %v4401
        %v4508 = vunpack.c.l.b16 %v4402
        %v4509 = vunpack.c.h.b16 %v4402
        %v4510 = vunpack.c.l.b16 %v4403
        %v4511 = vunpack.c.h.b16 %v4403
        %v4512 = vpack.c.b16 %v4450, %v4448
        %v4513 = vpack.c.b16 %v4451, %v4449
        %v4514 = vpack.c.b16 %v4454, %v4452
        %v4515 = vpack.c.b16 %v4455, %v4453
        %v4516 = vpack.c.b16 %v4458, %v4456
        %v4517 = vpack.c.b16 %v4459, %v4457
        %v4518 = vpack.c.b16 %v4462, %v4460
        %v4519 = vpack.c.b16 %v4463, %v4461
        %v4520 = vpack.c.b16 %v4466, %v4464
        %v4521 = vpack.c.b16 %v4467, %v4465
        %v4522 = vpack.c.b16 %v4470, %v4468
        %v4523 = vpack.c.b16 %v4471, %v4469
        %v4524 = vpack.c.b16 %v4474, %v4472
        %v4525 = vpack.c.b16 %v4475, %v4473
        %v4526 = vpack.c.b16 %v4478, %v4476
        %v4527 = vpack.c.b16 %v4479, %v4477
        %v4528 = vpack.c.b16 %v4482, %v4480
        %v4529 = vpack.c.b16 %v4483, %v4481
        %v4530 = vpack.c.b16 %v4486, %v4484
        %v4531 = vpack.c.b16 %v4487, %v4485
        %v4532 = vpack.c.b16 %v4490, %v4488
        %v4533 = vpack.c.b16 %v4491, %v4489
        %v4534 = vpack.c.b16 %v4494, %v4492
        %v4535 = vpack.c.b16 %v4495, %v4493
        %v4536 = vpack.c.b16 %v4498, %v4496
        %v4537 = vpack.c.b16 %v4499, %v4497
        %v4538 = vpack.c.b16 %v4502, %v4500
        %v4539 = vpack.c.b16 %v4503, %v4501
        %v4540 = vpack.c.b16 %v4506, %v4504
        %v4541 = vpack.c.b16 %v4507, %v4505
        %v4542 = vpack.c.b16 %v4510, %v4508
        %v4543 = vpack.c.b16 %v4511, %v4509
        %4576 = vmatprep.subr.bf16.mxu0 %v4513
        %4577 = vmatpush1.bf16.msra.mxu0 %v4512
        %4578 = vmatprep.subr.bf16.mxu0 %v4515
        %4579 = vmatpush1.bf16.msra.mxu0 %v4514
        %4580 = vmatprep.subr.bf16.mxu0 %v4517
        %4581 = vmatpush1.bf16.msra.mxu0 %v4516
        %4582 = vmatprep.subr.bf16.mxu0 %v4519
        %4583 = vmatpush1.bf16.msra.mxu0 %v4518
        %4584 = vmatprep.subr.bf16.mxu0 %v4521
        %4585 = vmatpush1.bf16.msra.mxu0 %v4520
        %4586 = vmatprep.subr.bf16.mxu0 %v4523
        %4587 = vmatpush1.bf16.msra.mxu0 %v4522
        %4588 = vmatprep.subr.bf16.mxu0 %v4525
        %4589 = vmatpush1.bf16.msra.mxu0 %v4524
        %4590 = vmatprep.subr.bf16.mxu0 %v4527
        %4591 = vmatpush1.bf16.msra.mxu0 %v4526
        %4592 = vmatprep.subr.bf16.mxu0 %v4529
        %4593 = vmatpush1.bf16.msra.mxu0 %v4528
        %4594 = vmatprep.subr.bf16.mxu0 %v4531
        %4595 = vmatpush1.bf16.msra.mxu0 %v4530
        %4596 = vmatprep.subr.bf16.mxu0 %v4533
        %4597 = vmatpush1.bf16.msra.mxu0 %v4532
        %4598 = vmatprep.subr.bf16.mxu0 %v4535
        %4599 = vmatpush1.bf16.msra.mxu0 %v4534
        %4600 = vmatprep.subr.bf16.mxu0 %v4537
        %4601 = vmatpush1.bf16.msra.mxu0 %v4536
        %4602 = vmatprep.subr.bf16.mxu0 %v4539
        %4603 = vmatpush1.bf16.msra.mxu0 %v4538
        %4604 = vmatprep.subr.bf16.mxu0 %v4541
        %4605 = vmatpush1.bf16.msra.mxu0 %v4540
        %4606 = vmatprep.subr.bf16.mxu0 %v4543
        %4607 = vmatpush1.bf16.msra.mxu0 %v4542
        %4608 = vmatprep.mubr.bf16.mxu0 %v4341
        %4609 = vmatmul.mubr.bf16.gmra.mrb[0].mxu0 %v4340
        %v4610 = vpop.f32.mrb[0].mxu0
        %v4611 = vadd.f32 %v4409, %v4610
        %v4612 = vpop.f32.mrb[0].mxu0
        %v4613 = vadd.f32 %v4413, %v4612
        %v4614 = vpop.f32.mrb[0].mxu0
        %v4615 = vadd.f32 %v4409, %v4614
        %v4616 = vpop.f32.mrb[0].mxu0
        %v4617 = vadd.f32 %v4413, %v4616
        %4618 = vmatprep.mubr.bf16.mxu0 %v4343
        %4619 = vmatmul.mubr.bf16.gmra.mrb[0].mxu0 %v4342
        %v4620 = vpop.f32.mrb[0].mxu0
        %v4621 = vadd.f32 %v4409, %v4620
        %v4622 = vpop.f32.mrb[0].mxu0
        %v4623 = vadd.f32 %v4413, %v4622
        %v4624 = vpop.f32.mrb[0].mxu0
        %v4625 = vadd.f32 %v4409, %v4624
        %v4626 = vpop.f32.mrb[0].mxu0
        %v4627 = vadd.f32 %v4413, %v4626
        %4628 = vmatprep.mubr.bf16.mxu0 %v4345
        %4629 = vmatmul.mubr.bf16.gmra.mrb[0].mxu0 %v4344
        %v4630 = vpop.f32.mrb[0].mxu0
        %v4631 = vadd.f32 %v4409, %v4630
        %v4632 = vpop.f32.mrb[0].mxu0
        %v4633 = vadd.f32 %v4413, %v4632
        %v4634 = vpop.f32.mrb[0].mxu0
        %v4635 = vadd.f32 %v4409, %v4634
        %v4636 = vpop.f32.mrb[0].mxu0
        %v4637 = vadd.f32 %v4413, %v4636
        %4638 = vmatprep.mubr.bf16.mxu0 %v4347
        %4639 = vmatmul.mubr.bf16.gmra.mrb[0].mxu0 %v4346
        %v4640 = vpop.f32.mrb[0].mxu0
        %v4641 = vadd.f32 %v4409, %v4640
        %v4642 = vpop.f32.mrb[0].mxu0
        %v4643 = vadd.f32 %v4413, %v4642
        %v4644 = vpop.f32.mrb[0].mxu0
        %v4645 = vadd.f32 %v4409, %v4644
        %v4646 = vpop.f32.mrb[0].mxu0
        %v4647 = vadd.f32 %v4413, %v4646
        %4648 = vmatprep.mubr.bf16.mxu0 %v4349
        %4649 = vmatmul.mubr.bf16.gmra.mrb[0].mxu0 %v4348
        %v4650 = vpop.f32.mrb[0].mxu0
        %v4651 = vadd.f32 %v4409, %v4650
        %v4652 = vpop.f32.mrb[0].mxu0
        %v4653 = vadd.f32 %v4413, %v4652
        %v4654 = vpop.f32.mrb[0].mxu0
        %v4655 = vadd.f32 %v4409, %v4654
        %v4656 = vpop.f32.mrb[0].mxu0
        %v4657 = vadd.f32 %v4413, %v4656
        %4658 = vmatprep.mubr.bf16.mxu0 %v4351
        %4659 = vmatmul.mubr.bf16.gmra.mrb[0].mxu0 %v4350
        %v4660 = vpop.f32.mrb[0].mxu0
        %v4661 = vadd.f32 %v4409, %v4660
        %v4662 = vpop.f32.mrb[0].mxu0
        %v4663 = vadd.f32 %v4413, %v4662
        %v4664 = vpop.f32.mrb[0].mxu0
        %v4665 = vadd.f32 %v4409, %v4664
        %v4666 = vpop.f32.mrb[0].mxu0
        %v4667 = vadd.f32 %v4413, %v4666
        %4668 = vmatprep.mubr.bf16.mxu0 %v4353
        %4669 = vmatmul.mubr.bf16.gmra.mrb[0].mxu0 %v4352
        %v4670 = vpop.f32.mrb[0].mxu0
        %v4671 = vadd.f32 %v4409, %v4670
        %v4672 = vpop.f32.mrb[0].mxu0
        %v4673 = vadd.f32 %v4413, %v4672
        %v4674 = vpop.f32.mrb[0].mxu0
        %v4675 = vadd.f32 %v4409, %v4674
        %v4676 = vpop.f32.mrb[0].mxu0
        %v4677 = vadd.f32 %v4413, %v4676
        %4678 = vmatprep.mubr.bf16.mxu0 %v4355
        %4679 = vmatmul.mubr.bf16.gmra.mrb[0].mxu0 %v4354
        %v4680 = vpop.f32.mrb[0].mxu0
        %v4681 = vadd.f32 %v4409, %v4680
        %v4682 = vpop.f32.mrb[0].mxu0
        %v4683 = vadd.f32 %v4413, %v4682
        %v4684 = vpop.f32.mrb[0].mxu0
        %v4685 = vadd.f32 %v4409, %v4684
        %v4686 = vpop.f32.mrb[0].mxu0
        %v4687 = vadd.f32 %v4413, %v4686
        %4688 = vmatprep.mubr.bf16.mxu0 %v4357
        %4689 = vmatmul.mubr.bf16.gmra.mrb[0].mxu0 %v4356
        %v4690 = vpop.f32.mrb[0].mxu0
        %v4691 = vadd.f32 %v4409, %v4690
        %v4692 = vpop.f32.mrb[0].mxu0
        %v4693 = vadd.f32 %v4413, %v4692
        %v4694 = vpop.f32.mrb[0].mxu0
        %v4695 = vadd.f32 %v4409, %v4694
        %v4696 = vpop.f32.mrb[0].mxu0
        %v4697 = vadd.f32 %v4413, %v4696
        %4698 = vmatprep.mubr.bf16.mxu0 %v4359
        %4699 = vmatmul.mubr.bf16.gmra.mrb[0].mxu0 %v4358
        %v4700 = vpop.f32.mrb[0].mxu0
        %v4701 = vadd.f32 %v4409, %v4700
        %v4702 = vpop.f32.mrb[0].mxu0
        %v4703 = vadd.f32 %v4413, %v4702
        %v4704 = vpop.f32.mrb[0].mxu0
        %v4705 = vadd.f32 %v4409, %v4704
        %v4706 = vpop.f32.mrb[0].mxu0
        %v4707 = vadd.f32 %v4413, %v4706
        %4708 = vmatprep.mubr.bf16.mxu0 %v4361
        %4709 = vmatmul.mubr.bf16.gmra.mrb[0].mxu0 %v4360
        %v4710 = vpop.f32.mrb[0].mxu0
        %v4711 = vadd.f32 %v4409, %v4710
        %v4712 = vpop.f32.mrb[0].mxu0
        %v4713 = vadd.f32 %v4413, %v4712
        %v4714 = vpop.f32.mrb[0].mxu0
        %v4715 = vadd.f32 %v4409, %v4714
        %v4716 = vpop.f32.mrb[0].mxu0
        %v4717 = vadd.f32 %v4413, %v4716
        %4718 = vmatprep.mubr.bf16.mxu0 %v4363
        %4719 = vmatmul.mubr.bf16.gmra.mrb[0].mxu0 %v4362
        %v4720 = vpop.f32.mrb[0].mxu0
        %v4721 = vadd.f32 %v4409, %v4720
        %v4722 = vpop.f32.mrb[0].mxu0
        %v4723 = vadd.f32 %v4413, %v4722
        %v4724 = vpop.f32.mrb[0].mxu0
        %v4725 = vadd.f32 %v4409, %v4724
        %v4726 = vpop.f32.mrb[0].mxu0
        %v4727 = vadd.f32 %v4413, %v4726
        %4728 = vmatprep.mubr.bf16.mxu0 %v4365
        %4729 = vmatmul.mubr.bf16.gmra.mrb[0].mxu0 %v4364
        %v4730 = vpop.f32.mrb[0].mxu0
        %v4731 = vadd.f32 %v4409, %v4730
        %v4732 = vpop.f32.mrb[0].mxu0
        %v4733 = vadd.f32 %v4413, %v4732
        %v4734 = vpop.f32.mrb[0].mxu0
        %v4735 = vadd.f32 %v4409, %v4734
        %v4736 = vpop.f32.mrb[0].mxu0
        %v4737 = vadd.f32 %v4413, %v4736
        %4738 = vmatprep.mubr.bf16.mxu0 %v4367
        %4739 = vmatmul.mubr.bf16.gmra.mrb[0].mxu0 %v4366
        %v4740 = vpop.f32.mrb[0].mxu0
        %v4741 = vadd.f32 %v4409, %v4740
        %v4742 = vpop.f32.mrb[0].mxu0
        %v4743 = vadd.f32 %v4413, %v4742
        %v4744 = vpop.f32.mrb[0].mxu0
        %v4745 = vadd.f32 %v4409, %v4744
        %v4746 = vpop.f32.mrb[0].mxu0
        %v4747 = vadd.f32 %v4413, %v4746
        %4748 = vmatprep.mubr.bf16.mxu0 %v4369
        %4749 = vmatmul.mubr.bf16.gmra.mrb[0].mxu0 %v4368
        %v4750 = vpop.f32.mrb[0].mxu0
        %v4751 = vadd.f32 %v4409, %v4750
        %v4752 = vpop.f32.mrb[0].mxu0
        %v4753 = vadd.f32 %v4413, %v4752
        %v4754 = vpop.f32.mrb[0].mxu0
        %v4755 = vadd.f32 %v4409, %v4754
        %v4756 = vpop.f32.mrb[0].mxu0
        %v4757 = vadd.f32 %v4413, %v4756
        %4758 = vmatprep.mubr.bf16.mxu0 %v4371
        %4759 = vmatmul.mubr.bf16.gmra.mrb[0].mxu0 %v4370
        %v4760 = vpop.f32.mrb[0].mxu0
        %v4761 = vadd.f32 %v4409, %v4760
        %v4762 = vpop.f32.mrb[0].mxu0
        %v4763 = vadd.f32 %v4413, %v4762
        %v4764 = vpop.f32.mrb[0].mxu0
        %v4765 = vadd.f32 %v4409, %v4764
        %v4766 = vpop.f32.mrb[0].mxu0
        %v4767 = vadd.f32 %v4413, %v4766
        %4768 = vdwg.mxu0
        %v4769 = vmax.f32 %v4611, 0.0
        %v4770 = vmax.f32 %v4613, 0.0
        %v4771 = vmax.f32 %v4615, 0.0
        %v4772 = vmax.f32 %v4617, 0.0
        %v4773 = vmax.f32 %v4621, 0.0
        %v4774 = vmax.f32 %v4623, 0.0
        %v4775 = vmax.f32 %v4625, 0.0
        %v4776 = vmax.f32 %v4627, 0.0
        %v4777 = vmax.f32 %v4631, 0.0
        %v4778 = vmax.f32 %v4633, 0.0
        %v4779 = vmax.f32 %v4635, 0.0
        %v4780 = vmax.f32 %v4637, 0.0
        %v4781 = vmax.f32 %v4641, 0.0
        %v4782 = vmax.f32 %v4643, 0.0
        %v4783 = vmax.f32 %v4645, 0.0
        %v4784 = vmax.f32 %v4647, 0.0
        %v4785 = vmax.f32 %v4651, 0.0
        %v4786 = vmax.f32 %v4653, 0.0
        %v4787 = vmax.f32 %v4655, 0.0
        %v4788 = vmax.f32 %v4657, 0.0
        %v4789 = vmax.f32 %v4661, 0.0
        %v4790 = vmax.f32 %v4663, 0.0
        %v4791 = vmax.f32 %v4665, 0.0
        %v4792 = vmax.f32 %v4667, 0.0
        %v4793 = vmax.f32 %v4671, 0.0
        %v4794 = vmax.f32 %v4673, 0.0
        %v4795 = vmax.f32 %v4675, 0.0
        %v4796 = vmax.f32 %v4677, 0.0
        %v4797 = vmax.f32 %v4681, 0.0
        %v4798 = vmax.f32 %v4683, 0.0
        %v4799 = vmax.f32 %v4685, 0.0
        %v4800 = vmax.f32 %v4687, 0.0
        %v4801 = vmax.f32 %v4691, 0.0
        %v4802 = vmax.f32 %v4693, 0.0
        %v4803 = vmax.f32 %v4695, 0.0
        %v4804 = vmax.f32 %v4697, 0.0
        %v4805 = vmax.f32 %v4701, 0.0
        %v4806 = vmax.f32 %v4703, 0.0
        %v4807 = vmax.f32 %v4705, 0.0
        %v4808 = vmax.f32 %v4707, 0.0
        %v4809 = vmax.f32 %v4711, 0.0
        %v4810 = vmax.f32 %v4713, 0.0
        %v4811 = vmax.f32 %v4715, 0.0
        %v4812 = vmax.f32 %v4717, 0.0
        %v4813 = vmax.f32 %v4721, 0.0
        %v4814 = vmax.f32 %v4723, 0.0
        %v4815 = vmax.f32 %v4725, 0.0
        %v4816 = vmax.f32 %v4727, 0.0
        %v4817 = vmax.f32 %v4731, 0.0
        %v4818 = vmax.f32 %v4733, 0.0
        %v4819 = vmax.f32 %v4735, 0.0
        %v4820 = vmax.f32 %v4737, 0.0
        %v4821 = vmax.f32 %v4741, 0.0
        %v4822 = vmax.f32 %v4743, 0.0
        %v4823 = vmax.f32 %v4745, 0.0
        %v4824 = vmax.f32 %v4747, 0.0
        %v4825 = vmax.f32 %v4751, 0.0
        %v4826 = vmax.f32 %v4753, 0.0
        %v4827 = vmax.f32 %v4755, 0.0
        %v4828 = vmax.f32 %v4757, 0.0
        %v4829 = vmax.f32 %v4761, 0.0
        %v4830 = vmax.f32 %v4763, 0.0
        %v4831 = vmax.f32 %v4765, 0.0
        %v4832 = vmax.f32 %v4767, 0.0
        %v4833 = vpack.c.bf16 %v4771, %v4769
        %v4834 = vpack.c.bf16 %v4772, %v4770
        %v4835 = vpack.c.bf16 %v4775, %v4773
        %v4836 = vpack.c.bf16 %v4776, %v4774
        %v4837 = vpack.c.bf16 %v4779, %v4777
        %v4838 = vpack.c.bf16 %v4780, %v4778
        %v4839 = vpack.c.bf16 %v4783, %v4781
        %v4840 = vpack.c.bf16 %v4784, %v4782
        %v4841 = vpack.c.bf16 %v4787, %v4785
        %v4842 = vpack.c.bf16 %v4788, %v4786
        %v4843 = vpack.c.bf16 %v4791, %v4789
        %v4844 = vpack.c.bf16 %v4792, %v4790
        %v4845 = vpack.c.bf16 %v4795, %v4793
        %v4846 = vpack.c.bf16 %v4796, %v4794
        %v4847 = vpack.c.bf16 %v4799, %v4797
        %v4848 = vpack.c.bf16 %v4800, %v4798
        %v4849 = vpack.c.bf16 %v4803, %v4801
        %v4850 = vpack.c.bf16 %v4804, %v4802
        %v4851 = vpack.c.bf16 %v4807, %v4805
        %v4852 = vpack.c.bf16 %v4808, %v4806
        %v4853 = vpack.c.bf16 %v4811, %v4809
        %v4854 = vpack.c.bf16 %v4812, %v4810
        %v4855 = vpack.c.bf16 %v4815, %v4813
        %v4856 = vpack.c.bf16 %v4816, %v4814
        %v4857 = vpack.c.bf16 %v4819, %v4817
        %v4858 = vpack.c.bf16 %v4820, %v4818
        %v4859 = vpack.c.bf16 %v4823, %v4821
        %v4860 = vpack.c.bf16 %v4824, %v4822
        %v4861 = vpack.c.bf16 %v4827, %v4825
        %v4862 = vpack.c.bf16 %v4828, %v4826
        %v4863 = vpack.c.bf16 %v4831, %v4829
        %v4864 = vpack.c.bf16 %v4832, %v4830
        %v4865 = vld [vmem:[#allocation17] sm:$0xff]
        %v4866 = vld [vmem:[#allocation17 + $0x8] sm:$0xff]
        %v4867 = vld [vmem:[#allocation17 + $0x10] sm:$0xff]
        %v4868 = vld [vmem:[#allocation17 + $0x18] sm:$0xff]
        %v4869 = vld [vmem:[#allocation17 + $0x20] sm:$0xff]
        %v4870 = vld [vmem:[#allocation17 + $0x28] sm:$0xff]
        %v4871 = vld [vmem:[#allocation17 + $0x30] sm:$0xff]
        %v4872 = vld [vmem:[#allocation17 + $0x38] sm:$0xff]
        %v4873 = vld [vmem:[#allocation17 + $0x40] sm:$0xff]
        %v4874 = vld [vmem:[#allocation17 + $0x48] sm:$0xff]
        %v4875 = vld [vmem:[#allocation17 + $0x50] sm:$0xff]
        %v4876 = vld [vmem:[#allocation17 + $0x58] sm:$0xff]
        %v4877 = vld [vmem:[#allocation17 + $0x60] sm:$0xff]
        %v4878 = vld [vmem:[#allocation17 + $0x68] sm:$0xff]
        %v4879 = vld [vmem:[#allocation17 + $0x70] sm:$0xff]
        %v4880 = vld [vmem:[#allocation17 + $0x78] sm:$0xff]
        %v4881 = vld [vmem:[#allocation17 + $0x80] sm:$0xff]
        %v4882 = vld [vmem:[#allocation17 + $0x88] sm:$0xff]
        %v4883 = vld [vmem:[#allocation17 + $0x90] sm:$0xff]
        %v4884 = vld [vmem:[#allocation17 + $0x98] sm:$0xff]
        %v4885 = vld [vmem:[#allocation17 + $0xa0] sm:$0xff]
        %v4886 = vld [vmem:[#allocation17 + $0xa8] sm:$0xff]
        %v4887 = vld [vmem:[#allocation17 + $0xb0] sm:$0xff]
        %v4888 = vld [vmem:[#allocation17 + $0xb8] sm:$0xff]
        %v4889 = vld [vmem:[#allocation17 + $0xc0] sm:$0xff]
        %v4890 = vld [vmem:[#allocation17 + $0xc8] sm:$0xff]
        %v4891 = vld [vmem:[#allocation17 + $0xd0] sm:$0xff]
        %v4892 = vld [vmem:[#allocation17 + $0xd8] sm:$0xff]
        %v4893 = vld [vmem:[#allocation17 + $0xe0] sm:$0xff]
        %v4894 = vld [vmem:[#allocation17 + $0xe8] sm:$0xff]
        %v4895 = vld [vmem:[#allocation17 + $0xf0] sm:$0xff]
        %v4896 = vld [vmem:[#allocation17 + $0xf8] sm:$0xff]
        %v4897 = vld [vmem:[%s17] sm:$0x3]
        %v4899 = vlaneseq
        %v4900 = vshrl.u32 %v4899, 7
        %v4901 = vsub.s32 0, %v4900
        %v4902 = vrot.slane %v4897, %v4901
        %v4903 = vlaneseq
        %v4904 = vshrl.u32 %v4903, 7
        %v4905 = vsub.s32 1, %v4904
        %v4906 = vrot.slane %v4897, %v4905
        %v4941 = vunpack.c.l.b16 %v4865
        %v4942 = vunpack.c.h.b16 %v4865
        %v4943 = vunpack.c.l.b16 %v4866
        %v4944 = vunpack.c.h.b16 %v4866
        %v4945 = vunpack.c.l.b16 %v4867
        %v4946 = vunpack.c.h.b16 %v4867
        %v4947 = vunpack.c.l.b16 %v4868
        %v4948 = vunpack.c.h.b16 %v4868
        %v4949 = vunpack.c.l.b16 %v4869
        %v4950 = vunpack.c.h.b16 %v4869
        %v4951 = vunpack.c.l.b16 %v4870
        %v4952 = vunpack.c.h.b16 %v4870
        %v4953 = vunpack.c.l.b16 %v4871
        %v4954 = vunpack.c.h.b16 %v4871
        %v4955 = vunpack.c.l.b16 %v4872
        %v4956 = vunpack.c.h.b16 %v4872
        %v4957 = vunpack.c.l.b16 %v4873
        %v4958 = vunpack.c.h.b16 %v4873
        %v4959 = vunpack.c.l.b16 %v4874
        %v4960 = vunpack.c.h.b16 %v4874
        %v4961 = vunpack.c.l.b16 %v4875
        %v4962 = vunpack.c.h.b16 %v4875
        %v4963 = vunpack.c.l.b16 %v4876
        %v4964 = vunpack.c.h.b16 %v4876
        %v4965 = vunpack.c.l.b16 %v4877
        %v4966 = vunpack.c.h.b16 %v4877
        %v4967 = vunpack.c.l.b16 %v4878
        %v4968 = vunpack.c.h.b16 %v4878
        %v4969 = vunpack.c.l.b16 %v4879
        %v4970 = vunpack.c.h.b16 %v4879
        %v4971 = vunpack.c.l.b16 %v4880
        %v4972 = vunpack.c.h.b16 %v4880
        %v4973 = vunpack.c.l.b16 %v4881
        %v4974 = vunpack.c.h.b16 %v4881
        %v4975 = vunpack.c.l.b16 %v4882
        %v4976 = vunpack.c.h.b16 %v4882
        %v4977 = vunpack.c.l.b16 %v4883
        %v4978 = vunpack.c.h.b16 %v4883
        %v4979 = vunpack.c.l.b16 %v4884
        %v4980 = vunpack.c.h.b16 %v4884
        %v4981 = vunpack.c.l.b16 %v4885
        %v4982 = vunpack.c.h.b16 %v4885
        %v4983 = vunpack.c.l.b16 %v4886
        %v4984 = vunpack.c.h.b16 %v4886
        %v4985 = vunpack.c.l.b16 %v4887
        %v4986 = vunpack.c.h.b16 %v4887
        %v4987 = vunpack.c.l.b16 %v4888
        %v4988 = vunpack.c.h.b16 %v4888
        %v4989 = vunpack.c.l.b16 %v4889
        %v4990 = vunpack.c.h.b16 %v4889
        %v4991 = vunpack.c.l.b16 %v4890
        %v4992 = vunpack.c.h.b16 %v4890
        %v4993 = vunpack.c.l.b16 %v4891
        %v4994 = vunpack.c.h.b16 %v4891
        %v4995 = vunpack.c.l.b16 %v4892
        %v4996 = vunpack.c.h.b16 %v4892
        %v4997 = vunpack.c.l.b16 %v4893
        %v4998 = vunpack.c.h.b16 %v4893
        %v4999 = vunpack.c.l.b16 %v4894
        %v5000 = vunpack.c.h.b16 %v4894
        %v5001 = vunpack.c.l.b16 %v4895
        %v5002 = vunpack.c.h.b16 %v4895
        %v5003 = vunpack.c.l.b16 %v4896
        %v5004 = vunpack.c.h.b16 %v4896
        %v5005 = vpack.c.b16 %v4943, %v4941
        %v5006 = vpack.c.b16 %v4944, %v4942
        %v5007 = vpack.c.b16 %v4947, %v4945
        %v5008 = vpack.c.b16 %v4948, %v4946
        %v5009 = vpack.c.b16 %v4951, %v4949
        %v5010 = vpack.c.b16 %v4952, %v4950
        %v5011 = vpack.c.b16 %v4955, %v4953
        %v5012 = vpack.c.b16 %v4956, %v4954
        %v5013 = vpack.c.b16 %v4959, %v4957
        %v5014 = vpack.c.b16 %v4960, %v4958
        %v5015 = vpack.c.b16 %v4963, %v4961
        %v5016 = vpack.c.b16 %v4964, %v4962
        %v5017 = vpack.c.b16 %v4967, %v4965
        %v5018 = vpack.c.b16 %v4968, %v4966
        %v5019 = vpack.c.b16 %v4971, %v4969
        %v5020 = vpack.c.b16 %v4972, %v4970
        %v5021 = vpack.c.b16 %v4975, %v4973
        %v5022 = vpack.c.b16 %v4976, %v4974
        %v5023 = vpack.c.b16 %v4979, %v4977
        %v5024 = vpack.c.b16 %v4980, %v4978
        %v5025 = vpack.c.b16 %v4983, %v4981
        %v5026 = vpack.c.b16 %v4984, %v4982
        %v5027 = vpack.c.b16 %v4987, %v4985
        %v5028 = vpack.c.b16 %v4988, %v4986
        %v5029 = vpack.c.b16 %v4991, %v4989
        %v5030 = vpack.c.b16 %v4992, %v4990
        %v5031 = vpack.c.b16 %v4995, %v4993
        %v5032 = vpack.c.b16 %v4996, %v4994
        %v5033 = vpack.c.b16 %v4999, %v4997
        %v5034 = vpack.c.b16 %v5000, %v4998
        %v5035 = vpack.c.b16 %v5003, %v5001
        %v5036 = vpack.c.b16 %v5004, %v5002
        %5069 = vmatprep.subr.bf16.mxu0 %v5006
        %5070 = vmatpush1.bf16.msra.mxu0 %v5005
        %5071 = vmatprep.subr.bf16.mxu0 %v5008
        %5072 = vmatpush1.bf16.msra.mxu0 %v5007
        %5073 = vmatprep.subr.bf16.mxu0 %v5010
        %5074 = vmatpush1.bf16.msra.mxu0 %v5009
        %5075 = vmatprep.subr.bf16.mxu0 %v5012
        %5076 = vmatpush1.bf16.msra.mxu0 %v5011
        %5077 = vmatprep.subr.bf16.mxu0 %v5014
        %5078 = vmatpush1.bf16.msra.mxu0 %v5013
        %5079 = vmatprep.subr.bf16.mxu0 %v5016
        %5080 = vmatpush1.bf16.msra.mxu0 %v5015
        %5081 = vmatprep.subr.bf16.mxu0 %v5018
        %5082 = vmatpush1.bf16.msra.mxu0 %v5017
        %5083 = vmatprep.subr.bf16.mxu0 %v5020
        %5084 = vmatpush1.bf16.msra.mxu0 %v5019
        %5085 = vmatprep.subr.bf16.mxu0 %v5022
        %5086 = vmatpush1.bf16.msra.mxu0 %v5021
        %5087 = vmatprep.subr.bf16.mxu0 %v5024
        %5088 = vmatpush1.bf16.msra.mxu0 %v5023
        %5089 = vmatprep.subr.bf16.mxu0 %v5026
        %5090 = vmatpush1.bf16.msra.mxu0 %v5025
        %5091 = vmatprep.subr.bf16.mxu0 %v5028
        %5092 = vmatpush1.bf16.msra.mxu0 %v5027
        %5093 = vmatprep.subr.bf16.mxu0 %v5030
        %5094 = vmatpush1.bf16.msra.mxu0 %v5029
        %5095 = vmatprep.subr.bf16.mxu0 %v5032
        %5096 = vmatpush1.bf16.msra.mxu0 %v5031
        %5097 = vmatprep.subr.bf16.mxu0 %v5034
        %5098 = vmatpush1.bf16.msra.mxu0 %v5033
        %5099 = vmatprep.subr.bf16.mxu0 %v5036
        %5100 = vmatpush1.bf16.msra.mxu0 %v5035
        %5101 = vmatprep.mubr.bf16.mxu0 %v4834
        %5102 = vmatmul.mubr.bf16.gmra.mrb[0].mxu0 %v4833
        %v5103 = vpop.f32.mrb[0].mxu0
        %v5104 = vadd.f32 %v4902, %v5103
        %v5105 = vpop.f32.mrb[0].mxu0
        %v5106 = vadd.f32 %v4906, %v5105
        %v5107 = vpop.f32.mrb[0].mxu0
        %v5108 = vadd.f32 %v4902, %v5107
        %v5109 = vpop.f32.mrb[0].mxu0
        %v5110 = vadd.f32 %v4906, %v5109
        %5111 = vmatprep.mubr.bf16.mxu0 %v4836
        %5112 = vmatmul.mubr.bf16.gmra.mrb[0].mxu0 %v4835
        %v5113 = vpop.f32.mrb[0].mxu0
        %v5114 = vadd.f32 %v4902, %v5113
        %v5115 = vpop.f32.mrb[0].mxu0
        %v5116 = vadd.f32 %v4906, %v5115
        %v5117 = vpop.f32.mrb[0].mxu0
        %v5118 = vadd.f32 %v4902, %v5117
        %v5119 = vpop.f32.mrb[0].mxu0
        %v5120 = vadd.f32 %v4906, %v5119
        %5121 = vmatprep.mubr.bf16.mxu0 %v4838
        %5122 = vmatmul.mubr.bf16.gmra.mrb[0].mxu0 %v4837
        %v5123 = vpop.f32.mrb[0].mxu0
        %v5124 = vadd.f32 %v4902, %v5123
        %v5125 = vpop.f32.mrb[0].mxu0
        %v5126 = vadd.f32 %v4906, %v5125
        %v5127 = vpop.f32.mrb[0].mxu0
        %v5128 = vadd.f32 %v4902, %v5127
        %v5129 = vpop.f32.mrb[0].mxu0
        %v5130 = vadd.f32 %v4906, %v5129
        %5131 = vmatprep.mubr.bf16.mxu0 %v4840
        %5132 = vmatmul.mubr.bf16.gmra.mrb[0].mxu0 %v4839
        %v5133 = vpop.f32.mrb[0].mxu0
        %v5134 = vadd.f32 %v4902, %v5133
        %v5135 = vpop.f32.mrb[0].mxu0
        %v5136 = vadd.f32 %v4906, %v5135
        %v5137 = vpop.f32.mrb[0].mxu0
        %v5138 = vadd.f32 %v4902, %v5137
        %v5139 = vpop.f32.mrb[0].mxu0
        %v5140 = vadd.f32 %v4906, %v5139
        %5141 = vmatprep.mubr.bf16.mxu0 %v4842
        %5142 = vmatmul.mubr.bf16.gmra.mrb[0].mxu0 %v4841
        %v5143 = vpop.f32.mrb[0].mxu0
        %v5144 = vadd.f32 %v4902, %v5143
        %v5145 = vpop.f32.mrb[0].mxu0
        %v5146 = vadd.f32 %v4906, %v5145
        %v5147 = vpop.f32.mrb[0].mxu0
        %v5148 = vadd.f32 %v4902, %v5147
        %v5149 = vpop.f32.mrb[0].mxu0
        %v5150 = vadd.f32 %v4906, %v5149
        %5151 = vmatprep.mubr.bf16.mxu0 %v4844
        %5152 = vmatmul.mubr.bf16.gmra.mrb[0].mxu0 %v4843
        %v5153 = vpop.f32.mrb[0].mxu0
        %v5154 = vadd.f32 %v4902, %v5153
        %v5155 = vpop.f32.mrb[0].mxu0
        %v5156 = vadd.f32 %v4906, %v5155
        %v5157 = vpop.f32.mrb[0].mxu0
        %v5158 = vadd.f32 %v4902, %v5157
        %v5159 = vpop.f32.mrb[0].mxu0
        %v5160 = vadd.f32 %v4906, %v5159
        %5161 = vmatprep.mubr.bf16.mxu0 %v4846
        %5162 = vmatmul.mubr.bf16.gmra.mrb[0].mxu0 %v4845
        %v5163 = vpop.f32.mrb[0].mxu0
        %v5164 = vadd.f32 %v4902, %v5163
        %v5165 = vpop.f32.mrb[0].mxu0
        %v5166 = vadd.f32 %v4906, %v5165
        %v5167 = vpop.f32.mrb[0].mxu0
        %v5168 = vadd.f32 %v4902, %v5167
        %v5169 = vpop.f32.mrb[0].mxu0
        %v5170 = vadd.f32 %v4906, %v5169
        %5171 = vmatprep.mubr.bf16.mxu0 %v4848
        %5172 = vmatmul.mubr.bf16.gmra.mrb[0].mxu0 %v4847
        %v5173 = vpop.f32.mrb[0].mxu0
        %v5174 = vadd.f32 %v4902, %v5173
        %v5175 = vpop.f32.mrb[0].mxu0
        %v5176 = vadd.f32 %v4906, %v5175
        %v5177 = vpop.f32.mrb[0].mxu0
        %v5178 = vadd.f32 %v4902, %v5177
        %v5179 = vpop.f32.mrb[0].mxu0
        %v5180 = vadd.f32 %v4906, %v5179
        %5181 = vmatprep.mubr.bf16.mxu0 %v4850
        %5182 = vmatmul.mubr.bf16.gmra.mrb[0].mxu0 %v4849
        %v5183 = vpop.f32.mrb[0].mxu0
        %v5184 = vadd.f32 %v4902, %v5183
        %v5185 = vpop.f32.mrb[0].mxu0
        %v5186 = vadd.f32 %v4906, %v5185
        %v5187 = vpop.f32.mrb[0].mxu0
        %v5188 = vadd.f32 %v4902, %v5187
        %v5189 = vpop.f32.mrb[0].mxu0
        %v5190 = vadd.f32 %v4906, %v5189
        %5191 = vmatprep.mubr.bf16.mxu0 %v4852
        %5192 = vmatmul.mubr.bf16.gmra.mrb[0].mxu0 %v4851
        %v5193 = vpop.f32.mrb[0].mxu0
        %v5194 = vadd.f32 %v4902, %v5193
        %v5195 = vpop.f32.mrb[0].mxu0
        %v5196 = vadd.f32 %v4906, %v5195
        %v5197 = vpop.f32.mrb[0].mxu0
        %v5198 = vadd.f32 %v4902, %v5197
        %v5199 = vpop.f32.mrb[0].mxu0
        %v5200 = vadd.f32 %v4906, %v5199
        %5201 = vmatprep.mubr.bf16.mxu0 %v4854
        %5202 = vmatmul.mubr.bf16.gmra.mrb[0].mxu0 %v4853
        %v5203 = vpop.f32.mrb[0].mxu0
        %v5204 = vadd.f32 %v4902, %v5203
        %v5205 = vpop.f32.mrb[0].mxu0
        %v5206 = vadd.f32 %v4906, %v5205
        %v5207 = vpop.f32.mrb[0].mxu0
        %v5208 = vadd.f32 %v4902, %v5207
        %v5209 = vpop.f32.mrb[0].mxu0
        %v5210 = vadd.f32 %v4906, %v5209
        %5211 = vmatprep.mubr.bf16.mxu0 %v4856
        %5212 = vmatmul.mubr.bf16.gmra.mrb[0].mxu0 %v4855
        %v5213 = vpop.f32.mrb[0].mxu0
        %v5214 = vadd.f32 %v4902, %v5213
        %v5215 = vpop.f32.mrb[0].mxu0
        %v5216 = vadd.f32 %v4906, %v5215
        %v5217 = vpop.f32.mrb[0].mxu0
        %v5218 = vadd.f32 %v4902, %v5217
        %v5219 = vpop.f32.mrb[0].mxu0
        %v5220 = vadd.f32 %v4906, %v5219
        %5221 = vmatprep.mubr.bf16.mxu0 %v4858
        %5222 = vmatmul.mubr.bf16.gmra.mrb[0].mxu0 %v4857
        %v5223 = vpop.f32.mrb[0].mxu0
        %v5224 = vadd.f32 %v4902, %v5223
        %v5225 = vpop.f32.mrb[0].mxu0
        %v5226 = vadd.f32 %v4906, %v5225
        %v5227 = vpop.f32.mrb[0].mxu0
        %v5228 = vadd.f32 %v4902, %v5227
        %v5229 = vpop.f32.mrb[0].mxu0
        %v5230 = vadd.f32 %v4906, %v5229
        %5231 = vmatprep.mubr.bf16.mxu0 %v4860
        %5232 = vmatmul.mubr.bf16.gmra.mrb[0].mxu0 %v4859
        %v5233 = vpop.f32.mrb[0].mxu0
        %v5234 = vadd.f32 %v4902, %v5233
        %v5235 = vpop.f32.mrb[0].mxu0
        %v5236 = vadd.f32 %v4906, %v5235
        %v5237 = vpop.f32.mrb[0].mxu0
        %v5238 = vadd.f32 %v4902, %v5237
        %v5239 = vpop.f32.mrb[0].mxu0
        %v5240 = vadd.f32 %v4906, %v5239
        %5241 = vmatprep.mubr.bf16.mxu0 %v4862
        %5242 = vmatmul.mubr.bf16.gmra.mrb[0].mxu0 %v4861
        %v5243 = vpop.f32.mrb[0].mxu0
        %v5244 = vadd.f32 %v4902, %v5243
        %v5245 = vpop.f32.mrb[0].mxu0
        %v5246 = vadd.f32 %v4906, %v5245
        %v5247 = vpop.f32.mrb[0].mxu0
        %v5248 = vadd.f32 %v4902, %v5247
        %v5249 = vpop.f32.mrb[0].mxu0
        %v5250 = vadd.f32 %v4906, %v5249
        %5251 = vmatprep.mubr.bf16.mxu0 %v4864
        %5252 = vmatmul.mubr.bf16.gmra.mrb[0].mxu0 %v4863
        %v5253 = vpop.f32.mrb[0].mxu0
        %v5254 = vadd.f32 %v4902, %v5253
        %v5255 = vpop.f32.mrb[0].mxu0
        %v5256 = vadd.f32 %v4906, %v5255
        %v5257 = vpop.f32.mrb[0].mxu0
        %v5258 = vadd.f32 %v4902, %v5257
        %v5259 = vpop.f32.mrb[0].mxu0
        %v5260 = vadd.f32 %v4906, %v5259
        %5261 = vdwg.mxu0
        %v5262 = vmax.f32 %v5104, 0.0
        %v5263 = vmax.f32 %v5106, 0.0
        %v5264 = vmax.f32 %v5108, 0.0
        %v5265 = vmax.f32 %v5110, 0.0
        %v5266 = vmax.f32 %v5114, 0.0
        %v5267 = vmax.f32 %v5116, 0.0
        %v5268 = vmax.f32 %v5118, 0.0
        %v5269 = vmax.f32 %v5120, 0.0
        %v5270 = vmax.f32 %v5124, 0.0
        %v5271 = vmax.f32 %v5126, 0.0
        %v5272 = vmax.f32 %v5128, 0.0
        %v5273 = vmax.f32 %v5130, 0.0
        %v5274 = vmax.f32 %v5134, 0.0
        %v5275 = vmax.f32 %v5136, 0.0
        %v5276 = vmax.f32 %v5138, 0.0
        %v5277 = vmax.f32 %v5140, 0.0
        %v5278 = vmax.f32 %v5144, 0.0
        %v5279 = vmax.f32 %v5146, 0.0
        %v5280 = vmax.f32 %v5148, 0.0
        %v5281 = vmax.f32 %v5150, 0.0
        %v5282 = vmax.f32 %v5154, 0.0
        %v5283 = vmax.f32 %v5156, 0.0
        %v5284 = vmax.f32 %v5158, 0.0
        %v5285 = vmax.f32 %v5160, 0.0
        %v5286 = vmax.f32 %v5164, 0.0
        %v5287 = vmax.f32 %v5166, 0.0
        %v5288 = vmax.f32 %v5168, 0.0
        %v5289 = vmax.f32 %v5170, 0.0
        %v5290 = vmax.f32 %v5174, 0.0
        %v5291 = vmax.f32 %v5176, 0.0
        %v5292 = vmax.f32 %v5178, 0.0
        %v5293 = vmax.f32 %v5180, 0.0
        %v5294 = vmax.f32 %v5184, 0.0
        %v5295 = vmax.f32 %v5186, 0.0
        %v5296 = vmax.f32 %v5188, 0.0
        %v5297 = vmax.f32 %v5190, 0.0
        %v5298 = vmax.f32 %v5194, 0.0
        %v5299 = vmax.f32 %v5196, 0.0
        %v5300 = vmax.f32 %v5198, 0.0
        %v5301 = vmax.f32 %v5200, 0.0
        %v5302 = vmax.f32 %v5204, 0.0
        %v5303 = vmax.f32 %v5206, 0.0
        %v5304 = vmax.f32 %v5208, 0.0
        %v5305 = vmax.f32 %v5210, 0.0
        %v5306 = vmax.f32 %v5214, 0.0
        %v5307 = vmax.f32 %v5216, 0.0
        %v5308 = vmax.f32 %v5218, 0.0
        %v5309 = vmax.f32 %v5220, 0.0
        %v5310 = vmax.f32 %v5224, 0.0
        %v5311 = vmax.f32 %v5226, 0.0
        %v5312 = vmax.f32 %v5228, 0.0
        %v5313 = vmax.f32 %v5230, 0.0
        %v5314 = vmax.f32 %v5234, 0.0
        %v5315 = vmax.f32 %v5236, 0.0
        %v5316 = vmax.f32 %v5238, 0.0
        %v5317 = vmax.f32 %v5240, 0.0
        %v5318 = vmax.f32 %v5244, 0.0
        %v5319 = vmax.f32 %v5246, 0.0
        %v5320 = vmax.f32 %v5248, 0.0
        %v5321 = vmax.f32 %v5250, 0.0
        %v5322 = vmax.f32 %v5254, 0.0
        %v5323 = vmax.f32 %v5256, 0.0
        %v5324 = vmax.f32 %v5258, 0.0
        %v5325 = vmax.f32 %v5260, 0.0
        %v5326 = vpack.c.bf16 %v5264, %v5262
        %v5327 = vpack.c.bf16 %v5265, %v5263
        %v5328 = vpack.c.bf16 %v5268, %v5266
        %v5329 = vpack.c.bf16 %v5269, %v5267
        %v5330 = vpack.c.bf16 %v5272, %v5270
        %v5331 = vpack.c.bf16 %v5273, %v5271
        %v5332 = vpack.c.bf16 %v5276, %v5274
        %v5333 = vpack.c.bf16 %v5277, %v5275
        %v5334 = vpack.c.bf16 %v5280, %v5278
        %v5335 = vpack.c.bf16 %v5281, %v5279
        %v5336 = vpack.c.bf16 %v5284, %v5282
        %v5337 = vpack.c.bf16 %v5285, %v5283
        %v5338 = vpack.c.bf16 %v5288, %v5286
        %v5339 = vpack.c.bf16 %v5289, %v5287
        %v5340 = vpack.c.bf16 %v5292, %v5290
        %v5341 = vpack.c.bf16 %v5293, %v5291
        %v5342 = vpack.c.bf16 %v5296, %v5294
        %v5343 = vpack.c.bf16 %v5297, %v5295
        %v5344 = vpack.c.bf16 %v5300, %v5298
        %v5345 = vpack.c.bf16 %v5301, %v5299
        %v5346 = vpack.c.bf16 %v5304, %v5302
        %v5347 = vpack.c.bf16 %v5305, %v5303
        %v5348 = vpack.c.bf16 %v5308, %v5306
        %v5349 = vpack.c.bf16 %v5309, %v5307
        %v5350 = vpack.c.bf16 %v5312, %v5310
        %v5351 = vpack.c.bf16 %v5313, %v5311
        %v5352 = vpack.c.bf16 %v5316, %v5314
        %v5353 = vpack.c.bf16 %v5317, %v5315
        %v5354 = vpack.c.bf16 %v5320, %v5318
        %v5355 = vpack.c.bf16 %v5321, %v5319
        %v5356 = vpack.c.bf16 %v5324, %v5322
        %v5357 = vpack.c.bf16 %v5325, %v5323
        %v5358 = vld [vmem:[#allocation19] sm:$0xf]
        %v5359 = vld [vmem:[#allocation19 + $0x4] sm:$0xf]
        %v5360 = vld [vmem:[#allocation19 + $0x8] sm:$0xf]
        %v5361 = vld [vmem:[#allocation19 + $0xc] sm:$0xf]
        %v5362 = vld [vmem:[#allocation19 + $0x10] sm:$0xf]
        %v5363 = vld [vmem:[#allocation19 + $0x14] sm:$0xf]
        %v5364 = vld [vmem:[#allocation19 + $0x18] sm:$0xf]
        %v5365 = vld [vmem:[#allocation19 + $0x1c] sm:$0xf]
        %v5366 = vld [vmem:[#allocation19 + $0x20] sm:$0xf]
        %v5367 = vld [vmem:[#allocation19 + $0x24] sm:$0xf]
        %v5368 = vld [vmem:[#allocation19 + $0x28] sm:$0xf]
        %v5369 = vld [vmem:[#allocation19 + $0x2c] sm:$0xf]
        %v5370 = vld [vmem:[#allocation19 + $0x30] sm:$0xf]
        %v5371 = vld [vmem:[#allocation19 + $0x34] sm:$0xf]
        %v5372 = vld [vmem:[#allocation19 + $0x38] sm:$0xf]
        %v5373 = vld [vmem:[#allocation19 + $0x3c] sm:$0xf]
        %v5374 = vld [vmem:[#allocation19 + $0x40] sm:$0xf]
        %v5375 = vld [vmem:[#allocation19 + $0x44] sm:$0xf]
        %v5376 = vld [vmem:[#allocation19 + $0x48] sm:$0xf]
        %v5377 = vld [vmem:[#allocation19 + $0x4c] sm:$0xf]
        %v5378 = vld [vmem:[#allocation19 + $0x50] sm:$0xf]
        %v5379 = vld [vmem:[#allocation19 + $0x54] sm:$0xf]
        %v5380 = vld [vmem:[#allocation19 + $0x58] sm:$0xf]
        %v5381 = vld [vmem:[#allocation19 + $0x5c] sm:$0xf]
        %v5382 = vld [vmem:[#allocation19 + $0x60] sm:$0xf]
        %v5383 = vld [vmem:[#allocation19 + $0x64] sm:$0xf]
        %v5384 = vld [vmem:[#allocation19 + $0x68] sm:$0xf]
        %v5385 = vld [vmem:[#allocation19 + $0x6c] sm:$0xf]
        %v5386 = vld [vmem:[#allocation19 + $0x70] sm:$0xf]
        %v5387 = vld [vmem:[#allocation19 + $0x74] sm:$0xf]
        %v5388 = vld [vmem:[#allocation19 + $0x78] sm:$0xf]
        %v5389 = vld [vmem:[#allocation19 + $0x7c] sm:$0xf]
        %v5390 = vld [vmem:[%s19] sm:$0x1]
        %v5392 = vlaneseq
        %v5393 = vshrl.u32 %v5392, 7
        %v5394 = vsub.s32 0, %v5393
        %v5395 = vrot.slane %v5390, %v5394
        %v5429 = vunpack.c.l.b16 %v5358
        %v5430 = vunpack.c.l.b16 %v5359
        %v5431 = vunpack.c.l.b16 %v5360
        %v5432 = vunpack.c.l.b16 %v5361
        %v5433 = vunpack.c.l.b16 %v5362
        %v5434 = vunpack.c.l.b16 %v5363
        %v5435 = vunpack.c.l.b16 %v5364
        %v5436 = vunpack.c.l.b16 %v5365
        %v5437 = vunpack.c.l.b16 %v5366
        %v5438 = vunpack.c.l.b16 %v5367
        %v5439 = vunpack.c.l.b16 %v5368
        %v5440 = vunpack.c.l.b16 %v5369
        %v5441 = vunpack.c.l.b16 %v5370
        %v5442 = vunpack.c.l.b16 %v5371
        %v5443 = vunpack.c.l.b16 %v5372
        %v5444 = vunpack.c.l.b16 %v5373
        %v5445 = vunpack.c.l.b16 %v5374
        %v5446 = vunpack.c.l.b16 %v5375
        %v5447 = vunpack.c.l.b16 %v5376
        %v5448 = vunpack.c.l.b16 %v5377
        %v5449 = vunpack.c.l.b16 %v5378
        %v5450 = vunpack.c.l.b16 %v5379
        %v5451 = vunpack.c.l.b16 %v5380
        %v5452 = vunpack.c.l.b16 %v5381
        %v5453 = vunpack.c.l.b16 %v5382
        %v5454 = vunpack.c.l.b16 %v5383
        %v5455 = vunpack.c.l.b16 %v5384
        %v5456 = vunpack.c.l.b16 %v5385
        %v5457 = vunpack.c.l.b16 %v5386
        %v5458 = vunpack.c.l.b16 %v5387
        %v5459 = vunpack.c.l.b16 %v5388
        %v5460 = vunpack.c.l.b16 %v5389
        %v5461 = vpack.c.b16 %v5430, %v5429
        %v5462 = vpack.c.b16 %v5432, %v5431
        %v5463 = vpack.c.b16 %v5434, %v5433
        %v5464 = vpack.c.b16 %v5436, %v5435
        %v5465 = vpack.c.b16 %v5438, %v5437
        %v5466 = vpack.c.b16 %v5440, %v5439
        %v5467 = vpack.c.b16 %v5442, %v5441
        %v5468 = vpack.c.b16 %v5444, %v5443
        %v5469 = vpack.c.b16 %v5446, %v5445
        %v5470 = vpack.c.b16 %v5448, %v5447
        %v5471 = vpack.c.b16 %v5450, %v5449
        %v5472 = vpack.c.b16 %v5452, %v5451
        %v5473 = vpack.c.b16 %v5454, %v5453
        %v5474 = vpack.c.b16 %v5456, %v5455
        %v5475 = vpack.c.b16 %v5458, %v5457
        %v5476 = vpack.c.b16 %v5460, %v5459
        %5493 = vmatprep.subr.bf16.mxu0 0
        %5494 = vmatpush1.bf16.msra.mxu0 %v5461
        %5495 = vmatprep.subr.bf16.mxu0 0
        %5496 = vmatpush1.bf16.msra.mxu0 %v5462
        %5497 = vmatprep.subr.bf16.mxu0 0
        %5498 = vmatpush1.bf16.msra.mxu0 %v5463
        %5499 = vmatprep.subr.bf16.mxu0 0
        %5500 = vmatpush1.bf16.msra.mxu0 %v5464
        %5501 = vmatprep.subr.bf16.mxu0 0
        %5502 = vmatpush1.bf16.msra.mxu0 %v5465
        %5503 = vmatprep.subr.bf16.mxu0 0
        %5504 = vmatpush1.bf16.msra.mxu0 %v5466
        %5505 = vmatprep.subr.bf16.mxu0 0
        %5506 = vmatpush1.bf16.msra.mxu0 %v5467
        %5507 = vmatprep.subr.bf16.mxu0 0
        %5508 = vmatpush1.bf16.msra.mxu0 %v5468
        %5509 = vmatprep.subr.bf16.mxu0 0
        %5510 = vmatpush1.bf16.msra.mxu0 %v5469
        %5511 = vmatprep.subr.bf16.mxu0 0
        %5512 = vmatpush1.bf16.msra.mxu0 %v5470
        %5513 = vmatprep.subr.bf16.mxu0 0
        %5514 = vmatpush1.bf16.msra.mxu0 %v5471
        %5515 = vmatprep.subr.bf16.mxu0 0
        %5516 = vmatpush1.bf16.msra.mxu0 %v5472
        %5517 = vmatprep.subr.bf16.mxu0 0
        %5518 = vmatpush1.bf16.msra.mxu0 %v5473
        %5519 = vmatprep.subr.bf16.mxu0 0
        %5520 = vmatpush1.bf16.msra.mxu0 %v5474
        %5521 = vmatprep.subr.bf16.mxu0 0
        %5522 = vmatpush1.bf16.msra.mxu0 %v5475
        %5523 = vmatprep.subr.bf16.mxu0 0
        %5524 = vmatpush1.bf16.msra.mxu0 %v5476
        %5525 = vmatprep.mubr.bf16.mxu0 %v5327
        %5526 = vmatmul.mubr.bf16.gmra.mrb[0].mxu0 %v5326
        %v5527 = vpop.f32.mrb[0].mxu0
        %v5528 = vadd.f32 %v5395, %v5527
        %v5529 = vpop.f32.mrb[0].mxu0
        %v5530 = vpop.f32.mrb[0].mxu0
        %v5531 = vadd.f32 %v5395, %v5530
        %v5532 = vpop.f32.mrb[0].mxu0
        %5533 = vmatprep.mubr.bf16.mxu0 %v5329
        %5534 = vmatmul.mubr.bf16.gmra.mrb[0].mxu0 %v5328
        %v5535 = vpop.f32.mrb[0].mxu0
        %v5536 = vadd.f32 %v5395, %v5535
        %v5537 = vpop.f32.mrb[0].mxu0
        %v5538 = vpop.f32.mrb[0].mxu0
        %v5539 = vadd.f32 %v5395, %v5538
        %v5540 = vpop.f32.mrb[0].mxu0
        %5541 = vmatprep.mubr.bf16.mxu0 %v5331
        %5542 = vmatmul.mubr.bf16.gmra.mrb[0].mxu0 %v5330
        %v5543 = vpop.f32.mrb[0].mxu0
        %v5544 = vadd.f32 %v5395, %v5543
        %v5545 = vpop.f32.mrb[0].mxu0
        %v5546 = vpop.f32.mrb[0].mxu0
        %v5547 = vadd.f32 %v5395, %v5546
        %v5548 = vpop.f32.mrb[0].mxu0
        %5549 = vmatprep.mubr.bf16.mxu0 %v5333
        %5550 = vmatmul.mubr.bf16.gmra.mrb[0].mxu0 %v5332
        %v5551 = vpop.f32.mrb[0].mxu0
        %v5552 = vadd.f32 %v5395, %v5551
        %v5553 = vpop.f32.mrb[0].mxu0
        %v5554 = vpop.f32.mrb[0].mxu0
        %v5555 = vadd.f32 %v5395, %v5554
        %v5556 = vpop.f32.mrb[0].mxu0
        %5557 = vmatprep.mubr.bf16.mxu0 %v5335
        %5558 = vmatmul.mubr.bf16.gmra.mrb[0].mxu0 %v5334
        %v5559 = vpop.f32.mrb[0].mxu0
        %v5560 = vadd.f32 %v5395, %v5559
        %v5561 = vpop.f32.mrb[0].mxu0
        %v5562 = vpop.f32.mrb[0].mxu0
        %v5563 = vadd.f32 %v5395, %v5562
        %v5564 = vpop.f32.mrb[0].mxu0
        %5565 = vmatprep.mubr.bf16.mxu0 %v5337
        %5566 = vmatmul.mubr.bf16.gmra.mrb[0].mxu0 %v5336
        %v5567 = vpop.f32.mrb[0].mxu0
        %v5568 = vadd.f32 %v5395, %v5567
        %v5569 = vpop.f32.mrb[0].mxu0
        %v5570 = vpop.f32.mrb[0].mxu0
        %v5571 = vadd.f32 %v5395, %v5570
        %v5572 = vpop.f32.mrb[0].mxu0
        %5573 = vmatprep.mubr.bf16.mxu0 %v5339
        %5574 = vmatmul.mubr.bf16.gmra.mrb[0].mxu0 %v5338
        %v5575 = vpop.f32.mrb[0].mxu0
        %v5576 = vadd.f32 %v5395, %v5575
        %v5577 = vpop.f32.mrb[0].mxu0
        %v5578 = vpop.f32.mrb[0].mxu0
        %v5579 = vadd.f32 %v5395, %v5578
        %v5580 = vpop.f32.mrb[0].mxu0
        %5581 = vmatprep.mubr.bf16.mxu0 %v5341
        %5582 = vmatmul.mubr.bf16.gmra.mrb[0].mxu0 %v5340
        %v5583 = vpop.f32.mrb[0].mxu0
        %v5584 = vadd.f32 %v5395, %v5583
        %v5585 = vpop.f32.mrb[0].mxu0
        %v5586 = vpop.f32.mrb[0].mxu0
        %v5587 = vadd.f32 %v5395, %v5586
        %v5588 = vpop.f32.mrb[0].mxu0
        %5589 = vmatprep.mubr.bf16.mxu0 %v5343
        %5590 = vmatmul.mubr.bf16.gmra.mrb[0].mxu0 %v5342
        %v5591 = vpop.f32.mrb[0].mxu0
        %v5592 = vadd.f32 %v5395, %v5591
        %v5593 = vpop.f32.mrb[0].mxu0
        %v5594 = vpop.f32.mrb[0].mxu0
        %v5595 = vadd.f32 %v5395, %v5594
        %v5596 = vpop.f32.mrb[0].mxu0
        %5597 = vmatprep.mubr.bf16.mxu0 %v5345
        %5598 = vmatmul.mubr.bf16.gmra.mrb[0].mxu0 %v5344
        %v5599 = vpop.f32.mrb[0].mxu0
        %v5600 = vadd.f32 %v5395, %v5599
        %v5601 = vpop.f32.mrb[0].mxu0
        %v5602 = vpop.f32.mrb[0].mxu0
        %v5603 = vadd.f32 %v5395, %v5602
        %v5604 = vpop.f32.mrb[0].mxu0
        %5605 = vmatprep.mubr.bf16.mxu0 %v5347
        %5606 = vmatmul.mubr.bf16.gmra.mrb[0].mxu0 %v5346
        %v5607 = vpop.f32.mrb[0].mxu0
        %v5608 = vadd.f32 %v5395, %v5607
        %v5609 = vpop.f32.mrb[0].mxu0
        %v5610 = vpop.f32.mrb[0].mxu0
        %v5611 = vadd.f32 %v5395, %v5610
        %v5612 = vpop.f32.mrb[0].mxu0
        %5613 = vmatprep.mubr.bf16.mxu0 %v5349
        %5614 = vmatmul.mubr.bf16.gmra.mrb[0].mxu0 %v5348
        %v5615 = vpop.f32.mrb[0].mxu0
        %v5616 = vadd.f32 %v5395, %v5615
        %v5617 = vpop.f32.mrb[0].mxu0
        %v5618 = vpop.f32.mrb[0].mxu0
        %v5619 = vadd.f32 %v5395, %v5618
        %v5620 = vpop.f32.mrb[0].mxu0
        %5621 = vmatprep.mubr.bf16.mxu0 %v5351
        %5622 = vmatmul.mubr.bf16.gmra.mrb[0].mxu0 %v5350
        %v5623 = vpop.f32.mrb[0].mxu0
        %v5624 = vadd.f32 %v5395, %v5623
        %v5625 = vpop.f32.mrb[0].mxu0
        %v5626 = vpop.f32.mrb[0].mxu0
        %v5627 = vadd.f32 %v5395, %v5626
        %v5628 = vpop.f32.mrb[0].mxu0
        %5629 = vmatprep.mubr.bf16.mxu0 %v5353
        %5630 = vmatmul.mubr.bf16.gmra.mrb[0].mxu0 %v5352
        %v5631 = vpop.f32.mrb[0].mxu0
        %v5632 = vadd.f32 %v5395, %v5631
        %v5633 = vpop.f32.mrb[0].mxu0
        %v5634 = vpop.f32.mrb[0].mxu0
        %v5635 = vadd.f32 %v5395, %v5634
        %v5636 = vpop.f32.mrb[0].mxu0
        %5637 = vmatprep.mubr.bf16.mxu0 %v5355
        %5638 = vmatmul.mubr.bf16.gmra.mrb[0].mxu0 %v5354
        %v5639 = vpop.f32.mrb[0].mxu0
        %v5640 = vadd.f32 %v5395, %v5639
        %v5641 = vpop.f32.mrb[0].mxu0
        %v5642 = vpop.f32.mrb[0].mxu0
        %v5643 = vadd.f32 %v5395, %v5642
        %v5644 = vpop.f32.mrb[0].mxu0
        %5645 = vmatprep.mubr.bf16.mxu0 %v5357
        %5646 = vmatmul.mubr.bf16.gmra.mrb[0].mxu0 %v5356
        %v5647 = vpop.f32.mrb[0].mxu0
        %v5648 = vadd.f32 %v5395, %v5647
        %v5649 = vpop.f32.mrb[0].mxu0
        %v5650 = vpop.f32.mrb[0].mxu0
        %v5651 = vadd.f32 %v5395, %v5650
        %v5652 = vpop.f32.mrb[0].mxu0
        %5653 = vdwg.mxu0
        %v5654 = vmax.f32 %v5528, 0.0
        %v5655 = vmax.f32 %v5531, 0.0
        %v5656 = vmax.f32 %v5536, 0.0
        %v5657 = vmax.f32 %v5539, 0.0
        %v5658 = vmax.f32 %v5544, 0.0
        %v5659 = vmax.f32 %v5547, 0.0
        %v5660 = vmax.f32 %v5552, 0.0
        %v5661 = vmax.f32 %v5555, 0.0
        %v5662 = vmax.f32 %v5560, 0.0
        %v5663 = vmax.f32 %v5563, 0.0
        %v5664 = vmax.f32 %v5568, 0.0
        %v5665 = vmax.f32 %v5571, 0.0
        %v5666 = vmax.f32 %v5576, 0.0
        %v5667 = vmax.f32 %v5579, 0.0
        %v5668 = vmax.f32 %v5584, 0.0
        %v5669 = vmax.f32 %v5587, 0.0
        %v5670 = vmax.f32 %v5592, 0.0
        %v5671 = vmax.f32 %v5595, 0.0
        %v5672 = vmax.f32 %v5600, 0.0
        %v5673 = vmax.f32 %v5603, 0.0
        %v5674 = vmax.f32 %v5608, 0.0
        %v5675 = vmax.f32 %v5611, 0.0
        %v5676 = vmax.f32 %v5616, 0.0
        %v5677 = vmax.f32 %v5619, 0.0
        %v5678 = vmax.f32 %v5624, 0.0
        %v5679 = vmax.f32 %v5627, 0.0
        %v5680 = vmax.f32 %v5632, 0.0
        %v5681 = vmax.f32 %v5635, 0.0
        %v5682 = vmax.f32 %v5640, 0.0
        %v5683 = vmax.f32 %v5643, 0.0
        %v5684 = vmax.f32 %v5648, 0.0
        %v5685 = vmax.f32 %v5651, 0.0
        %v5686 = vld [vmem:[#allocation20] sm:$0xff]
        %v5687 = vld [vmem:[#allocation20 + $0x8] sm:$0xff]
        %v5688 = vld [vmem:[#allocation20 + $0x10] sm:$0xff]
        %v5689 = vld [vmem:[#allocation20 + $0x18] sm:$0xff]
        %v5690 = vld [vmem:[#allocation20 + $0x20] sm:$0xff]
        %v5691 = vld [vmem:[#allocation20 + $0x28] sm:$0xff]
        %v5692 = vld [vmem:[#allocation20 + $0x30] sm:$0xff]
        %v5693 = vld [vmem:[#allocation20 + $0x38] sm:$0xff]
        %v5694 = vld [vmem:[#allocation20 + $0x40] sm:$0xff]
        %v5695 = vld [vmem:[#allocation20 + $0x48] sm:$0xff]
        %v5696 = vld [vmem:[#allocation20 + $0x50] sm:$0xff]
        %v5697 = vld [vmem:[#allocation20 + $0x58] sm:$0xff]
        %v5698 = vld [vmem:[#allocation20 + $0x60] sm:$0xff]
        %v5699 = vld [vmem:[#allocation20 + $0x68] sm:$0xff]
        %v5700 = vld [vmem:[#allocation20 + $0x70] sm:$0xff]
        %v5701 = vld [vmem:[#allocation20 + $0x78] sm:$0xff]
        %v5702 = vld [vmem:[#allocation20 + $0x80] sm:$0xff]
        %v5703 = vld [vmem:[#allocation20 + $0x88] sm:$0xff]
        %v5704 = vld [vmem:[#allocation20 + $0x90] sm:$0xff]
        %v5705 = vld [vmem:[#allocation20 + $0x98] sm:$0xff]
        %v5706 = vld [vmem:[#allocation20 + $0xa0] sm:$0xff]
        %v5707 = vld [vmem:[#allocation20 + $0xa8] sm:$0xff]
        %v5708 = vld [vmem:[#allocation20 + $0xb0] sm:$0xff]
        %v5709 = vld [vmem:[#allocation20 + $0xb8] sm:$0xff]
        %v5710 = vld [vmem:[#allocation20 + $0xc0] sm:$0xff]
        %v5711 = vld [vmem:[#allocation20 + $0xc8] sm:$0xff]
        %v5712 = vld [vmem:[#allocation20 + $0xd0] sm:$0xff]
        %v5713 = vld [vmem:[#allocation20 + $0xd8] sm:$0xff]
        %v5714 = vld [vmem:[#allocation20 + $0xe0] sm:$0xff]
        %v5715 = vld [vmem:[#allocation20 + $0xe8] sm:$0xff]
        %v5716 = vld [vmem:[#allocation20 + $0xf0] sm:$0xff]
        %v5717 = vld [vmem:[#allocation20 + $0xf8] sm:$0xff]
        %v5718 = vld [vmem:[%s21] sm:$0x3]
        %v5720 = vlaneseq
        %v5721 = vshrl.u32 %v5720, 7
        %v5722 = vsub.s32 0, %v5721
        %v5723 = vrot.slane %v5718, %v5722
        %v5724 = vlaneseq
        %v5725 = vshrl.u32 %v5724, 7
        %v5726 = vsub.s32 1, %v5725
        %v5727 = vrot.slane %v5718, %v5726
        %v5762 = vunpack.c.l.b16 %v5686
        %v5763 = vunpack.c.h.b16 %v5686
        %v5764 = vunpack.c.l.b16 %v5687
        %v5765 = vunpack.c.h.b16 %v5687
        %v5766 = vunpack.c.l.b16 %v5688
        %v5767 = vunpack.c.h.b16 %v5688
        %v5768 = vunpack.c.l.b16 %v5689
        %v5769 = vunpack.c.h.b16 %v5689
        %v5770 = vunpack.c.l.b16 %v5690
        %v5771 = vunpack.c.h.b16 %v5690
        %v5772 = vunpack.c.l.b16 %v5691
        %v5773 = vunpack.c.h.b16 %v5691
        %v5774 = vunpack.c.l.b16 %v5692
        %v5775 = vunpack.c.h.b16 %v5692
        %v5776 = vunpack.c.l.b16 %v5693
        %v5777 = vunpack.c.h.b16 %v5693
        %v5778 = vunpack.c.l.b16 %v5694
        %v5779 = vunpack.c.h.b16 %v5694
        %v5780 = vunpack.c.l.b16 %v5695
        %v5781 = vunpack.c.h.b16 %v5695
        %v5782 = vunpack.c.l.b16 %v5696
        %v5783 = vunpack.c.h.b16 %v5696
        %v5784 = vunpack.c.l.b16 %v5697
        %v5785 = vunpack.c.h.b16 %v5697
        %v5786 = vunpack.c.l.b16 %v5698
        %v5787 = vunpack.c.h.b16 %v5698
        %v5788 = vunpack.c.l.b16 %v5699
        %v5789 = vunpack.c.h.b16 %v5699
        %v5790 = vunpack.c.l.b16 %v5700
        %v5791 = vunpack.c.h.b16 %v5700
        %v5792 = vunpack.c.l.b16 %v5701
        %v5793 = vunpack.c.h.b16 %v5701
        %v5794 = vunpack.c.l.b16 %v5702
        %v5795 = vunpack.c.h.b16 %v5702
        %v5796 = vunpack.c.l.b16 %v5703
        %v5797 = vunpack.c.h.b16 %v5703
        %v5798 = vunpack.c.l.b16 %v5704
        %v5799 = vunpack.c.h.b16 %v5704
        %v5800 = vunpack.c.l.b16 %v5705
        %v5801 = vunpack.c.h.b16 %v5705
        %v5802 = vunpack.c.l.b16 %v5706
        %v5803 = vunpack.c.h.b16 %v5706
        %v5804 = vunpack.c.l.b16 %v5707
        %v5805 = vunpack.c.h.b16 %v5707
        %v5806 = vunpack.c.l.b16 %v5708
        %v5807 = vunpack.c.h.b16 %v5708
        %v5808 = vunpack.c.l.b16 %v5709
        %v5809 = vunpack.c.h.b16 %v5709
        %v5810 = vunpack.c.l.b16 %v5710
        %v5811 = vunpack.c.h.b16 %v5710
        %v5812 = vunpack.c.l.b16 %v5711
        %v5813 = vunpack.c.h.b16 %v5711
        %v5814 = vunpack.c.l.b16 %v5712
        %v5815 = vunpack.c.h.b16 %v5712
        %v5816 = vunpack.c.l.b16 %v5713
        %v5817 = vunpack.c.h.b16 %v5713
        %v5818 = vunpack.c.l.b16 %v5714
        %v5819 = vunpack.c.h.b16 %v5714
        %v5820 = vunpack.c.l.b16 %v5715
        %v5821 = vunpack.c.h.b16 %v5715
        %v5822 = vunpack.c.l.b16 %v5716
        %v5823 = vunpack.c.h.b16 %v5716
        %v5824 = vunpack.c.l.b16 %v5717
        %v5825 = vunpack.c.h.b16 %v5717
        %v5826 = vpack.c.b16 %v5764, %v5762
        %v5827 = vpack.c.b16 %v5765, %v5763
        %v5828 = vpack.c.b16 %v5768, %v5766
        %v5829 = vpack.c.b16 %v5769, %v5767
        %v5830 = vpack.c.b16 %v5772, %v5770
        %v5831 = vpack.c.b16 %v5773, %v5771
        %v5832 = vpack.c.b16 %v5776, %v5774
        %v5833 = vpack.c.b16 %v5777, %v5775
        %v5834 = vpack.c.b16 %v5780, %v5778
        %v5835 = vpack.c.b16 %v5781, %v5779
        %v5836 = vpack.c.b16 %v5784, %v5782
        %v5837 = vpack.c.b16 %v5785, %v5783
        %v5838 = vpack.c.b16 %v5788, %v5786
        %v5839 = vpack.c.b16 %v5789, %v5787
        %v5840 = vpack.c.b16 %v5792, %v5790
        %v5841 = vpack.c.b16 %v5793, %v5791
        %v5842 = vpack.c.b16 %v5796, %v5794
        %v5843 = vpack.c.b16 %v5797, %v5795
        %v5844 = vpack.c.b16 %v5800, %v5798
        %v5845 = vpack.c.b16 %v5801, %v5799
        %v5846 = vpack.c.b16 %v5804, %v5802
        %v5847 = vpack.c.b16 %v5805, %v5803
        %v5848 = vpack.c.b16 %v5808, %v5806
        %v5849 = vpack.c.b16 %v5809, %v5807
        %v5850 = vpack.c.b16 %v5812, %v5810
        %v5851 = vpack.c.b16 %v5813, %v5811
        %v5852 = vpack.c.b16 %v5816, %v5814
        %v5853 = vpack.c.b16 %v5817, %v5815
        %v5854 = vpack.c.b16 %v5820, %v5818
        %v5855 = vpack.c.b16 %v5821, %v5819
        %v5856 = vpack.c.b16 %v5824, %v5822
        %v5857 = vpack.c.b16 %v5825, %v5823
        %5890 = vmatprep.subr.bf16.mxu0 %v5827
        %5891 = vmatpush1.bf16.msra.mxu0 %v5826
        %5892 = vmatprep.subr.bf16.mxu0 %v5829
        %5893 = vmatpush1.bf16.msra.mxu0 %v5828
        %5894 = vmatprep.subr.bf16.mxu0 %v5831
        %5895 = vmatpush1.bf16.msra.mxu0 %v5830
        %5896 = vmatprep.subr.bf16.mxu0 %v5833
        %5897 = vmatpush1.bf16.msra.mxu0 %v5832
        %5898 = vmatprep.subr.bf16.mxu0 %v5835
        %5899 = vmatpush1.bf16.msra.mxu0 %v5834
        %5900 = vmatprep.subr.bf16.mxu0 %v5837
        %5901 = vmatpush1.bf16.msra.mxu0 %v5836
        %5902 = vmatprep.subr.bf16.mxu0 %v5839
        %5903 = vmatpush1.bf16.msra.mxu0 %v5838
        %5904 = vmatprep.subr.bf16.mxu0 %v5841
        %5905 = vmatpush1.bf16.msra.mxu0 %v5840
        %5906 = vmatprep.subr.bf16.mxu0 %v5843
        %5907 = vmatpush1.bf16.msra.mxu0 %v5842
        %5908 = vmatprep.subr.bf16.mxu0 %v5845
        %5909 = vmatpush1.bf16.msra.mxu0 %v5844
        %5910 = vmatprep.subr.bf16.mxu0 %v5847
        %5911 = vmatpush1.bf16.msra.mxu0 %v5846
        %5912 = vmatprep.subr.bf16.mxu0 %v5849
        %5913 = vmatpush1.bf16.msra.mxu0 %v5848
        %5914 = vmatprep.subr.bf16.mxu0 %v5851
        %5915 = vmatpush1.bf16.msra.mxu0 %v5850
        %5916 = vmatprep.subr.bf16.mxu0 %v5853
        %5917 = vmatpush1.bf16.msra.mxu0 %v5852
        %5918 = vmatprep.subr.bf16.mxu0 %v5855
        %5919 = vmatpush1.bf16.msra.mxu0 %v5854
        %5920 = vmatprep.subr.bf16.mxu0 %v5857
        %5921 = vmatpush1.bf16.msra.mxu0 %v5856
        %5922 = vmatprep.mubr.bf16.mxu0 %v5327
        %5923 = vmatmul.mubr.bf16.gmra.mrb[0].mxu0 %v5326
        %v5924 = vpop.f32.mrb[0].mxu0
        %v5925 = vadd.f32 %v5723, %v5924
        %v5926 = vpop.f32.mrb[0].mxu0
        %v5927 = vadd.f32 %v5727, %v5926
        %v5928 = vpop.f32.mrb[0].mxu0
        %v5929 = vadd.f32 %v5723, %v5928
        %v5930 = vpop.f32.mrb[0].mxu0
        %v5931 = vadd.f32 %v5727, %v5930
        %5932 = vmatprep.mubr.bf16.mxu0 %v5329
        %5933 = vmatmul.mubr.bf16.gmra.mrb[0].mxu0 %v5328
        %v5934 = vpop.f32.mrb[0].mxu0
        %v5935 = vadd.f32 %v5723, %v5934
        %v5936 = vpop.f32.mrb[0].mxu0
        %v5937 = vadd.f32 %v5727, %v5936
        %v5938 = vpop.f32.mrb[0].mxu0
        %v5939 = vadd.f32 %v5723, %v5938
        %v5940 = vpop.f32.mrb[0].mxu0
        %v5941 = vadd.f32 %v5727, %v5940
        %5942 = vmatprep.mubr.bf16.mxu0 %v5331
        %5943 = vmatmul.mubr.bf16.gmra.mrb[0].mxu0 %v5330
        %v5944 = vpop.f32.mrb[0].mxu0
        %v5945 = vadd.f32 %v5723, %v5944
        %v5946 = vpop.f32.mrb[0].mxu0
        %v5947 = vadd.f32 %v5727, %v5946
        %v5948 = vpop.f32.mrb[0].mxu0
        %v5949 = vadd.f32 %v5723, %v5948
        %v5950 = vpop.f32.mrb[0].mxu0
        %v5951 = vadd.f32 %v5727, %v5950
        %5952 = vmatprep.mubr.bf16.mxu0 %v5333
        %5953 = vmatmul.mubr.bf16.gmra.mrb[0].mxu0 %v5332
        %v5954 = vpop.f32.mrb[0].mxu0
        %v5955 = vadd.f32 %v5723, %v5954
        %v5956 = vpop.f32.mrb[0].mxu0
        %v5957 = vadd.f32 %v5727, %v5956
        %v5958 = vpop.f32.mrb[0].mxu0
        %v5959 = vadd.f32 %v5723, %v5958
        %v5960 = vpop.f32.mrb[0].mxu0
        %v5961 = vadd.f32 %v5727, %v5960
        %5962 = vmatprep.mubr.bf16.mxu0 %v5335
        %5963 = vmatmul.mubr.bf16.gmra.mrb[0].mxu0 %v5334
        %v5964 = vpop.f32.mrb[0].mxu0
        %v5965 = vadd.f32 %v5723, %v5964
        %v5966 = vpop.f32.mrb[0].mxu0
        %v5967 = vadd.f32 %v5727, %v5966
        %v5968 = vpop.f32.mrb[0].mxu0
        %v5969 = vadd.f32 %v5723, %v5968
        %v5970 = vpop.f32.mrb[0].mxu0
        %v5971 = vadd.f32 %v5727, %v5970
        %5972 = vmatprep.mubr.bf16.mxu0 %v5337
        %5973 = vmatmul.mubr.bf16.gmra.mrb[0].mxu0 %v5336
        %v5974 = vpop.f32.mrb[0].mxu0
        %v5975 = vadd.f32 %v5723, %v5974
        %v5976 = vpop.f32.mrb[0].mxu0
        %v5977 = vadd.f32 %v5727, %v5976
        %v5978 = vpop.f32.mrb[0].mxu0
        %v5979 = vadd.f32 %v5723, %v5978
        %v5980 = vpop.f32.mrb[0].mxu0
        %v5981 = vadd.f32 %v5727, %v5980
        %5982 = vmatprep.mubr.bf16.mxu0 %v5339
        %5983 = vmatmul.mubr.bf16.gmra.mrb[0].mxu0 %v5338
        %v5984 = vpop.f32.mrb[0].mxu0
        %v5985 = vadd.f32 %v5723, %v5984
        %v5986 = vpop.f32.mrb[0].mxu0
        %v5987 = vadd.f32 %v5727, %v5986
        %v5988 = vpop.f32.mrb[0].mxu0
        %v5989 = vadd.f32 %v5723, %v5988
        %v5990 = vpop.f32.mrb[0].mxu0
        %v5991 = vadd.f32 %v5727, %v5990
        %5992 = vmatprep.mubr.bf16.mxu0 %v5341
        %5993 = vmatmul.mubr.bf16.gmra.mrb[0].mxu0 %v5340
        %v5994 = vpop.f32.mrb[0].mxu0
        %v5995 = vadd.f32 %v5723, %v5994
        %v5996 = vpop.f32.mrb[0].mxu0
        %v5997 = vadd.f32 %v5727, %v5996
        %v5998 = vpop.f32.mrb[0].mxu0
        %v5999 = vadd.f32 %v5723, %v5998
        %v6000 = vpop.f32.mrb[0].mxu0
        %v6001 = vadd.f32 %v5727, %v6000
        %6002 = vmatprep.mubr.bf16.mxu0 %v5343
        %6003 = vmatmul.mubr.bf16.gmra.mrb[0].mxu0 %v5342
        %v6004 = vpop.f32.mrb[0].mxu0
        %v6005 = vadd.f32 %v5723, %v6004
        %v6006 = vpop.f32.mrb[0].mxu0
        %v6007 = vadd.f32 %v5727, %v6006
        %v6008 = vpop.f32.mrb[0].mxu0
        %v6009 = vadd.f32 %v5723, %v6008
        %v6010 = vpop.f32.mrb[0].mxu0
        %v6011 = vadd.f32 %v5727, %v6010
        %6012 = vmatprep.mubr.bf16.mxu0 %v5345
        %6013 = vmatmul.mubr.bf16.gmra.mrb[0].mxu0 %v5344
        %v6014 = vpop.f32.mrb[0].mxu0
        %v6015 = vadd.f32 %v5723, %v6014
        %v6016 = vpop.f32.mrb[0].mxu0
        %v6017 = vadd.f32 %v5727, %v6016
        %v6018 = vpop.f32.mrb[0].mxu0
        %v6019 = vadd.f32 %v5723, %v6018
        %v6020 = vpop.f32.mrb[0].mxu0
        %v6021 = vadd.f32 %v5727, %v6020
        %6022 = vmatprep.mubr.bf16.mxu0 %v5347
        %6023 = vmatmul.mubr.bf16.gmra.mrb[0].mxu0 %v5346
        %v6024 = vpop.f32.mrb[0].mxu0
        %v6025 = vadd.f32 %v5723, %v6024
        %v6026 = vpop.f32.mrb[0].mxu0
        %v6027 = vadd.f32 %v5727, %v6026
        %v6028 = vpop.f32.mrb[0].mxu0
        %v6029 = vadd.f32 %v5723, %v6028
        %v6030 = vpop.f32.mrb[0].mxu0
        %v6031 = vadd.f32 %v5727, %v6030
        %6032 = vmatprep.mubr.bf16.mxu0 %v5349
        %6033 = vmatmul.mubr.bf16.gmra.mrb[0].mxu0 %v5348
        %v6034 = vpop.f32.mrb[0].mxu0
        %v6035 = vadd.f32 %v5723, %v6034
        %v6036 = vpop.f32.mrb[0].mxu0
        %v6037 = vadd.f32 %v5727, %v6036
        %v6038 = vpop.f32.mrb[0].mxu0
        %v6039 = vadd.f32 %v5723, %v6038
        %v6040 = vpop.f32.mrb[0].mxu0
        %v6041 = vadd.f32 %v5727, %v6040
        %6042 = vmatprep.mubr.bf16.mxu0 %v5351
        %6043 = vmatmul.mubr.bf16.gmra.mrb[0].mxu0 %v5350
        %v6044 = vpop.f32.mrb[0].mxu0
        %v6045 = vadd.f32 %v5723, %v6044
        %v6046 = vpop.f32.mrb[0].mxu0
        %v6047 = vadd.f32 %v5727, %v6046
        %v6048 = vpop.f32.mrb[0].mxu0
        %v6049 = vadd.f32 %v5723, %v6048
        %v6050 = vpop.f32.mrb[0].mxu0
        %v6051 = vadd.f32 %v5727, %v6050
        %6052 = vmatprep.mubr.bf16.mxu0 %v5353
        %6053 = vmatmul.mubr.bf16.gmra.mrb[0].mxu0 %v5352
        %v6054 = vpop.f32.mrb[0].mxu0
        %v6055 = vadd.f32 %v5723, %v6054
        %v6056 = vpop.f32.mrb[0].mxu0
        %v6057 = vadd.f32 %v5727, %v6056
        %v6058 = vpop.f32.mrb[0].mxu0
        %v6059 = vadd.f32 %v5723, %v6058
        %v6060 = vpop.f32.mrb[0].mxu0
        %v6061 = vadd.f32 %v5727, %v6060
        %6062 = vmatprep.mubr.bf16.mxu0 %v5355
        %6063 = vmatmul.mubr.bf16.gmra.mrb[0].mxu0 %v5354
        %v6064 = vpop.f32.mrb[0].mxu0
        %v6065 = vadd.f32 %v5723, %v6064
        %v6066 = vpop.f32.mrb[0].mxu0
        %v6067 = vadd.f32 %v5727, %v6066
        %v6068 = vpop.f32.mrb[0].mxu0
        %v6069 = vadd.f32 %v5723, %v6068
        %v6070 = vpop.f32.mrb[0].mxu0
        %v6071 = vadd.f32 %v5727, %v6070
        %6072 = vmatprep.mubr.bf16.mxu0 %v5357
        %6073 = vmatmul.mubr.bf16.gmra.mrb[0].mxu0 %v5356
        %v6074 = vpop.f32.mrb[0].mxu0
        %v6075 = vadd.f32 %v5723, %v6074
        %v6076 = vpop.f32.mrb[0].mxu0
        %v6077 = vadd.f32 %v5727, %v6076
        %v6078 = vpop.f32.mrb[0].mxu0
        %v6079 = vadd.f32 %v5723, %v6078
        %v6080 = vpop.f32.mrb[0].mxu0
        %v6081 = vadd.f32 %v5727, %v6080
        %6082 = vdwg.mxu0
        %v6083 = vpack.c.bf16 %v5929, %v5925
        %v6084 = vpack.c.bf16 %v5931, %v5927
        %v6085 = vpack.c.bf16 %v5939, %v5935
        %v6086 = vpack.c.bf16 %v5941, %v5937
        %v6087 = vpack.c.bf16 %v5949, %v5945
        %v6088 = vpack.c.bf16 %v5951, %v5947
        %v6089 = vpack.c.bf16 %v5959, %v5955
        %v6090 = vpack.c.bf16 %v5961, %v5957
        %v6091 = vpack.c.bf16 %v5969, %v5965
        %v6092 = vpack.c.bf16 %v5971, %v5967
        %v6093 = vpack.c.bf16 %v5979, %v5975
        %v6094 = vpack.c.bf16 %v5981, %v5977
        %v6095 = vpack.c.bf16 %v5989, %v5985
        %v6096 = vpack.c.bf16 %v5991, %v5987
        %v6097 = vpack.c.bf16 %v5999, %v5995
        %v6098 = vpack.c.bf16 %v6001, %v5997
        %v6099 = vpack.c.bf16 %v6009, %v6005
        %v6100 = vpack.c.bf16 %v6011, %v6007
        %v6101 = vpack.c.bf16 %v6019, %v6015
        %v6102 = vpack.c.bf16 %v6021, %v6017
        %v6103 = vpack.c.bf16 %v6029, %v6025
        %v6104 = vpack.c.bf16 %v6031, %v6027
        %v6105 = vpack.c.bf16 %v6039, %v6035
        %v6106 = vpack.c.bf16 %v6041, %v6037
        %v6107 = vpack.c.bf16 %v6049, %v6045
        %v6108 = vpack.c.bf16 %v6051, %v6047
        %v6109 = vpack.c.bf16 %v6059, %v6055
        %v6110 = vpack.c.bf16 %v6061, %v6057
        %v6111 = vpack.c.bf16 %v6069, %v6065
        %v6112 = vpack.c.bf16 %v6071, %v6067
        %v6113 = vpack.c.bf16 %v6079, %v6075
        %v6114 = vpack.c.bf16 %v6081, %v6077
        %v6115 = vld [vmem:[#allocation22] sm:$0xf]
        %v6116 = vld [vmem:[#allocation22 + $0x4] sm:$0xf]
        %v6117 = vld [vmem:[#allocation22 + $0x8] sm:$0xf]
        %v6118 = vld [vmem:[#allocation22 + $0xc] sm:$0xf]
        %v6119 = vld [vmem:[#allocation22 + $0x10] sm:$0xf]
        %v6120 = vld [vmem:[#allocation22 + $0x14] sm:$0xf]
        %v6121 = vld [vmem:[#allocation22 + $0x18] sm:$0xf]
        %v6122 = vld [vmem:[#allocation22 + $0x1c] sm:$0xf]
        %v6123 = vld [vmem:[#allocation22 + $0x20] sm:$0xf]
        %v6124 = vld [vmem:[#allocation22 + $0x24] sm:$0xf]
        %v6125 = vld [vmem:[#allocation22 + $0x28] sm:$0xf]
        %v6126 = vld [vmem:[#allocation22 + $0x2c] sm:$0xf]
        %v6127 = vld [vmem:[#allocation22 + $0x30] sm:$0xf]
        %v6128 = vld [vmem:[#allocation22 + $0x34] sm:$0xf]
        %v6129 = vld [vmem:[#allocation22 + $0x38] sm:$0xf]
        %v6130 = vld [vmem:[#allocation22 + $0x3c] sm:$0xf]
        %v6131 = vld [vmem:[#allocation22 + $0x40] sm:$0xf]
        %v6132 = vld [vmem:[#allocation22 + $0x44] sm:$0xf]
        %v6133 = vld [vmem:[#allocation22 + $0x48] sm:$0xf]
        %v6134 = vld [vmem:[#allocation22 + $0x4c] sm:$0xf]
        %v6135 = vld [vmem:[#allocation22 + $0x50] sm:$0xf]
        %v6136 = vld [vmem:[#allocation22 + $0x54] sm:$0xf]
        %v6137 = vld [vmem:[#allocation22 + $0x58] sm:$0xf]
        %v6138 = vld [vmem:[#allocation22 + $0x5c] sm:$0xf]
        %v6139 = vld [vmem:[#allocation22 + $0x60] sm:$0xf]
        %v6140 = vld [vmem:[#allocation22 + $0x64] sm:$0xf]
        %v6141 = vld [vmem:[#allocation22 + $0x68] sm:$0xf]
        %v6142 = vld [vmem:[#allocation22 + $0x6c] sm:$0xf]
        %v6143 = vld [vmem:[#allocation22 + $0x70] sm:$0xf]
        %v6144 = vld [vmem:[#allocation22 + $0x74] sm:$0xf]
        %v6145 = vld [vmem:[#allocation22 + $0x78] sm:$0xf]
        %v6146 = vld [vmem:[#allocation22 + $0x7c] sm:$0xf]
        %v6147 = vld [vmem:[%s23] sm:$0xf]
        %v6148 = vld [vmem:[%s23 + $0x4] sm:$0xf]
        %v6149 = vld [vmem:[%s23 + $0x8] sm:$0xf]
        %v6150 = vld [vmem:[%s23 + $0xc] sm:$0xf]
        %v6151 = vld [vmem:[%s23 + $0x10] sm:$0xf]
        %v6152 = vld [vmem:[%s23 + $0x14] sm:$0xf]
        %v6153 = vld [vmem:[%s23 + $0x18] sm:$0xf]
        %v6154 = vld [vmem:[%s23 + $0x1c] sm:$0xf]
        %v6155 = vld [vmem:[%s23 + $0x20] sm:$0xf]
        %v6156 = vld [vmem:[%s23 + $0x24] sm:$0xf]
        %v6157 = vld [vmem:[%s23 + $0x28] sm:$0xf]
        %v6158 = vld [vmem:[%s23 + $0x2c] sm:$0xf]
        %v6159 = vld [vmem:[%s23 + $0x30] sm:$0xf]
        %v6160 = vld [vmem:[%s23 + $0x34] sm:$0xf]
        %v6161 = vld [vmem:[%s23 + $0x38] sm:$0xf]
        %v6162 = vld [vmem:[%s23 + $0x3c] sm:$0xf]
        %v6179 = vunpack.c.l.b16 %v6147
        %v6180 = vunpack.c.l.b16 %v6148
        %v6181 = vunpack.c.l.b16 %v6149
        %v6182 = vunpack.c.l.b16 %v6150
        %v6183 = vunpack.c.l.b16 %v6151
        %v6184 = vunpack.c.l.b16 %v6152
        %v6185 = vunpack.c.l.b16 %v6153
        %v6186 = vunpack.c.l.b16 %v6154
        %v6187 = vunpack.c.l.b16 %v6155
        %v6188 = vunpack.c.l.b16 %v6156
        %v6189 = vunpack.c.l.b16 %v6157
        %v6190 = vunpack.c.l.b16 %v6158
        %v6191 = vunpack.c.l.b16 %v6159
        %v6192 = vunpack.c.l.b16 %v6160
        %v6193 = vunpack.c.l.b16 %v6161
        %v6194 = vunpack.c.l.b16 %v6162
        %v6195 = vpack.c.b16 %v6180, %v6179
        %v6196 = vpack.c.b16 %v6182, %v6181
        %v6197 = vpack.c.b16 %v6184, %v6183
        %v6198 = vpack.c.b16 %v6186, %v6185
        %v6199 = vpack.c.b16 %v6188, %v6187
        %v6200 = vpack.c.b16 %v6190, %v6189
        %v6201 = vpack.c.b16 %v6192, %v6191
        %v6202 = vpack.c.b16 %v6194, %v6193
        %6211 = vmatprep.subr.bf16.mxu0 0
        %6212 = vmatpush1.bf16.msra.mxu0 %v6195
        %6213 = vmatprep.subr.bf16.mxu0 0
        %6214 = vmatpush1.bf16.msra.mxu0 %v6196
        %6215 = vmatprep.subr.bf16.mxu0 0
        %6216 = vmatpush1.bf16.msra.mxu0 %v6197
        %6217 = vmatprep.subr.bf16.mxu0 0
        %6218 = vmatpush1.bf16.msra.mxu0 %v6198
        %6219 = vmatprep.subr.bf16.mxu0 0
        %6220 = vmatpush1.bf16.msra.mxu0 %v6199
        %6221 = vmatprep.subr.bf16.mxu0 0
        %6222 = vmatpush1.bf16.msra.mxu0 %v6200
        %6223 = vmatprep.subr.bf16.mxu0 0
        %6224 = vmatpush1.bf16.msra.mxu0 %v6201
        %6225 = vmatprep.subr.bf16.mxu0 0
        %6226 = vmatpush1.bf16.msra.mxu0 %v6202
        %6227 = vmatprep.subr.bf16.mxu0 0
        %6228 = vmatpush1.bf16.msra.mxu0 0
        %6229 = vmatprep.subr.bf16.mxu0 0
        %6230 = vmatpush1.bf16.msra.mxu0 0
        %6231 = vmatprep.subr.bf16.mxu0 0
        %6232 = vmatpush1.bf16.msra.mxu0 0
        %6233 = vmatprep.subr.bf16.mxu0 0
        %6234 = vmatpush1.bf16.msra.mxu0 0
        %6235 = vmatprep.subr.bf16.mxu0 0
        %6236 = vmatpush1.bf16.msra.mxu0 0
        %6237 = vmatprep.subr.bf16.mxu0 0
        %6238 = vmatpush1.bf16.msra.mxu0 0
        %6239 = vmatprep.subr.bf16.mxu0 0
        %6240 = vmatpush1.bf16.msra.mxu0 0
        %6241 = vmatprep.subr.bf16.mxu0 0
        %6242 = vmatpush1.bf16.msra.mxu0 0
        %6243 = vmatprep.mubr.bf16.mxu0 0
        %6244 = vmatmul.mubr.bf16.gmra.mrb[0].mxu0 %v1153
        %v6245 = vpop.f32.mrb[0].mxu0
        %v6246 = vadd.f32 0.0, %v6245
        %v6247 = vpop.f32.mrb[0].mxu0
        %v6248 = vpop.f32.mrb[0].mxu0
        %v6249 = vadd.f32 0.0, %v6248
        %v6250 = vpop.f32.mrb[0].mxu0
        %6251 = vmatprep.mubr.bf16.mxu0 0
        %6252 = vmatmul.mubr.bf16.gmra.mrb[0].mxu0 %v1154
        %v6253 = vpop.f32.mrb[0].mxu0
        %v6254 = vadd.f32 0.0, %v6253
        %v6255 = vpop.f32.mrb[0].mxu0
        %v6256 = vpop.f32.mrb[0].mxu0
        %v6257 = vadd.f32 0.0, %v6256
        %v6258 = vpop.f32.mrb[0].mxu0
        %6259 = vmatprep.mubr.bf16.mxu0 0
        %6260 = vmatmul.mubr.bf16.gmra.mrb[0].mxu0 %v1155
        %v6261 = vpop.f32.mrb[0].mxu0
        %v6262 = vadd.f32 0.0, %v6261
        %v6263 = vpop.f32.mrb[0].mxu0
        %v6264 = vpop.f32.mrb[0].mxu0
        %v6265 = vadd.f32 0.0, %v6264
        %v6266 = vpop.f32.mrb[0].mxu0
        %6267 = vmatprep.mubr.bf16.mxu0 0
        %6268 = vmatmul.mubr.bf16.gmra.mrb[0].mxu0 %v1156
        %v6269 = vpop.f32.mrb[0].mxu0
        %v6270 = vadd.f32 0.0, %v6269
        %v6271 = vpop.f32.mrb[0].mxu0
        %v6272 = vpop.f32.mrb[0].mxu0
        %v6273 = vadd.f32 0.0, %v6272
        %v6274 = vpop.f32.mrb[0].mxu0
        %6275 = vmatprep.mubr.bf16.mxu0 0
        %6276 = vmatmul.mubr.bf16.gmra.mrb[0].mxu0 %v1157
        %v6277 = vpop.f32.mrb[0].mxu0
        %v6278 = vadd.f32 0.0, %v6277
        %v6279 = vpop.f32.mrb[0].mxu0
        %v6280 = vpop.f32.mrb[0].mxu0
        %v6281 = vadd.f32 0.0, %v6280
        %v6282 = vpop.f32.mrb[0].mxu0
        %6283 = vmatprep.mubr.bf16.mxu0 0
        %6284 = vmatmul.mubr.bf16.gmra.mrb[0].mxu0 %v1158
        %v6285 = vpop.f32.mrb[0].mxu0
        %v6286 = vadd.f32 0.0, %v6285
        %v6287 = vpop.f32.mrb[0].mxu0
        %v6288 = vpop.f32.mrb[0].mxu0
        %v6289 = vadd.f32 0.0, %v6288
        %v6290 = vpop.f32.mrb[0].mxu0
        %6291 = vmatprep.mubr.bf16.mxu0 0
        %6292 = vmatmul.mubr.bf16.gmra.mrb[0].mxu0 %v1159
        %v6293 = vpop.f32.mrb[0].mxu0
        %v6294 = vadd.f32 0.0, %v6293
        %v6295 = vpop.f32.mrb[0].mxu0
        %v6296 = vpop.f32.mrb[0].mxu0
        %v6297 = vadd.f32 0.0, %v6296
        %v6298 = vpop.f32.mrb[0].mxu0
        %6299 = vmatprep.mubr.bf16.mxu0 0
        %6300 = vmatmul.mubr.bf16.gmra.mrb[0].mxu0 %v1160
        %v6301 = vpop.f32.mrb[0].mxu0
        %v6302 = vadd.f32 0.0, %v6301
        %v6303 = vpop.f32.mrb[0].mxu0
        %v6304 = vpop.f32.mrb[0].mxu0
        %v6305 = vadd.f32 0.0, %v6304
        %v6306 = vpop.f32.mrb[0].mxu0
        %6307 = vmatprep.mubr.bf16.mxu0 0
        %6308 = vmatmul.mubr.bf16.gmra.mrb[0].mxu0 %v1161
        %v6309 = vpop.f32.mrb[0].mxu0
        %v6310 = vadd.f32 0.0, %v6309
        %v6311 = vpop.f32.mrb[0].mxu0
        %v6312 = vpop.f32.mrb[0].mxu0
        %v6313 = vadd.f32 0.0, %v6312
        %v6314 = vpop.f32.mrb[0].mxu0
        %6315 = vmatprep.mubr.bf16.mxu0 0
        %6316 = vmatmul.mubr.bf16.gmra.mrb[0].mxu0 %v1162
        %v6317 = vpop.f32.mrb[0].mxu0
        %v6318 = vadd.f32 0.0, %v6317
        %v6319 = vpop.f32.mrb[0].mxu0
        %v6320 = vpop.f32.mrb[0].mxu0
        %v6321 = vadd.f32 0.0, %v6320
        %v6322 = vpop.f32.mrb[0].mxu0
        %6323 = vmatprep.mubr.bf16.mxu0 0
        %6324 = vmatmul.mubr.bf16.gmra.mrb[0].mxu0 %v1163
        %v6325 = vpop.f32.mrb[0].mxu0
        %v6326 = vadd.f32 0.0, %v6325
        %v6327 = vpop.f32.mrb[0].mxu0
        %v6328 = vpop.f32.mrb[0].mxu0
        %v6329 = vadd.f32 0.0, %v6328
        %v6330 = vpop.f32.mrb[0].mxu0
        %6331 = vmatprep.mubr.bf16.mxu0 0
        %6332 = vmatmul.mubr.bf16.gmra.mrb[0].mxu0 %v1164
        %v6333 = vpop.f32.mrb[0].mxu0
        %v6334 = vadd.f32 0.0, %v6333
        %v6335 = vpop.f32.mrb[0].mxu0
        %v6336 = vpop.f32.mrb[0].mxu0
        %v6337 = vadd.f32 0.0, %v6336
        %v6338 = vpop.f32.mrb[0].mxu0
        %6339 = vmatprep.mubr.bf16.mxu0 0
        %6340 = vmatmul.mubr.bf16.gmra.mrb[0].mxu0 %v1165
        %v6341 = vpop.f32.mrb[0].mxu0
        %v6342 = vadd.f32 0.0, %v6341
        %v6343 = vpop.f32.mrb[0].mxu0
        %v6344 = vpop.f32.mrb[0].mxu0
        %v6345 = vadd.f32 0.0, %v6344
        %v6346 = vpop.f32.mrb[0].mxu0
        %6347 = vmatprep.mubr.bf16.mxu0 0
        %6348 = vmatmul.mubr.bf16.gmra.mrb[0].mxu0 %v1166
        %v6349 = vpop.f32.mrb[0].mxu0
        %v6350 = vadd.f32 0.0, %v6349
        %v6351 = vpop.f32.mrb[0].mxu0
        %v6352 = vpop.f32.mrb[0].mxu0
        %v6353 = vadd.f32 0.0, %v6352
        %v6354 = vpop.f32.mrb[0].mxu0
        %6355 = vmatprep.mubr.bf16.mxu0 0
        %6356 = vmatmul.mubr.bf16.gmra.mrb[0].mxu0 %v1167
        %v6357 = vpop.f32.mrb[0].mxu0
        %v6358 = vadd.f32 0.0, %v6357
        %v6359 = vpop.f32.mrb[0].mxu0
        %v6360 = vpop.f32.mrb[0].mxu0
        %v6361 = vadd.f32 0.0, %v6360
        %v6362 = vpop.f32.mrb[0].mxu0
        %6363 = vmatprep.mubr.bf16.mxu0 0
        %6364 = vmatmul.mubr.bf16.gmra.mrb[0].mxu0 %v1168
        %v6365 = vpop.f32.mrb[0].mxu0
        %v6366 = vadd.f32 0.0, %v6365
        %v6367 = vpop.f32.mrb[0].mxu0
        %v6368 = vpop.f32.mrb[0].mxu0
        %v6369 = vadd.f32 0.0, %v6368
        %v6370 = vpop.f32.mrb[0].mxu0
        %6371 = vdwg.mxu0
        %v6404 = vunpack.c.l.b16 %v6115
        %v6405 = vunpack.c.l.b16 %v6116
        %v6406 = vunpack.c.l.b16 %v6117
        %v6407 = vunpack.c.l.b16 %v6118
        %v6408 = vunpack.c.l.b16 %v6119
        %v6409 = vunpack.c.l.b16 %v6120
        %v6410 = vunpack.c.l.b16 %v6121
        %v6411 = vunpack.c.l.b16 %v6122
        %v6412 = vunpack.c.l.b16 %v6123
        %v6413 = vunpack.c.l.b16 %v6124
        %v6414 = vunpack.c.l.b16 %v6125
        %v6415 = vunpack.c.l.b16 %v6126
        %v6416 = vunpack.c.l.b16 %v6127
        %v6417 = vunpack.c.l.b16 %v6128
        %v6418 = vunpack.c.l.b16 %v6129
        %v6419 = vunpack.c.l.b16 %v6130
        %v6420 = vunpack.c.l.b16 %v6131
        %v6421 = vunpack.c.l.b16 %v6132
        %v6422 = vunpack.c.l.b16 %v6133
        %v6423 = vunpack.c.l.b16 %v6134
        %v6424 = vunpack.c.l.b16 %v6135
        %v6425 = vunpack.c.l.b16 %v6136
        %v6426 = vunpack.c.l.b16 %v6137
        %v6427 = vunpack.c.l.b16 %v6138
        %v6428 = vunpack.c.l.b16 %v6139
        %v6429 = vunpack.c.l.b16 %v6140
        %v6430 = vunpack.c.l.b16 %v6141
        %v6431 = vunpack.c.l.b16 %v6142
        %v6432 = vunpack.c.l.b16 %v6143
        %v6433 = vunpack.c.l.b16 %v6144
        %v6434 = vunpack.c.l.b16 %v6145
        %v6435 = vunpack.c.l.b16 %v6146
        %v6436 = vpack.c.b16 %v6405, %v6404
        %v6437 = vpack.c.b16 %v6407, %v6406
        %v6438 = vpack.c.b16 %v6409, %v6408
        %v6439 = vpack.c.b16 %v6411, %v6410
        %v6440 = vpack.c.b16 %v6413, %v6412
        %v6441 = vpack.c.b16 %v6415, %v6414
        %v6442 = vpack.c.b16 %v6417, %v6416
        %v6443 = vpack.c.b16 %v6419, %v6418
        %v6444 = vpack.c.b16 %v6421, %v6420
        %v6445 = vpack.c.b16 %v6423, %v6422
        %v6446 = vpack.c.b16 %v6425, %v6424
        %v6447 = vpack.c.b16 %v6427, %v6426
        %v6448 = vpack.c.b16 %v6429, %v6428
        %v6449 = vpack.c.b16 %v6431, %v6430
        %v6450 = vpack.c.b16 %v6433, %v6432
        %v6451 = vpack.c.b16 %v6435, %v6434
        %6468 = vmatprep.subr.bf16.mxu0 0
        %6469 = vmatpush1.bf16.msra.mxu0 %v6436
        %6470 = vmatprep.subr.bf16.mxu0 0
        %6471 = vmatpush1.bf16.msra.mxu0 %v6437
        %6472 = vmatprep.subr.bf16.mxu0 0
        %6473 = vmatpush1.bf16.msra.mxu0 %v6438
        %6474 = vmatprep.subr.bf16.mxu0 0
        %6475 = vmatpush1.bf16.msra.mxu0 %v6439
        %6476 = vmatprep.subr.bf16.mxu0 0
        %6477 = vmatpush1.bf16.msra.mxu0 %v6440
        %6478 = vmatprep.subr.bf16.mxu0 0
        %6479 = vmatpush1.bf16.msra.mxu0 %v6441
        %6480 = vmatprep.subr.bf16.mxu0 0
        %6481 = vmatpush1.bf16.msra.mxu0 %v6442
        %6482 = vmatprep.subr.bf16.mxu0 0
        %6483 = vmatpush1.bf16.msra.mxu0 %v6443
        %6484 = vmatprep.subr.bf16.mxu0 0
        %6485 = vmatpush1.bf16.msra.mxu0 %v6444
        %6486 = vmatprep.subr.bf16.mxu0 0
        %6487 = vmatpush1.bf16.msra.mxu0 %v6445
        %6488 = vmatprep.subr.bf16.mxu0 0
        %6489 = vmatpush1.bf16.msra.mxu0 %v6446
        %6490 = vmatprep.subr.bf16.mxu0 0
        %6491 = vmatpush1.bf16.msra.mxu0 %v6447
        %6492 = vmatprep.subr.bf16.mxu0 0
        %6493 = vmatpush1.bf16.msra.mxu0 %v6448
        %6494 = vmatprep.subr.bf16.mxu0 0
        %6495 = vmatpush1.bf16.msra.mxu0 %v6449
        %6496 = vmatprep.subr.bf16.mxu0 0
        %6497 = vmatpush1.bf16.msra.mxu0 %v6450
        %6498 = vmatprep.subr.bf16.mxu0 0
        %6499 = vmatpush1.bf16.msra.mxu0 %v6451
        %6500 = vmatprep.mubr.bf16.mxu0 %v6084
        %6501 = vmatmul.mubr.bf16.gmra.mrb[0].mxu0 %v6083
        %v6502 = vpop.f32.mrb[0].mxu0
        %v6503 = vadd.f32 %v6246, %v6502
        %v6504 = vpop.f32.mrb[0].mxu0
        %v6505 = vpop.f32.mrb[0].mxu0
        %v6506 = vadd.f32 %v6249, %v6505
        %v6507 = vpop.f32.mrb[0].mxu0
        %6508 = vmatprep.mubr.bf16.mxu0 %v6086
        %6509 = vmatmul.mubr.bf16.gmra.mrb[0].mxu0 %v6085
        %v6510 = vpop.f32.mrb[0].mxu0
        %v6511 = vadd.f32 %v6254, %v6510
        %v6512 = vpop.f32.mrb[0].mxu0
        %v6513 = vpop.f32.mrb[0].mxu0
        %v6514 = vadd.f32 %v6257, %v6513
        %v6515 = vpop.f32.mrb[0].mxu0
        %6516 = vmatprep.mubr.bf16.mxu0 %v6088
        %6517 = vmatmul.mubr.bf16.gmra.mrb[0].mxu0 %v6087
        %v6518 = vpop.f32.mrb[0].mxu0
        %v6519 = vadd.f32 %v6262, %v6518
        %v6520 = vpop.f32.mrb[0].mxu0
        %v6521 = vpop.f32.mrb[0].mxu0
        %v6522 = vadd.f32 %v6265, %v6521
        %v6523 = vpop.f32.mrb[0].mxu0
        %6524 = vmatprep.mubr.bf16.mxu0 %v6090
        %6525 = vmatmul.mubr.bf16.gmra.mrb[0].mxu0 %v6089
        %v6526 = vpop.f32.mrb[0].mxu0
        %v6527 = vadd.f32 %v6270, %v6526
        %v6528 = vpop.f32.mrb[0].mxu0
        %v6529 = vpop.f32.mrb[0].mxu0
        %v6530 = vadd.f32 %v6273, %v6529
        %v6531 = vpop.f32.mrb[0].mxu0
        %6532 = vmatprep.mubr.bf16.mxu0 %v6092
        %6533 = vmatmul.mubr.bf16.gmra.mrb[0].mxu0 %v6091
        %v6534 = vpop.f32.mrb[0].mxu0
        %v6535 = vadd.f32 %v6278, %v6534
        %v6536 = vpop.f32.mrb[0].mxu0
        %v6537 = vpop.f32.mrb[0].mxu0
        %v6538 = vadd.f32 %v6281, %v6537
        %v6539 = vpop.f32.mrb[0].mxu0
        %6540 = vmatprep.mubr.bf16.mxu0 %v6094
        %6541 = vmatmul.mubr.bf16.gmra.mrb[0].mxu0 %v6093
        %v6542 = vpop.f32.mrb[0].mxu0
        %v6543 = vadd.f32 %v6286, %v6542
        %v6544 = vpop.f32.mrb[0].mxu0
        %v6545 = vpop.f32.mrb[0].mxu0
        %v6546 = vadd.f32 %v6289, %v6545
        %v6547 = vpop.f32.mrb[0].mxu0
        %6548 = vmatprep.mubr.bf16.mxu0 %v6096
        %6549 = vmatmul.mubr.bf16.gmra.mrb[0].mxu0 %v6095
        %v6550 = vpop.f32.mrb[0].mxu0
        %v6551 = vadd.f32 %v6294, %v6550
        %v6552 = vpop.f32.mrb[0].mxu0
        %v6553 = vpop.f32.mrb[0].mxu0
        %v6554 = vadd.f32 %v6297, %v6553
        %v6555 = vpop.f32.mrb[0].mxu0
        %6556 = vmatprep.mubr.bf16.mxu0 %v6098
        %6557 = vmatmul.mubr.bf16.gmra.mrb[0].mxu0 %v6097
        %v6558 = vpop.f32.mrb[0].mxu0
        %v6559 = vadd.f32 %v6302, %v6558
        %v6560 = vpop.f32.mrb[0].mxu0
        %v6561 = vpop.f32.mrb[0].mxu0
        %v6562 = vadd.f32 %v6305, %v6561
        %v6563 = vpop.f32.mrb[0].mxu0
        %6564 = vmatprep.mubr.bf16.mxu0 %v6100
        %6565 = vmatmul.mubr.bf16.gmra.mrb[0].mxu0 %v6099
        %v6566 = vpop.f32.mrb[0].mxu0
        %v6567 = vadd.f32 %v6310, %v6566
        %v6568 = vpop.f32.mrb[0].mxu0
        %v6569 = vpop.f32.mrb[0].mxu0
        %v6570 = vadd.f32 %v6313, %v6569
        %v6571 = vpop.f32.mrb[0].mxu0
        %6572 = vmatprep.mubr.bf16.mxu0 %v6102
        %6573 = vmatmul.mubr.bf16.gmra.mrb[0].mxu0 %v6101
        %v6574 = vpop.f32.mrb[0].mxu0
        %v6575 = vadd.f32 %v6318, %v6574
        %v6576 = vpop.f32.mrb[0].mxu0
        %v6577 = vpop.f32.mrb[0].mxu0
        %v6578 = vadd.f32 %v6321, %v6577
        %v6579 = vpop.f32.mrb[0].mxu0
        %6580 = vmatprep.mubr.bf16.mxu0 %v6104
        %6581 = vmatmul.mubr.bf16.gmra.mrb[0].mxu0 %v6103
        %v6582 = vpop.f32.mrb[0].mxu0
        %v6583 = vadd.f32 %v6326, %v6582
        %v6584 = vpop.f32.mrb[0].mxu0
        %v6585 = vpop.f32.mrb[0].mxu0
        %v6586 = vadd.f32 %v6329, %v6585
        %v6587 = vpop.f32.mrb[0].mxu0
        %6588 = vmatprep.mubr.bf16.mxu0 %v6106
        %6589 = vmatmul.mubr.bf16.gmra.mrb[0].mxu0 %v6105
        %v6590 = vpop.f32.mrb[0].mxu0
        %v6591 = vadd.f32 %v6334, %v6590
        %v6592 = vpop.f32.mrb[0].mxu0
        %v6593 = vpop.f32.mrb[0].mxu0
        %v6594 = vadd.f32 %v6337, %v6593
        %v6595 = vpop.f32.mrb[0].mxu0
        %6596 = vmatprep.mubr.bf16.mxu0 %v6108
        %6597 = vmatmul.mubr.bf16.gmra.mrb[0].mxu0 %v6107
        %v6598 = vpop.f32.mrb[0].mxu0
        %v6599 = vadd.f32 %v6342, %v6598
        %v6600 = vpop.f32.mrb[0].mxu0
        %v6601 = vpop.f32.mrb[0].mxu0
        %v6602 = vadd.f32 %v6345, %v6601
        %v6603 = vpop.f32.mrb[0].mxu0
        %6604 = vmatprep.mubr.bf16.mxu0 %v6110
        %6605 = vmatmul.mubr.bf16.gmra.mrb[0].mxu0 %v6109
        %v6606 = vpop.f32.mrb[0].mxu0
        %v6607 = vadd.f32 %v6350, %v6606
        %v6608 = vpop.f32.mrb[0].mxu0
        %v6609 = vpop.f32.mrb[0].mxu0
        %v6610 = vadd.f32 %v6353, %v6609
        %v6611 = vpop.f32.mrb[0].mxu0
        %6612 = vmatprep.mubr.bf16.mxu0 %v6112
        %6613 = vmatmul.mubr.bf16.gmra.mrb[0].mxu0 %v6111
        %v6614 = vpop.f32.mrb[0].mxu0
        %v6615 = vadd.f32 %v6358, %v6614
        %v6616 = vpop.f32.mrb[0].mxu0
        %v6617 = vpop.f32.mrb[0].mxu0
        %v6618 = vadd.f32 %v6361, %v6617
        %v6619 = vpop.f32.mrb[0].mxu0
        %6620 = vmatprep.mubr.bf16.mxu0 %v6114
        %6621 = vmatmul.mubr.bf16.gmra.mrb[0].mxu0 %v6113
        %v6622 = vpop.f32.mrb[0].mxu0
        %v6623 = vadd.f32 %v6366, %v6622
        %v6624 = vpop.f32.mrb[0].mxu0
        %v6625 = vpop.f32.mrb[0].mxu0
        %v6626 = vadd.f32 %v6369, %v6625
        %v6627 = vpop.f32.mrb[0].mxu0
        %6628 = vdwg.mxu0
        %v6629 = vld [vmem:[%s24] sm:$0x1]
        %v6631 = vlaneseq
        %v6632 = vshrl.u32 %v6631, 7
        %v6633 = vsub.s32 0, %v6632
        %v6634 = vrot.slane %v6629, %v6633
        %v6636 = vadd.f32 %v6503, %v6634
        %v6637 = vadd.f32 %v6506, %v6634
        %v6638 = vadd.f32 %v6511, %v6634
        %v6639 = vadd.f32 %v6514, %v6634
        %v6640 = vadd.f32 %v6519, %v6634
        %v6641 = vadd.f32 %v6522, %v6634
        %v6642 = vadd.f32 %v6527, %v6634
        %v6643 = vadd.f32 %v6530, %v6634
        %v6644 = vadd.f32 %v6535, %v6634
        %v6645 = vadd.f32 %v6538, %v6634
        %v6646 = vadd.f32 %v6543, %v6634
        %v6647 = vadd.f32 %v6546, %v6634
        %v6648 = vadd.f32 %v6551, %v6634
        %v6649 = vadd.f32 %v6554, %v6634
        %v6650 = vadd.f32 %v6559, %v6634
        %v6651 = vadd.f32 %v6562, %v6634
        %v6652 = vadd.f32 %v6567, %v6634
        %v6653 = vadd.f32 %v6570, %v6634
        %v6654 = vadd.f32 %v6575, %v6634
        %v6655 = vadd.f32 %v6578, %v6634
        %v6656 = vadd.f32 %v6583, %v6634
        %v6657 = vadd.f32 %v6586, %v6634
        %v6658 = vadd.f32 %v6591, %v6634
        %v6659 = vadd.f32 %v6594, %v6634
        %v6660 = vadd.f32 %v6599, %v6634
        %v6661 = vadd.f32 %v6602, %v6634
        %v6662 = vadd.f32 %v6607, %v6634
        %v6663 = vadd.f32 %v6610, %v6634
        %v6664 = vadd.f32 %v6615, %v6634
        %v6665 = vadd.f32 %v6618, %v6634
        %v6666 = vadd.f32 %v6623, %v6634
        %v6667 = vadd.f32 %v6626, %v6634
        %v6668 = vmax.f32 %v6636, 0.0
        %v6669 = vmax.f32 %v6637, 0.0
        %v6670 = vmax.f32 %v6638, 0.0
        %v6671 = vmax.f32 %v6639, 0.0
        %v6672 = vmax.f32 %v6640, 0.0
        %v6673 = vmax.f32 %v6641, 0.0
        %v6674 = vmax.f32 %v6642, 0.0
        %v6675 = vmax.f32 %v6643, 0.0
        %v6676 = vmax.f32 %v6644, 0.0
        %v6677 = vmax.f32 %v6645, 0.0
        %v6678 = vmax.f32 %v6646, 0.0
        %v6679 = vmax.f32 %v6647, 0.0
        %v6680 = vmax.f32 %v6648, 0.0
        %v6681 = vmax.f32 %v6649, 0.0
        %v6682 = vmax.f32 %v6650, 0.0
        %v6683 = vmax.f32 %v6651, 0.0
        %v6684 = vmax.f32 %v6652, 0.0
        %v6685 = vmax.f32 %v6653, 0.0
        %v6686 = vmax.f32 %v6654, 0.0
        %v6687 = vmax.f32 %v6655, 0.0
        %v6688 = vmax.f32 %v6656, 0.0
        %v6689 = vmax.f32 %v6657, 0.0
        %v6690 = vmax.f32 %v6658, 0.0
        %v6691 = vmax.f32 %v6659, 0.0
        %v6692 = vmax.f32 %v6660, 0.0
        %v6693 = vmax.f32 %v6661, 0.0
        %v6694 = vmax.f32 %v6662, 0.0
        %v6695 = vmax.f32 %v6663, 0.0
        %v6696 = vmax.f32 %v6664, 0.0
        %v6697 = vmax.f32 %v6665, 0.0
        %v6698 = vmax.f32 %v6666, 0.0
        %v6699 = vmax.f32 %v6667, 0.0
        %v6700 = vpack.c.bf16 %v6669, %v6668
        %v6701 = vpack.c.bf16 %v6671, %v6670
        %v6702 = vpack.c.bf16 %v6673, %v6672
        %v6703 = vpack.c.bf16 %v6675, %v6674
        %v6704 = vpack.c.bf16 %v6677, %v6676
        %v6705 = vpack.c.bf16 %v6679, %v6678
        %v6706 = vpack.c.bf16 %v6681, %v6680
        %v6707 = vpack.c.bf16 %v6683, %v6682
        %v6708 = vpack.c.bf16 %v6685, %v6684
        %v6709 = vpack.c.bf16 %v6687, %v6686
        %v6710 = vpack.c.bf16 %v6689, %v6688
        %v6711 = vpack.c.bf16 %v6691, %v6690
        %v6712 = vpack.c.bf16 %v6693, %v6692
        %v6713 = vpack.c.bf16 %v6695, %v6694
        %v6714 = vpack.c.bf16 %v6697, %v6696
        %v6715 = vpack.c.bf16 %v6699, %v6698
        %v6716 = vld [vmem:[#allocation23] sm:$0xf]
        %v6717 = vld [vmem:[#allocation23 + $0x4] sm:$0xf]
        %v6718 = vld [vmem:[#allocation23 + $0x8] sm:$0xf]
        %v6719 = vld [vmem:[#allocation23 + $0xc] sm:$0xf]
        %v6720 = vld [vmem:[#allocation23 + $0x10] sm:$0xf]
        %v6721 = vld [vmem:[#allocation23 + $0x14] sm:$0xf]
        %v6722 = vld [vmem:[#allocation23 + $0x18] sm:$0xf]
        %v6723 = vld [vmem:[#allocation23 + $0x1c] sm:$0xf]
        %v6724 = vld [vmem:[#allocation23 + $0x20] sm:$0xf]
        %v6725 = vld [vmem:[#allocation23 + $0x24] sm:$0xf]
        %v6726 = vld [vmem:[#allocation23 + $0x28] sm:$0xf]
        %v6727 = vld [vmem:[#allocation23 + $0x2c] sm:$0xf]
        %v6728 = vld [vmem:[#allocation23 + $0x30] sm:$0xf]
        %v6729 = vld [vmem:[#allocation23 + $0x34] sm:$0xf]
        %v6730 = vld [vmem:[#allocation23 + $0x38] sm:$0xf]
        %v6731 = vld [vmem:[#allocation23 + $0x3c] sm:$0xf]
        %v6732 = vld [vmem:[%s26] sm:$0x1]
        %v6734 = vlaneseq
        %v6735 = vshrl.u32 %v6734, 7
        %v6736 = vsub.s32 0, %v6735
        %v6737 = vrot.slane %v6732, %v6736
        %v6755 = vunpack.c.l.b16 %v6716
        %v6756 = vunpack.c.l.b16 %v6717
        %v6757 = vunpack.c.l.b16 %v6718
        %v6758 = vunpack.c.l.b16 %v6719
        %v6759 = vunpack.c.l.b16 %v6720
        %v6760 = vunpack.c.l.b16 %v6721
        %v6761 = vunpack.c.l.b16 %v6722
        %v6762 = vunpack.c.l.b16 %v6723
        %v6763 = vunpack.c.l.b16 %v6724
        %v6764 = vunpack.c.l.b16 %v6725
        %v6765 = vunpack.c.l.b16 %v6726
        %v6766 = vunpack.c.l.b16 %v6727
        %v6767 = vunpack.c.l.b16 %v6728
        %v6768 = vunpack.c.l.b16 %v6729
        %v6769 = vunpack.c.l.b16 %v6730
        %v6770 = vunpack.c.l.b16 %v6731
        %v6771 = vpack.c.b16 %v6756, %v6755
        %v6772 = vpack.c.b16 %v6758, %v6757
        %v6773 = vpack.c.b16 %v6760, %v6759
        %v6774 = vpack.c.b16 %v6762, %v6761
        %v6775 = vpack.c.b16 %v6764, %v6763
        %v6776 = vpack.c.b16 %v6766, %v6765
        %v6777 = vpack.c.b16 %v6768, %v6767
        %v6778 = vpack.c.b16 %v6770, %v6769
        %6787 = vmatprep.subr.bf16.mxu0 0
        %6788 = vmatpush1.bf16.msra.mxu0 %v6771
        %6789 = vmatprep.subr.bf16.mxu0 0
        %6790 = vmatpush1.bf16.msra.mxu0 %v6772
        %6791 = vmatprep.subr.bf16.mxu0 0
        %6792 = vmatpush1.bf16.msra.mxu0 %v6773
        %6793 = vmatprep.subr.bf16.mxu0 0
        %6794 = vmatpush1.bf16.msra.mxu0 %v6774
        %6795 = vmatprep.subr.bf16.mxu0 0
        %6796 = vmatpush1.bf16.msra.mxu0 %v6775
        %6797 = vmatprep.subr.bf16.mxu0 0
        %6798 = vmatpush1.bf16.msra.mxu0 %v6776
        %6799 = vmatprep.subr.bf16.mxu0 0
        %6800 = vmatpush1.bf16.msra.mxu0 %v6777
        %6801 = vmatprep.subr.bf16.mxu0 0
        %6802 = vmatpush1.bf16.msra.mxu0 %v6778
        %6803 = vmatprep.subr.bf16.mxu0 0
        %6804 = vmatpush1.bf16.msra.mxu0 0
        %6805 = vmatprep.subr.bf16.mxu0 0
        %6806 = vmatpush1.bf16.msra.mxu0 0
        %6807 = vmatprep.subr.bf16.mxu0 0
        %6808 = vmatpush1.bf16.msra.mxu0 0
        %6809 = vmatprep.subr.bf16.mxu0 0
        %6810 = vmatpush1.bf16.msra.mxu0 0
        %6811 = vmatprep.subr.bf16.mxu0 0
        %6812 = vmatpush1.bf16.msra.mxu0 0
        %6813 = vmatprep.subr.bf16.mxu0 0
        %6814 = vmatpush1.bf16.msra.mxu0 0
        %6815 = vmatprep.subr.bf16.mxu0 0
        %6816 = vmatpush1.bf16.msra.mxu0 0
        %6817 = vmatprep.subr.bf16.mxu0 0
        %6818 = vmatpush1.bf16.msra.mxu0 0
        %6819 = vmatprep.mubr.bf16.mxu0 0
        %6820 = vmatmul.mubr.bf16.gmra.mrb[0].mxu0 %v6700
        %v6821 = vpop.f32.mrb[0].mxu0
        %v6822 = vadd.f32 %v6737, %v6821
        %v6823 = vpop.f32.mrb[0].mxu0
        %v6824 = vpop.f32.mrb[0].mxu0
        %v6825 = vadd.f32 %v6737, %v6824
        %v6826 = vpop.f32.mrb[0].mxu0
        %6827 = vmatprep.mubr.bf16.mxu0 0
        %6828 = vmatmul.mubr.bf16.gmra.mrb[0].mxu0 %v6701
        %v6829 = vpop.f32.mrb[0].mxu0
        %v6830 = vadd.f32 %v6737, %v6829
        %v6831 = vpop.f32.mrb[0].mxu0
        %v6832 = vpop.f32.mrb[0].mxu0
        %v6833 = vadd.f32 %v6737, %v6832
        %v6834 = vpop.f32.mrb[0].mxu0
        %6835 = vmatprep.mubr.bf16.mxu0 0
        %6836 = vmatmul.mubr.bf16.gmra.mrb[0].mxu0 %v6702
        %v6837 = vpop.f32.mrb[0].mxu0
        %v6838 = vadd.f32 %v6737, %v6837
        %v6839 = vpop.f32.mrb[0].mxu0
        %v6840 = vpop.f32.mrb[0].mxu0
        %v6841 = vadd.f32 %v6737, %v6840
        %v6842 = vpop.f32.mrb[0].mxu0
        %6843 = vmatprep.mubr.bf16.mxu0 0
        %6844 = vmatmul.mubr.bf16.gmra.mrb[0].mxu0 %v6703
        %v6845 = vpop.f32.mrb[0].mxu0
        %v6846 = vadd.f32 %v6737, %v6845
        %v6847 = vpop.f32.mrb[0].mxu0
        %v6848 = vpop.f32.mrb[0].mxu0
        %v6849 = vadd.f32 %v6737, %v6848
        %v6850 = vpop.f32.mrb[0].mxu0
        %6851 = vmatprep.mubr.bf16.mxu0 0
        %6852 = vmatmul.mubr.bf16.gmra.mrb[0].mxu0 %v6704
        %v6853 = vpop.f32.mrb[0].mxu0
        %v6854 = vadd.f32 %v6737, %v6853
        %v6855 = vpop.f32.mrb[0].mxu0
        %v6856 = vpop.f32.mrb[0].mxu0
        %v6857 = vadd.f32 %v6737, %v6856
        %v6858 = vpop.f32.mrb[0].mxu0
        %6859 = vmatprep.mubr.bf16.mxu0 0
        %6860 = vmatmul.mubr.bf16.gmra.mrb[0].mxu0 %v6705
        %v6861 = vpop.f32.mrb[0].mxu0
        %v6862 = vadd.f32 %v6737, %v6861
        %v6863 = vpop.f32.mrb[0].mxu0
        %v6864 = vpop.f32.mrb[0].mxu0
        %v6865 = vadd.f32 %v6737, %v6864
        %v6866 = vpop.f32.mrb[0].mxu0
        %6867 = vmatprep.mubr.bf16.mxu0 0
        %6868 = vmatmul.mubr.bf16.gmra.mrb[0].mxu0 %v6706
        %v6869 = vpop.f32.mrb[0].mxu0
        %v6870 = vadd.f32 %v6737, %v6869
        %v6871 = vpop.f32.mrb[0].mxu0
        %v6872 = vpop.f32.mrb[0].mxu0
        %v6873 = vadd.f32 %v6737, %v6872
        %v6874 = vpop.f32.mrb[0].mxu0
        %6875 = vmatprep.mubr.bf16.mxu0 0
        %6876 = vmatmul.mubr.bf16.gmra.mrb[0].mxu0 %v6707
        %v6877 = vpop.f32.mrb[0].mxu0
        %v6878 = vadd.f32 %v6737, %v6877
        %v6879 = vpop.f32.mrb[0].mxu0
        %v6880 = vpop.f32.mrb[0].mxu0
        %v6881 = vadd.f32 %v6737, %v6880
        %v6882 = vpop.f32.mrb[0].mxu0
        %6883 = vmatprep.mubr.bf16.mxu0 0
        %6884 = vmatmul.mubr.bf16.gmra.mrb[0].mxu0 %v6708
        %v6885 = vpop.f32.mrb[0].mxu0
        %v6886 = vadd.f32 %v6737, %v6885
        %v6887 = vpop.f32.mrb[0].mxu0
        %v6888 = vpop.f32.mrb[0].mxu0
        %v6889 = vadd.f32 %v6737, %v6888
        %v6890 = vpop.f32.mrb[0].mxu0
        %6891 = vmatprep.mubr.bf16.mxu0 0
        %6892 = vmatmul.mubr.bf16.gmra.mrb[0].mxu0 %v6709
        %v6893 = vpop.f32.mrb[0].mxu0
        %v6894 = vadd.f32 %v6737, %v6893
        %v6895 = vpop.f32.mrb[0].mxu0
        %v6896 = vpop.f32.mrb[0].mxu0
        %v6897 = vadd.f32 %v6737, %v6896
        %v6898 = vpop.f32.mrb[0].mxu0
        %6899 = vmatprep.mubr.bf16.mxu0 0
        %6900 = vmatmul.mubr.bf16.gmra.mrb[0].mxu0 %v6710
        %v6901 = vpop.f32.mrb[0].mxu0
        %v6902 = vadd.f32 %v6737, %v6901
        %v6903 = vpop.f32.mrb[0].mxu0
        %v6904 = vpop.f32.mrb[0].mxu0
        %v6905 = vadd.f32 %v6737, %v6904
        %v6906 = vpop.f32.mrb[0].mxu0
        %6907 = vmatprep.mubr.bf16.mxu0 0
        %6908 = vmatmul.mubr.bf16.gmra.mrb[0].mxu0 %v6711
        %v6909 = vpop.f32.mrb[0].mxu0
        %v6910 = vadd.f32 %v6737, %v6909
        %v6911 = vpop.f32.mrb[0].mxu0
        %v6912 = vpop.f32.mrb[0].mxu0
        %v6913 = vadd.f32 %v6737, %v6912
        %v6914 = vpop.f32.mrb[0].mxu0
        %6915 = vmatprep.mubr.bf16.mxu0 0
        %6916 = vmatmul.mubr.bf16.gmra.mrb[0].mxu0 %v6712
        %v6917 = vpop.f32.mrb[0].mxu0
        %v6918 = vadd.f32 %v6737, %v6917
        %v6919 = vpop.f32.mrb[0].mxu0
        %v6920 = vpop.f32.mrb[0].mxu0
        %v6921 = vadd.f32 %v6737, %v6920
        %v6922 = vpop.f32.mrb[0].mxu0
        %6923 = vmatprep.mubr.bf16.mxu0 0
        %6924 = vmatmul.mubr.bf16.gmra.mrb[0].mxu0 %v6713
        %v6925 = vpop.f32.mrb[0].mxu0
        %v6926 = vadd.f32 %v6737, %v6925
        %v6927 = vpop.f32.mrb[0].mxu0
        %v6928 = vpop.f32.mrb[0].mxu0
        %v6929 = vadd.f32 %v6737, %v6928
        %v6930 = vpop.f32.mrb[0].mxu0
        %6931 = vmatprep.mubr.bf16.mxu0 0
        %6932 = vmatmul.mubr.bf16.gmra.mrb[0].mxu0 %v6714
        %v6933 = vpop.f32.mrb[0].mxu0
        %v6934 = vadd.f32 %v6737, %v6933
        %v6935 = vpop.f32.mrb[0].mxu0
        %v6936 = vpop.f32.mrb[0].mxu0
        %v6937 = vadd.f32 %v6737, %v6936
        %v6938 = vpop.f32.mrb[0].mxu0
        %6939 = vmatprep.mubr.bf16.mxu0 0
        %6940 = vmatmul.mubr.bf16.gmra.mrb[0].mxu0 %v6715
        %v6941 = vpop.f32.mrb[0].mxu0
        %v6942 = vadd.f32 %v6737, %v6941
        %v6943 = vpop.f32.mrb[0].mxu0
        %v6944 = vpop.f32.mrb[0].mxu0
        %v6945 = vadd.f32 %v6737, %v6944
        %v6946 = vpop.f32.mrb[0].mxu0
        %6947 = vdwg.mxu0
        %v6948 = vxor.u32 %v6822, 2147483648
        %v6949 = vxor.u32 %v6825, 2147483648
        %v6950 = vxor.u32 %v6830, 2147483648
        %v6951 = vxor.u32 %v6833, 2147483648
        %v6952 = vxor.u32 %v6838, 2147483648
        %v6953 = vxor.u32 %v6841, 2147483648
        %v6954 = vxor.u32 %v6846, 2147483648
        %v6955 = vxor.u32 %v6849, 2147483648
        %v6956 = vxor.u32 %v6854, 2147483648
        %v6957 = vxor.u32 %v6857, 2147483648
        %v6958 = vxor.u32 %v6862, 2147483648
        %v6959 = vxor.u32 %v6865, 2147483648
        %v6960 = vxor.u32 %v6870, 2147483648
        %v6961 = vxor.u32 %v6873, 2147483648
        %v6962 = vxor.u32 %v6878, 2147483648
        %v6963 = vxor.u32 %v6881, 2147483648
        %v6964 = vxor.u32 %v6886, 2147483648
        %v6965 = vxor.u32 %v6889, 2147483648
        %v6966 = vxor.u32 %v6894, 2147483648
        %v6967 = vxor.u32 %v6897, 2147483648
        %v6968 = vxor.u32 %v6902, 2147483648
        %v6969 = vxor.u32 %v6905, 2147483648
        %v6970 = vxor.u32 %v6910, 2147483648
        %v6971 = vxor.u32 %v6913, 2147483648
        %v6972 = vxor.u32 %v6918, 2147483648
        %v6973 = vxor.u32 %v6921, 2147483648
        %v6974 = vxor.u32 %v6926, 2147483648
        %v6975 = vxor.u32 %v6929, 2147483648
        %v6976 = vxor.u32 %v6934, 2147483648
        %v6977 = vxor.u32 %v6937, 2147483648
        %v6978 = vxor.u32 %v6942, 2147483648
        %v6979 = vxor.u32 %v6945, 2147483648
        %v6980 = vmul.f32 %v6948, 1.442695
        %v6981 = vpow.pop %v6980
        %v6982 = vmul.f32 %v6949, 1.442695
        %v6983 = vpow.pop %v6982
        %v6984 = vmul.f32 %v6950, 1.442695
        %v6985 = vpow.pop %v6984
        %v6986 = vmul.f32 %v6951, 1.442695
        %v6987 = vpow.pop %v6986
        %v6988 = vmul.f32 %v6952, 1.442695
        %v6989 = vpow.pop %v6988
        %v6990 = vmul.f32 %v6953, 1.442695
        %v6991 = vpow.pop %v6990
        %v6992 = vmul.f32 %v6954, 1.442695
        %v6993 = vpow.pop %v6992
        %v6994 = vmul.f32 %v6955, 1.442695
        %v6995 = vpow.pop %v6994
        %v6996 = vmul.f32 %v6956, 1.442695
        %v6997 = vpow.pop %v6996
        %v6998 = vmul.f32 %v6957, 1.442695
        %v6999 = vpow.pop %v6998
        %v7000 = vmul.f32 %v6958, 1.442695
        %v7001 = vpow.pop %v7000
        %v7002 = vmul.f32 %v6959, 1.442695
        %v7003 = vpow.pop %v7002
        %v7004 = vmul.f32 %v6960, 1.442695
        %v7005 = vpow.pop %v7004
        %v7006 = vmul.f32 %v6961, 1.442695
        %v7007 = vpow.pop %v7006
        %v7008 = vmul.f32 %v6962, 1.442695
        %v7009 = vpow.pop %v7008
        %v7010 = vmul.f32 %v6963, 1.442695
        %v7011 = vpow.pop %v7010
        %v7012 = vmul.f32 %v6964, 1.442695
        %v7013 = vpow.pop %v7012
        %v7014 = vmul.f32 %v6965, 1.442695
        %v7015 = vpow.pop %v7014
        %v7016 = vmul.f32 %v6966, 1.442695
        %v7017 = vpow.pop %v7016
        %v7018 = vmul.f32 %v6967, 1.442695
        %v7019 = vpow.pop %v7018
        %v7020 = vmul.f32 %v6968, 1.442695
        %v7021 = vpow.pop %v7020
        %v7022 = vmul.f32 %v6969, 1.442695
        %v7023 = vpow.pop %v7022
        %v7024 = vmul.f32 %v6970, 1.442695
        %v7025 = vpow.pop %v7024
        %v7026 = vmul.f32 %v6971, 1.442695
        %v7027 = vpow.pop %v7026
        %v7028 = vmul.f32 %v6972, 1.442695
        %v7029 = vpow.pop %v7028
        %v7030 = vmul.f32 %v6973, 1.442695
        %v7031 = vpow.pop %v7030
        %v7032 = vmul.f32 %v6974, 1.442695
        %v7033 = vpow.pop %v7032
        %v7034 = vmul.f32 %v6975, 1.442695
        %v7035 = vpow.pop %v7034
        %v7036 = vmul.f32 %v6976, 1.442695
        %v7037 = vpow.pop %v7036
        %v7038 = vmul.f32 %v6977, 1.442695
        %v7039 = vpow.pop %v7038
        %v7040 = vmul.f32 %v6978, 1.442695
        %v7041 = vpow.pop %v7040
        %v7042 = vmul.f32 %v6979, 1.442695
        %v7043 = vpow.pop %v7042
        %v7044 = vadd.f32 %v6981, 1.0
        %v7045 = vadd.f32 %v6983, 1.0
        %v7046 = vadd.f32 %v6985, 1.0
        %v7047 = vadd.f32 %v6987, 1.0
        %v7048 = vadd.f32 %v6989, 1.0
        %v7049 = vadd.f32 %v6991, 1.0
        %v7050 = vadd.f32 %v6993, 1.0
        %v7051 = vadd.f32 %v6995, 1.0
        %v7052 = vadd.f32 %v6997, 1.0
        %v7053 = vadd.f32 %v6999, 1.0
        %v7054 = vadd.f32 %v7001, 1.0
        %v7055 = vadd.f32 %v7003, 1.0
        %v7056 = vadd.f32 %v7005, 1.0
        %v7057 = vadd.f32 %v7007, 1.0
        %v7058 = vadd.f32 %v7009, 1.0
        %v7059 = vadd.f32 %v7011, 1.0
        %v7060 = vadd.f32 %v7013, 1.0
        %v7061 = vadd.f32 %v7015, 1.0
        %v7062 = vadd.f32 %v7017, 1.0
        %v7063 = vadd.f32 %v7019, 1.0
        %v7064 = vadd.f32 %v7021, 1.0
        %v7065 = vadd.f32 %v7023, 1.0
        %v7066 = vadd.f32 %v7025, 1.0
        %v7067 = vadd.f32 %v7027, 1.0
        %v7068 = vadd.f32 %v7029, 1.0
        %v7069 = vadd.f32 %v7031, 1.0
        %v7070 = vadd.f32 %v7033, 1.0
        %v7071 = vadd.f32 %v7035, 1.0
        %v7072 = vadd.f32 %v7037, 1.0
        %v7073 = vadd.f32 %v7039, 1.0
        %v7074 = vadd.f32 %v7041, 1.0
        %v7075 = vadd.f32 %v7043, 1.0
        %v7076 = vrcp.pop %v7044
        %v7077 = vmul.f32 1.0, %v7076
        %v7078 = vrcp.pop %v7045
        %v7079 = vmul.f32 1.0, %v7078
        %v7080 = vrcp.pop %v7046
        %v7081 = vmul.f32 1.0, %v7080
        %v7082 = vrcp.pop %v7047
        %v7083 = vmul.f32 1.0, %v7082
        %v7084 = vrcp.pop %v7048
        %v7085 = vmul.f32 1.0, %v7084
        %v7086 = vrcp.pop %v7049
        %v7087 = vmul.f32 1.0, %v7086
        %v7088 = vrcp.pop %v7050
        %v7089 = vmul.f32 1.0, %v7088
        %v7090 = vrcp.pop %v7051
        %v7091 = vmul.f32 1.0, %v7090
        %v7092 = vrcp.pop %v7052
        %v7093 = vmul.f32 1.0, %v7092
        %v7094 = vrcp.pop %v7053
        %v7095 = vmul.f32 1.0, %v7094
        %v7096 = vrcp.pop %v7054
        %v7097 = vmul.f32 1.0, %v7096
        %v7098 = vrcp.pop %v7055
        %v7099 = vmul.f32 1.0, %v7098
        %v7100 = vrcp.pop %v7056
        %v7101 = vmul.f32 1.0, %v7100
        %v7102 = vrcp.pop %v7057
        %v7103 = vmul.f32 1.0, %v7102
        %v7104 = vrcp.pop %v7058
        %v7105 = vmul.f32 1.0, %v7104
        %v7106 = vrcp.pop %v7059
        %v7107 = vmul.f32 1.0, %v7106
        %v7108 = vrcp.pop %v7060
        %v7109 = vmul.f32 1.0, %v7108
        %v7110 = vrcp.pop %v7061
        %v7111 = vmul.f32 1.0, %v7110
        %v7112 = vrcp.pop %v7062
        %v7113 = vmul.f32 1.0, %v7112
        %v7114 = vrcp.pop %v7063
        %v7115 = vmul.f32 1.0, %v7114
        %v7116 = vrcp.pop %v7064
        %v7117 = vmul.f32 1.0, %v7116
        %v7118 = vrcp.pop %v7065
        %v7119 = vmul.f32 1.0, %v7118
        %v7120 = vrcp.pop %v7066
        %v7121 = vmul.f32 1.0, %v7120
        %v7122 = vrcp.pop %v7067
        %v7123 = vmul.f32 1.0, %v7122
        %v7124 = vrcp.pop %v7068
        %v7125 = vmul.f32 1.0, %v7124
        %v7126 = vrcp.pop %v7069
        %v7127 = vmul.f32 1.0, %v7126
        %v7128 = vrcp.pop %v7070
        %v7129 = vmul.f32 1.0, %v7128
        %v7130 = vrcp.pop %v7071
        %v7131 = vmul.f32 1.0, %v7130
        %v7132 = vrcp.pop %v7072
        %v7133 = vmul.f32 1.0, %v7132
        %v7134 = vrcp.pop %v7073
        %v7135 = vmul.f32 1.0, %v7134
        %v7136 = vrcp.pop %v7074
        %v7137 = vmul.f32 1.0, %v7136
        %v7138 = vrcp.pop %v7075
        %v7139 = vmul.f32 1.0, %v7138
        %v7140 = vlaneseq
        %v7141 = vand.u32 %v7140, 127
        %vm7142 = vcmp.lt.s32.totalorder %v7141, 3
        %v7143 = vsel %vm7142, %v7077, %v5654
        %v7144 = vsel %vm7142, %v7079, %v5655
        %v7145 = vsel %vm7142, %v7081, %v5656
        %v7146 = vsel %vm7142, %v7083, %v5657
        %v7147 = vsel %vm7142, %v7085, %v5658
        %v7148 = vsel %vm7142, %v7087, %v5659
        %v7149 = vsel %vm7142, %v7089, %v5660
        %v7150 = vsel %vm7142, %v7091, %v5661
        %v7151 = vsel %vm7142, %v7093, %v5662
        %v7152 = vsel %vm7142, %v7095, %v5663
        %v7153 = vsel %vm7142, %v7097, %v5664
        %v7154 = vsel %vm7142, %v7099, %v5665
        %v7155 = vsel %vm7142, %v7101, %v5666
        %v7156 = vsel %vm7142, %v7103, %v5667
        %v7157 = vsel %vm7142, %v7105, %v5668
        %v7158 = vsel %vm7142, %v7107, %v5669
        %v7159 = vsel %vm7142, %v7109, %v5670
        %v7160 = vsel %vm7142, %v7111, %v5671
        %v7161 = vsel %vm7142, %v7113, %v5672
        %v7162 = vsel %vm7142, %v7115, %v5673
        %v7163 = vsel %vm7142, %v7117, %v5674
        %v7164 = vsel %vm7142, %v7119, %v5675
        %v7165 = vsel %vm7142, %v7121, %v5676
        %v7166 = vsel %vm7142, %v7123, %v5677
        %v7167 = vsel %vm7142, %v7125, %v5678
        %v7168 = vsel %vm7142, %v7127, %v5679
        %v7169 = vsel %vm7142, %v7129, %v5680
        %v7170 = vsel %vm7142, %v7131, %v5681
        %v7171 = vsel %vm7142, %v7133, %v5682
        %v7172 = vsel %vm7142, %v7135, %v5683
        %v7173 = vsel %vm7142, %v7137, %v5684
        %v7174 = vsel %vm7142, %v7139, %v5685
        %7175 = vst [vmem:[%s1025] sm:$0xff] %v7143
        %7176 = vst [vmem:[%s1025 + $0x8] sm:$0xff] %v7144
        %7177 = vst [vmem:[%s1025 + $0x10] sm:$0xff] %v7145
        %7178 = vst [vmem:[%s1025 + $0x18] sm:$0xff] %v7146
        %7179 = vst [vmem:[%s1025 + $0x20] sm:$0xff] %v7147
        %7180 = vst [vmem:[%s1025 + $0x28] sm:$0xff] %v7148
        %7181 = vst [vmem:[%s1025 + $0x30] sm:$0xff] %v7149
        %7182 = vst [vmem:[%s1025 + $0x38] sm:$0xff] %v7150
        %7183 = vst [vmem:[%s1025 + $0x40] sm:$0xff] %v7151
        %7184 = vst [vmem:[%s1025 + $0x48] sm:$0xff] %v7152
        %7185 = vst [vmem:[%s1025 + $0x50] sm:$0xff] %v7153
        %7186 = vst [vmem:[%s1025 + $0x58] sm:$0xff] %v7154
        %7187 = vst [vmem:[%s1025 + $0x60] sm:$0xff] %v7155
        %7188 = vst [vmem:[%s1025 + $0x68] sm:$0xff] %v7156
        %7189 = vst [vmem:[%s1025 + $0x70] sm:$0xff] %v7157
        %7190 = vst [vmem:[%s1025 + $0x78] sm:$0xff] %v7158
        %7191 = vst [vmem:[%s1025 + $0x80] sm:$0xff] %v7159
        %7192 = vst [vmem:[%s1025 + $0x88] sm:$0xff] %v7160
        %7193 = vst [vmem:[%s1025 + $0x90] sm:$0xff] %v7161
        %7194 = vst [vmem:[%s1025 + $0x98] sm:$0xff] %v7162
        %7195 = vst [vmem:[%s1025 + $0xa0] sm:$0xff] %v7163
        %7196 = vst [vmem:[%s1025 + $0xa8] sm:$0xff] %v7164
        %7197 = vst [vmem:[%s1025 + $0xb0] sm:$0xff] %v7165
        %7198 = vst [vmem:[%s1025 + $0xb8] sm:$0xff] %v7166
        %7199 = vst [vmem:[%s1025 + $0xc0] sm:$0xff] %v7167
        %7200 = vst [vmem:[%s1025 + $0xc8] sm:$0xff] %v7168
        %7201 = vst [vmem:[%s1025 + $0xd0] sm:$0xff] %v7169
        %7202 = vst [vmem:[%s1025 + $0xd8] sm:$0xff] %v7170
        %7203 = vst [vmem:[%s1025 + $0xe0] sm:$0xff] %v7171
        %7204 = vst [vmem:[%s1025 + $0xe8] sm:$0xff] %v7172
        %7205 = vst [vmem:[%s1025 + $0xf0] sm:$0xff] %v7173
        %7206 = vst [vmem:[%s1025 + $0xf8] sm:$0xff] %v7174
        %s7207 = sand.u32 %s631, 1
        %s7208 = scalar_lea.sflag [#allocation4], %s7207
        %s7209 = sand.u32 %s631, 1
        %s7210 = smul.addr %s7209, 256
        %s7211 = scalar_lea.vmem [#allocation25], %s7210
        // Predicated region
        $region185: #{tpu_custom_call.1} parent=127 // pred_check
          %p7212 = pneg %p641
        $region186: #{tpu_custom_call.1} parent=127 // pred_check_branch
          %7214 = sbr.rel (%p7212) target = $region188
        $region187: #{tpu_custom_call.1} parent=127 // pred_region
          %s7215 = smul.u32 32, %s51
          %s7217 = ssub.s32 4096, 4096
          %7218 = vsyncadd %s7208, %s7217
          %s7219 = smul.addr %s7215, 128
          %s7220 = scalar_lea.hbm %s27, %s7219
          %s7221 = sshll.u32 %s7211, 4
          %s7222 = int_to_ptr.vmem [resolvable:$true] %s7221
          %7227 = dma.vmem_to_hbm [thread:$0]  %s7222, 4096, %s7220, %s7208, 128, 128, 8
        $region188: #{tpu_custom_call.1} parent=127 // pred_fallthru
          _
      $region128: #{tpu_custom_call.1} parent=5 // pred_fallthru
        _
      %p7228 = scmp.le.s32.totalorder 2, %s46
      // Predicated region
      $region189: #{tpu_custom_call.1} parent=5 // pred_check
        %p7229 = pneg %p7228
      $region190: #{tpu_custom_call.1} parent=5 // pred_check_branch
        %7231 = sbr.rel (%p7229) target = $region192
      $region191: #{tpu_custom_call.1} parent=5 // pred_region
        %s7232 = ssub.s32 %s46, 2
        // Predicated region
        $region193: #{tpu_custom_call.1} parent=191 // pred_check
          %p7233 = pneg %p647
        $region194: #{tpu_custom_call.1} parent=191 // pred_check_branch
          %7235 = sbr.rel (%p7233) target = $region196
        $region195: #{tpu_custom_call.1} parent=191 // pred_region
          %s7236 = sand.u32 %s632, 1
          %s7237 = scalar_lea.sflag [#allocation4], %s7236
          %s7238 = sand.u32 %s632, 1
          %s7239 = smul.addr %s7238, 256
          %s7240 = scalar_lea.vmem [#allocation25], %s7239
          %7241 = dma.done %s7237, 4096
        $region196: #{tpu_custom_call.1} parent=191 // pred_fallthru
          _
      $region192: #{tpu_custom_call.1} parent=5 // pred_fallthru
        _
    $region6: #{tpu_custom_call.1} parent=1 // loop_footer
      %s50 = sadd.s32 1, %s46
    $region7: #{tpu_custom_call.1} parent=1 // loop_footer_branch
      %45 = sbr.rel target = $region3
    $region8: #{tpu_custom_call.1} parent=1 // loop_exit
      _
    %7242 = vsyncpa [#allocation3], 1
    %s7243 = scalar_lea.sflag [#allocation3], 1
    %7244 = vsyncpa %s7243, 1
    %7245 = vsyncpa [#allocation6], 1
    %7246 = vsyncpa [#allocation9], 1
    %7247 = vsyncpa [#allocation12], 1
    %7248 = vsyncpa [#allocation15], 1
    %7249 = vsyncpa [#allocation18], 1
    %7250 = vsyncpa [#allocation21], 1
    %7251 = vsyncpa [#allocation24], 1
    %7252 = vsyncpa [#allocation4], 1
    %s7253 = scalar_lea.sflag [#allocation4], 1
    %7254 = vsyncpa %s7253, 1

</llo_original>
